<compile_context>
chip_gen: v6e
topology: v6e:2x2x1
jax: 0.10.0
libtpu: 0.0.40
codegen_flags: <defaults>
</compile_context>

<pallas_src>
import jax
import jax.numpy as jnp
from jax import lax
import numpy as np
from jax.experimental import pallas as pl
from jax.experimental.pallas import tpu as pltpu

EPS = 1e-5


def _resnet_block_kernel(x_ref, w1_ref, b1_ref, w2_ref, b2_ref, o_ref):
    # x_ref : (nb, H, W, C)  activations, channels-last (C on the lane axis)
    # w*_ref: (3, 3*C, C)    folded conv weights [dy, kw*C + c_in, c_out], bf16
    # b*_ref: (1, C)         float32 biases
    nb, H, W, C = x_ref.shape
    HW = H * W

    w1 = w1_ref[...]
    w2 = w2_ref[...]
    cdt = w1.dtype                                   # MXU feed dtype (bf16)
    b1 = b1_ref[...].astype(jnp.float32)
    b2 = b2_ref[...].astype(jnp.float32)

    # Column-position masks for the reflect fix-up of the sublane rolls.
    # Hoisted out of the sample loop (broadcast_in_dim is not CSE'd by JAX).
    col = lax.broadcasted_iota(jnp.int32, (HW, 1), 0) % W
    first_col = col == 0
    last_col = col == (W - 1)

    def expand_columns(a2):
        """(HW, C) f32 -> (HW, 3C) bf16: kw = 0,1,2 taps with reflect at the edges.

        The column shifts are sublane (XLU) rotations of the row-major flattened
        array; the only wrong entries of the rotation are exactly the reflect
        boundary positions, which are patched from the opposite rotation.
        """
        up = pltpu.roll(a2, shift=1, axis=0)          # up[p]   = a2[p-1]
        down = pltpu.roll(a2, shift=HW - 1, axis=0)   # down[p] = a2[p+1]
        left = jnp.where(first_col, down, up)         # column j-1; reflect(-1) = 1
        right = jnp.where(last_col, up, down)         # column j+1; reflect(W) = W-2
        return jnp.concatenate(
            [left.astype(cdt), a2.astype(cdt), right.astype(cdt)], axis=-1)

    def conv3x3(a2, w, b):
        """a2: (HW, C) f32 -> (HW, C) f32 conv output with bias added."""
        aw = expand_columns(a2)                                    # (HW, 3C) bf16
        # Reflect-pad the rows (dy taps) once: ((H+2)*W, 3C).  Each dy operand is
        # a static, sublane-aligned slice of this buffer (no per-dy copies).
        awp = jnp.concatenate(
            [aw[W:2 * W], aw, aw[HW - 2 * W:HW - W]], axis=0)
        acc = b                                                    # (1, C) f32, broadcasts
        for dy in range(3):                                        # deep-K matmuls, K = 3C
            acc = acc + jnp.dot(awp[dy * W:dy * W + HW], w[dy],
                                preferred_element_type=jnp.float32)
        return acc

    def instance_norm(a):
        """Single-pass instance norm over (HW, C); statistics in f32."""
        inv_n = 1.0 / HW
        s1 = jnp.sum(a, axis=0, keepdims=True)
        s2 = jnp.sum(a * a, axis=0, keepdims=True)
        mean = s1 * inv_n
        var = jnp.maximum(s2 * inv_n - mean * mean, 0.0)           # clamp cancellation
        return (a - mean) * lax.rsqrt(var + EPS)

    def body(s, carry):
        x2 = x_ref[s].reshape(HW, C).astype(jnp.float32)           # (HW, C)
        h = instance_norm(conv3x3(x2, w1, b1))
        h = jnp.maximum(h, 0.0)                                    # ReLU
        h = instance_norm(conv3x3(h, w2, b2))
        o_ref[s] = (x2 + h).reshape(H, W, C).astype(o_ref.dtype)   # skip connection
        return carry

    # fori_loop bounds the per-sample intermediate live ranges; unroll=True keeps
    # LLO scheduling visibility for small nb.
    lax.fori_loop(0, nb, body, None, unroll=True)


def _pick_samples_per_step(batch):
    # Amortize the ~0.35 us per-grid-step overhead, but keep >= 2 grid steps so
    # dimension_semantics=("parallel",) can split the batch across v7x's 2 TCs.
    cap = max(1, min(8, batch // 2))
    for nb in range(cap, 0, -1):
        if batch % nb == 0:
            return nb
    return 1


def _vmem_limit_bytes():
    # Generation-aware scoped-VMEM limit (v5e/v6e: 128 MiB, v7x: 64 MiB per TC),
    # leaving headroom for compiler-internal scratch.
    try:
        cap = int(pltpu.get_tpu_info().vmem_capacity_bytes)
    except Exception:                      # query unavailable -> conservative (v7x)
        cap = 64 * 1024 * 1024
    return int(max(32 << 20, min(cap - (16 << 20), 100 << 20)))


def resnet_block_nhwc(x_nhwc, w1, b1, w2, b2, *, samples_per_step=None,
                      compute_dtype=jnp.bfloat16):
    """x_nhwc: (N, H, W, C); w*: (3, 3, C, C) HWIO; b*: (C,) or (1, C)."""
    N, H, W, C = x_nhwc.shape
    assert H >= 2 and W >= 2, "ReflectionPad2d(1) requires H, W >= 2"
    # NOTE: W % 8 == 0 keeps the (H*W, C) flattening / sublane slices aligned
    # (perf only; correctness holds for any W).

    nb = _pick_samples_per_step(N) if samples_per_step is None else samples_per_step
    assert N % nb == 0, "samples_per_step must divide the batch"

    # bf16 MXU feed; pre-fold the dx taps into the weight K dimension: (3, 3C, C).
    w1 = jnp.asarray(w1).astype(compute_dtype).reshape(3, 3 * C, C)
    w2 = jnp.asarray(w2).astype(compute_dtype).reshape(3, 3 * C, C)
    b1 = jnp.asarray(b1).reshape(1, C).astype(jnp.float32)
    b2 = jnp.asarray(b2).reshape(1, C).astype(jnp.float32)

    act_itemsize = x_nhwc.dtype.itemsize
    w_itemsize = jnp.dtype(compute_dtype).itemsize
    flops = 2 * N * H * W * (2 * 9 * C * C)               # two 3x3 convs on the MXU
    bytes_accessed = ((2 * N * H * W * C) * act_itemsize
                      + (2 * 9 * C * C) * w_itemsize + 2 * C * 4)

    def _build_call(const_pipeline_mode):
        extra = ({} if const_pipeline_mode is None
                 else {"pipeline_mode": const_pipeline_mode})
        grid_spec = pltpu.PrefetchScalarGridSpec(
            num_scalar_prefetch=0,
            grid=(N // nb,),
            in_specs=[
                pl.BlockSpec((nb, H, W, C), lambda n: (n, 0, 0, 0)),
                # Weights / biases: constant index_map -> fetched once, resident.
                pl.BlockSpec((3, 3 * C, C), lambda n: (0, 0, 0), **extra),
                pl.BlockSpec((1, C), lambda n: (0, 0), **extra),
                pl.BlockSpec((3, 3 * C, C), lambda n: (0, 0, 0), **extra),
                pl.BlockSpec((1, C), lambda n: (0, 0), **extra),
            ],
            out_specs=pl.BlockSpec((nb, H, W, C), lambda n: (n, 0, 0, 0)),
        )
        return pl.pallas_call(
            _resnet_block_kernel,
            out_shape=jax.ShapeDtypeStruct((N, H, W, C), x_nhwc.dtype),
            grid_spec=grid_spec,
            compiler_params=pltpu.CompilerParams(
                dimension_semantics=("parallel",),        # batch axis -> megacore / 2 TCs
                vmem_limit_bytes=_vmem_limit_bytes(),
            ),
            cost_estimate=pl.CostEstimate(
                flops=flops, transcendentals=0, bytes_accessed=bytes_accessed),
        )

    try:
        # Constant-index weights/biases gain nothing from double buffering:
        # single-buffer them to halve their resident VMEM.
        return _build_call(pl.Buffered(1))(x_nhwc, w1, b1, w2, b2)
    except Exception:
        # pipeline_mode unsupported on this jax build -> default double buffering.
        return _build_call(None)(x_nhwc, w1, b1, w2, b2)


def resnet_block(x_nchw, w1, b1, w2, b2, **kwargs):
    # PyTorch-facing wrapper: NCHW in, NCHW out.
    x_nhwc = jnp.transpose(x_nchw, (0, 2, 3, 1))
    y_nhwc = resnet_block_nhwc(x_nhwc, w1, b1, w2, b2, **kwargs)
    return jnp.transpose(y_nhwc, (0, 3, 1, 2))


def _reference_nhwc(x, w1, b1, w2, b2):
    """Pure-JAX f32 reference (matches the PyTorch module semantics)."""
    def pad_reflect(a):
        return jnp.pad(a, ((0, 0), (1, 1), (1, 1), (0, 0)), mode='reflect')

    def conv(a, w, b):
        return lax.conv_general_dilated(
            a, w, window_strides=(1, 1), padding='VALID',
            dimension_numbers=('NHWC', 'HWIO', 'NHWC')) + b.reshape(1, 1, 1, -1)

    def inorm(a):
        m = jnp.mean(a, axis=(1, 2), keepdims=True)
        v = jnp.mean((a - m) ** 2, axis=(1, 2), keepdims=True)
        return (a - m) * lax.rsqrt(v + EPS)

    h = jnp.maximum(inorm(conv(pad_reflect(x), w1, b1)), 0.0)
    h = inorm(conv(pad_reflect(h), w2, b2))
    return x + h


if __name__ == "__main__":
    # dim = 128: lane-dense channels-last layout (real CycleGAN blocks use 256);
    # spatial kept small so the script runs quickly (H, W >= 2 required, same as
    # nn.ReflectionPad2d(1)).
    N, C, H, W = 2, 128, 16, 16
    key = jax.random.PRNGKey(0)
    kx, kw1, kb1, kw2, kb2 = jax.random.split(key, 5)

    x = jax.random.normal(kx, (N, C, H, W), dtype=jnp.float32)

    # Deterministic synthetic Conv2d(dim, dim, 3, bias=True) parameters (HWIO).
    fan_in = C * 3 * 3
    scale = 1.0 / np.sqrt(fan_in)
    w1 = jax.random.uniform(kw1, (3, 3, C, C), jnp.float32, -scale, scale)
    b1 = jax.random.uniform(kb1, (1, C), jnp.float32, -scale, scale)
    w2 = jax.random.uniform(kw2, (3, 3, C, C), jnp.float32, -scale, scale)
    b2 = jax.random.uniform(kb2, (1, C), jnp.float32, -scale, scale)

    out = resnet_block(x, w1, b1, w2, b2)
    out = jax.block_until_ready(out)

    # Sanity check against a pure-JAX f32 reference.  Tolerance is sized for the
    # bf16 MXU feed (a reflect/boundary bug would produce O(1) errors).
    ref = _reference_nhwc(jnp.transpose(x, (0, 2, 3, 1)), w1, b1, w2, b2)
    ref = jnp.transpose(ref, (0, 3, 1, 2))
    assert out.shape == x.shape and out.dtype == x.dtype
    np.testing.assert_allclose(np.asarray(out), np.asarray(ref),
                               rtol=5e-2, atol=1e-1)

    print("KERNEL_OK")
</pallas_src>

<mosaic_0001>
module attributes {stable_mosaic.version = 11 : i64} {
  func.func @_resnet_block_kernel(%arg0: i32, %arg1: memref<1x16x16x128xf32, #tpu.memory_space<vmem>>, %arg2: memref<3x384x128xbf16, #tpu.memory_space<vmem>>, %arg3: memref<1x128xf32, #tpu.memory_space<vmem>>, %arg4: memref<3x384x128xbf16, #tpu.memory_space<vmem>>, %arg5: memref<1x128xf32, #tpu.memory_space<vmem>>, %arg6: memref<1x16x16x128xf32, #tpu.memory_space<vmem>>) attributes {dimension_semantics = [#tpu.dimension_semantics<parallel>], iteration_bounds = array<i64: 2>, scalar_prefetch = 0 : i64, scratch_operands = 0 : i64, tpu.core_type = #tpu.core_type<tc>, window_params = [{transform_indices = @transform_0, window_bounds = array<i64: 1, 16, 16, 128>}, {pipeline_mode = #tpu.pipeline_mode<synchronous>, transform_indices = @transform_1, window_bounds = array<i64: 3, 384, 128>}, {pipeline_mode = #tpu.pipeline_mode<synchronous>, transform_indices = @transform_2, window_bounds = array<i64: 1, 128>}, {pipeline_mode = #tpu.pipeline_mode<synchronous>, transform_indices = @transform_3, window_bounds = array<i64: 3, 384, 128>}, {pipeline_mode = #tpu.pipeline_mode<synchronous>, transform_indices = @transform_4, window_bounds = array<i64: 1, 128>}, {transform_indices = @transform_5, window_bounds = array<i64: 1, 16, 16, 128>}]} {
    %c0 = arith.constant 0 : index
    %c0_0 = arith.constant 0 : index
    %c0_1 = arith.constant 0 : index
    %0 = vector.load %arg2[%c0, %c0_0, %c0_1] : memref<3x384x128xbf16, #tpu.memory_space<vmem>>, vector<3x384x128xbf16>
    %c0_2 = arith.constant 0 : index
    %c0_3 = arith.constant 0 : index
    %c0_4 = arith.constant 0 : index
    %1 = vector.load %arg4[%c0_2, %c0_3, %c0_4] : memref<3x384x128xbf16, #tpu.memory_space<vmem>>, vector<3x384x128xbf16>
    %c0_5 = arith.constant 0 : index
    %c0_6 = arith.constant 0 : index
    %2 = vector.load %arg3[%c0_5, %c0_6] : memref<1x128xf32, #tpu.memory_space<vmem>>, vector<1x128xf32>
    %c0_7 = arith.constant 0 : index
    %c0_8 = arith.constant 0 : index
    %3 = vector.load %arg5[%c0_7, %c0_8] : memref<1x128xf32, #tpu.memory_space<vmem>>, vector<1x128xf32>
    %4 = tpu.iota {dimensions = array<i32: 0>} : vector<256x1xi32>
    %c16_i32 = arith.constant 16 : i32
    %c0_i32 = arith.constant 0 : i32
    %5 = arith.cmpi eq, %c16_i32, %c0_i32 : i32
    %c1_i32 = arith.constant 1 : i32
    %6 = arith.select %5, %c1_i32, %c16_i32 : i32
    %7 = vector.broadcast %6 : i32 to vector<256x1xi32>
    %8 = arith.remsi %4, %7 : vector<256x1xi32>
    %c0_i32_9 = arith.constant 0 : i32
    %9 = vector.broadcast %c0_i32_9 : i32 to vector<256x1xi32>
    %10 = arith.cmpi ne, %8, %9 : vector<256x1xi32>
    %c0_i32_10 = arith.constant 0 : i32
    %11 = vector.broadcast %c0_i32_10 : i32 to vector<256x1xi32>
    %12 = arith.cmpi slt, %8, %11 : vector<256x1xi32>
    %c0_i32_11 = arith.constant 0 : i32
    %13 = arith.cmpi slt, %6, %c0_i32_11 : i32
    %14 = vector.broadcast %13 : i1 to vector<256x1xi1>
    %15 = vector.broadcast %14 : vector<256x1xi1> to vector<256x1xi1>
    %16 = arith.xori %12, %15 : vector<256x1xi1>
    %17 = arith.andi %16, %10 : vector<256x1xi1>
    %18 = vector.broadcast %6 : i32 to vector<256x1xi32>
    %19 = arith.addi %8, %18 : vector<256x1xi32>
    %20 = arith.select %17, %19, %8 : vector<256x1xi1>, vector<256x1xi32>
    %c0_i32_12 = arith.constant 0 : i32
    %21 = vector.broadcast %c0_i32_12 : i32 to vector<256x1xi32>
    %22 = arith.cmpi eq, %20, %21 : vector<256x1xi32>
    %c15_i32 = arith.constant 15 : i32
    %23 = vector.broadcast %c15_i32 : i32 to vector<256x1xi32>
    %24 = arith.cmpi eq, %20, %23 : vector<256x1xi32>
    %c0_i32_13 = arith.constant 0 : i32
    %25 = arith.index_cast %c0_i32_13 : i32 to index
    %c0_14 = arith.constant 0 : index
    %c0_15 = arith.constant 0 : index
    %c0_16 = arith.constant 0 : index
    %26 = vector.load %arg1[%25, %c0_14, %c0_15, %c0_16] : memref<1x16x16x128xf32, #tpu.memory_space<vmem>>, vector<1x16x16x128xf32>
    %27 = vector.shape_cast %26 : vector<1x16x16x128xf32> to vector<16x16x128xf32>
    %28 = vector.shape_cast %27 : vector<16x16x128xf32> to vector<256x128xf32>
    %c1_i32_17 = arith.constant 1 : i32
    %29 = tpu.dynamic_rotate %28 by %c1_i32_17 dim 0 : vector<256x128xf32>, i32 -> vector<256x128xf32>
    %c255_i32 = arith.constant 255 : i32
    %30 = tpu.dynamic_rotate %28 by %c255_i32 dim 0 : vector<256x128xf32>, i32 -> vector<256x128xf32>
    %31 = vector.shape_cast %22 : vector<256x1xi1> to vector<256x1xi1>
    %32 = vector.broadcast %31 : vector<256x1xi1> to vector<256x128xi1>
    %33 = arith.select %32, %30, %29 : vector<256x128xi1>, vector<256x128xf32>
    %34 = vector.shape_cast %24 : vector<256x1xi1> to vector<256x1xi1>
    %35 = vector.broadcast %34 : vector<256x1xi1> to vector<256x128xi1>
    %36 = arith.select %35, %29, %30 : vector<256x128xi1>, vector<256x128xf32>
    %37 = arith.truncf %33 : vector<256x128xf32> to vector<256x128xbf16>
    %38 = arith.truncf %28 : vector<256x128xf32> to vector<256x128xbf16>
    %39 = arith.truncf %36 : vector<256x128xf32> to vector<256x128xbf16>
    %40 = tpu.concatenate %37, %38, %39 in 1 : vector<256x128xbf16>, vector<256x128xbf16>, vector<256x128xbf16> -> vector<256x384xbf16>
    %41 = vector.extract_strided_slice %40 {offsets = [16, 0], sizes = [16, 384], strides = [1, 1]} : vector<256x384xbf16> to vector<16x384xbf16>
    %42 = vector.extract_strided_slice %40 {offsets = [224, 0], sizes = [16, 384], strides = [1, 1]} : vector<256x384xbf16> to vector<16x384xbf16>
    %43 = tpu.concatenate %41, %40, %42 in 0 : vector<16x384xbf16>, vector<256x384xbf16>, vector<16x384xbf16> -> vector<288x384xbf16>
    %44 = vector.extract_strided_slice %43 {offsets = [0, 0], sizes = [256, 384], strides = [1, 1]} : vector<288x384xbf16> to vector<256x384xbf16>
    %45 = vector.extract_strided_slice %0 {offsets = [0, 0, 0], sizes = [1, 384, 128], strides = [1, 1, 1]} : vector<3x384x128xbf16> to vector<1x384x128xbf16>
    %46 = vector.shape_cast %45 : vector<1x384x128xbf16> to vector<384x128xbf16>
    %cst = arith.constant dense<0.000000e+00> : vector<256x128xf32>
    %47 = tpu.matmul %44, %46, %cst {dimension_numbers = #tpu.dot_dimension_numbers<[1], [0], [0], [1], [0, 0, 1, 1], [], []>} : vector<256x384xbf16>, vector<384x128xbf16>, vector<256x128xf32> -> vector<256x128xf32>
    %48 = vector.broadcast %2 : vector<1x128xf32> to vector<256x128xf32>
    %49 = arith.addf %48, %47 : vector<256x128xf32>
    %50 = vector.extract_strided_slice %43 {offsets = [16, 0], sizes = [256, 384], strides = [1, 1]} : vector<288x384xbf16> to vector<256x384xbf16>
    %51 = vector.extract_strided_slice %0 {offsets = [1, 0, 0], sizes = [1, 384, 128], strides = [1, 1, 1]} : vector<3x384x128xbf16> to vector<1x384x128xbf16>
    %52 = vector.shape_cast %51 : vector<1x384x128xbf16> to vector<384x128xbf16>
    %cst_18 = arith.constant dense<0.000000e+00> : vector<256x128xf32>
    %53 = tpu.matmul %50, %52, %cst_18 {dimension_numbers = #tpu.dot_dimension_numbers<[1], [0], [0], [1], [0, 0, 1, 1], [], []>} : vector<256x384xbf16>, vector<384x128xbf16>, vector<256x128xf32> -> vector<256x128xf32>
    %54 = arith.addf %49, %53 : vector<256x128xf32>
    %55 = vector.extract_strided_slice %43 {offsets = [32, 0], sizes = [256, 384], strides = [1, 1]} : vector<288x384xbf16> to vector<256x384xbf16>
    %56 = vector.extract_strided_slice %0 {offsets = [2, 0, 0], sizes = [1, 384, 128], strides = [1, 1, 1]} : vector<3x384x128xbf16> to vector<1x384x128xbf16>
    %57 = vector.shape_cast %56 : vector<1x384x128xbf16> to vector<384x128xbf16>
    %cst_19 = arith.constant dense<0.000000e+00> : vector<256x128xf32>
    %58 = tpu.matmul %55, %57, %cst_19 {dimension_numbers = #tpu.dot_dimension_numbers<[1], [0], [0], [1], [0, 0, 1, 1], [], []>} : vector<256x384xbf16>, vector<384x128xbf16>, vector<256x128xf32> -> vector<256x128xf32>
    %59 = arith.addf %54, %58 : vector<256x128xf32>
    %cst_20 = arith.constant dense<0.000000e+00> : vector<128xf32>
    %60 = vector.multi_reduction <add>, %59, %cst_20 [0] : vector<256x128xf32> to vector<128xf32>
    %61 = vector.shape_cast %60 : vector<128xf32> to vector<1x128xf32>
    %62 = arith.mulf %59, %59 : vector<256x128xf32>
    %cst_21 = arith.constant dense<0.000000e+00> : vector<128xf32>
    %63 = vector.multi_reduction <add>, %62, %cst_21 [0] : vector<256x128xf32> to vector<128xf32>
    %64 = vector.shape_cast %63 : vector<128xf32> to vector<1x128xf32>
    %cst_22 = arith.constant 3.906250e-03 : f32
    %65 = vector.broadcast %cst_22 : f32 to vector<1x128xf32>
    %66 = arith.mulf %61, %65 : vector<1x128xf32>
    %cst_23 = arith.constant 3.906250e-03 : f32
    %67 = vector.broadcast %cst_23 : f32 to vector<1x128xf32>
    %68 = arith.mulf %64, %67 : vector<1x128xf32>
    %69 = arith.mulf %66, %66 : vector<1x128xf32>
    %70 = arith.subf %68, %69 : vector<1x128xf32>
    %cst_24 = arith.constant 0.000000e+00 : f32
    %71 = vector.broadcast %cst_24 : f32 to vector<1x128xf32>
    %72 = arith.maximumf %70, %71 : vector<1x128xf32>
    %73 = vector.broadcast %66 : vector<1x128xf32> to vector<256x128xf32>
    %74 = arith.subf %59, %73 : vector<256x128xf32>
    %cst_25 = arith.constant 9.99999974E-6 : f32
    %75 = vector.broadcast %cst_25 : f32 to vector<1x128xf32>
    %76 = arith.addf %72, %75 : vector<1x128xf32>
    %77 = math.rsqrt %76 : vector<1x128xf32>
    %78 = vector.broadcast %77 : vector<1x128xf32> to vector<256x128xf32>
    %79 = arith.mulf %74, %78 : vector<256x128xf32>
    %cst_26 = arith.constant 0.000000e+00 : f32
    %80 = vector.broadcast %cst_26 : f32 to vector<256x128xf32>
    %81 = arith.maximumf %79, %80 : vector<256x128xf32>
    %c1_i32_27 = arith.constant 1 : i32
    %82 = tpu.dynamic_rotate %81 by %c1_i32_27 dim 0 : vector<256x128xf32>, i32 -> vector<256x128xf32>
    %c255_i32_28 = arith.constant 255 : i32
    %83 = tpu.dynamic_rotate %81 by %c255_i32_28 dim 0 : vector<256x128xf32>, i32 -> vector<256x128xf32>
    %84 = vector.shape_cast %22 : vector<256x1xi1> to vector<256x1xi1>
    %85 = vector.broadcast %84 : vector<256x1xi1> to vector<256x128xi1>
    %86 = arith.select %85, %83, %82 : vector<256x128xi1>, vector<256x128xf32>
    %87 = vector.shape_cast %24 : vector<256x1xi1> to vector<256x1xi1>
    %88 = vector.broadcast %87 : vector<256x1xi1> to vector<256x128xi1>
    %89 = arith.select %88, %82, %83 : vector<256x128xi1>, vector<256x128xf32>
    %90 = arith.truncf %86 : vector<256x128xf32> to vector<256x128xbf16>
    %91 = arith.truncf %81 : vector<256x128xf32> to vector<256x128xbf16>
    %92 = arith.truncf %89 : vector<256x128xf32> to vector<256x128xbf16>
    %93 = tpu.concatenate %90, %91, %92 in 1 : vector<256x128xbf16>, vector<256x128xbf16>, vector<256x128xbf16> -> vector<256x384xbf16>
    %94 = vector.extract_strided_slice %93 {offsets = [16, 0], sizes = [16, 384], strides = [1, 1]} : vector<256x384xbf16> to vector<16x384xbf16>
    %95 = vector.extract_strided_slice %93 {offsets = [224, 0], sizes = [16, 384], strides = [1, 1]} : vector<256x384xbf16> to vector<16x384xbf16>
    %96 = tpu.concatenate %94, %93, %95 in 0 : vector<16x384xbf16>, vector<256x384xbf16>, vector<16x384xbf16> -> vector<288x384xbf16>
    %97 = vector.extract_strided_slice %96 {offsets = [0, 0], sizes = [256, 384], strides = [1, 1]} : vector<288x384xbf16> to vector<256x384xbf16>
    %98 = vector.extract_strided_slice %1 {offsets = [0, 0, 0], sizes = [1, 384, 128], strides = [1, 1, 1]} : vector<3x384x128xbf16> to vector<1x384x128xbf16>
    %99 = vector.shape_cast %98 : vector<1x384x128xbf16> to vector<384x128xbf16>
    %cst_29 = arith.constant dense<0.000000e+00> : vector<256x128xf32>
    %100 = tpu.matmul %97, %99, %cst_29 {dimension_numbers = #tpu.dot_dimension_numbers<[1], [0], [0], [1], [0, 0, 1, 1], [], []>} : vector<256x384xbf16>, vector<384x128xbf16>, vector<256x128xf32> -> vector<256x128xf32>
    %101 = vector.broadcast %3 : vector<1x128xf32> to vector<256x128xf32>
    %102 = arith.addf %101, %100 : vector<256x128xf32>
    %103 = vector.extract_strided_slice %96 {offsets = [16, 0], sizes = [256, 384], strides = [1, 1]} : vector<288x384xbf16> to vector<256x384xbf16>
    %104 = vector.extract_strided_slice %1 {offsets = [1, 0, 0], sizes = [1, 384, 128], strides = [1, 1, 1]} : vector<3x384x128xbf16> to vector<1x384x128xbf16>
    %105 = vector.shape_cast %104 : vector<1x384x128xbf16> to vector<384x128xbf16>
    %cst_30 = arith.constant dense<0.000000e+00> : vector<256x128xf32>
    %106 = tpu.matmul %103, %105, %cst_30 {dimension_numbers = #tpu.dot_dimension_numbers<[1], [0], [0], [1], [0, 0, 1, 1], [], []>} : vector<256x384xbf16>, vector<384x128xbf16>, vector<256x128xf32> -> vector<256x128xf32>
    %107 = arith.addf %102, %106 : vector<256x128xf32>
    %108 = vector.extract_strided_slice %96 {offsets = [32, 0], sizes = [256, 384], strides = [1, 1]} : vector<288x384xbf16> to vector<256x384xbf16>
    %109 = vector.extract_strided_slice %1 {offsets = [2, 0, 0], sizes = [1, 384, 128], strides = [1, 1, 1]} : vector<3x384x128xbf16> to vector<1x384x128xbf16>
    %110 = vector.shape_cast %109 : vector<1x384x128xbf16> to vector<384x128xbf16>
    %cst_31 = arith.constant dense<0.000000e+00> : vector<256x128xf32>
    %111 = tpu.matmul %108, %110, %cst_31 {dimension_numbers = #tpu.dot_dimension_numbers<[1], [0], [0], [1], [0, 0, 1, 1], [], []>} : vector<256x384xbf16>, vector<384x128xbf16>, vector<256x128xf32> -> vector<256x128xf32>
    %112 = arith.addf %107, %111 : vector<256x128xf32>
    %cst_32 = arith.constant dense<0.000000e+00> : vector<128xf32>
    %113 = vector.multi_reduction <add>, %112, %cst_32 [0] : vector<256x128xf32> to vector<128xf32>
    %114 = vector.shape_cast %113 : vector<128xf32> to vector<1x128xf32>
    %115 = arith.mulf %112, %112 : vector<256x128xf32>
    %cst_33 = arith.constant dense<0.000000e+00> : vector<128xf32>
    %116 = vector.multi_reduction <add>, %115, %cst_33 [0] : vector<256x128xf32> to vector<128xf32>
    %117 = vector.shape_cast %116 : vector<128xf32> to vector<1x128xf32>
    %cst_34 = arith.constant 3.906250e-03 : f32
    %118 = vector.broadcast %cst_34 : f32 to vector<1x128xf32>
    %119 = arith.mulf %114, %118 : vector<1x128xf32>
    %cst_35 = arith.constant 3.906250e-03 : f32
    %120 = vector.broadcast %cst_35 : f32 to vector<1x128xf32>
    %121 = arith.mulf %117, %120 : vector<1x128xf32>
    %122 = arith.mulf %119, %119 : vector<1x128xf32>
    %123 = arith.subf %121, %122 : vector<1x128xf32>
    %cst_36 = arith.constant 0.000000e+00 : f32
    %124 = vector.broadcast %cst_36 : f32 to vector<1x128xf32>
    %125 = arith.maximumf %123, %124 : vector<1x128xf32>
    %126 = vector.broadcast %119 : vector<1x128xf32> to vector<256x128xf32>
    %127 = arith.subf %112, %126 : vector<256x128xf32>
    %cst_37 = arith.constant 9.99999974E-6 : f32
    %128 = vector.broadcast %cst_37 : f32 to vector<1x128xf32>
    %129 = arith.addf %125, %128 : vector<1x128xf32>
    %130 = math.rsqrt %129 : vector<1x128xf32>
    %131 = vector.broadcast %130 : vector<1x128xf32> to vector<256x128xf32>
    %132 = arith.mulf %127, %131 : vector<256x128xf32>
    %133 = arith.addf %28, %132 : vector<256x128xf32>
    %134 = vector.shape_cast %133 : vector<256x128xf32> to vector<16x16x128xf32>
    %135 = arith.index_cast %c0_i32_13 : i32 to index
    %c0_38 = arith.constant 0 : index
    %c0_39 = arith.constant 0 : index
    %c0_40 = arith.constant 0 : index
    %136 = vector.load %arg6[%135, %c0_38, %c0_39, %c0_40] : memref<1x16x16x128xf32, #tpu.memory_space<vmem>>, vector<1x16x16x128xf32>
    %137 = vector.shape_cast %136 : vector<1x16x16x128xf32> to vector<16x16x128xf32>
    %138 = vector.shape_cast %134 : vector<16x16x128xf32> to vector<1x16x16x128xf32>
    tpu.vector_store %arg6[%135, %c0_38, %c0_39, %c0_40], %138 {strides = array<i32>} : memref<1x16x16x128xf32, #tpu.memory_space<vmem>>, vector<1x16x16x128xf32>,
    %c1_i32_41 = arith.constant 1 : i32
    return
  }
  func.func @transform_0(%arg0: i32) -> (i32, i32, i32, i32) {
    %c0_i32 = arith.constant 0 : i32
    %c0_i32_0 = arith.constant 0 : i32
    %c0_i32_1 = arith.constant 0 : i32
    %c0_i32_2 = arith.constant 0 : i32
    return %arg0, %c0_i32, %c0_i32_0, %c0_i32_1 : i32, i32, i32, i32
  }
  func.func @transform_1(%arg0: i32) -> (i32, i32, i32) {
    %c0_i32 = arith.constant 0 : i32
    %c0_i32_0 = arith.constant 0 : i32
    %c0_i32_1 = arith.constant 0 : i32
    %c0_i32_2 = arith.constant 0 : i32
    return %c0_i32, %c0_i32_0, %c0_i32_1 : i32, i32, i32
  }
  func.func @transform_2(%arg0: i32) -> (i32, i32) {
    %c0_i32 = arith.constant 0 : i32
    %c0_i32_0 = arith.constant 0 : i32
    %c0_i32_1 = arith.constant 0 : i32
    return %c0_i32, %c0_i32_0 : i32, i32
  }
  func.func @transform_3(%arg0: i32) -> (i32, i32, i32) {
    %c0_i32 = arith.constant 0 : i32
    %c0_i32_0 = arith.constant 0 : i32
    %c0_i32_1 = arith.constant 0 : i32
    %c0_i32_2 = arith.constant 0 : i32
    return %c0_i32, %c0_i32_0, %c0_i32_1 : i32, i32, i32
  }
  func.func @transform_4(%arg0: i32) -> (i32, i32) {
    %c0_i32 = arith.constant 0 : i32
    %c0_i32_0 = arith.constant 0 : i32
    %c0_i32_1 = arith.constant 0 : i32
    return %c0_i32, %c0_i32_0 : i32, i32
  }
  func.func @transform_5(%arg0: i32) -> (i32, i32, i32, i32) {
    %c0_i32 = arith.constant 0 : i32
    %c0_i32_0 = arith.constant 0 : i32
    %c0_i32_1 = arith.constant 0 : i32
    %c0_i32_2 = arith.constant 0 : i32
    return %arg0, %c0_i32, %c0_i32_0, %c0_i32_1 : i32, i32, i32, i32
  }
}

module attributes {stable_mosaic.version = 11 : i64} {
  func.func @_resnet_block_kernel(%arg0: i32, %arg1: memref<1x16x16x128xf32, #tpu.memory_space<vmem>>, %arg2: memref<3x384x128xbf16, #tpu.memory_space<vmem>>, %arg3: memref<1x128xf32, #tpu.memory_space<vmem>>, %arg4: memref<3x384x128xbf16, #tpu.memory_space<vmem>>, %arg5: memref<1x128xf32, #tpu.memory_space<vmem>>, %arg6: memref<1x16x16x128xf32, #tpu.memory_space<vmem>>) attributes {dimension_semantics = [#tpu.dimension_semantics<parallel>], iteration_bounds = array<i64: 2>, scalar_prefetch = 0 : i64, scratch_operands = 0 : i64, tpu.core_type = #tpu.core_type<tc>, window_params = [{transform_indices = @transform_0, window_bounds = array<i64: 1, 16, 16, 128>}, {pipeline_mode = #tpu.pipeline_mode<synchronous>, transform_indices = @transform_1, window_bounds = array<i64: 3, 384, 128>}, {pipeline_mode = #tpu.pipeline_mode<synchronous>, transform_indices = @transform_2, window_bounds = array<i64: 1, 128>}, {pipeline_mode = #tpu.pipeline_mode<synchronous>, transform_indices = @transform_3, window_bounds = array<i64: 3, 384, 128>}, {pipeline_mode = #tpu.pipeline_mode<synchronous>, transform_indices = @transform_4, window_bounds = array<i64: 1, 128>}, {transform_indices = @transform_5, window_bounds = array<i64: 1, 16, 16, 128>}]} {
    %c0 = arith.constant 0 : index
    %c0_0 = arith.constant 0 : index
    %c0_1 = arith.constant 0 : index
    %0 = vector.load %arg2[%c0, %c0_0, %c0_1] : memref<3x384x128xbf16, #tpu.memory_space<vmem>>, vector<3x384x128xbf16>
    %c0_2 = arith.constant 0 : index
    %c0_3 = arith.constant 0 : index
    %c0_4 = arith.constant 0 : index
    %1 = vector.load %arg4[%c0_2, %c0_3, %c0_4] : memref<3x384x128xbf16, #tpu.memory_space<vmem>>, vector<3x384x128xbf16>
    %c0_5 = arith.constant 0 : index
    %c0_6 = arith.constant 0 : index
    %2 = vector.load %arg3[%c0_5, %c0_6] : memref<1x128xf32, #tpu.memory_space<vmem>>, vector<1x128xf32>
    %c0_7 = arith.constant 0 : index
    %c0_8 = arith.constant 0 : index
    %3 = vector.load %arg5[%c0_7, %c0_8] : memref<1x128xf32, #tpu.memory_space<vmem>>, vector<1x128xf32>
    %4 = tpu.iota {dimensions = array<i32: 0>} : vector<256x1xi32>
    %c16_i32 = arith.constant 16 : i32
    %c0_i32 = arith.constant 0 : i32
    %5 = arith.cmpi eq, %c16_i32, %c0_i32 : i32
    %c1_i32 = arith.constant 1 : i32
    %6 = arith.select %5, %c1_i32, %c16_i32 : i32
    %7 = vector.broadcast %6 : i32 to vector<256x1xi32>
    %8 = arith.remsi %4, %7 : vector<256x1xi32>
    %c0_i32_9 = arith.constant 0 : i32
    %9 = vector.broadcast %c0_i32_9 : i32 to vector<256x1xi32>
    %10 = arith.cmpi ne, %8, %9 : vector<256x1xi32>
    %c0_i32_10 = arith.constant 0 : i32
    %11 = vector.broadcast %c0_i32_10 : i32 to vector<256x1xi32>
    %12 = arith.cmpi slt, %8, %11 : vector<256x1xi32>
    %c0_i32_11 = arith.constant 0 : i32
    %13 = arith.cmpi slt, %6, %c0_i32_11 : i32
    %14 = vector.broadcast %13 : i1 to vector<256x1xi1>
    %15 = vector.broadcast %14 : vector<256x1xi1> to vector<256x1xi1>
    %16 = arith.xori %12, %15 : vector<256x1xi1>
    %17 = arith.andi %16, %10 : vector<256x1xi1>
    %18 = vector.broadcast %6 : i32 to vector<256x1xi32>
    %19 = arith.addi %8, %18 : vector<256x1xi32>
    %20 = arith.select %17, %19, %8 : vector<256x1xi1>, vector<256x1xi32>
    %c0_i32_12 = arith.constant 0 : i32
    %21 = vector.broadcast %c0_i32_12 : i32 to vector<256x1xi32>
    %22 = arith.cmpi eq, %20, %21 : vector<256x1xi32>
    %c15_i32 = arith.constant 15 : i32
    %23 = vector.broadcast %c15_i32 : i32 to vector<256x1xi32>
    %24 = arith.cmpi eq, %20, %23 : vector<256x1xi32>
    %c0_i32_13 = arith.constant 0 : i32
    %25 = arith.index_cast %c0_i32_13 : i32 to index
    %c0_14 = arith.constant 0 : index
    %c0_15 = arith.constant 0 : index
    %c0_16 = arith.constant 0 : index
    %26 = vector.load %arg1[%25, %c0_14, %c0_15, %c0_16] : memref<1x16x16x128xf32, #tpu.memory_space<vmem>>, vector<1x16x16x128xf32>
    %27 = vector.shape_cast %26 : vector<1x16x16x128xf32> to vector<16x16x128xf32>
    %28 = vector.shape_cast %27 : vector<16x16x128xf32> to vector<256x128xf32>
    %c1_i32_17 = arith.constant 1 : i32
    %29 = tpu.dynamic_rotate %28 by %c1_i32_17 dim 0 : vector<256x128xf32>, i32 -> vector<256x128xf32>
    %c255_i32 = arith.constant 255 : i32
    %30 = tpu.dynamic_rotate %28 by %c255_i32 dim 0 : vector<256x128xf32>, i32 -> vector<256x128xf32>
    %31 = vector.shape_cast %22 : vector<256x1xi1> to vector<256x1xi1>
    %32 = vector.broadcast %31 : vector<256x1xi1> to vector<256x128xi1>
    %33 = arith.select %32, %30, %29 : vector<256x128xi1>, vector<256x128xf32>
    %34 = vector.shape_cast %24 : vector<256x1xi1> to vector<256x1xi1>
    %35 = vector.broadcast %34 : vector<256x1xi1> to vector<256x128xi1>
    %36 = arith.select %35, %29, %30 : vector<256x128xi1>, vector<256x128xf32>
    %37 = arith.truncf %33 : vector<256x128xf32> to vector<256x128xbf16>
    %38 = arith.truncf %28 : vector<256x128xf32> to vector<256x128xbf16>
    %39 = arith.truncf %36 : vector<256x128xf32> to vector<256x128xbf16>
    %40 = tpu.concatenate %37, %38, %39 in 1 : vector<256x128xbf16>, vector<256x128xbf16>, vector<256x128xbf16> -> vector<256x384xbf16>
    %41 = vector.extract_strided_slice %40 {offsets = [16, 0], sizes = [16, 384], strides = [1, 1]} : vector<256x384xbf16> to vector<16x384xbf16>
    %42 = vector.extract_strided_slice %40 {offsets = [224, 0], sizes = [16, 384], strides = [1, 1]} : vector<256x384xbf16> to vector<16x384xbf16>
    %43 = tpu.concatenate %41, %40, %42 in 0 : vector<16x384xbf16>, vector<256x384xbf16>, vector<16x384xbf16> -> vector<288x384xbf16>
    %44 = vector.extract_strided_slice %43 {offsets = [0, 0], sizes = [256, 384], strides = [1, 1]} : vector<288x384xbf16> to vector<256x384xbf16>
    %45 = vector.extract_strided_slice %0 {offsets = [0, 0, 0], sizes = [1, 384, 128], strides = [1, 1, 1]} : vector<3x384x128xbf16> to vector<1x384x128xbf16>
    %46 = vector.shape_cast %45 : vector<1x384x128xbf16> to vector<384x128xbf16>
    %cst = arith.constant dense<0.000000e+00> : vector<256x128xf32>
    %47 = tpu.matmul %44, %46, %cst {dimension_numbers = #tpu.dot_dimension_numbers<[1], [0], [0], [1], [0, 0, 1, 1], [], []>} : vector<256x384xbf16>, vector<384x128xbf16>, vector<256x128xf32> -> vector<256x128xf32>
    %48 = vector.broadcast %2 : vector<1x128xf32> to vector<256x128xf32>
    %49 = arith.addf %48, %47 : vector<256x128xf32>
    %50 = vector.extract_strided_slice %43 {offsets = [16, 0], sizes = [256, 384], strides = [1, 1]} : vector<288x384xbf16> to vector<256x384xbf16>
    %51 = vector.extract_strided_slice %0 {offsets = [1, 0, 0], sizes = [1, 384, 128], strides = [1, 1, 1]} : vector<3x384x128xbf16> to vector<1x384x128xbf16>
    %52 = vector.shape_cast %51 : vector<1x384x128xbf16> to vector<384x128xbf16>
    %cst_18 = arith.constant dense<0.000000e+00> : vector<256x128xf32>
    %53 = tpu.matmul %50, %52, %cst_18 {dimension_numbers = #tpu.dot_dimension_numbers<[1], [0], [0], [1], [0, 0, 1, 1], [], []>} : vector<256x384xbf16>, vector<384x128xbf16>, vector<256x128xf32> -> vector<256x128xf32>
    %54 = arith.addf %49, %53 : vector<256x128xf32>
    %55 = vector.extract_strided_slice %43 {offsets = [32, 0], sizes = [256, 384], strides = [1, 1]} : vector<288x384xbf16> to vector<256x384xbf16>
    %56 = vector.extract_strided_slice %0 {offsets = [2, 0, 0], sizes = [1, 384, 128], strides = [1, 1, 1]} : vector<3x384x128xbf16> to vector<1x384x128xbf16>
    %57 = vector.shape_cast %56 : vector<1x384x128xbf16> to vector<384x128xbf16>
    %cst_19 = arith.constant dense<0.000000e+00> : vector<256x128xf32>
    %58 = tpu.matmul %55, %57, %cst_19 {dimension_numbers = #tpu.dot_dimension_numbers<[1], [0], [0], [1], [0, 0, 1, 1], [], []>} : vector<256x384xbf16>, vector<384x128xbf16>, vector<256x128xf32> -> vector<256x128xf32>
    %59 = arith.addf %54, %58 : vector<256x128xf32>
    %cst_20 = arith.constant dense<0.000000e+00> : vector<128xf32>
    %60 = vector.multi_reduction <add>, %59, %cst_20 [0] : vector<256x128xf32> to vector<128xf32>
    %61 = vector.shape_cast %60 : vector<128xf32> to vector<1x128xf32>
    %62 = arith.mulf %59, %59 : vector<256x128xf32>
    %cst_21 = arith.constant dense<0.000000e+00> : vector<128xf32>
    %63 = vector.multi_reduction <add>, %62, %cst_21 [0] : vector<256x128xf32> to vector<128xf32>
    %64 = vector.shape_cast %63 : vector<128xf32> to vector<1x128xf32>
    %cst_22 = arith.constant 3.906250e-03 : f32
    %65 = vector.broadcast %cst_22 : f32 to vector<1x128xf32>
    %66 = arith.mulf %61, %65 : vector<1x128xf32>
    %cst_23 = arith.constant 3.906250e-03 : f32
    %67 = vector.broadcast %cst_23 : f32 to vector<1x128xf32>
    %68 = arith.mulf %64, %67 : vector<1x128xf32>
    %69 = arith.mulf %66, %66 : vector<1x128xf32>
    %70 = arith.subf %68, %69 : vector<1x128xf32>
    %cst_24 = arith.constant 0.000000e+00 : f32
    %71 = vector.broadcast %cst_24 : f32 to vector<1x128xf32>
    %72 = arith.maximumf %70, %71 : vector<1x128xf32>
    %73 = vector.broadcast %66 : vector<1x128xf32> to vector<256x128xf32>
    %74 = arith.subf %59, %73 : vector<256x128xf32>
    %cst_25 = arith.constant 9.99999974E-6 : f32
    %75 = vector.broadcast %cst_25 : f32 to vector<1x128xf32>
    %76 = arith.addf %72, %75 : vector<1x128xf32>
    %77 = math.rsqrt %76 : vector<1x128xf32>
    %78 = vector.broadcast %77 : vector<1x128xf32> to vector<256x128xf32>
    %79 = arith.mulf %74, %78 : vector<256x128xf32>
    %cst_26 = arith.constant 0.000000e+00 : f32
    %80 = vector.broadcast %cst_26 : f32 to vector<256x128xf32>
    %81 = arith.maximumf %79, %80 : vector<256x128xf32>
    %c1_i32_27 = arith.constant 1 : i32
    %82 = tpu.dynamic_rotate %81 by %c1_i32_27 dim 0 : vector<256x128xf32>, i32 -> vector<256x128xf32>
    %c255_i32_28 = arith.constant 255 : i32
    %83 = tpu.dynamic_rotate %81 by %c255_i32_28 dim 0 : vector<256x128xf32>, i32 -> vector<256x128xf32>
    %84 = vector.shape_cast %22 : vector<256x1xi1> to vector<256x1xi1>
    %85 = vector.broadcast %84 : vector<256x1xi1> to vector<256x128xi1>
    %86 = arith.select %85, %83, %82 : vector<256x128xi1>, vector<256x128xf32>
    %87 = vector.shape_cast %24 : vector<256x1xi1> to vector<256x1xi1>
    %88 = vector.broadcast %87 : vector<256x1xi1> to vector<256x128xi1>
    %89 = arith.select %88, %82, %83 : vector<256x128xi1>, vector<256x128xf32>
    %90 = arith.truncf %86 : vector<256x128xf32> to vector<256x128xbf16>
    %91 = arith.truncf %81 : vector<256x128xf32> to vector<256x128xbf16>
    %92 = arith.truncf %89 : vector<256x128xf32> to vector<256x128xbf16>
    %93 = tpu.concatenate %90, %91, %92 in 1 : vector<256x128xbf16>, vector<256x128xbf16>, vector<256x128xbf16> -> vector<256x384xbf16>
    %94 = vector.extract_strided_slice %93 {offsets = [16, 0], sizes = [16, 384], strides = [1, 1]} : vector<256x384xbf16> to vector<16x384xbf16>
    %95 = vector.extract_strided_slice %93 {offsets = [224, 0], sizes = [16, 384], strides = [1, 1]} : vector<256x384xbf16> to vector<16x384xbf16>
    %96 = tpu.concatenate %94, %93, %95 in 0 : vector<16x384xbf16>, vector<256x384xbf16>, vector<16x384xbf16> -> vector<288x384xbf16>
    %97 = vector.extract_strided_slice %96 {offsets = [0, 0], sizes = [256, 384], strides = [1, 1]} : vector<288x384xbf16> to vector<256x384xbf16>
    %98 = vector.extract_strided_slice %1 {offsets = [0, 0, 0], sizes = [1, 384, 128], strides = [1, 1, 1]} : vector<3x384x128xbf16> to vector<1x384x128xbf16>
    %99 = vector.shape_cast %98 : vector<1x384x128xbf16> to vector<384x128xbf16>
    %cst_29 = arith.constant dense<0.000000e+00> : vector<256x128xf32>
    %100 = tpu.matmul %97, %99, %cst_29 {dimension_numbers = #tpu.dot_dimension_numbers<[1], [0], [0], [1], [0, 0, 1, 1], [], []>} : vector<256x384xbf16>, vector<384x128xbf16>, vector<256x128xf32> -> vector<256x128xf32>
    %101 = vector.broadcast %3 : vector<1x128xf32> to vector<256x128xf32>
    %102 = arith.addf %101, %100 : vector<256x128xf32>
    %103 = vector.extract_strided_slice %96 {offsets = [16, 0], sizes = [256, 384], strides = [1, 1]} : vector<288x384xbf16> to vector<256x384xbf16>
    %104 = vector.extract_strided_slice %1 {offsets = [1, 0, 0], sizes = [1, 384, 128], strides = [1, 1, 1]} : vector<3x384x128xbf16> to vector<1x384x128xbf16>
    %105 = vector.shape_cast %104 : vector<1x384x128xbf16> to vector<384x128xbf16>
    %cst_30 = arith.constant dense<0.000000e+00> : vector<256x128xf32>
    %106 = tpu.matmul %103, %105, %cst_30 {dimension_numbers = #tpu.dot_dimension_numbers<[1], [0], [0], [1], [0, 0, 1, 1], [], []>} : vector<256x384xbf16>, vector<384x128xbf16>, vector<256x128xf32> -> vector<256x128xf32>
    %107 = arith.addf %102, %106 : vector<256x128xf32>
    %108 = vector.extract_strided_slice %96 {offsets = [32, 0], sizes = [256, 384], strides = [1, 1]} : vector<288x384xbf16> to vector<256x384xbf16>
    %109 = vector.extract_strided_slice %1 {offsets = [2, 0, 0], sizes = [1, 384, 128], strides = [1, 1, 1]} : vector<3x384x128xbf16> to vector<1x384x128xbf16>
    %110 = vector.shape_cast %109 : vector<1x384x128xbf16> to vector<384x128xbf16>
    %cst_31 = arith.constant dense<0.000000e+00> : vector<256x128xf32>
    %111 = tpu.matmul %108, %110, %cst_31 {dimension_numbers = #tpu.dot_dimension_numbers<[1], [0], [0], [1], [0, 0, 1, 1], [], []>} : vector<256x384xbf16>, vector<384x128xbf16>, vector<256x128xf32> -> vector<256x128xf32>
    %112 = arith.addf %107, %111 : vector<256x128xf32>
    %cst_32 = arith.constant dense<0.000000e+00> : vector<128xf32>
    %113 = vector.multi_reduction <add>, %112, %cst_32 [0] : vector<256x128xf32> to vector<128xf32>
    %114 = vector.shape_cast %113 : vector<128xf32> to vector<1x128xf32>
    %115 = arith.mulf %112, %112 : vector<256x128xf32>
    %cst_33 = arith.constant dense<0.000000e+00> : vector<128xf32>
    %116 = vector.multi_reduction <add>, %115, %cst_33 [0] : vector<256x128xf32> to vector<128xf32>
    %117 = vector.shape_cast %116 : vector<128xf32> to vector<1x128xf32>
    %cst_34 = arith.constant 3.906250e-03 : f32
    %118 = vector.broadcast %cst_34 : f32 to vector<1x128xf32>
    %119 = arith.mulf %114, %118 : vector<1x128xf32>
    %cst_35 = arith.constant 3.906250e-03 : f32
    %120 = vector.broadcast %cst_35 : f32 to vector<1x128xf32>
    %121 = arith.mulf %117, %120 : vector<1x128xf32>
    %122 = arith.mulf %119, %119 : vector<1x128xf32>
    %123 = arith.subf %121, %122 : vector<1x128xf32>
    %cst_36 = arith.constant 0.000000e+00 : f32
    %124 = vector.broadcast %cst_36 : f32 to vector<1x128xf32>
    %125 = arith.maximumf %123, %124 : vector<1x128xf32>
    %126 = vector.broadcast %119 : vector<1x128xf32> to vector<256x128xf32>
    %127 = arith.subf %112, %126 : vector<256x128xf32>
    %cst_37 = arith.constant 9.99999974E-6 : f32
    %128 = vector.broadcast %cst_37 : f32 to vector<1x128xf32>
    %129 = arith.addf %125, %128 : vector<1x128xf32>
    %130 = math.rsqrt %129 : vector<1x128xf32>
    %131 = vector.broadcast %130 : vector<1x128xf32> to vector<256x128xf32>
    %132 = arith.mulf %127, %131 : vector<256x128xf32>
    %133 = arith.addf %28, %132 : vector<256x128xf32>
    %134 = vector.shape_cast %133 : vector<256x128xf32> to vector<16x16x128xf32>
    %135 = arith.index_cast %c0_i32_13 : i32 to index
    %c0_38 = arith.constant 0 : index
    %c0_39 = arith.constant 0 : index
    %c0_40 = arith.constant 0 : index
    %136 = vector.load %arg6[%135, %c0_38, %c0_39, %c0_40] : memref<1x16x16x128xf32, #tpu.memory_space<vmem>>, vector<1x16x16x128xf32>
    %137 = vector.shape_cast %136 : vector<1x16x16x128xf32> to vector<16x16x128xf32>
    %138 = vector.shape_cast %134 : vector<16x16x128xf32> to vector<1x16x16x128xf32>
    tpu.vector_store %arg6[%135, %c0_38, %c0_39, %c0_40], %138 {strides = array<i32>} : memref<1x16x16x128xf32, #tpu.memory_space<vmem>>, vector<1x16x16x128xf32>,
    %c1_i32_41 = arith.constant 1 : i32
    return
  }
  func.func @transform_0(%arg0: i32) -> (i32, i32, i32, i32) {
    %c0_i32 = arith.constant 0 : i32
    %c0_i32_0 = arith.constant 0 : i32
    %c0_i32_1 = arith.constant 0 : i32
    %c0_i32_2 = arith.constant 0 : i32
    return %arg0, %c0_i32, %c0_i32_0, %c0_i32_1 : i32, i32, i32, i32
  }
  func.func @transform_1(%arg0: i32) -> (i32, i32, i32) {
    %c0_i32 = arith.constant 0 : i32
    %c0_i32_0 = arith.constant 0 : i32
    %c0_i32_1 = arith.constant 0 : i32
    %c0_i32_2 = arith.constant 0 : i32
    return %c0_i32, %c0_i32_0, %c0_i32_1 : i32, i32, i32
  }
  func.func @transform_2(%arg0: i32) -> (i32, i32) {
    %c0_i32 = arith.constant 0 : i32
    %c0_i32_0 = arith.constant 0 : i32
    %c0_i32_1 = arith.constant 0 : i32
    return %c0_i32, %c0_i32_0 : i32, i32
  }
  func.func @transform_3(%arg0: i32) -> (i32, i32, i32) {
    %c0_i32 = arith.constant 0 : i32
    %c0_i32_0 = arith.constant 0 : i32
    %c0_i32_1 = arith.constant 0 : i32
    %c0_i32_2 = arith.constant 0 : i32
    return %c0_i32, %c0_i32_0, %c0_i32_1 : i32, i32, i32
  }
  func.func @transform_4(%arg0: i32) -> (i32, i32) {
    %c0_i32 = arith.constant 0 : i32
    %c0_i32_0 = arith.constant 0 : i32
    %c0_i32_1 = arith.constant 0 : i32
    return %c0_i32, %c0_i32_0 : i32, i32
  }
  func.func @transform_5(%arg0: i32) -> (i32, i32, i32, i32) {
    %c0_i32 = arith.constant 0 : i32
    %c0_i32_0 = arith.constant 0 : i32
    %c0_i32_1 = arith.constant 0 : i32
    %c0_i32_2 = arith.constant 0 : i32
    return %arg0, %c0_i32, %c0_i32_0, %c0_i32_1 : i32, i32, i32, i32
  }
}

</mosaic_0001>

<llo_original>
// kernel: tpu_custom_call.1
$region0: #{tpu_custom_call.1}
  #allocation0 [shape = 'u32[]', space=smem, size = 0x4, offset = 0x4, fixed_abs, tag = 'smem constant byte address 0x4 - core index']
  #allocation1 [shape = 'u32[144,128]{1,0:T(1,128)}', space=vmem, size = 0x12000, scoped, tag = 'internal scratch']
  %s0 = inlined_call_operand.hbm [shape: f32[2,16,16,128], index: 0, kind: input, shape index: {}]
  %s1 = inlined_call_operand.hbm [shape: bf16[3,384,128], index: 1, kind: input, shape index: {}]
  %s2 = inlined_call_operand.vmem [shape: f32[1,128], index: 2, kind: input, shape index: {}]
  %s3 = inlined_call_operand.hbm [shape: bf16[3,384,128], index: 3, kind: input, shape index: {}]
  %s4 = inlined_call_operand.vmem [shape: f32[1,128], index: 4, kind: input, shape index: {}]
  %s5 = inlined_call_operand.hbm [shape: f32[2,16,16,128], index: 5, kind: output, shape index: {}]
  %s6 = sld [smem:[#allocation0]]
  $region65: #{tpu_custom_call.1} parent=0
    _
  %s8 = ssub.s32 1, %s6
  %s9 = scalar_select 0, %s8, %s6
  $region1: #{tpu_custom_call.1} parent=0
    #allocation2 [shape = 'u8[262144]{0}', space=vmem, size = 0x40000, scoped, tag = 'input window, operand 0']
    #allocation3 [shape = 's32[2]{0}', space=sflag, size = 0x8, scoped, tag = 'scoped memory for tpu_custom_call.1']
    #allocation4 [shape = 's32[2]{0}', space=sflag, size = 0x8, scoped, tag = 'scoped memory for tpu_custom_call.1']
    #allocation5 [shape = 'u8[294912]{0}', space=vmem, size = 0x48000, scoped, tag = 'input window, operand 1, single buffered']
    #allocation6 [shape = 's32[1]{0}', space=sflag, size = 0x4, scoped, tag = 'scoped memory for tpu_custom_call.1']
    #allocation7 [shape = 'u8[294912]{0}', space=vmem, size = 0x48000, scoped, tag = 'input window, operand 3, single buffered']
    #allocation8 [shape = 'u8[262144]{0}', space=vmem, size = 0x40000, scoped, tag = 'output window, operand 0']
    %10 = vsyncpa [#allocation3], 0
    %s11 = scalar_lea.sflag [#allocation3], 1
    %12 = vsyncpa %s11, 0
    %13 = vsyncpa [#allocation6], 0
    %14 = vsyncpa [#allocation4], 0
    %s15 = scalar_lea.sflag [#allocation4], 1
    %16 = vsyncpa %s15, 0
    loop: start=0, step=1, limit=4
    $region2: #{tpu_custom_call.1} parent=1 // loop_pre_header
      _
    $region3: #{tpu_custom_call.1} parent=1 // loop_header
      %s18 = sphi 0, %s22
      %p19 = scmp.ge.s32.totalorder %s18, 4
      %s28 = sphi 0, %s30
      %s31 = sphi 0, %s28
      %s32 = sphi 0, %s31
      %s48 = sphi 0, %s32
      %s52 = sphi 0, %s52
      %s54 = sphi 0, %s52
      %s55 = sphi 0, %s54
      %s69 = sphi 0, %s55
      %s73 = sphi 0, %s73
      %s75 = sphi 0, %s73
      %s76 = sphi 0, %s75
      %s90 = sphi 0, %s76
      %s94 = sphi 0, %s94
      %s96 = sphi 0, %s94
      %s97 = sphi 0, %s96
      %s111 = sphi 0, %s97
      %s115 = sphi 0, %s115
      %s117 = sphi 0, %s115
      %s118 = sphi 0, %s117
      %s132 = sphi 0, %s118
      %s138 = sphi 0, %s140
      %s141 = sphi 0, %s138
      %s142 = sphi 0, %s141
      %s158 = sphi 0, %s142
    $region4: #{tpu_custom_call.1} parent=1 // loop_header_branch
      %21 = sbr.rel (%p19) target = $region8
    $region5: #{tpu_custom_call.1} parent=1 // loop_body
      %s23 = ssub.s32 %s18, 1
      %s24 = ssub.s32 %s18, 2
      %s25 = sadd.s32 %s18, 1
      %s26 = ssub.s32 %s18, %s25
      %p27 = scmp.eq.s32.totalorder %s26, 0
      %s29 = sadd.s32 %s28, 1
      %s30 = scalar_select %p27, %s28, %s29
      %p33 = pneg %p27
      %p34 = scmp.eq.s32.totalorder %s18, 1
      %p35 = por %p33, %p34
      %p36 = scmp.ne.s32.totalorder %s28, %s31
      %p37 = scmp.eq.s32.totalorder %s18, 0
      %p38 = por %p36, %p37
      %p39 = scmp.ne.s32.totalorder %s28, %s31
      %p40 = scmp.eq.s32.totalorder %s23, 1
      %p41 = por %p39, %p40
      %p42 = scmp.ne.s32.totalorder %s31, %s32
      %p43 = scmp.eq.s32.totalorder %s23, 0
      %p44 = por %p42, %p43
      %p45 = scmp.ne.s32.totalorder %s31, %s32
      %p46 = scmp.eq.s32.totalorder %s24, 1
      %p47 = por %p45, %p46
      %p49 = scmp.ne.s32.totalorder %s32, %s48
      %p50 = scmp.eq.s32.totalorder %s24, 0
      %p51 = por %p49, %p50
      %s53 = sadd.s32 %s52, 1
      %p56 = scmp.eq.s32.totalorder %s18, 1
      %p57 = scmp.ne.s32.totalorder %s52, %s54
      %p58 = scmp.eq.s32.totalorder %s18, 0
      %p59 = por %p57, %p58
      %p60 = scmp.ne.s32.totalorder %s52, %s54
      %p61 = scmp.eq.s32.totalorder %s23, 1
      %p62 = por %p60, %p61
      %p63 = scmp.ne.s32.totalorder %s54, %s55
      %p64 = scmp.eq.s32.totalorder %s23, 0
      %p65 = por %p63, %p64
      %p66 = scmp.ne.s32.totalorder %s54, %s55
      %p67 = scmp.eq.s32.totalorder %s24, 1
      %p68 = por %p66, %p67
      %p70 = scmp.ne.s32.totalorder %s55, %s69
      %p71 = scmp.eq.s32.totalorder %s24, 0
      %p72 = por %p70, %p71
      %s74 = sadd.s32 %s73, 1
      %p77 = scmp.eq.s32.totalorder %s18, 1
      %p78 = scmp.ne.s32.totalorder %s73, %s75
      %p79 = scmp.eq.s32.totalorder %s18, 0
      %p80 = por %p78, %p79
      %p81 = scmp.ne.s32.totalorder %s73, %s75
      %p82 = scmp.eq.s32.totalorder %s23, 1
      %p83 = por %p81, %p82
      %p84 = scmp.ne.s32.totalorder %s75, %s76
      %p85 = scmp.eq.s32.totalorder %s23, 0
      %p86 = por %p84, %p85
      %p87 = scmp.ne.s32.totalorder %s75, %s76
      %p88 = scmp.eq.s32.totalorder %s24, 1
      %p89 = por %p87, %p88
      %p91 = scmp.ne.s32.totalorder %s76, %s90
      %p92 = scmp.eq.s32.totalorder %s24, 0
      %p93 = por %p91, %p92
      %s95 = sadd.s32 %s94, 1
      %p98 = scmp.eq.s32.totalorder %s18, 1
      %p99 = scmp.ne.s32.totalorder %s94, %s96
      %p100 = scmp.eq.s32.totalorder %s18, 0
      %p101 = por %p99, %p100
      %p102 = scmp.ne.s32.totalorder %s94, %s96
      %p103 = scmp.eq.s32.totalorder %s23, 1
      %p104 = por %p102, %p103
      %p105 = scmp.ne.s32.totalorder %s96, %s97
      %p106 = scmp.eq.s32.totalorder %s23, 0
      %p107 = por %p105, %p106
      %p108 = scmp.ne.s32.totalorder %s96, %s97
      %p109 = scmp.eq.s32.totalorder %s24, 1
      %p110 = por %p108, %p109
      %p112 = scmp.ne.s32.totalorder %s97, %s111
      %p113 = scmp.eq.s32.totalorder %s24, 0
      %p114 = por %p112, %p113
      %s116 = sadd.s32 %s115, 1
      %p119 = scmp.eq.s32.totalorder %s18, 1
      %p120 = scmp.ne.s32.totalorder %s115, %s117
      %p121 = scmp.eq.s32.totalorder %s18, 0
      %p122 = por %p120, %p121
      %p123 = scmp.ne.s32.totalorder %s115, %s117
      %p124 = scmp.eq.s32.totalorder %s23, 1
      %p125 = por %p123, %p124
      %p126 = scmp.ne.s32.totalorder %s117, %s118
      %p127 = scmp.eq.s32.totalorder %s23, 0
      %p128 = por %p126, %p127
      %p129 = scmp.ne.s32.totalorder %s117, %s118
      %p130 = scmp.eq.s32.totalorder %s24, 1
      %p131 = por %p129, %p130
      %p133 = scmp.ne.s32.totalorder %s118, %s132
      %p134 = scmp.eq.s32.totalorder %s24, 0
      %p135 = por %p133, %p134
      %s136 = ssub.s32 %s18, %s25
      %p137 = scmp.eq.s32.totalorder %s136, 0
      %s139 = sadd.s32 %s138, 1
      %s140 = scalar_select %p137, %s138, %s139
      %p143 = pneg %p137
      %p144 = scmp.eq.s32.totalorder %s18, 1
      %p145 = por %p143, %p144
      %p146 = scmp.ne.s32.totalorder %s138, %s141
      %p147 = scmp.eq.s32.totalorder %s18, 0
      %p148 = por %p146, %p147
      %p149 = scmp.ne.s32.totalorder %s138, %s141
      %p150 = scmp.eq.s32.totalorder %s23, 1
      %p151 = por %p149, %p150
      %p152 = scmp.ne.s32.totalorder %s141, %s142
      %p153 = scmp.eq.s32.totalorder %s23, 0
      %p154 = por %p152, %p153
      %p155 = scmp.ne.s32.totalorder %s141, %s142
      %p156 = scmp.eq.s32.totalorder %s24, 1
      %p157 = por %p155, %p156
      %p159 = scmp.ne.s32.totalorder %s142, %s158
      %p160 = scmp.eq.s32.totalorder %s24, 0
      %p161 = por %p159, %p160
      %p162 = scmp.le.s32.totalorder 1, %s18
      %p163 = scmp.lt.s32.totalorder %s18, 3
      %p164 = pnand %p162, %p163
      %p165 = pneg %p164
      // Predicated region
      $region9: #{tpu_custom_call.1} parent=5 // pred_check
        _
      $region10: #{tpu_custom_call.1} parent=5 // pred_check_branch
        %167 = sbr.rel (%p164) target = $region12
      $region11: #{tpu_custom_call.1} parent=5 // pred_region
        %s168 = ssub.s32 %s18, 1
        // Predicated region
        $region13: #{tpu_custom_call.1} parent=11 // pred_check
          %p169 = pneg %p65
        $region14: #{tpu_custom_call.1} parent=11 // pred_check_branch
          %171 = sbr.rel (%p169) target = $region16
        $region15: #{tpu_custom_call.1} parent=11 // pred_region
          %s173 = ssub.s32 9216, 9216
          %174 = vsyncadd [#allocation6], %s173
          %s175 = sshll.u32 [#allocation5], 4
          %s176 = int_to_ptr.vmem [resolvable:$true] %s175
          %181 = dma.hbm_to_vmem [thread:$0]  %s1, 9216, %s176, [#allocation6], 64, 64, 4
        $region16: #{tpu_custom_call.1} parent=11 // pred_fallthru
          _
        // Predicated region
        $region17: #{tpu_custom_call.1} parent=11 // pred_check
          %p182 = pneg %p86
        $region18: #{tpu_custom_call.1} parent=11 // pred_check_branch
          %184 = sbr.rel (%p182) target = $region20
        $region19: #{tpu_custom_call.1} parent=11 // pred_region
          _
        $region20: #{tpu_custom_call.1} parent=11 // pred_fallthru
          _
        // Predicated region
        $region21: #{tpu_custom_call.1} parent=11 // pred_check
          %p185 = pneg %p107
        $region22: #{tpu_custom_call.1} parent=11 // pred_check_branch
          %187 = sbr.rel (%p185) target = $region24
        $region23: #{tpu_custom_call.1} parent=11 // pred_region
          %s189 = ssub.s32 9216, 9216
          %190 = vsyncadd [#allocation6], %s189
          %s191 = sshll.u32 [#allocation7], 4
          %s192 = int_to_ptr.vmem [resolvable:$true] %s191
          %197 = dma.hbm_to_vmem [thread:$0]  %s3, 9216, %s192, [#allocation6], 64, 64, 4
        $region24: #{tpu_custom_call.1} parent=11 // pred_fallthru
          _
        // Predicated region
        $region25: #{tpu_custom_call.1} parent=11 // pred_check
          %p198 = pneg %p128
        $region26: #{tpu_custom_call.1} parent=11 // pred_check_branch
          %200 = sbr.rel (%p198) target = $region28
        $region27: #{tpu_custom_call.1} parent=11 // pred_region
          _
        $region28: #{tpu_custom_call.1} parent=11 // pred_fallthru
          _
      $region12: #{tpu_custom_call.1} parent=5 // pred_fallthru
        _
      %p201 = scmp.lt.s32.totalorder %s18, 2
      // Predicated region
      $region29: #{tpu_custom_call.1} parent=5 // pred_check
        %p202 = pneg %p201
      $region30: #{tpu_custom_call.1} parent=5 // pred_check_branch
        %204 = sbr.rel (%p202) target = $region32
      $region31: #{tpu_custom_call.1} parent=5 // pred_region
        // Predicated region
        $region33: #{tpu_custom_call.1} parent=31 // pred_check
          %p205 = pneg %p38
        $region34: #{tpu_custom_call.1} parent=31 // pred_check_branch
          %207 = sbr.rel (%p205) target = $region36
        $region35: #{tpu_custom_call.1} parent=31 // pred_region
          %s208 = sand.u32 %s28, 1
          %s209 = scalar_lea.sflag [#allocation3], %s208
          %s210 = sand.u32 %s28, 1
          %s211 = smul.addr %s210, 256
          %s212 = scalar_lea.vmem [#allocation2], %s211
          %s214 = ssub.s32 4096, 4096
          %215 = vsyncadd %s209, %s214
          %s216 = smul.addr %s18, 32
          %s217 = smul.addr %s216, 128
          %s218 = scalar_lea.hbm %s0, %s217
          %s219 = sshll.u32 %s212, 4
          %s220 = int_to_ptr.vmem [resolvable:$true] %s219
          %225 = dma.hbm_to_vmem [thread:$0]  %s218, 4096, %s220, %s209, 128, 128, 8
        $region36: #{tpu_custom_call.1} parent=31 // pred_fallthru
          _
      $region32: #{tpu_custom_call.1} parent=5 // pred_fallthru
        _
      %p226 = scmp.le.s32.totalorder 1, %s18
      %p227 = scmp.lt.s32.totalorder %s18, 3
      %p228 = pnand %p226, %p227
      %p229 = pneg %p228
      // Predicated region
      $region37: #{tpu_custom_call.1} parent=5 // pred_check
        _
      $region38: #{tpu_custom_call.1} parent=5 // pred_check_branch
        %231 = sbr.rel (%p228) target = $region40
      $region39: #{tpu_custom_call.1} parent=5 // pred_region
        %s232 = ssub.s32 %s18, 1
        %s233 = sand.u32 %s31, 1
        %s234 = scalar_lea.sflag [#allocation3], %s233
        %s235 = sand.u32 %s31, 1
        %s236 = smul.addr %s235, 256
        %s237 = scalar_lea.vmem [#allocation2], %s236
        // Predicated region
        $region41: #{tpu_custom_call.1} parent=39 // pred_check
          %p238 = pneg %p44
        $region42: #{tpu_custom_call.1} parent=39 // pred_check_branch
          %240 = sbr.rel (%p238) target = $region44
        $region43: #{tpu_custom_call.1} parent=39 // pred_region
          %241 = dma.done %s234, 4096
        $region44: #{tpu_custom_call.1} parent=39 // pred_fallthru
          _
        // Predicated region
        $region45: #{tpu_custom_call.1} parent=39 // pred_check
          %p242 = pneg %p65
        $region46: #{tpu_custom_call.1} parent=39 // pred_check_branch
          %244 = sbr.rel (%p242) target = $region48
        $region47: #{tpu_custom_call.1} parent=39 // pred_region
          %245 = dma.done [#allocation6], 9216
        $region48: #{tpu_custom_call.1} parent=39 // pred_fallthru
          _
        // Predicated region
        $region49: #{tpu_custom_call.1} parent=39 // pred_check
          %p246 = pneg %p107
        $region50: #{tpu_custom_call.1} parent=39 // pred_check_branch
          %248 = sbr.rel (%p246) target = $region52
        $region51: #{tpu_custom_call.1} parent=39 // pred_region
          %249 = dma.done [#allocation6], 9216
        $region52: #{tpu_custom_call.1} parent=39 // pred_fallthru
          _
        %s250 = sand.u32 %s31, 1
        %s251 = scalar_lea.sflag [#allocation3], %s250
        %s252 = sand.u32 %s31, 1
        %s253 = smul.addr %s252, 256
        %s254 = scalar_lea.vmem [#allocation2], %s253
        %p255 = pneg %p44
        %p256 = pneg %p41
        %p257 = pneg %p65
        %p258 = pneg %p62
        %p259 = pneg %p86
        %p260 = pneg %p83
        %p261 = pneg %p107
        %p262 = pneg %p104
        %p263 = pneg %p128
        %p264 = pneg %p125
        %p265 = pneg %p154
        %p266 = pneg %p151
        %s267 = sand.u32 %s141, 1
        %s268 = scalar_lea.sflag [#allocation4], %s267
        %s269 = sand.u32 %s141, 1
        %s270 = smul.addr %s269, 256
        %s271 = scalar_lea.vmem [#allocation8], %s270
        %v273 = vld [vmem:[#allocation5] sm:$0xf]
        %v274 = vld [vmem:[#allocation5 + $0x4] sm:$0xf]
        %v275 = vld [vmem:[#allocation5 + $0x8] sm:$0xf]
        %v276 = vld [vmem:[#allocation5 + $0xc] sm:$0xf]
        %v277 = vld [vmem:[#allocation5 + $0x10] sm:$0xf]
        %v278 = vld [vmem:[#allocation5 + $0x14] sm:$0xf]
        %v279 = vld [vmem:[#allocation5 + $0x18] sm:$0xf]
        %v280 = vld [vmem:[#allocation5 + $0x1c] sm:$0xf]
        %v281 = vld [vmem:[#allocation5 + $0x20] sm:$0xf]
        %v282 = vld [vmem:[#allocation5 + $0x24] sm:$0xf]
        %v283 = vld [vmem:[#allocation5 + $0x28] sm:$0xf]
        %v284 = vld [vmem:[#allocation5 + $0x2c] sm:$0xf]
        %v285 = vld [vmem:[#allocation5 + $0x30] sm:$0xf]
        %v286 = vld [vmem:[#allocation5 + $0x34] sm:$0xf]
        %v287 = vld [vmem:[#allocation5 + $0x38] sm:$0xf]
        %v288 = vld [vmem:[#allocation5 + $0x3c] sm:$0xf]
        %v289 = vld [vmem:[#allocation5 + $0x40] sm:$0xf]
        %v290 = vld [vmem:[#allocation5 + $0x44] sm:$0xf]
        %v291 = vld [vmem:[#allocation5 + $0x48] sm:$0xf]
        %v292 = vld [vmem:[#allocation5 + $0x4c] sm:$0xf]
        %v293 = vld [vmem:[#allocation5 + $0x50] sm:$0xf]
        %v294 = vld [vmem:[#allocation5 + $0x54] sm:$0xf]
        %v295 = vld [vmem:[#allocation5 + $0x58] sm:$0xf]
        %v296 = vld [vmem:[#allocation5 + $0x5c] sm:$0xf]
        %v297 = vld [vmem:[#allocation5 + $0x60] sm:$0xf]
        %v298 = vld [vmem:[#allocation5 + $0x64] sm:$0xf]
        %v299 = vld [vmem:[#allocation5 + $0x68] sm:$0xf]
        %v300 = vld [vmem:[#allocation5 + $0x6c] sm:$0xf]
        %v301 = vld [vmem:[#allocation5 + $0x70] sm:$0xf]
        %v302 = vld [vmem:[#allocation5 + $0x74] sm:$0xf]
        %v303 = vld [vmem:[#allocation5 + $0x78] sm:$0xf]
        %v304 = vld [vmem:[#allocation5 + $0x7c] sm:$0xf]
        %v305 = vld [vmem:[#allocation5 + $0x80] sm:$0xf]
        %v306 = vld [vmem:[#allocation5 + $0x84] sm:$0xf]
        %v307 = vld [vmem:[#allocation5 + $0x88] sm:$0xf]
        %v308 = vld [vmem:[#allocation5 + $0x8c] sm:$0xf]
        %v309 = vld [vmem:[#allocation5 + $0x90] sm:$0xf]
        %v310 = vld [vmem:[#allocation5 + $0x94] sm:$0xf]
        %v311 = vld [vmem:[#allocation5 + $0x98] sm:$0xf]
        %v312 = vld [vmem:[#allocation5 + $0x9c] sm:$0xf]
        %v313 = vld [vmem:[#allocation5 + $0xa0] sm:$0xf]
        %v314 = vld [vmem:[#allocation5 + $0xa4] sm:$0xf]
        %v315 = vld [vmem:[#allocation5 + $0xa8] sm:$0xf]
        %v316 = vld [vmem:[#allocation5 + $0xac] sm:$0xf]
        %v317 = vld [vmem:[#allocation5 + $0xb0] sm:$0xf]
        %v318 = vld [vmem:[#allocation5 + $0xb4] sm:$0xf]
        %v319 = vld [vmem:[#allocation5 + $0xb8] sm:$0xf]
        %v320 = vld [vmem:[#allocation5 + $0xbc] sm:$0xf]
        %v321 = vld [vmem:[#allocation5 + $0xc0] sm:$0xf]
        %v322 = vld [vmem:[#allocation5 + $0xc4] sm:$0xf]
        %v323 = vld [vmem:[#allocation5 + $0xc8] sm:$0xf]
        %v324 = vld [vmem:[#allocation5 + $0xcc] sm:$0xf]
        %v325 = vld [vmem:[#allocation5 + $0xd0] sm:$0xf]
        %v326 = vld [vmem:[#allocation5 + $0xd4] sm:$0xf]
        %v327 = vld [vmem:[#allocation5 + $0xd8] sm:$0xf]
        %v328 = vld [vmem:[#allocation5 + $0xdc] sm:$0xf]
        %v329 = vld [vmem:[#allocation5 + $0xe0] sm:$0xf]
        %v330 = vld [vmem:[#allocation5 + $0xe4] sm:$0xf]
        %v331 = vld [vmem:[#allocation5 + $0xe8] sm:$0xf]
        %v332 = vld [vmem:[#allocation5 + $0xec] sm:$0xf]
        %v333 = vld [vmem:[#allocation5 + $0xf0] sm:$0xf]
        %v334 = vld [vmem:[#allocation5 + $0xf4] sm:$0xf]
        %v335 = vld [vmem:[#allocation5 + $0xf8] sm:$0xf]
        %v336 = vld [vmem:[#allocation5 + $0xfc] sm:$0xf]
        %v337 = vld [vmem:[#allocation5 + $0x100] sm:$0xf]
        %v338 = vld [vmem:[#allocation5 + $0x104] sm:$0xf]
        %v339 = vld [vmem:[#allocation5 + $0x108] sm:$0xf]
        %v340 = vld [vmem:[#allocation5 + $0x10c] sm:$0xf]
        %v341 = vld [vmem:[#allocation5 + $0x110] sm:$0xf]
        %v342 = vld [vmem:[#allocation5 + $0x114] sm:$0xf]
        %v343 = vld [vmem:[#allocation5 + $0x118] sm:$0xf]
        %v344 = vld [vmem:[#allocation5 + $0x11c] sm:$0xf]
        %v345 = vld [vmem:[#allocation5 + $0x120] sm:$0xf]
        %v346 = vld [vmem:[#allocation5 + $0x124] sm:$0xf]
        %v347 = vld [vmem:[#allocation5 + $0x128] sm:$0xf]
        %v348 = vld [vmem:[#allocation5 + $0x12c] sm:$0xf]
        %v349 = vld [vmem:[#allocation5 + $0x130] sm:$0xf]
        %v350 = vld [vmem:[#allocation5 + $0x134] sm:$0xf]
        %v351 = vld [vmem:[#allocation5 + $0x138] sm:$0xf]
        %v352 = vld [vmem:[#allocation5 + $0x13c] sm:$0xf]
        %v353 = vld [vmem:[#allocation5 + $0x140] sm:$0xf]
        %v354 = vld [vmem:[#allocation5 + $0x144] sm:$0xf]
        %v355 = vld [vmem:[#allocation5 + $0x148] sm:$0xf]
        %v356 = vld [vmem:[#allocation5 + $0x14c] sm:$0xf]
        %v357 = vld [vmem:[#allocation5 + $0x150] sm:$0xf]
        %v358 = vld [vmem:[#allocation5 + $0x154] sm:$0xf]
        %v359 = vld [vmem:[#allocation5 + $0x158] sm:$0xf]
        %v360 = vld [vmem:[#allocation5 + $0x15c] sm:$0xf]
        %v361 = vld [vmem:[#allocation5 + $0x160] sm:$0xf]
        %v362 = vld [vmem:[#allocation5 + $0x164] sm:$0xf]
        %v363 = vld [vmem:[#allocation5 + $0x168] sm:$0xf]
        %v364 = vld [vmem:[#allocation5 + $0x16c] sm:$0xf]
        %v365 = vld [vmem:[#allocation5 + $0x170] sm:$0xf]
        %v366 = vld [vmem:[#allocation5 + $0x174] sm:$0xf]
        %v367 = vld [vmem:[#allocation5 + $0x178] sm:$0xf]
        %v368 = vld [vmem:[#allocation5 + $0x17c] sm:$0xf]
        %v369 = vld [vmem:[#allocation5 + $0x180] sm:$0xf]
        %v370 = vld [vmem:[#allocation5 + $0x184] sm:$0xf]
        %v371 = vld [vmem:[#allocation5 + $0x188] sm:$0xf]
        %v372 = vld [vmem:[#allocation5 + $0x18c] sm:$0xf]
        %v373 = vld [vmem:[#allocation5 + $0x190] sm:$0xf]
        %v374 = vld [vmem:[#allocation5 + $0x194] sm:$0xf]
        %v375 = vld [vmem:[#allocation5 + $0x198] sm:$0xf]
        %v376 = vld [vmem:[#allocation5 + $0x19c] sm:$0xf]
        %v377 = vld [vmem:[#allocation5 + $0x1a0] sm:$0xf]
        %v378 = vld [vmem:[#allocation5 + $0x1a4] sm:$0xf]
        %v379 = vld [vmem:[#allocation5 + $0x1a8] sm:$0xf]
        %v380 = vld [vmem:[#allocation5 + $0x1ac] sm:$0xf]
        %v381 = vld [vmem:[#allocation5 + $0x1b0] sm:$0xf]
        %v382 = vld [vmem:[#allocation5 + $0x1b4] sm:$0xf]
        %v383 = vld [vmem:[#allocation5 + $0x1b8] sm:$0xf]
        %v384 = vld [vmem:[#allocation5 + $0x1bc] sm:$0xf]
        %v385 = vld [vmem:[#allocation5 + $0x1c0] sm:$0xf]
        %v386 = vld [vmem:[#allocation5 + $0x1c4] sm:$0xf]
        %v387 = vld [vmem:[#allocation5 + $0x1c8] sm:$0xf]
        %v388 = vld [vmem:[#allocation5 + $0x1cc] sm:$0xf]
        %v389 = vld [vmem:[#allocation5 + $0x1d0] sm:$0xf]
        %v390 = vld [vmem:[#allocation5 + $0x1d4] sm:$0xf]
        %v391 = vld [vmem:[#allocation5 + $0x1d8] sm:$0xf]
        %v392 = vld [vmem:[#allocation5 + $0x1dc] sm:$0xf]
        %v393 = vld [vmem:[#allocation5 + $0x1e0] sm:$0xf]
        %v394 = vld [vmem:[#allocation5 + $0x1e4] sm:$0xf]
        %v395 = vld [vmem:[#allocation5 + $0x1e8] sm:$0xf]
        %v396 = vld [vmem:[#allocation5 + $0x1ec] sm:$0xf]
        %v397 = vld [vmem:[#allocation5 + $0x1f0] sm:$0xf]
        %v398 = vld [vmem:[#allocation5 + $0x1f4] sm:$0xf]
        %v399 = vld [vmem:[#allocation5 + $0x1f8] sm:$0xf]
        %v400 = vld [vmem:[#allocation5 + $0x1fc] sm:$0xf]
        %v401 = vld [vmem:[#allocation5 + $0x200] sm:$0xf]
        %v402 = vld [vmem:[#allocation5 + $0x204] sm:$0xf]
        %v403 = vld [vmem:[#allocation5 + $0x208] sm:$0xf]
        %v404 = vld [vmem:[#allocation5 + $0x20c] sm:$0xf]
        %v405 = vld [vmem:[#allocation5 + $0x210] sm:$0xf]
        %v406 = vld [vmem:[#allocation5 + $0x214] sm:$0xf]
        %v407 = vld [vmem:[#allocation5 + $0x218] sm:$0xf]
        %v408 = vld [vmem:[#allocation5 + $0x21c] sm:$0xf]
        %v409 = vld [vmem:[#allocation5 + $0x220] sm:$0xf]
        %v410 = vld [vmem:[#allocation5 + $0x224] sm:$0xf]
        %v411 = vld [vmem:[#allocation5 + $0x228] sm:$0xf]
        %v412 = vld [vmem:[#allocation5 + $0x22c] sm:$0xf]
        %v413 = vld [vmem:[#allocation5 + $0x230] sm:$0xf]
        %v414 = vld [vmem:[#allocation5 + $0x234] sm:$0xf]
        %v415 = vld [vmem:[#allocation5 + $0x238] sm:$0xf]
        %v416 = vld [vmem:[#allocation5 + $0x23c] sm:$0xf]
        %v417 = vld [vmem:[#allocation7] sm:$0xf]
        %v418 = vld [vmem:[#allocation7 + $0x4] sm:$0xf]
        %v419 = vld [vmem:[#allocation7 + $0x8] sm:$0xf]
        %v420 = vld [vmem:[#allocation7 + $0xc] sm:$0xf]
        %v421 = vld [vmem:[#allocation7 + $0x10] sm:$0xf]
        %v422 = vld [vmem:[#allocation7 + $0x14] sm:$0xf]
        %v423 = vld [vmem:[#allocation7 + $0x18] sm:$0xf]
        %v424 = vld [vmem:[#allocation7 + $0x1c] sm:$0xf]
        %v425 = vld [vmem:[#allocation7 + $0x20] sm:$0xf]
        %v426 = vld [vmem:[#allocation7 + $0x24] sm:$0xf]
        %v427 = vld [vmem:[#allocation7 + $0x28] sm:$0xf]
        %v428 = vld [vmem:[#allocation7 + $0x2c] sm:$0xf]
        %v429 = vld [vmem:[#allocation7 + $0x30] sm:$0xf]
        %v430 = vld [vmem:[#allocation7 + $0x34] sm:$0xf]
        %v431 = vld [vmem:[#allocation7 + $0x38] sm:$0xf]
        %v432 = vld [vmem:[#allocation7 + $0x3c] sm:$0xf]
        %v433 = vld [vmem:[#allocation7 + $0x40] sm:$0xf]
        %v434 = vld [vmem:[#allocation7 + $0x44] sm:$0xf]
        %v435 = vld [vmem:[#allocation7 + $0x48] sm:$0xf]
        %v436 = vld [vmem:[#allocation7 + $0x4c] sm:$0xf]
        %v437 = vld [vmem:[#allocation7 + $0x50] sm:$0xf]
        %v438 = vld [vmem:[#allocation7 + $0x54] sm:$0xf]
        %v439 = vld [vmem:[#allocation7 + $0x58] sm:$0xf]
        %v440 = vld [vmem:[#allocation7 + $0x5c] sm:$0xf]
        %v441 = vld [vmem:[#allocation7 + $0x60] sm:$0xf]
        %v442 = vld [vmem:[#allocation7 + $0x64] sm:$0xf]
        %v443 = vld [vmem:[#allocation7 + $0x68] sm:$0xf]
        %v444 = vld [vmem:[#allocation7 + $0x6c] sm:$0xf]
        %v445 = vld [vmem:[#allocation7 + $0x70] sm:$0xf]
        %v446 = vld [vmem:[#allocation7 + $0x74] sm:$0xf]
        %v447 = vld [vmem:[#allocation7 + $0x78] sm:$0xf]
        %v448 = vld [vmem:[#allocation7 + $0x7c] sm:$0xf]
        %v449 = vld [vmem:[#allocation7 + $0x80] sm:$0xf]
        %v450 = vld [vmem:[#allocation7 + $0x84] sm:$0xf]
        %v451 = vld [vmem:[#allocation7 + $0x88] sm:$0xf]
        %v452 = vld [vmem:[#allocation7 + $0x8c] sm:$0xf]
        %v453 = vld [vmem:[#allocation7 + $0x90] sm:$0xf]
        %v454 = vld [vmem:[#allocation7 + $0x94] sm:$0xf]
        %v455 = vld [vmem:[#allocation7 + $0x98] sm:$0xf]
        %v456 = vld [vmem:[#allocation7 + $0x9c] sm:$0xf]
        %v457 = vld [vmem:[#allocation7 + $0xa0] sm:$0xf]
        %v458 = vld [vmem:[#allocation7 + $0xa4] sm:$0xf]
        %v459 = vld [vmem:[#allocation7 + $0xa8] sm:$0xf]
        %v460 = vld [vmem:[#allocation7 + $0xac] sm:$0xf]
        %v461 = vld [vmem:[#allocation7 + $0xb0] sm:$0xf]
        %v462 = vld [vmem:[#allocation7 + $0xb4] sm:$0xf]
        %v463 = vld [vmem:[#allocation7 + $0xb8] sm:$0xf]
        %v464 = vld [vmem:[#allocation7 + $0xbc] sm:$0xf]
        %v465 = vld [vmem:[#allocation7 + $0xc0] sm:$0xf]
        %v466 = vld [vmem:[#allocation7 + $0xc4] sm:$0xf]
        %v467 = vld [vmem:[#allocation7 + $0xc8] sm:$0xf]
        %v468 = vld [vmem:[#allocation7 + $0xcc] sm:$0xf]
        %v469 = vld [vmem:[#allocation7 + $0xd0] sm:$0xf]
        %v470 = vld [vmem:[#allocation7 + $0xd4] sm:$0xf]
        %v471 = vld [vmem:[#allocation7 + $0xd8] sm:$0xf]
        %v472 = vld [vmem:[#allocation7 + $0xdc] sm:$0xf]
        %v473 = vld [vmem:[#allocation7 + $0xe0] sm:$0xf]
        %v474 = vld [vmem:[#allocation7 + $0xe4] sm:$0xf]
        %v475 = vld [vmem:[#allocation7 + $0xe8] sm:$0xf]
        %v476 = vld [vmem:[#allocation7 + $0xec] sm:$0xf]
        %v477 = vld [vmem:[#allocation7 + $0xf0] sm:$0xf]
        %v478 = vld [vmem:[#allocation7 + $0xf4] sm:$0xf]
        %v479 = vld [vmem:[#allocation7 + $0xf8] sm:$0xf]
        %v480 = vld [vmem:[#allocation7 + $0xfc] sm:$0xf]
        %v481 = vld [vmem:[#allocation7 + $0x100] sm:$0xf]
        %v482 = vld [vmem:[#allocation7 + $0x104] sm:$0xf]
        %v483 = vld [vmem:[#allocation7 + $0x108] sm:$0xf]
        %v484 = vld [vmem:[#allocation7 + $0x10c] sm:$0xf]
        %v485 = vld [vmem:[#allocation7 + $0x110] sm:$0xf]
        %v486 = vld [vmem:[#allocation7 + $0x114] sm:$0xf]
        %v487 = vld [vmem:[#allocation7 + $0x118] sm:$0xf]
        %v488 = vld [vmem:[#allocation7 + $0x11c] sm:$0xf]
        %v489 = vld [vmem:[#allocation7 + $0x120] sm:$0xf]
        %v490 = vld [vmem:[#allocation7 + $0x124] sm:$0xf]
        %v491 = vld [vmem:[#allocation7 + $0x128] sm:$0xf]
        %v492 = vld [vmem:[#allocation7 + $0x12c] sm:$0xf]
        %v493 = vld [vmem:[#allocation7 + $0x130] sm:$0xf]
        %v494 = vld [vmem:[#allocation7 + $0x134] sm:$0xf]
        %v495 = vld [vmem:[#allocation7 + $0x138] sm:$0xf]
        %v496 = vld [vmem:[#allocation7 + $0x13c] sm:$0xf]
        %v497 = vld [vmem:[#allocation7 + $0x140] sm:$0xf]
        %v498 = vld [vmem:[#allocation7 + $0x144] sm:$0xf]
        %v499 = vld [vmem:[#allocation7 + $0x148] sm:$0xf]
        %v500 = vld [vmem:[#allocation7 + $0x14c] sm:$0xf]
        %v501 = vld [vmem:[#allocation7 + $0x150] sm:$0xf]
        %v502 = vld [vmem:[#allocation7 + $0x154] sm:$0xf]
        %v503 = vld [vmem:[#allocation7 + $0x158] sm:$0xf]
        %v504 = vld [vmem:[#allocation7 + $0x15c] sm:$0xf]
        %v505 = vld [vmem:[#allocation7 + $0x160] sm:$0xf]
        %v506 = vld [vmem:[#allocation7 + $0x164] sm:$0xf]
        %v507 = vld [vmem:[#allocation7 + $0x168] sm:$0xf]
        %v508 = vld [vmem:[#allocation7 + $0x16c] sm:$0xf]
        %v509 = vld [vmem:[#allocation7 + $0x170] sm:$0xf]
        %v510 = vld [vmem:[#allocation7 + $0x174] sm:$0xf]
        %v511 = vld [vmem:[#allocation7 + $0x178] sm:$0xf]
        %v512 = vld [vmem:[#allocation7 + $0x17c] sm:$0xf]
        %v513 = vld [vmem:[#allocation7 + $0x180] sm:$0xf]
        %v514 = vld [vmem:[#allocation7 + $0x184] sm:$0xf]
        %v515 = vld [vmem:[#allocation7 + $0x188] sm:$0xf]
        %v516 = vld [vmem:[#allocation7 + $0x18c] sm:$0xf]
        %v517 = vld [vmem:[#allocation7 + $0x190] sm:$0xf]
        %v518 = vld [vmem:[#allocation7 + $0x194] sm:$0xf]
        %v519 = vld [vmem:[#allocation7 + $0x198] sm:$0xf]
        %v520 = vld [vmem:[#allocation7 + $0x19c] sm:$0xf]
        %v521 = vld [vmem:[#allocation7 + $0x1a0] sm:$0xf]
        %v522 = vld [vmem:[#allocation7 + $0x1a4] sm:$0xf]
        %v523 = vld [vmem:[#allocation7 + $0x1a8] sm:$0xf]
        %v524 = vld [vmem:[#allocation7 + $0x1ac] sm:$0xf]
        %v525 = vld [vmem:[#allocation7 + $0x1b0] sm:$0xf]
        %v526 = vld [vmem:[#allocation7 + $0x1b4] sm:$0xf]
        %v527 = vld [vmem:[#allocation7 + $0x1b8] sm:$0xf]
        %v528 = vld [vmem:[#allocation7 + $0x1bc] sm:$0xf]
        %v529 = vld [vmem:[#allocation7 + $0x1c0] sm:$0xf]
        %v530 = vld [vmem:[#allocation7 + $0x1c4] sm:$0xf]
        %v531 = vld [vmem:[#allocation7 + $0x1c8] sm:$0xf]
        %v532 = vld [vmem:[#allocation7 + $0x1cc] sm:$0xf]
        %v533 = vld [vmem:[#allocation7 + $0x1d0] sm:$0xf]
        %v534 = vld [vmem:[#allocation7 + $0x1d4] sm:$0xf]
        %v535 = vld [vmem:[#allocation7 + $0x1d8] sm:$0xf]
        %v536 = vld [vmem:[#allocation7 + $0x1dc] sm:$0xf]
        %v537 = vld [vmem:[#allocation7 + $0x1e0] sm:$0xf]
        %v538 = vld [vmem:[#allocation7 + $0x1e4] sm:$0xf]
        %v539 = vld [vmem:[#allocation7 + $0x1e8] sm:$0xf]
        %v540 = vld [vmem:[#allocation7 + $0x1ec] sm:$0xf]
        %v541 = vld [vmem:[#allocation7 + $0x1f0] sm:$0xf]
        %v542 = vld [vmem:[#allocation7 + $0x1f4] sm:$0xf]
        %v543 = vld [vmem:[#allocation7 + $0x1f8] sm:$0xf]
        %v544 = vld [vmem:[#allocation7 + $0x1fc] sm:$0xf]
        %v545 = vld [vmem:[#allocation7 + $0x200] sm:$0xf]
        %v546 = vld [vmem:[#allocation7 + $0x204] sm:$0xf]
        %v547 = vld [vmem:[#allocation7 + $0x208] sm:$0xf]
        %v548 = vld [vmem:[#allocation7 + $0x20c] sm:$0xf]
        %v549 = vld [vmem:[#allocation7 + $0x210] sm:$0xf]
        %v550 = vld [vmem:[#allocation7 + $0x214] sm:$0xf]
        %v551 = vld [vmem:[#allocation7 + $0x218] sm:$0xf]
        %v552 = vld [vmem:[#allocation7 + $0x21c] sm:$0xf]
        %v553 = vld [vmem:[#allocation7 + $0x220] sm:$0xf]
        %v554 = vld [vmem:[#allocation7 + $0x224] sm:$0xf]
        %v555 = vld [vmem:[#allocation7 + $0x228] sm:$0xf]
        %v556 = vld [vmem:[#allocation7 + $0x22c] sm:$0xf]
        %v557 = vld [vmem:[#allocation7 + $0x230] sm:$0xf]
        %v558 = vld [vmem:[#allocation7 + $0x234] sm:$0xf]
        %v559 = vld [vmem:[#allocation7 + $0x238] sm:$0xf]
        %v560 = vld [vmem:[#allocation7 + $0x23c] sm:$0xf]
        %v561 = vld [vmem:[%s2] sm:$0x1]
        %v562 = vld [vmem:[%s4] sm:$0x1]
        %v563 = vlaneseq
        %v564 = vshrl.u32 %v563, 7
        %v565 = vadd.s32 %v564, 8
        %v566 = vadd.s32 %v564, 16
        %v567 = vadd.s32 %v564, 24
        %v568 = vadd.s32 %v564, 32
        %v569 = vadd.s32 %v564, 40
        %v570 = vadd.s32 %v564, 48
        %v571 = vadd.s32 %v564, 56
        %v572 = vadd.s32 %v564, 64
        %v573 = vadd.s32 %v564, 72
        %v574 = vadd.s32 %v564, 80
        %v575 = vadd.s32 %v564, 88
        %v576 = vadd.s32 %v564, 96
        %v577 = vadd.s32 %v564, 104
        %v578 = vadd.s32 %v564, 112
        %v579 = vadd.s32 %v564, 120
        %v580 = vadd.s32 %v564, 128
        %v581 = vadd.s32 %v564, 136
        %v582 = vadd.s32 %v564, 144
        %v583 = vadd.s32 %v564, 152
        %v584 = vadd.s32 %v564, 160
        %v585 = vadd.s32 %v564, 168
        %v586 = vadd.s32 %v564, 176
        %v587 = vadd.s32 %v564, 184
        %v588 = vadd.s32 %v564, 192
        %v589 = vadd.s32 %v564, 200
        %v590 = vadd.s32 %v564, 208
        %v591 = vadd.s32 %v564, 216
        %v592 = vadd.s32 %v564, 224
        %v593 = vadd.s32 %v564, 232
        %v594 = vadd.s32 %v564, 240
        %v595 = vadd.s32 %v564, 248
        %vm596 = vcmp.lt.s32.totalorder %v564, 0
        %v597 = vsub.s32 0, %v564
        %v598 = vsel %vm596, %v597, %v564
        %v599 = vshrl.u32 %v598, 4
        %v600 = vand.u32 %v598, 15
        %v601 = vsub.s32 0, %v600
        %v602 = vsel %vm596, %v601, %v600
        %vm603 = vcmp.lt.s32.totalorder %v565, 0
        %v604 = vsub.s32 0, %v565
        %v605 = vsel %vm603, %v604, %v565
        %v606 = vshrl.u32 %v605, 4
        %v607 = vand.u32 %v605, 15
        %v608 = vsub.s32 0, %v607
        %v609 = vsel %vm603, %v608, %v607
        %vm610 = vcmp.lt.s32.totalorder %v566, 0
        %v611 = vsub.s32 0, %v566
        %v612 = vsel %vm610, %v611, %v566
        %v613 = vshrl.u32 %v612, 4
        %v614 = vand.u32 %v612, 15
        %v615 = vsub.s32 0, %v614
        %v616 = vsel %vm610, %v615, %v614
        %vm617 = vcmp.lt.s32.totalorder %v567, 0
        %v618 = vsub.s32 0, %v567
        %v619 = vsel %vm617, %v618, %v567
        %v620 = vshrl.u32 %v619, 4
        %v621 = vand.u32 %v619, 15
        %v622 = vsub.s32 0, %v621
        %v623 = vsel %vm617, %v622, %v621
        %vm624 = vcmp.lt.s32.totalorder %v568, 0
        %v625 = vsub.s32 0, %v568
        %v626 = vsel %vm624, %v625, %v568
        %v627 = vshrl.u32 %v626, 4
        %v628 = vand.u32 %v626, 15
        %v629 = vsub.s32 0, %v628
        %v630 = vsel %vm624, %v629, %v628
        %vm631 = vcmp.lt.s32.totalorder %v569, 0
        %v632 = vsub.s32 0, %v569
        %v633 = vsel %vm631, %v632, %v569
        %v634 = vshrl.u32 %v633, 4
        %v635 = vand.u32 %v633, 15
        %v636 = vsub.s32 0, %v635
        %v637 = vsel %vm631, %v636, %v635
        %vm638 = vcmp.lt.s32.totalorder %v570, 0
        %v639 = vsub.s32 0, %v570
        %v640 = vsel %vm638, %v639, %v570
        %v641 = vshrl.u32 %v640, 4
        %v642 = vand.u32 %v640, 15
        %v643 = vsub.s32 0, %v642
        %v644 = vsel %vm638, %v643, %v642
        %vm645 = vcmp.lt.s32.totalorder %v571, 0
        %v646 = vsub.s32 0, %v571
        %v647 = vsel %vm645, %v646, %v571
        %v648 = vshrl.u32 %v647, 4
        %v649 = vand.u32 %v647, 15
        %v650 = vsub.s32 0, %v649
        %v651 = vsel %vm645, %v650, %v649
        %vm652 = vcmp.lt.s32.totalorder %v572, 0
        %v653 = vsub.s32 0, %v572
        %v654 = vsel %vm652, %v653, %v572
        %v655 = vshrl.u32 %v654, 4
        %v656 = vand.u32 %v654, 15
        %v657 = vsub.s32 0, %v656
        %v658 = vsel %vm652, %v657, %v656
        %vm659 = vcmp.lt.s32.totalorder %v573, 0
        %v660 = vsub.s32 0, %v573
        %v661 = vsel %vm659, %v660, %v573
        %v662 = vshrl.u32 %v661, 4
        %v663 = vand.u32 %v661, 15
        %v664 = vsub.s32 0, %v663
        %v665 = vsel %vm659, %v664, %v663
        %vm666 = vcmp.lt.s32.totalorder %v574, 0
        %v667 = vsub.s32 0, %v574
        %v668 = vsel %vm666, %v667, %v574
        %v669 = vshrl.u32 %v668, 4
        %v670 = vand.u32 %v668, 15
        %v671 = vsub.s32 0, %v670
        %v672 = vsel %vm666, %v671, %v670
        %vm673 = vcmp.lt.s32.totalorder %v575, 0
        %v674 = vsub.s32 0, %v575
        %v675 = vsel %vm673, %v674, %v575
        %v676 = vshrl.u32 %v675, 4
        %v677 = vand.u32 %v675, 15
        %v678 = vsub.s32 0, %v677
        %v679 = vsel %vm673, %v678, %v677
        %vm680 = vcmp.lt.s32.totalorder %v576, 0
        %v681 = vsub.s32 0, %v576
        %v682 = vsel %vm680, %v681, %v576
        %v683 = vshrl.u32 %v682, 4
        %v684 = vand.u32 %v682, 15
        %v685 = vsub.s32 0, %v684
        %v686 = vsel %vm680, %v685, %v684
        %vm687 = vcmp.lt.s32.totalorder %v577, 0
        %v688 = vsub.s32 0, %v577
        %v689 = vsel %vm687, %v688, %v577
        %v690 = vshrl.u32 %v689, 4
        %v691 = vand.u32 %v689, 15
        %v692 = vsub.s32 0, %v691
        %v693 = vsel %vm687, %v692, %v691
        %vm694 = vcmp.lt.s32.totalorder %v578, 0
        %v695 = vsub.s32 0, %v578
        %v696 = vsel %vm694, %v695, %v578
        %v697 = vshrl.u32 %v696, 4
        %v698 = vand.u32 %v696, 15
        %v699 = vsub.s32 0, %v698
        %v700 = vsel %vm694, %v699, %v698
        %vm701 = vcmp.lt.s32.totalorder %v579, 0
        %v702 = vsub.s32 0, %v579
        %v703 = vsel %vm701, %v702, %v579
        %v704 = vshrl.u32 %v703, 4
        %v705 = vand.u32 %v703, 15
        %v706 = vsub.s32 0, %v705
        %v707 = vsel %vm701, %v706, %v705
        %vm708 = vcmp.lt.s32.totalorder %v580, 0
        %v709 = vsub.s32 0, %v580
        %v710 = vsel %vm708, %v709, %v580
        %v711 = vshrl.u32 %v710, 4
        %v712 = vand.u32 %v710, 15
        %v713 = vsub.s32 0, %v712
        %v714 = vsel %vm708, %v713, %v712
        %vm715 = vcmp.lt.s32.totalorder %v581, 0
        %v716 = vsub.s32 0, %v581
        %v717 = vsel %vm715, %v716, %v581
        %v718 = vshrl.u32 %v717, 4
        %v719 = vand.u32 %v717, 15
        %v720 = vsub.s32 0, %v719
        %v721 = vsel %vm715, %v720, %v719
        %vm722 = vcmp.lt.s32.totalorder %v582, 0
        %v723 = vsub.s32 0, %v582
        %v724 = vsel %vm722, %v723, %v582
        %v725 = vshrl.u32 %v724, 4
        %v726 = vand.u32 %v724, 15
        %v727 = vsub.s32 0, %v726
        %v728 = vsel %vm722, %v727, %v726
        %vm729 = vcmp.lt.s32.totalorder %v583, 0
        %v730 = vsub.s32 0, %v583
        %v731 = vsel %vm729, %v730, %v583
        %v732 = vshrl.u32 %v731, 4
        %v733 = vand.u32 %v731, 15
        %v734 = vsub.s32 0, %v733
        %v735 = vsel %vm729, %v734, %v733
        %vm736 = vcmp.lt.s32.totalorder %v584, 0
        %v737 = vsub.s32 0, %v584
        %v738 = vsel %vm736, %v737, %v584
        %v739 = vshrl.u32 %v738, 4
        %v740 = vand.u32 %v738, 15
        %v741 = vsub.s32 0, %v740
        %v742 = vsel %vm736, %v741, %v740
        %vm743 = vcmp.lt.s32.totalorder %v585, 0
        %v744 = vsub.s32 0, %v585
        %v745 = vsel %vm743, %v744, %v585
        %v746 = vshrl.u32 %v745, 4
        %v747 = vand.u32 %v745, 15
        %v748 = vsub.s32 0, %v747
        %v749 = vsel %vm743, %v748, %v747
        %vm750 = vcmp.lt.s32.totalorder %v586, 0
        %v751 = vsub.s32 0, %v586
        %v752 = vsel %vm750, %v751, %v586
        %v753 = vshrl.u32 %v752, 4
        %v754 = vand.u32 %v752, 15
        %v755 = vsub.s32 0, %v754
        %v756 = vsel %vm750, %v755, %v754
        %vm757 = vcmp.lt.s32.totalorder %v587, 0
        %v758 = vsub.s32 0, %v587
        %v759 = vsel %vm757, %v758, %v587
        %v760 = vshrl.u32 %v759, 4
        %v761 = vand.u32 %v759, 15
        %v762 = vsub.s32 0, %v761
        %v763 = vsel %vm757, %v762, %v761
        %vm764 = vcmp.lt.s32.totalorder %v588, 0
        %v765 = vsub.s32 0, %v588
        %v766 = vsel %vm764, %v765, %v588
        %v767 = vshrl.u32 %v766, 4
        %v768 = vand.u32 %v766, 15
        %v769 = vsub.s32 0, %v768
        %v770 = vsel %vm764, %v769, %v768
        %vm771 = vcmp.lt.s32.totalorder %v589, 0
        %v772 = vsub.s32 0, %v589
        %v773 = vsel %vm771, %v772, %v589
        %v774 = vshrl.u32 %v773, 4
        %v775 = vand.u32 %v773, 15
        %v776 = vsub.s32 0, %v775
        %v777 = vsel %vm771, %v776, %v775
        %vm778 = vcmp.lt.s32.totalorder %v590, 0
        %v779 = vsub.s32 0, %v590
        %v780 = vsel %vm778, %v779, %v590
        %v781 = vshrl.u32 %v780, 4
        %v782 = vand.u32 %v780, 15
        %v783 = vsub.s32 0, %v782
        %v784 = vsel %vm778, %v783, %v782
        %vm785 = vcmp.lt.s32.totalorder %v591, 0
        %v786 = vsub.s32 0, %v591
        %v787 = vsel %vm785, %v786, %v591
        %v788 = vshrl.u32 %v787, 4
        %v789 = vand.u32 %v787, 15
        %v790 = vsub.s32 0, %v789
        %v791 = vsel %vm785, %v790, %v789
        %vm792 = vcmp.lt.s32.totalorder %v592, 0
        %v793 = vsub.s32 0, %v592
        %v794 = vsel %vm792, %v793, %v592
        %v795 = vshrl.u32 %v794, 4
        %v796 = vand.u32 %v794, 15
        %v797 = vsub.s32 0, %v796
        %v798 = vsel %vm792, %v797, %v796
        %vm799 = vcmp.lt.s32.totalorder %v593, 0
        %v800 = vsub.s32 0, %v593
        %v801 = vsel %vm799, %v800, %v593
        %v802 = vshrl.u32 %v801, 4
        %v803 = vand.u32 %v801, 15
        %v804 = vsub.s32 0, %v803
        %v805 = vsel %vm799, %v804, %v803
        %vm806 = vcmp.lt.s32.totalorder %v594, 0
        %v807 = vsub.s32 0, %v594
        %v808 = vsel %vm806, %v807, %v594
        %v809 = vshrl.u32 %v808, 4
        %v810 = vand.u32 %v808, 15
        %v811 = vsub.s32 0, %v810
        %v812 = vsel %vm806, %v811, %v810
        %vm813 = vcmp.lt.s32.totalorder %v595, 0
        %v814 = vsub.s32 0, %v595
        %v815 = vsel %vm813, %v814, %v595
        %v816 = vshrl.u32 %v815, 4
        %v817 = vand.u32 %v815, 15
        %v818 = vsub.s32 0, %v817
        %v819 = vsel %vm813, %v818, %v817
        %vm820 = vcmp.ne.s32.totalorder %v602, 0
        %vm821 = vcmp.ne.s32.totalorder %v609, 0
        %vm822 = vcmp.ne.s32.totalorder %v616, 0
        %vm823 = vcmp.ne.s32.totalorder %v623, 0
        %vm824 = vcmp.ne.s32.totalorder %v630, 0
        %vm825 = vcmp.ne.s32.totalorder %v637, 0
        %vm826 = vcmp.ne.s32.totalorder %v644, 0
        %vm827 = vcmp.ne.s32.totalorder %v651, 0
        %vm828 = vcmp.ne.s32.totalorder %v658, 0
        %vm829 = vcmp.ne.s32.totalorder %v665, 0
        %vm830 = vcmp.ne.s32.totalorder %v672, 0
        %vm831 = vcmp.ne.s32.totalorder %v679, 0
        %vm832 = vcmp.ne.s32.totalorder %v686, 0
        %vm833 = vcmp.ne.s32.totalorder %v693, 0
        %vm834 = vcmp.ne.s32.totalorder %v700, 0
        %vm835 = vcmp.ne.s32.totalorder %v707, 0
        %vm836 = vcmp.ne.s32.totalorder %v714, 0
        %vm837 = vcmp.ne.s32.totalorder %v721, 0
        %vm838 = vcmp.ne.s32.totalorder %v728, 0
        %vm839 = vcmp.ne.s32.totalorder %v735, 0
        %vm840 = vcmp.ne.s32.totalorder %v742, 0
        %vm841 = vcmp.ne.s32.totalorder %v749, 0
        %vm842 = vcmp.ne.s32.totalorder %v756, 0
        %vm843 = vcmp.ne.s32.totalorder %v763, 0
        %vm844 = vcmp.ne.s32.totalorder %v770, 0
        %vm845 = vcmp.ne.s32.totalorder %v777, 0
        %vm846 = vcmp.ne.s32.totalorder %v784, 0
        %vm847 = vcmp.ne.s32.totalorder %v791, 0
        %vm848 = vcmp.ne.s32.totalorder %v798, 0
        %vm849 = vcmp.ne.s32.totalorder %v805, 0
        %vm850 = vcmp.ne.s32.totalorder %v812, 0
        %vm851 = vcmp.ne.s32.totalorder %v819, 0
        %vm852 = vcmp.lt.s32.totalorder %v602, 0
        %vm853 = vcmp.lt.s32.totalorder %v609, 0
        %vm854 = vcmp.lt.s32.totalorder %v616, 0
        %vm855 = vcmp.lt.s32.totalorder %v623, 0
        %vm856 = vcmp.lt.s32.totalorder %v630, 0
        %vm857 = vcmp.lt.s32.totalorder %v637, 0
        %vm858 = vcmp.lt.s32.totalorder %v644, 0
        %vm859 = vcmp.lt.s32.totalorder %v651, 0
        %vm860 = vcmp.lt.s32.totalorder %v658, 0
        %vm861 = vcmp.lt.s32.totalorder %v665, 0
        %vm862 = vcmp.lt.s32.totalorder %v672, 0
        %vm863 = vcmp.lt.s32.totalorder %v679, 0
        %vm864 = vcmp.lt.s32.totalorder %v686, 0
        %vm865 = vcmp.lt.s32.totalorder %v693, 0
        %vm866 = vcmp.lt.s32.totalorder %v700, 0
        %vm867 = vcmp.lt.s32.totalorder %v707, 0
        %vm868 = vcmp.lt.s32.totalorder %v714, 0
        %vm869 = vcmp.lt.s32.totalorder %v721, 0
        %vm870 = vcmp.lt.s32.totalorder %v728, 0
        %vm871 = vcmp.lt.s32.totalorder %v735, 0
        %vm872 = vcmp.lt.s32.totalorder %v742, 0
        %vm873 = vcmp.lt.s32.totalorder %v749, 0
        %vm874 = vcmp.lt.s32.totalorder %v756, 0
        %vm875 = vcmp.lt.s32.totalorder %v763, 0
        %vm876 = vcmp.lt.s32.totalorder %v770, 0
        %vm877 = vcmp.lt.s32.totalorder %v777, 0
        %vm878 = vcmp.lt.s32.totalorder %v784, 0
        %vm879 = vcmp.lt.s32.totalorder %v791, 0
        %vm880 = vcmp.lt.s32.totalorder %v798, 0
        %vm881 = vcmp.lt.s32.totalorder %v805, 0
        %vm882 = vcmp.lt.s32.totalorder %v812, 0
        %vm883 = vcmp.lt.s32.totalorder %v819, 0
        %vm884 = vmand %vm852, %vm820
        %vm885 = vmand %vm853, %vm821
        %vm886 = vmand %vm854, %vm822
        %vm887 = vmand %vm855, %vm823
        %vm888 = vmand %vm856, %vm824
        %vm889 = vmand %vm857, %vm825
        %vm890 = vmand %vm858, %vm826
        %vm891 = vmand %vm859, %vm827
        %vm892 = vmand %vm860, %vm828
        %vm893 = vmand %vm861, %vm829
        %vm894 = vmand %vm862, %vm830
        %vm895 = vmand %vm863, %vm831
        %vm896 = vmand %vm864, %vm832
        %vm897 = vmand %vm865, %vm833
        %vm898 = vmand %vm866, %vm834
        %vm899 = vmand %vm867, %vm835
        %vm900 = vmand %vm868, %vm836
        %vm901 = vmand %vm869, %vm837
        %vm902 = vmand %vm870, %vm838
        %vm903 = vmand %vm871, %vm839
        %vm904 = vmand %vm872, %vm840
        %vm905 = vmand %vm873, %vm841
        %vm906 = vmand %vm874, %vm842
        %vm907 = vmand %vm875, %vm843
        %vm908 = vmand %vm876, %vm844
        %vm909 = vmand %vm877, %vm845
        %vm910 = vmand %vm878, %vm846
        %vm911 = vmand %vm879, %vm847
        %vm912 = vmand %vm880, %vm848
        %vm913 = vmand %vm881, %vm849
        %vm914 = vmand %vm882, %vm850
        %vm915 = vmand %vm883, %vm851
        %v916 = vadd.s32 %v602, 16
        %v917 = vadd.s32 %v609, 16
        %v918 = vadd.s32 %v616, 16
        %v919 = vadd.s32 %v623, 16
        %v920 = vadd.s32 %v630, 16
        %v921 = vadd.s32 %v637, 16
        %v922 = vadd.s32 %v644, 16
        %v923 = vadd.s32 %v651, 16
        %v924 = vadd.s32 %v658, 16
        %v925 = vadd.s32 %v665, 16
        %v926 = vadd.s32 %v672, 16
        %v927 = vadd.s32 %v679, 16
        %v928 = vadd.s32 %v686, 16
        %v929 = vadd.s32 %v693, 16
        %v930 = vadd.s32 %v700, 16
        %v931 = vadd.s32 %v707, 16
        %v932 = vadd.s32 %v714, 16
        %v933 = vadd.s32 %v721, 16
        %v934 = vadd.s32 %v728, 16
        %v935 = vadd.s32 %v735, 16
        %v936 = vadd.s32 %v742, 16
        %v937 = vadd.s32 %v749, 16
        %v938 = vadd.s32 %v756, 16
        %v939 = vadd.s32 %v763, 16
        %v940 = vadd.s32 %v770, 16
        %v941 = vadd.s32 %v777, 16
        %v942 = vadd.s32 %v784, 16
        %v943 = vadd.s32 %v791, 16
        %v944 = vadd.s32 %v798, 16
        %v945 = vadd.s32 %v805, 16
        %v946 = vadd.s32 %v812, 16
        %v947 = vadd.s32 %v819, 16
        %v948 = vsel %vm884, %v916, %v602
        %v949 = vsel %vm885, %v917, %v609
        %v950 = vsel %vm886, %v918, %v616
        %v951 = vsel %vm887, %v919, %v623
        %v952 = vsel %vm888, %v920, %v630
        %v953 = vsel %vm889, %v921, %v637
        %v954 = vsel %vm890, %v922, %v644
        %v955 = vsel %vm891, %v923, %v651
        %v956 = vsel %vm892, %v924, %v658
        %v957 = vsel %vm893, %v925, %v665
        %v958 = vsel %vm894, %v926, %v672
        %v959 = vsel %vm895, %v927, %v679
        %v960 = vsel %vm896, %v928, %v686
        %v961 = vsel %vm897, %v929, %v693
        %v962 = vsel %vm898, %v930, %v700
        %v963 = vsel %vm899, %v931, %v707
        %v964 = vsel %vm900, %v932, %v714
        %v965 = vsel %vm901, %v933, %v721
        %v966 = vsel %vm902, %v934, %v728
        %v967 = vsel %vm903, %v935, %v735
        %v968 = vsel %vm904, %v936, %v742
        %v969 = vsel %vm905, %v937, %v749
        %v970 = vsel %vm906, %v938, %v756
        %v971 = vsel %vm907, %v939, %v763
        %v972 = vsel %vm908, %v940, %v770
        %v973 = vsel %vm909, %v941, %v777
        %v974 = vsel %vm910, %v942, %v784
        %v975 = vsel %vm911, %v943, %v791
        %v976 = vsel %vm912, %v944, %v798
        %v977 = vsel %vm913, %v945, %v805
        %v978 = vsel %vm914, %v946, %v812
        %v979 = vsel %vm915, %v947, %v819
        %vm980 = vcmp.eq.s32.totalorder %v948, 0
        %vm981 = vcmp.eq.s32.totalorder %v949, 0
        %vm982 = vcmp.eq.s32.totalorder %v950, 0
        %vm983 = vcmp.eq.s32.totalorder %v951, 0
        %vm984 = vcmp.eq.s32.totalorder %v952, 0
        %vm985 = vcmp.eq.s32.totalorder %v953, 0
        %vm986 = vcmp.eq.s32.totalorder %v954, 0
        %vm987 = vcmp.eq.s32.totalorder %v955, 0
        %vm988 = vcmp.eq.s32.totalorder %v956, 0
        %vm989 = vcmp.eq.s32.totalorder %v957, 0
        %vm990 = vcmp.eq.s32.totalorder %v958, 0
        %vm991 = vcmp.eq.s32.totalorder %v959, 0
        %vm992 = vcmp.eq.s32.totalorder %v960, 0
        %vm993 = vcmp.eq.s32.totalorder %v961, 0
        %vm994 = vcmp.eq.s32.totalorder %v962, 0
        %vm995 = vcmp.eq.s32.totalorder %v963, 0
        %vm996 = vcmp.eq.s32.totalorder %v964, 0
        %vm997 = vcmp.eq.s32.totalorder %v965, 0
        %vm998 = vcmp.eq.s32.totalorder %v966, 0
        %vm999 = vcmp.eq.s32.totalorder %v967, 0
        %vm1000 = vcmp.eq.s32.totalorder %v968, 0
        %vm1001 = vcmp.eq.s32.totalorder %v969, 0
        %vm1002 = vcmp.eq.s32.totalorder %v970, 0
        %vm1003 = vcmp.eq.s32.totalorder %v971, 0
        %vm1004 = vcmp.eq.s32.totalorder %v972, 0
        %vm1005 = vcmp.eq.s32.totalorder %v973, 0
        %vm1006 = vcmp.eq.s32.totalorder %v974, 0
        %vm1007 = vcmp.eq.s32.totalorder %v975, 0
        %vm1008 = vcmp.eq.s32.totalorder %v976, 0
        %vm1009 = vcmp.eq.s32.totalorder %v977, 0
        %vm1010 = vcmp.eq.s32.totalorder %v978, 0
        %vm1011 = vcmp.eq.s32.totalorder %v979, 0
        %vm1012 = vcmp.eq.s32.totalorder %v948, 15
        %vm1013 = vcmp.eq.s32.totalorder %v949, 15
        %vm1014 = vcmp.eq.s32.totalorder %v950, 15
        %vm1015 = vcmp.eq.s32.totalorder %v951, 15
        %vm1016 = vcmp.eq.s32.totalorder %v952, 15
        %vm1017 = vcmp.eq.s32.totalorder %v953, 15
        %vm1018 = vcmp.eq.s32.totalorder %v954, 15
        %vm1019 = vcmp.eq.s32.totalorder %v955, 15
        %vm1020 = vcmp.eq.s32.totalorder %v956, 15
        %vm1021 = vcmp.eq.s32.totalorder %v957, 15
        %vm1022 = vcmp.eq.s32.totalorder %v958, 15
        %vm1023 = vcmp.eq.s32.totalorder %v959, 15
        %vm1024 = vcmp.eq.s32.totalorder %v960, 15
        %vm1025 = vcmp.eq.s32.totalorder %v961, 15
        %vm1026 = vcmp.eq.s32.totalorder %v962, 15
        %vm1027 = vcmp.eq.s32.totalorder %v963, 15
        %vm1028 = vcmp.eq.s32.totalorder %v964, 15
        %vm1029 = vcmp.eq.s32.totalorder %v965, 15
        %vm1030 = vcmp.eq.s32.totalorder %v966, 15
        %vm1031 = vcmp.eq.s32.totalorder %v967, 15
        %vm1032 = vcmp.eq.s32.totalorder %v968, 15
        %vm1033 = vcmp.eq.s32.totalorder %v969, 15
        %vm1034 = vcmp.eq.s32.totalorder %v970, 15
        %vm1035 = vcmp.eq.s32.totalorder %v971, 15
        %vm1036 = vcmp.eq.s32.totalorder %v972, 15
        %vm1037 = vcmp.eq.s32.totalorder %v973, 15
        %vm1038 = vcmp.eq.s32.totalorder %v974, 15
        %vm1039 = vcmp.eq.s32.totalorder %v975, 15
        %vm1040 = vcmp.eq.s32.totalorder %v976, 15
        %vm1041 = vcmp.eq.s32.totalorder %v977, 15
        %vm1042 = vcmp.eq.s32.totalorder %v978, 15
        %vm1043 = vcmp.eq.s32.totalorder %v979, 15
        %v1044 = vld [vmem:[%s237] sm:$0xff]
        %v1045 = vld [vmem:[%s237 + $0x8] sm:$0xff]
        %v1046 = vld [vmem:[%s237 + $0x10] sm:$0xff]
        %v1047 = vld [vmem:[%s237 + $0x18] sm:$0xff]
        %v1048 = vld [vmem:[%s237 + $0x20] sm:$0xff]
        %v1049 = vld [vmem:[%s237 + $0x28] sm:$0xff]
        %v1050 = vld [vmem:[%s237 + $0x30] sm:$0xff]
        %v1051 = vld [vmem:[%s237 + $0x38] sm:$0xff]
        %v1052 = vld [vmem:[%s237 + $0x40] sm:$0xff]
        %v1053 = vld [vmem:[%s237 + $0x48] sm:$0xff]
        %v1054 = vld [vmem:[%s237 + $0x50] sm:$0xff]
        %v1055 = vld [vmem:[%s237 + $0x58] sm:$0xff]
        %v1056 = vld [vmem:[%s237 + $0x60] sm:$0xff]
        %v1057 = vld [vmem:[%s237 + $0x68] sm:$0xff]
        %v1058 = vld [vmem:[%s237 + $0x70] sm:$0xff]
        %v1059 = vld [vmem:[%s237 + $0x78] sm:$0xff]
        %v1060 = vld [vmem:[%s237 + $0x80] sm:$0xff]
        %v1061 = vld [vmem:[%s237 + $0x88] sm:$0xff]
        %v1062 = vld [vmem:[%s237 + $0x90] sm:$0xff]
        %v1063 = vld [vmem:[%s237 + $0x98] sm:$0xff]
        %v1064 = vld [vmem:[%s237 + $0xa0] sm:$0xff]
        %v1065 = vld [vmem:[%s237 + $0xa8] sm:$0xff]
        %v1066 = vld [vmem:[%s237 + $0xb0] sm:$0xff]
        %v1067 = vld [vmem:[%s237 + $0xb8] sm:$0xff]
        %v1068 = vld [vmem:[%s237 + $0xc0] sm:$0xff]
        %v1069 = vld [vmem:[%s237 + $0xc8] sm:$0xff]
        %v1070 = vld [vmem:[%s237 + $0xd0] sm:$0xff]
        %v1071 = vld [vmem:[%s237 + $0xd8] sm:$0xff]
        %v1072 = vld [vmem:[%s237 + $0xe0] sm:$0xff]
        %v1073 = vld [vmem:[%s237 + $0xe8] sm:$0xff]
        %v1074 = vld [vmem:[%s237 + $0xf0] sm:$0xff]
        %v1075 = vld [vmem:[%s237 + $0xf8] sm:$0xff]
        %v1076 = vrot.slane %v1044, 7
        %v1077 = vrot.slane %v1045, 7
        %v1078 = vrot.slane %v1046, 7
        %v1079 = vrot.slane %v1047, 7
        %v1080 = vrot.slane %v1048, 7
        %v1081 = vrot.slane %v1049, 7
        %v1082 = vrot.slane %v1050, 7
        %v1083 = vrot.slane %v1051, 7
        %v1084 = vrot.slane %v1052, 7
        %v1085 = vrot.slane %v1053, 7
        %v1086 = vrot.slane %v1054, 7
        %v1087 = vrot.slane %v1055, 7
        %v1088 = vrot.slane %v1056, 7
        %v1089 = vrot.slane %v1057, 7
        %v1090 = vrot.slane %v1058, 7
        %v1091 = vrot.slane %v1059, 7
        %v1092 = vrot.slane %v1060, 7
        %v1093 = vrot.slane %v1061, 7
        %v1094 = vrot.slane %v1062, 7
        %v1095 = vrot.slane %v1063, 7
        %v1096 = vrot.slane %v1064, 7
        %v1097 = vrot.slane %v1065, 7
        %v1098 = vrot.slane %v1066, 7
        %v1099 = vrot.slane %v1067, 7
        %v1100 = vrot.slane %v1068, 7
        %v1101 = vrot.slane %v1069, 7
        %v1102 = vrot.slane %v1070, 7
        %v1103 = vrot.slane %v1071, 7
        %v1104 = vrot.slane %v1072, 7
        %v1105 = vrot.slane %v1073, 7
        %v1106 = vrot.slane %v1074, 7
        %v1107 = vrot.slane %v1075, 7
        %vm1108 = vcmp.lt.s32.totalorder %v564, 1
        %v1109 = vsel %vm1108, %v1106, %v1107
        %v1110 = vsel %vm1108, %v1105, %v1106
        %v1111 = vsel %vm1108, %v1104, %v1105
        %v1112 = vsel %vm1108, %v1103, %v1104
        %v1113 = vsel %vm1108, %v1102, %v1103
        %v1114 = vsel %vm1108, %v1101, %v1102
        %v1115 = vsel %vm1108, %v1100, %v1101
        %v1116 = vsel %vm1108, %v1099, %v1100
        %v1117 = vsel %vm1108, %v1098, %v1099
        %v1118 = vsel %vm1108, %v1097, %v1098
        %v1119 = vsel %vm1108, %v1096, %v1097
        %v1120 = vsel %vm1108, %v1095, %v1096
        %v1121 = vsel %vm1108, %v1094, %v1095
        %v1122 = vsel %vm1108, %v1093, %v1094
        %v1123 = vsel %vm1108, %v1092, %v1093
        %v1124 = vsel %vm1108, %v1091, %v1092
        %v1125 = vsel %vm1108, %v1090, %v1091
        %v1126 = vsel %vm1108, %v1089, %v1090
        %v1127 = vsel %vm1108, %v1088, %v1089
        %v1128 = vsel %vm1108, %v1087, %v1088
        %v1129 = vsel %vm1108, %v1086, %v1087
        %v1130 = vsel %vm1108, %v1085, %v1086
        %v1131 = vsel %vm1108, %v1084, %v1085
        %v1132 = vsel %vm1108, %v1083, %v1084
        %v1133 = vsel %vm1108, %v1082, %v1083
        %v1134 = vsel %vm1108, %v1081, %v1082
        %v1135 = vsel %vm1108, %v1080, %v1081
        %v1136 = vsel %vm1108, %v1079, %v1080
        %v1137 = vsel %vm1108, %v1078, %v1079
        %v1138 = vsel %vm1108, %v1077, %v1078
        %v1139 = vsel %vm1108, %v1076, %v1077
        %v1140 = vsel %vm1108, %v1107, %v1076
        %v1141 = vrot.slane %v1044, 1
        %v1142 = vrot.slane %v1045, 1
        %v1143 = vrot.slane %v1046, 1
        %v1144 = vrot.slane %v1047, 1
        %v1145 = vrot.slane %v1048, 1
        %v1146 = vrot.slane %v1049, 1
        %v1147 = vrot.slane %v1050, 1
        %v1148 = vrot.slane %v1051, 1
        %v1149 = vrot.slane %v1052, 1
        %v1150 = vrot.slane %v1053, 1
        %v1151 = vrot.slane %v1054, 1
        %v1152 = vrot.slane %v1055, 1
        %v1153 = vrot.slane %v1056, 1
        %v1154 = vrot.slane %v1057, 1
        %v1155 = vrot.slane %v1058, 1
        %v1156 = vrot.slane %v1059, 1
        %v1157 = vrot.slane %v1060, 1
        %v1158 = vrot.slane %v1061, 1
        %v1159 = vrot.slane %v1062, 1
        %v1160 = vrot.slane %v1063, 1
        %v1161 = vrot.slane %v1064, 1
        %v1162 = vrot.slane %v1065, 1
        %v1163 = vrot.slane %v1066, 1
        %v1164 = vrot.slane %v1067, 1
        %v1165 = vrot.slane %v1068, 1
        %v1166 = vrot.slane %v1069, 1
        %v1167 = vrot.slane %v1070, 1
        %v1168 = vrot.slane %v1071, 1
        %v1169 = vrot.slane %v1072, 1
        %v1170 = vrot.slane %v1073, 1
        %v1171 = vrot.slane %v1074, 1
        %v1172 = vrot.slane %v1075, 1
        %vm1173 = vcmp.lt.s32.totalorder %v564, 7
        %v1174 = vsel %vm1173, %v1171, %v1172
        %v1175 = vsel %vm1173, %v1170, %v1171
        %v1176 = vsel %vm1173, %v1169, %v1170
        %v1177 = vsel %vm1173, %v1168, %v1169
        %v1178 = vsel %vm1173, %v1167, %v1168
        %v1179 = vsel %vm1173, %v1166, %v1167
        %v1180 = vsel %vm1173, %v1165, %v1166
        %v1181 = vsel %vm1173, %v1164, %v1165
        %v1182 = vsel %vm1173, %v1163, %v1164
        %v1183 = vsel %vm1173, %v1162, %v1163
        %v1184 = vsel %vm1173, %v1161, %v1162
        %v1185 = vsel %vm1173, %v1160, %v1161
        %v1186 = vsel %vm1173, %v1159, %v1160
        %v1187 = vsel %vm1173, %v1158, %v1159
        %v1188 = vsel %vm1173, %v1157, %v1158
        %v1189 = vsel %vm1173, %v1156, %v1157
        %v1190 = vsel %vm1173, %v1155, %v1156
        %v1191 = vsel %vm1173, %v1154, %v1155
        %v1192 = vsel %vm1173, %v1153, %v1154
        %v1193 = vsel %vm1173, %v1152, %v1153
        %v1194 = vsel %vm1173, %v1151, %v1152
        %v1195 = vsel %vm1173, %v1150, %v1151
        %v1196 = vsel %vm1173, %v1149, %v1150
        %v1197 = vsel %vm1173, %v1148, %v1149
        %v1198 = vsel %vm1173, %v1147, %v1148
        %v1199 = vsel %vm1173, %v1146, %v1147
        %v1200 = vsel %vm1173, %v1145, %v1146
        %v1201 = vsel %vm1173, %v1144, %v1145
        %v1202 = vsel %vm1173, %v1143, %v1144
        %v1203 = vsel %vm1173, %v1142, %v1143
        %v1204 = vsel %vm1173, %v1141, %v1142
        %v1205 = vsel %vm1173, %v1172, %v1141
        %v1206 = vsel %vm980, 1, 0
        %v1207 = vsel %vm981, 1, 0
        %v1208 = vsel %vm982, 1, 0
        %v1209 = vsel %vm983, 1, 0
        %v1210 = vsel %vm984, 1, 0
        %v1211 = vsel %vm985, 1, 0
        %v1212 = vsel %vm986, 1, 0
        %v1213 = vsel %vm987, 1, 0
        %v1214 = vsel %vm988, 1, 0
        %v1215 = vsel %vm989, 1, 0
        %v1216 = vsel %vm990, 1, 0
        %v1217 = vsel %vm991, 1, 0
        %v1218 = vsel %vm992, 1, 0
        %v1219 = vsel %vm993, 1, 0
        %v1220 = vsel %vm994, 1, 0
        %v1221 = vsel %vm995, 1, 0
        %v1222 = vsel %vm996, 1, 0
        %v1223 = vsel %vm997, 1, 0
        %v1224 = vsel %vm998, 1, 0
        %v1225 = vsel %vm999, 1, 0
        %v1226 = vsel %vm1000, 1, 0
        %v1227 = vsel %vm1001, 1, 0
        %v1228 = vsel %vm1002, 1, 0
        %v1229 = vsel %vm1003, 1, 0
        %v1230 = vsel %vm1004, 1, 0
        %v1231 = vsel %vm1005, 1, 0
        %v1232 = vsel %vm1006, 1, 0
        %v1233 = vsel %vm1007, 1, 0
        %v1234 = vsel %vm1008, 1, 0
        %v1235 = vsel %vm1009, 1, 0
        %v1236 = vsel %vm1010, 1, 0
        %v1237 = vsel %vm1011, 1, 0
        %vm1238 = vcmp.eq.s32.totalorder %v1206, 1
        %vm1239 = vcmp.eq.s32.totalorder %v1207, 1
        %vm1240 = vcmp.eq.s32.totalorder %v1208, 1
        %vm1241 = vcmp.eq.s32.totalorder %v1209, 1
        %vm1242 = vcmp.eq.s32.totalorder %v1210, 1
        %vm1243 = vcmp.eq.s32.totalorder %v1211, 1
        %vm1244 = vcmp.eq.s32.totalorder %v1212, 1
        %vm1245 = vcmp.eq.s32.totalorder %v1213, 1
        %vm1246 = vcmp.eq.s32.totalorder %v1214, 1
        %vm1247 = vcmp.eq.s32.totalorder %v1215, 1
        %vm1248 = vcmp.eq.s32.totalorder %v1216, 1
        %vm1249 = vcmp.eq.s32.totalorder %v1217, 1
        %vm1250 = vcmp.eq.s32.totalorder %v1218, 1
        %vm1251 = vcmp.eq.s32.totalorder %v1219, 1
        %vm1252 = vcmp.eq.s32.totalorder %v1220, 1
        %vm1253 = vcmp.eq.s32.totalorder %v1221, 1
        %vm1254 = vcmp.eq.s32.totalorder %v1222, 1
        %vm1255 = vcmp.eq.s32.totalorder %v1223, 1
        %vm1256 = vcmp.eq.s32.totalorder %v1224, 1
        %vm1257 = vcmp.eq.s32.totalorder %v1225, 1
        %vm1258 = vcmp.eq.s32.totalorder %v1226, 1
        %vm1259 = vcmp.eq.s32.totalorder %v1227, 1
        %vm1260 = vcmp.eq.s32.totalorder %v1228, 1
        %vm1261 = vcmp.eq.s32.totalorder %v1229, 1
        %vm1262 = vcmp.eq.s32.totalorder %v1230, 1
        %vm1263 = vcmp.eq.s32.totalorder %v1231, 1
        %vm1264 = vcmp.eq.s32.totalorder %v1232, 1
        %vm1265 = vcmp.eq.s32.totalorder %v1233, 1
        %vm1266 = vcmp.eq.s32.totalorder %v1234, 1
        %vm1267 = vcmp.eq.s32.totalorder %v1235, 1
        %vm1268 = vcmp.eq.s32.totalorder %v1236, 1
        %vm1269 = vcmp.eq.s32.totalorder %v1237, 1
        %v1270 = vsel %vm1238, %v1204, %v1140
        %v1271 = vsel %vm1239, %v1203, %v1139
        %v1272 = vsel %vm1240, %v1202, %v1138
        %v1273 = vsel %vm1241, %v1201, %v1137
        %v1274 = vsel %vm1242, %v1200, %v1136
        %v1275 = vsel %vm1243, %v1199, %v1135
        %v1276 = vsel %vm1244, %v1198, %v1134
        %v1277 = vsel %vm1245, %v1197, %v1133
        %v1278 = vsel %vm1246, %v1196, %v1132
        %v1279 = vsel %vm1247, %v1195, %v1131
        %v1280 = vsel %vm1248, %v1194, %v1130
        %v1281 = vsel %vm1249, %v1193, %v1129
        %v1282 = vsel %vm1250, %v1192, %v1128
        %v1283 = vsel %vm1251, %v1191, %v1127
        %v1284 = vsel %vm1252, %v1190, %v1126
        %v1285 = vsel %vm1253, %v1189, %v1125
        %v1286 = vsel %vm1254, %v1188, %v1124
        %v1287 = vsel %vm1255, %v1187, %v1123
        %v1288 = vsel %vm1256, %v1186, %v1122
        %v1289 = vsel %vm1257, %v1185, %v1121
        %v1290 = vsel %vm1258, %v1184, %v1120
        %v1291 = vsel %vm1259, %v1183, %v1119
        %v1292 = vsel %vm1260, %v1182, %v1118
        %v1293 = vsel %vm1261, %v1181, %v1117
        %v1294 = vsel %vm1262, %v1180, %v1116
        %v1295 = vsel %vm1263, %v1179, %v1115
        %v1296 = vsel %vm1264, %v1178, %v1114
        %v1297 = vsel %vm1265, %v1177, %v1113
        %v1298 = vsel %vm1266, %v1176, %v1112
        %v1299 = vsel %vm1267, %v1175, %v1111
        %v1300 = vsel %vm1268, %v1174, %v1110
        %v1301 = vsel %vm1269, %v1205, %v1109
        %v1302 = vsel %vm1012, 1, 0
        %v1303 = vsel %vm1013, 1, 0
        %v1304 = vsel %vm1014, 1, 0
        %v1305 = vsel %vm1015, 1, 0
        %v1306 = vsel %vm1016, 1, 0
        %v1307 = vsel %vm1017, 1, 0
        %v1308 = vsel %vm1018, 1, 0
        %v1309 = vsel %vm1019, 1, 0
        %v1310 = vsel %vm1020, 1, 0
        %v1311 = vsel %vm1021, 1, 0
        %v1312 = vsel %vm1022, 1, 0
        %v1313 = vsel %vm1023, 1, 0
        %v1314 = vsel %vm1024, 1, 0
        %v1315 = vsel %vm1025, 1, 0
        %v1316 = vsel %vm1026, 1, 0
        %v1317 = vsel %vm1027, 1, 0
        %v1318 = vsel %vm1028, 1, 0
        %v1319 = vsel %vm1029, 1, 0
        %v1320 = vsel %vm1030, 1, 0
        %v1321 = vsel %vm1031, 1, 0
        %v1322 = vsel %vm1032, 1, 0
        %v1323 = vsel %vm1033, 1, 0
        %v1324 = vsel %vm1034, 1, 0
        %v1325 = vsel %vm1035, 1, 0
        %v1326 = vsel %vm1036, 1, 0
        %v1327 = vsel %vm1037, 1, 0
        %v1328 = vsel %vm1038, 1, 0
        %v1329 = vsel %vm1039, 1, 0
        %v1330 = vsel %vm1040, 1, 0
        %v1331 = vsel %vm1041, 1, 0
        %v1332 = vsel %vm1042, 1, 0
        %v1333 = vsel %vm1043, 1, 0
        %vm1334 = vcmp.eq.s32.totalorder %v1302, 1
        %vm1335 = vcmp.eq.s32.totalorder %v1303, 1
        %vm1336 = vcmp.eq.s32.totalorder %v1304, 1
        %vm1337 = vcmp.eq.s32.totalorder %v1305, 1
        %vm1338 = vcmp.eq.s32.totalorder %v1306, 1
        %vm1339 = vcmp.eq.s32.totalorder %v1307, 1
        %vm1340 = vcmp.eq.s32.totalorder %v1308, 1
        %vm1341 = vcmp.eq.s32.totalorder %v1309, 1
        %vm1342 = vcmp.eq.s32.totalorder %v1310, 1
        %vm1343 = vcmp.eq.s32.totalorder %v1311, 1
        %vm1344 = vcmp.eq.s32.totalorder %v1312, 1
        %vm1345 = vcmp.eq.s32.totalorder %v1313, 1
        %vm1346 = vcmp.eq.s32.totalorder %v1314, 1
        %vm1347 = vcmp.eq.s32.totalorder %v1315, 1
        %vm1348 = vcmp.eq.s32.totalorder %v1316, 1
        %vm1349 = vcmp.eq.s32.totalorder %v1317, 1
        %vm1350 = vcmp.eq.s32.totalorder %v1318, 1
        %vm1351 = vcmp.eq.s32.totalorder %v1319, 1
        %vm1352 = vcmp.eq.s32.totalorder %v1320, 1
        %vm1353 = vcmp.eq.s32.totalorder %v1321, 1
        %vm1354 = vcmp.eq.s32.totalorder %v1322, 1
        %vm1355 = vcmp.eq.s32.totalorder %v1323, 1
        %vm1356 = vcmp.eq.s32.totalorder %v1324, 1
        %vm1357 = vcmp.eq.s32.totalorder %v1325, 1
        %vm1358 = vcmp.eq.s32.totalorder %v1326, 1
        %vm1359 = vcmp.eq.s32.totalorder %v1327, 1
        %vm1360 = vcmp.eq.s32.totalorder %v1328, 1
        %vm1361 = vcmp.eq.s32.totalorder %v1329, 1
        %vm1362 = vcmp.eq.s32.totalorder %v1330, 1
        %vm1363 = vcmp.eq.s32.totalorder %v1331, 1
        %vm1364 = vcmp.eq.s32.totalorder %v1332, 1
        %vm1365 = vcmp.eq.s32.totalorder %v1333, 1
        %v1366 = vsel %vm1334, %v1140, %v1204
        %v1367 = vsel %vm1335, %v1139, %v1203
        %v1368 = vsel %vm1336, %v1138, %v1202
        %v1369 = vsel %vm1337, %v1137, %v1201
        %v1370 = vsel %vm1338, %v1136, %v1200
        %v1371 = vsel %vm1339, %v1135, %v1199
        %v1372 = vsel %vm1340, %v1134, %v1198
        %v1373 = vsel %vm1341, %v1133, %v1197
        %v1374 = vsel %vm1342, %v1132, %v1196
        %v1375 = vsel %vm1343, %v1131, %v1195
        %v1376 = vsel %vm1344, %v1130, %v1194
        %v1377 = vsel %vm1345, %v1129, %v1193
        %v1378 = vsel %vm1346, %v1128, %v1192
        %v1379 = vsel %vm1347, %v1127, %v1191
        %v1380 = vsel %vm1348, %v1126, %v1190
        %v1381 = vsel %vm1349, %v1125, %v1189
        %v1382 = vsel %vm1350, %v1124, %v1188
        %v1383 = vsel %vm1351, %v1123, %v1187
        %v1384 = vsel %vm1352, %v1122, %v1186
        %v1385 = vsel %vm1353, %v1121, %v1185
        %v1386 = vsel %vm1354, %v1120, %v1184
        %v1387 = vsel %vm1355, %v1119, %v1183
        %v1388 = vsel %vm1356, %v1118, %v1182
        %v1389 = vsel %vm1357, %v1117, %v1181
        %v1390 = vsel %vm1358, %v1116, %v1180
        %v1391 = vsel %vm1359, %v1115, %v1179
        %v1392 = vsel %vm1360, %v1114, %v1178
        %v1393 = vsel %vm1361, %v1113, %v1177
        %v1394 = vsel %vm1362, %v1112, %v1176
        %v1395 = vsel %vm1363, %v1111, %v1175
        %v1396 = vsel %vm1364, %v1110, %v1174
        %v1397 = vsel %vm1365, %v1109, %v1205
        %v1398 = vpack.c.bf16 %v1271, %v1270
        %v1399 = vpack.c.bf16 %v1273, %v1272
        %v1400 = vpack.c.bf16 %v1275, %v1274
        %v1401 = vpack.c.bf16 %v1277, %v1276
        %v1402 = vpack.c.bf16 %v1279, %v1278
        %v1403 = vpack.c.bf16 %v1281, %v1280
        %v1404 = vpack.c.bf16 %v1283, %v1282
        %v1405 = vpack.c.bf16 %v1285, %v1284
        %v1406 = vpack.c.bf16 %v1287, %v1286
        %v1407 = vpack.c.bf16 %v1289, %v1288
        %v1408 = vpack.c.bf16 %v1291, %v1290
        %v1409 = vpack.c.bf16 %v1293, %v1292
        %v1410 = vpack.c.bf16 %v1295, %v1294
        %v1411 = vpack.c.bf16 %v1297, %v1296
        %v1412 = vpack.c.bf16 %v1299, %v1298
        %v1413 = vpack.c.bf16 %v1301, %v1300
        %v1414 = vpack.c.bf16 %v1045, %v1044
        %v1415 = vpack.c.bf16 %v1047, %v1046
        %v1416 = vpack.c.bf16 %v1049, %v1048
        %v1417 = vpack.c.bf16 %v1051, %v1050
        %v1418 = vpack.c.bf16 %v1053, %v1052
        %v1419 = vpack.c.bf16 %v1055, %v1054
        %v1420 = vpack.c.bf16 %v1057, %v1056
        %v1421 = vpack.c.bf16 %v1059, %v1058
        %v1422 = vpack.c.bf16 %v1061, %v1060
        %v1423 = vpack.c.bf16 %v1063, %v1062
        %v1424 = vpack.c.bf16 %v1065, %v1064
        %v1425 = vpack.c.bf16 %v1067, %v1066
        %v1426 = vpack.c.bf16 %v1069, %v1068
        %v1427 = vpack.c.bf16 %v1071, %v1070
        %v1428 = vpack.c.bf16 %v1073, %v1072
        %v1429 = vpack.c.bf16 %v1075, %v1074
        %v1430 = vpack.c.bf16 %v1367, %v1366
        %v1431 = vpack.c.bf16 %v1369, %v1368
        %v1432 = vpack.c.bf16 %v1371, %v1370
        %v1433 = vpack.c.bf16 %v1373, %v1372
        %v1434 = vpack.c.bf16 %v1375, %v1374
        %v1435 = vpack.c.bf16 %v1377, %v1376
        %v1436 = vpack.c.bf16 %v1379, %v1378
        %v1437 = vpack.c.bf16 %v1381, %v1380
        %v1438 = vpack.c.bf16 %v1383, %v1382
        %v1439 = vpack.c.bf16 %v1385, %v1384
        %v1440 = vpack.c.bf16 %v1387, %v1386
        %v1441 = vpack.c.bf16 %v1389, %v1388
        %v1442 = vpack.c.bf16 %v1391, %v1390
        %v1443 = vpack.c.bf16 %v1393, %v1392
        %v1444 = vpack.c.bf16 %v1395, %v1394
        %v1445 = vpack.c.bf16 %v1397, %v1396
        %v1494 = vunpack.c.l.b16 %v273
        %v1495 = vunpack.c.l.b16 %v274
        %v1496 = vunpack.c.l.b16 %v275
        %v1497 = vunpack.c.l.b16 %v276
        %v1498 = vunpack.c.l.b16 %v277
        %v1499 = vunpack.c.l.b16 %v278
        %v1500 = vunpack.c.l.b16 %v279
        %v1501 = vunpack.c.l.b16 %v280
        %v1502 = vunpack.c.l.b16 %v281
        %v1503 = vunpack.c.l.b16 %v282
        %v1504 = vunpack.c.l.b16 %v283
        %v1505 = vunpack.c.l.b16 %v284
        %v1506 = vunpack.c.l.b16 %v285
        %v1507 = vunpack.c.l.b16 %v286
        %v1508 = vunpack.c.l.b16 %v287
        %v1509 = vunpack.c.l.b16 %v288
        %v1510 = vunpack.c.l.b16 %v289
        %v1511 = vunpack.c.l.b16 %v290
        %v1512 = vunpack.c.l.b16 %v291
        %v1513 = vunpack.c.l.b16 %v292
        %v1514 = vunpack.c.l.b16 %v293
        %v1515 = vunpack.c.l.b16 %v294
        %v1516 = vunpack.c.l.b16 %v295
        %v1517 = vunpack.c.l.b16 %v296
        %v1518 = vunpack.c.l.b16 %v297
        %v1519 = vunpack.c.l.b16 %v298
        %v1520 = vunpack.c.l.b16 %v299
        %v1521 = vunpack.c.l.b16 %v300
        %v1522 = vunpack.c.l.b16 %v301
        %v1523 = vunpack.c.l.b16 %v302
        %v1524 = vunpack.c.l.b16 %v303
        %v1525 = vunpack.c.l.b16 %v304
        %v1526 = vunpack.c.l.b16 %v305
        %v1527 = vunpack.c.l.b16 %v306
        %v1528 = vunpack.c.l.b16 %v307
        %v1529 = vunpack.c.l.b16 %v308
        %v1530 = vunpack.c.l.b16 %v309
        %v1531 = vunpack.c.l.b16 %v310
        %v1532 = vunpack.c.l.b16 %v311
        %v1533 = vunpack.c.l.b16 %v312
        %v1534 = vunpack.c.l.b16 %v313
        %v1535 = vunpack.c.l.b16 %v314
        %v1536 = vunpack.c.l.b16 %v315
        %v1537 = vunpack.c.l.b16 %v316
        %v1538 = vunpack.c.l.b16 %v317
        %v1539 = vunpack.c.l.b16 %v318
        %v1540 = vunpack.c.l.b16 %v319
        %v1541 = vunpack.c.l.b16 %v320
        %v1542 = vpack.c.b16 %v1495, %v1494
        %v1543 = vpack.c.b16 %v1497, %v1496
        %v1544 = vpack.c.b16 %v1499, %v1498
        %v1545 = vpack.c.b16 %v1501, %v1500
        %v1546 = vpack.c.b16 %v1503, %v1502
        %v1547 = vpack.c.b16 %v1505, %v1504
        %v1548 = vpack.c.b16 %v1507, %v1506
        %v1549 = vpack.c.b16 %v1509, %v1508
        %v1550 = vpack.c.b16 %v1511, %v1510
        %v1551 = vpack.c.b16 %v1513, %v1512
        %v1552 = vpack.c.b16 %v1515, %v1514
        %v1553 = vpack.c.b16 %v1517, %v1516
        %v1554 = vpack.c.b16 %v1519, %v1518
        %v1555 = vpack.c.b16 %v1521, %v1520
        %v1556 = vpack.c.b16 %v1523, %v1522
        %v1557 = vpack.c.b16 %v1525, %v1524
        %v1558 = vpack.c.b16 %v1527, %v1526
        %v1559 = vpack.c.b16 %v1529, %v1528
        %v1560 = vpack.c.b16 %v1531, %v1530
        %v1561 = vpack.c.b16 %v1533, %v1532
        %v1562 = vpack.c.b16 %v1535, %v1534
        %v1563 = vpack.c.b16 %v1537, %v1536
        %v1564 = vpack.c.b16 %v1539, %v1538
        %v1565 = vpack.c.b16 %v1541, %v1540
        %1590 = vmatprep.subr.bf16.mxu0 0
        %1591 = vmatpush1.bf16.msra.mxu0 %v1549
        %1592 = vmatprep.subr.bf16.mxu0 0
        %1593 = vmatpush1.bf16.msra.mxu0 %v1548
        %1594 = vmatprep.subr.bf16.mxu0 0
        %1595 = vmatpush1.bf16.msra.mxu0 %v1547
        %1596 = vmatprep.subr.bf16.mxu0 0
        %1597 = vmatpush1.bf16.msra.mxu0 %v1546
        %1598 = vmatprep.subr.bf16.mxu0 0
        %1599 = vmatpush1.bf16.msra.mxu0 %v1545
        %1600 = vmatprep.subr.bf16.mxu0 0
        %1601 = vmatpush1.bf16.msra.mxu0 %v1544
        %1602 = vmatprep.subr.bf16.mxu0 0
        %1603 = vmatpush1.bf16.msra.mxu0 %v1543
        %1604 = vmatprep.subr.bf16.mxu0 0
        %1605 = vmatpush1.bf16.msra.mxu0 %v1542
        %1606 = vmatprep.subr.bf16.mxu0 0
        %1607 = vmatpush2.bf16.msra.mxu0 %v1557
        %1608 = vmatprep.subr.bf16.mxu0 0
        %1609 = vmatpush2.bf16.msra.mxu0 %v1556
        %1610 = vmatprep.subr.bf16.mxu0 0
        %1611 = vmatpush2.bf16.msra.mxu0 %v1555
        %1612 = vmatprep.subr.bf16.mxu0 0
        %1613 = vmatpush2.bf16.msra.mxu0 %v1554
        %1614 = vmatprep.subr.bf16.mxu0 0
        %1615 = vmatpush2.bf16.msra.mxu0 %v1553
        %1616 = vmatprep.subr.bf16.mxu0 0
        %1617 = vmatpush2.bf16.msra.mxu0 %v1552
        %1618 = vmatprep.subr.bf16.mxu0 0
        %1619 = vmatpush2.bf16.msra.mxu0 %v1551
        %1620 = vmatprep.subr.bf16.mxu0 0
        %1621 = vmatpush2.bf16.msra.mxu0 %v1550
        %1622 = vmatprep.mubr.bf16.mxu0 %v1415
        %1623 = vmatmul.mubr.bf16.gmra.mxu0 %v1399
        %v1624 = vpop.f32.mrf.mxu0
        %v1625 = vadd.f32 0.0, %v1624
        %v1626 = vpop.f32.mrf.mxu0
        %v1627 = vpop.f32.mrf.mxu0
        %v1628 = vadd.f32 0.0, %v1627
        %v1629 = vpop.f32.mrf.mxu0
        %1630 = vmatprep.mubr.bf16.mxu0 %v1414
        %1631 = vmatmul.mubr.bf16.gmra.mxu0 %v1398
        %v1632 = vpop.f32.mrf.mxu0
        %v1633 = vadd.f32 0.0, %v1632
        %v1634 = vpop.f32.mrf.mxu0
        %v1635 = vpop.f32.mrf.mxu0
        %v1636 = vadd.f32 0.0, %v1635
        %v1637 = vpop.f32.mrf.mxu0
        %1638 = vmatprep.mubr.bf16.mxu0 %v1415
        %1639 = vmatmul.mubr.bf16.gmra.mxu0 %v1399
        %v1640 = vpop.f32.mrf.mxu0
        %v1641 = vadd.f32 0.0, %v1640
        %v1642 = vpop.f32.mrf.mxu0
        %v1643 = vpop.f32.mrf.mxu0
        %v1644 = vadd.f32 0.0, %v1643
        %v1645 = vpop.f32.mrf.mxu0
        %1646 = vmatprep.mubr.bf16.mxu0 %v1416
        %1647 = vmatmul.mubr.bf16.gmra.mxu0 %v1400
        %v1648 = vpop.f32.mrf.mxu0
        %v1649 = vadd.f32 0.0, %v1648
        %v1650 = vpop.f32.mrf.mxu0
        %v1651 = vpop.f32.mrf.mxu0
        %v1652 = vadd.f32 0.0, %v1651
        %v1653 = vpop.f32.mrf.mxu0
        %1654 = vmatprep.mubr.bf16.mxu0 %v1417
        %1655 = vmatmul.mubr.bf16.gmra.mxu0 %v1401
        %v1656 = vpop.f32.mrf.mxu0
        %v1657 = vadd.f32 0.0, %v1656
        %v1658 = vpop.f32.mrf.mxu0
        %v1659 = vpop.f32.mrf.mxu0
        %v1660 = vadd.f32 0.0, %v1659
        %v1661 = vpop.f32.mrf.mxu0
        %1662 = vmatprep.mubr.bf16.mxu0 %v1418
        %1663 = vmatmul.mubr.bf16.gmra.mxu0 %v1402
        %v1664 = vpop.f32.mrf.mxu0
        %v1665 = vadd.f32 0.0, %v1664
        %v1666 = vpop.f32.mrf.mxu0
        %v1667 = vpop.f32.mrf.mxu0
        %v1668 = vadd.f32 0.0, %v1667
        %v1669 = vpop.f32.mrf.mxu0
        %1670 = vmatprep.mubr.bf16.mxu0 %v1419
        %1671 = vmatmul.mubr.bf16.gmra.mxu0 %v1403
        %v1672 = vpop.f32.mrf.mxu0
        %v1673 = vadd.f32 0.0, %v1672
        %v1674 = vpop.f32.mrf.mxu0
        %v1675 = vpop.f32.mrf.mxu0
        %v1676 = vadd.f32 0.0, %v1675
        %v1677 = vpop.f32.mrf.mxu0
        %1678 = vmatprep.mubr.bf16.mxu0 %v1420
        %1679 = vmatmul.mubr.bf16.gmra.mxu0 %v1404
        %v1680 = vpop.f32.mrf.mxu0
        %v1681 = vadd.f32 0.0, %v1680
        %v1682 = vpop.f32.mrf.mxu0
        %v1683 = vpop.f32.mrf.mxu0
        %v1684 = vadd.f32 0.0, %v1683
        %v1685 = vpop.f32.mrf.mxu0
        %1686 = vmatprep.mubr.bf16.mxu0 %v1421
        %1687 = vmatmul.mubr.bf16.gmra.mxu0 %v1405
        %v1688 = vpop.f32.mrf.mxu0
        %v1689 = vadd.f32 0.0, %v1688
        %v1690 = vpop.f32.mrf.mxu0
        %v1691 = vpop.f32.mrf.mxu0
        %v1692 = vadd.f32 0.0, %v1691
        %v1693 = vpop.f32.mrf.mxu0
        %1694 = vmatprep.mubr.bf16.mxu0 %v1422
        %1695 = vmatmul.mubr.bf16.gmra.mxu0 %v1406
        %v1696 = vpop.f32.mrf.mxu0
        %v1697 = vadd.f32 0.0, %v1696
        %v1698 = vpop.f32.mrf.mxu0
        %v1699 = vpop.f32.mrf.mxu0
        %v1700 = vadd.f32 0.0, %v1699
        %v1701 = vpop.f32.mrf.mxu0
        %1702 = vmatprep.mubr.bf16.mxu0 %v1423
        %1703 = vmatmul.mubr.bf16.gmra.mxu0 %v1407
        %v1704 = vpop.f32.mrf.mxu0
        %v1705 = vadd.f32 0.0, %v1704
        %v1706 = vpop.f32.mrf.mxu0
        %v1707 = vpop.f32.mrf.mxu0
        %v1708 = vadd.f32 0.0, %v1707
        %v1709 = vpop.f32.mrf.mxu0
        %1710 = vmatprep.mubr.bf16.mxu0 %v1424
        %1711 = vmatmul.mubr.bf16.gmra.mxu0 %v1408
        %v1712 = vpop.f32.mrf.mxu0
        %v1713 = vadd.f32 0.0, %v1712
        %v1714 = vpop.f32.mrf.mxu0
        %v1715 = vpop.f32.mrf.mxu0
        %v1716 = vadd.f32 0.0, %v1715
        %v1717 = vpop.f32.mrf.mxu0
        %1718 = vmatprep.mubr.bf16.mxu0 %v1425
        %1719 = vmatmul.mubr.bf16.gmra.mxu0 %v1409
        %v1720 = vpop.f32.mrf.mxu0
        %v1721 = vadd.f32 0.0, %v1720
        %v1722 = vpop.f32.mrf.mxu0
        %v1723 = vpop.f32.mrf.mxu0
        %v1724 = vadd.f32 0.0, %v1723
        %v1725 = vpop.f32.mrf.mxu0
        %1726 = vmatprep.mubr.bf16.mxu0 %v1426
        %1727 = vmatmul.mubr.bf16.gmra.mxu0 %v1410
        %v1728 = vpop.f32.mrf.mxu0
        %v1729 = vadd.f32 0.0, %v1728
        %v1730 = vpop.f32.mrf.mxu0
        %v1731 = vpop.f32.mrf.mxu0
        %v1732 = vadd.f32 0.0, %v1731
        %v1733 = vpop.f32.mrf.mxu0
        %1734 = vmatprep.mubr.bf16.mxu0 %v1427
        %1735 = vmatmul.mubr.bf16.gmra.mxu0 %v1411
        %v1736 = vpop.f32.mrf.mxu0
        %v1737 = vadd.f32 0.0, %v1736
        %v1738 = vpop.f32.mrf.mxu0
        %v1739 = vpop.f32.mrf.mxu0
        %v1740 = vadd.f32 0.0, %v1739
        %v1741 = vpop.f32.mrf.mxu0
        %1742 = vmatprep.mubr.bf16.mxu0 %v1428
        %1743 = vmatmul.mubr.bf16.gmra.mxu0 %v1412
        %v1744 = vpop.f32.mrf.mxu0
        %v1745 = vadd.f32 0.0, %v1744
        %v1746 = vpop.f32.mrf.mxu0
        %v1747 = vpop.f32.mrf.mxu0
        %v1748 = vadd.f32 0.0, %v1747
        %v1749 = vpop.f32.mrf.mxu0
        %1750 = vdwg.mxu0
        %1751 = vmatprep.subr.bf16.mxu0 0
        %1752 = vmatpush1.bf16.msra.mxu0 %v1565
        %1753 = vmatprep.subr.bf16.mxu0 0
        %1754 = vmatpush1.bf16.msra.mxu0 %v1564
        %1755 = vmatprep.subr.bf16.mxu0 0
        %1756 = vmatpush1.bf16.msra.mxu0 %v1563
        %1757 = vmatprep.subr.bf16.mxu0 0
        %1758 = vmatpush1.bf16.msra.mxu0 %v1562
        %1759 = vmatprep.subr.bf16.mxu0 0
        %1760 = vmatpush1.bf16.msra.mxu0 %v1561
        %1761 = vmatprep.subr.bf16.mxu0 0
        %1762 = vmatpush1.bf16.msra.mxu0 %v1560
        %1763 = vmatprep.subr.bf16.mxu0 0
        %1764 = vmatpush1.bf16.msra.mxu0 %v1559
        %1765 = vmatprep.subr.bf16.mxu0 0
        %1766 = vmatpush1.bf16.msra.mxu0 %v1558
        %1767 = vmatprep.subr.bf16.mxu0 0
        %1768 = vmatpush2.bf16.msra.mxu0 0
        %1769 = vmatprep.subr.bf16.mxu0 0
        %1770 = vmatpush2.bf16.msra.mxu0 0
        %1771 = vmatprep.subr.bf16.mxu0 0
        %1772 = vmatpush2.bf16.msra.mxu0 0
        %1773 = vmatprep.subr.bf16.mxu0 0
        %1774 = vmatpush2.bf16.msra.mxu0 0
        %1775 = vmatprep.subr.bf16.mxu0 0
        %1776 = vmatpush2.bf16.msra.mxu0 0
        %1777 = vmatprep.subr.bf16.mxu0 0
        %1778 = vmatpush2.bf16.msra.mxu0 0
        %1779 = vmatprep.subr.bf16.mxu0 0
        %1780 = vmatpush2.bf16.msra.mxu0 0
        %1781 = vmatprep.subr.bf16.mxu0 0
        %1782 = vmatpush2.bf16.msra.mxu0 0
        %1783 = vmatprep.mubr.bf16.mxu0 0
        %1784 = vmatmul.mubr.bf16.gmra.mxu0 %v1431
        %v1785 = vpop.f32.mrf.mxu0
        %v1786 = vadd.f32 %v1625, %v1785
        %v1787 = vpop.f32.mrf.mxu0
        %v1788 = vpop.f32.mrf.mxu0
        %v1789 = vadd.f32 %v1628, %v1788
        %v1790 = vpop.f32.mrf.mxu0
        %1791 = vmatprep.mubr.bf16.mxu0 0
        %1792 = vmatmul.mubr.bf16.gmra.mxu0 %v1430
        %v1793 = vpop.f32.mrf.mxu0
        %v1794 = vadd.f32 %v1633, %v1793
        %v1795 = vpop.f32.mrf.mxu0
        %v1796 = vpop.f32.mrf.mxu0
        %v1797 = vadd.f32 %v1636, %v1796
        %v1798 = vpop.f32.mrf.mxu0
        %1799 = vmatprep.mubr.bf16.mxu0 0
        %1800 = vmatmul.mubr.bf16.gmra.mxu0 %v1431
        %v1801 = vpop.f32.mrf.mxu0
        %v1802 = vadd.f32 %v1641, %v1801
        %v1803 = vpop.f32.mrf.mxu0
        %v1804 = vpop.f32.mrf.mxu0
        %v1805 = vadd.f32 %v1644, %v1804
        %v1806 = vpop.f32.mrf.mxu0
        %1807 = vmatprep.mubr.bf16.mxu0 0
        %1808 = vmatmul.mubr.bf16.gmra.mxu0 %v1432
        %v1809 = vpop.f32.mrf.mxu0
        %v1810 = vadd.f32 %v1649, %v1809
        %v1811 = vpop.f32.mrf.mxu0
        %v1812 = vpop.f32.mrf.mxu0
        %v1813 = vadd.f32 %v1652, %v1812
        %v1814 = vpop.f32.mrf.mxu0
        %1815 = vmatprep.mubr.bf16.mxu0 0
        %1816 = vmatmul.mubr.bf16.gmra.mxu0 %v1433
        %v1817 = vpop.f32.mrf.mxu0
        %v1818 = vadd.f32 %v1657, %v1817
        %v1819 = vpop.f32.mrf.mxu0
        %v1820 = vpop.f32.mrf.mxu0
        %v1821 = vadd.f32 %v1660, %v1820
        %v1822 = vpop.f32.mrf.mxu0
        %1823 = vmatprep.mubr.bf16.mxu0 0
        %1824 = vmatmul.mubr.bf16.gmra.mxu0 %v1434
        %v1825 = vpop.f32.mrf.mxu0
        %v1826 = vadd.f32 %v1665, %v1825
        %v1827 = vpop.f32.mrf.mxu0
        %v1828 = vpop.f32.mrf.mxu0
        %v1829 = vadd.f32 %v1668, %v1828
        %v1830 = vpop.f32.mrf.mxu0
        %1831 = vmatprep.mubr.bf16.mxu0 0
        %1832 = vmatmul.mubr.bf16.gmra.mxu0 %v1435
        %v1833 = vpop.f32.mrf.mxu0
        %v1834 = vadd.f32 %v1673, %v1833
        %v1835 = vpop.f32.mrf.mxu0
        %v1836 = vpop.f32.mrf.mxu0
        %v1837 = vadd.f32 %v1676, %v1836
        %v1838 = vpop.f32.mrf.mxu0
        %1839 = vmatprep.mubr.bf16.mxu0 0
        %1840 = vmatmul.mubr.bf16.gmra.mxu0 %v1436
        %v1841 = vpop.f32.mrf.mxu0
        %v1842 = vadd.f32 %v1681, %v1841
        %v1843 = vpop.f32.mrf.mxu0
        %v1844 = vpop.f32.mrf.mxu0
        %v1845 = vadd.f32 %v1684, %v1844
        %v1846 = vpop.f32.mrf.mxu0
        %1847 = vmatprep.mubr.bf16.mxu0 0
        %1848 = vmatmul.mubr.bf16.gmra.mxu0 %v1437
        %v1849 = vpop.f32.mrf.mxu0
        %v1850 = vadd.f32 %v1689, %v1849
        %v1851 = vpop.f32.mrf.mxu0
        %v1852 = vpop.f32.mrf.mxu0
        %v1853 = vadd.f32 %v1692, %v1852
        %v1854 = vpop.f32.mrf.mxu0
        %1855 = vmatprep.mubr.bf16.mxu0 0
        %1856 = vmatmul.mubr.bf16.gmra.mxu0 %v1438
        %v1857 = vpop.f32.mrf.mxu0
        %v1858 = vadd.f32 %v1697, %v1857
        %v1859 = vpop.f32.mrf.mxu0
        %v1860 = vpop.f32.mrf.mxu0
        %v1861 = vadd.f32 %v1700, %v1860
        %v1862 = vpop.f32.mrf.mxu0
        %1863 = vmatprep.mubr.bf16.mxu0 0
        %1864 = vmatmul.mubr.bf16.gmra.mxu0 %v1439
        %v1865 = vpop.f32.mrf.mxu0
        %v1866 = vadd.f32 %v1705, %v1865
        %v1867 = vpop.f32.mrf.mxu0
        %v1868 = vpop.f32.mrf.mxu0
        %v1869 = vadd.f32 %v1708, %v1868
        %v1870 = vpop.f32.mrf.mxu0
        %1871 = vmatprep.mubr.bf16.mxu0 0
        %1872 = vmatmul.mubr.bf16.gmra.mxu0 %v1440
        %v1873 = vpop.f32.mrf.mxu0
        %v1874 = vadd.f32 %v1713, %v1873
        %v1875 = vpop.f32.mrf.mxu0
        %v1876 = vpop.f32.mrf.mxu0
        %v1877 = vadd.f32 %v1716, %v1876
        %v1878 = vpop.f32.mrf.mxu0
        %1879 = vmatprep.mubr.bf16.mxu0 0
        %1880 = vmatmul.mubr.bf16.gmra.mxu0 %v1441
        %v1881 = vpop.f32.mrf.mxu0
        %v1882 = vadd.f32 %v1721, %v1881
        %v1883 = vpop.f32.mrf.mxu0
        %v1884 = vpop.f32.mrf.mxu0
        %v1885 = vadd.f32 %v1724, %v1884
        %v1886 = vpop.f32.mrf.mxu0
        %1887 = vmatprep.mubr.bf16.mxu0 0
        %1888 = vmatmul.mubr.bf16.gmra.mxu0 %v1442
        %v1889 = vpop.f32.mrf.mxu0
        %v1890 = vadd.f32 %v1729, %v1889
        %v1891 = vpop.f32.mrf.mxu0
        %v1892 = vpop.f32.mrf.mxu0
        %v1893 = vadd.f32 %v1732, %v1892
        %v1894 = vpop.f32.mrf.mxu0
        %1895 = vmatprep.mubr.bf16.mxu0 0
        %1896 = vmatmul.mubr.bf16.gmra.mxu0 %v1443
        %v1897 = vpop.f32.mrf.mxu0
        %v1898 = vadd.f32 %v1737, %v1897
        %v1899 = vpop.f32.mrf.mxu0
        %v1900 = vpop.f32.mrf.mxu0
        %v1901 = vadd.f32 %v1740, %v1900
        %v1902 = vpop.f32.mrf.mxu0
        %1903 = vmatprep.mubr.bf16.mxu0 0
        %1904 = vmatmul.mubr.bf16.gmra.mxu0 %v1444
        %v1905 = vpop.f32.mrf.mxu0
        %v1906 = vadd.f32 %v1745, %v1905
        %v1907 = vpop.f32.mrf.mxu0
        %v1908 = vpop.f32.mrf.mxu0
        %v1909 = vadd.f32 %v1748, %v1908
        %v1910 = vpop.f32.mrf.mxu0
        %1911 = vdwg.mxu0
        %v1913 = vlaneseq
        %v1914 = vshrl.u32 %v1913, 7
        %v1915 = vsub.s32 0, %v1914
        %v1916 = vrot.slane %v561, %v1915
        %v1918 = vadd.f32 %v1916, %v1786
        %v1919 = vadd.f32 %v1916, %v1789
        %v1920 = vadd.f32 %v1916, %v1794
        %v1921 = vadd.f32 %v1916, %v1797
        %v1922 = vadd.f32 %v1916, %v1802
        %v1923 = vadd.f32 %v1916, %v1805
        %v1924 = vadd.f32 %v1916, %v1810
        %v1925 = vadd.f32 %v1916, %v1813
        %v1926 = vadd.f32 %v1916, %v1818
        %v1927 = vadd.f32 %v1916, %v1821
        %v1928 = vadd.f32 %v1916, %v1826
        %v1929 = vadd.f32 %v1916, %v1829
        %v1930 = vadd.f32 %v1916, %v1834
        %v1931 = vadd.f32 %v1916, %v1837
        %v1932 = vadd.f32 %v1916, %v1842
        %v1933 = vadd.f32 %v1916, %v1845
        %v1934 = vadd.f32 %v1916, %v1850
        %v1935 = vadd.f32 %v1916, %v1853
        %v1936 = vadd.f32 %v1916, %v1858
        %v1937 = vadd.f32 %v1916, %v1861
        %v1938 = vadd.f32 %v1916, %v1866
        %v1939 = vadd.f32 %v1916, %v1869
        %v1940 = vadd.f32 %v1916, %v1874
        %v1941 = vadd.f32 %v1916, %v1877
        %v1942 = vadd.f32 %v1916, %v1882
        %v1943 = vadd.f32 %v1916, %v1885
        %v1944 = vadd.f32 %v1916, %v1890
        %v1945 = vadd.f32 %v1916, %v1893
        %v1946 = vadd.f32 %v1916, %v1898
        %v1947 = vadd.f32 %v1916, %v1901
        %v1948 = vadd.f32 %v1916, %v1906
        %v1949 = vadd.f32 %v1916, %v1909
        %v1998 = vunpack.c.l.b16 %v321
        %v1999 = vunpack.c.l.b16 %v322
        %v2000 = vunpack.c.l.b16 %v323
        %v2001 = vunpack.c.l.b16 %v324
        %v2002 = vunpack.c.l.b16 %v325
        %v2003 = vunpack.c.l.b16 %v326
        %v2004 = vunpack.c.l.b16 %v327
        %v2005 = vunpack.c.l.b16 %v328
        %v2006 = vunpack.c.l.b16 %v329
        %v2007 = vunpack.c.l.b16 %v330
        %v2008 = vunpack.c.l.b16 %v331
        %v2009 = vunpack.c.l.b16 %v332
        %v2010 = vunpack.c.l.b16 %v333
        %v2011 = vunpack.c.l.b16 %v334
        %v2012 = vunpack.c.l.b16 %v335
        %v2013 = vunpack.c.l.b16 %v336
        %v2014 = vunpack.c.l.b16 %v337
        %v2015 = vunpack.c.l.b16 %v338
        %v2016 = vunpack.c.l.b16 %v339
        %v2017 = vunpack.c.l.b16 %v340
        %v2018 = vunpack.c.l.b16 %v341
        %v2019 = vunpack.c.l.b16 %v342
        %v2020 = vunpack.c.l.b16 %v343
        %v2021 = vunpack.c.l.b16 %v344
        %v2022 = vunpack.c.l.b16 %v345
        %v2023 = vunpack.c.l.b16 %v346
        %v2024 = vunpack.c.l.b16 %v347
        %v2025 = vunpack.c.l.b16 %v348
        %v2026 = vunpack.c.l.b16 %v349
        %v2027 = vunpack.c.l.b16 %v350
        %v2028 = vunpack.c.l.b16 %v351
        %v2029 = vunpack.c.l.b16 %v352
        %v2030 = vunpack.c.l.b16 %v353
        %v2031 = vunpack.c.l.b16 %v354
        %v2032 = vunpack.c.l.b16 %v355
        %v2033 = vunpack.c.l.b16 %v356
        %v2034 = vunpack.c.l.b16 %v357
        %v2035 = vunpack.c.l.b16 %v358
        %v2036 = vunpack.c.l.b16 %v359
        %v2037 = vunpack.c.l.b16 %v360
        %v2038 = vunpack.c.l.b16 %v361
        %v2039 = vunpack.c.l.b16 %v362
        %v2040 = vunpack.c.l.b16 %v363
        %v2041 = vunpack.c.l.b16 %v364
        %v2042 = vunpack.c.l.b16 %v365
        %v2043 = vunpack.c.l.b16 %v366
        %v2044 = vunpack.c.l.b16 %v367
        %v2045 = vunpack.c.l.b16 %v368
        %v2046 = vpack.c.b16 %v1999, %v1998
        %v2047 = vpack.c.b16 %v2001, %v2000
        %v2048 = vpack.c.b16 %v2003, %v2002
        %v2049 = vpack.c.b16 %v2005, %v2004
        %v2050 = vpack.c.b16 %v2007, %v2006
        %v2051 = vpack.c.b16 %v2009, %v2008
        %v2052 = vpack.c.b16 %v2011, %v2010
        %v2053 = vpack.c.b16 %v2013, %v2012
        %v2054 = vpack.c.b16 %v2015, %v2014
        %v2055 = vpack.c.b16 %v2017, %v2016
        %v2056 = vpack.c.b16 %v2019, %v2018
        %v2057 = vpack.c.b16 %v2021, %v2020
        %v2058 = vpack.c.b16 %v2023, %v2022
        %v2059 = vpack.c.b16 %v2025, %v2024
        %v2060 = vpack.c.b16 %v2027, %v2026
        %v2061 = vpack.c.b16 %v2029, %v2028
        %v2062 = vpack.c.b16 %v2031, %v2030
        %v2063 = vpack.c.b16 %v2033, %v2032
        %v2064 = vpack.c.b16 %v2035, %v2034
        %v2065 = vpack.c.b16 %v2037, %v2036
        %v2066 = vpack.c.b16 %v2039, %v2038
        %v2067 = vpack.c.b16 %v2041, %v2040
        %v2068 = vpack.c.b16 %v2043, %v2042
        %v2069 = vpack.c.b16 %v2045, %v2044
        %2094 = vmatprep.subr.bf16.mxu0 0
        %2095 = vmatpush1.bf16.msra.mxu0 %v2053
        %2096 = vmatprep.subr.bf16.mxu0 0
        %2097 = vmatpush1.bf16.msra.mxu0 %v2052
        %2098 = vmatprep.subr.bf16.mxu0 0
        %2099 = vmatpush1.bf16.msra.mxu0 %v2051
        %2100 = vmatprep.subr.bf16.mxu0 0
        %2101 = vmatpush1.bf16.msra.mxu0 %v2050
        %2102 = vmatprep.subr.bf16.mxu0 0
        %2103 = vmatpush1.bf16.msra.mxu0 %v2049
        %2104 = vmatprep.subr.bf16.mxu0 0
        %2105 = vmatpush1.bf16.msra.mxu0 %v2048
        %2106 = vmatprep.subr.bf16.mxu0 0
        %2107 = vmatpush1.bf16.msra.mxu0 %v2047
        %2108 = vmatprep.subr.bf16.mxu0 0
        %2109 = vmatpush1.bf16.msra.mxu0 %v2046
        %2110 = vmatprep.subr.bf16.mxu0 0
        %2111 = vmatpush2.bf16.msra.mxu0 %v2061
        %2112 = vmatprep.subr.bf16.mxu0 0
        %2113 = vmatpush2.bf16.msra.mxu0 %v2060
        %2114 = vmatprep.subr.bf16.mxu0 0
        %2115 = vmatpush2.bf16.msra.mxu0 %v2059
        %2116 = vmatprep.subr.bf16.mxu0 0
        %2117 = vmatpush2.bf16.msra.mxu0 %v2058
        %2118 = vmatprep.subr.bf16.mxu0 0
        %2119 = vmatpush2.bf16.msra.mxu0 %v2057
        %2120 = vmatprep.subr.bf16.mxu0 0
        %2121 = vmatpush2.bf16.msra.mxu0 %v2056
        %2122 = vmatprep.subr.bf16.mxu0 0
        %2123 = vmatpush2.bf16.msra.mxu0 %v2055
        %2124 = vmatprep.subr.bf16.mxu0 0
        %2125 = vmatpush2.bf16.msra.mxu0 %v2054
        %2126 = vmatprep.mubr.bf16.mxu0 %v1414
        %2127 = vmatmul.mubr.bf16.gmra.mxu0 %v1398
        %v2128 = vpop.f32.mrf.mxu0
        %v2129 = vadd.f32 0.0, %v2128
        %v2130 = vpop.f32.mrf.mxu0
        %v2131 = vpop.f32.mrf.mxu0
        %v2132 = vadd.f32 0.0, %v2131
        %v2133 = vpop.f32.mrf.mxu0
        %2134 = vmatprep.mubr.bf16.mxu0 %v1415
        %2135 = vmatmul.mubr.bf16.gmra.mxu0 %v1399
        %v2136 = vpop.f32.mrf.mxu0
        %v2137 = vadd.f32 0.0, %v2136
        %v2138 = vpop.f32.mrf.mxu0
        %v2139 = vpop.f32.mrf.mxu0
        %v2140 = vadd.f32 0.0, %v2139
        %v2141 = vpop.f32.mrf.mxu0
        %2142 = vmatprep.mubr.bf16.mxu0 %v1416
        %2143 = vmatmul.mubr.bf16.gmra.mxu0 %v1400
        %v2144 = vpop.f32.mrf.mxu0
        %v2145 = vadd.f32 0.0, %v2144
        %v2146 = vpop.f32.mrf.mxu0
        %v2147 = vpop.f32.mrf.mxu0
        %v2148 = vadd.f32 0.0, %v2147
        %v2149 = vpop.f32.mrf.mxu0
        %2150 = vmatprep.mubr.bf16.mxu0 %v1417
        %2151 = vmatmul.mubr.bf16.gmra.mxu0 %v1401
        %v2152 = vpop.f32.mrf.mxu0
        %v2153 = vadd.f32 0.0, %v2152
        %v2154 = vpop.f32.mrf.mxu0
        %v2155 = vpop.f32.mrf.mxu0
        %v2156 = vadd.f32 0.0, %v2155
        %v2157 = vpop.f32.mrf.mxu0
        %2158 = vmatprep.mubr.bf16.mxu0 %v1418
        %2159 = vmatmul.mubr.bf16.gmra.mxu0 %v1402
        %v2160 = vpop.f32.mrf.mxu0
        %v2161 = vadd.f32 0.0, %v2160
        %v2162 = vpop.f32.mrf.mxu0
        %v2163 = vpop.f32.mrf.mxu0
        %v2164 = vadd.f32 0.0, %v2163
        %v2165 = vpop.f32.mrf.mxu0
        %2166 = vmatprep.mubr.bf16.mxu0 %v1419
        %2167 = vmatmul.mubr.bf16.gmra.mxu0 %v1403
        %v2168 = vpop.f32.mrf.mxu0
        %v2169 = vadd.f32 0.0, %v2168
        %v2170 = vpop.f32.mrf.mxu0
        %v2171 = vpop.f32.mrf.mxu0
        %v2172 = vadd.f32 0.0, %v2171
        %v2173 = vpop.f32.mrf.mxu0
        %2174 = vmatprep.mubr.bf16.mxu0 %v1420
        %2175 = vmatmul.mubr.bf16.gmra.mxu0 %v1404
        %v2176 = vpop.f32.mrf.mxu0
        %v2177 = vadd.f32 0.0, %v2176
        %v2178 = vpop.f32.mrf.mxu0
        %v2179 = vpop.f32.mrf.mxu0
        %v2180 = vadd.f32 0.0, %v2179
        %v2181 = vpop.f32.mrf.mxu0
        %2182 = vmatprep.mubr.bf16.mxu0 %v1421
        %2183 = vmatmul.mubr.bf16.gmra.mxu0 %v1405
        %v2184 = vpop.f32.mrf.mxu0
        %v2185 = vadd.f32 0.0, %v2184
        %v2186 = vpop.f32.mrf.mxu0
        %v2187 = vpop.f32.mrf.mxu0
        %v2188 = vadd.f32 0.0, %v2187
        %v2189 = vpop.f32.mrf.mxu0
        %2190 = vmatprep.mubr.bf16.mxu0 %v1422
        %2191 = vmatmul.mubr.bf16.gmra.mxu0 %v1406
        %v2192 = vpop.f32.mrf.mxu0
        %v2193 = vadd.f32 0.0, %v2192
        %v2194 = vpop.f32.mrf.mxu0
        %v2195 = vpop.f32.mrf.mxu0
        %v2196 = vadd.f32 0.0, %v2195
        %v2197 = vpop.f32.mrf.mxu0
        %2198 = vmatprep.mubr.bf16.mxu0 %v1423
        %2199 = vmatmul.mubr.bf16.gmra.mxu0 %v1407
        %v2200 = vpop.f32.mrf.mxu0
        %v2201 = vadd.f32 0.0, %v2200
        %v2202 = vpop.f32.mrf.mxu0
        %v2203 = vpop.f32.mrf.mxu0
        %v2204 = vadd.f32 0.0, %v2203
        %v2205 = vpop.f32.mrf.mxu0
        %2206 = vmatprep.mubr.bf16.mxu0 %v1424
        %2207 = vmatmul.mubr.bf16.gmra.mxu0 %v1408
        %v2208 = vpop.f32.mrf.mxu0
        %v2209 = vadd.f32 0.0, %v2208
        %v2210 = vpop.f32.mrf.mxu0
        %v2211 = vpop.f32.mrf.mxu0
        %v2212 = vadd.f32 0.0, %v2211
        %v2213 = vpop.f32.mrf.mxu0
        %2214 = vmatprep.mubr.bf16.mxu0 %v1425
        %2215 = vmatmul.mubr.bf16.gmra.mxu0 %v1409
        %v2216 = vpop.f32.mrf.mxu0
        %v2217 = vadd.f32 0.0, %v2216
        %v2218 = vpop.f32.mrf.mxu0
        %v2219 = vpop.f32.mrf.mxu0
        %v2220 = vadd.f32 0.0, %v2219
        %v2221 = vpop.f32.mrf.mxu0
        %2222 = vmatprep.mubr.bf16.mxu0 %v1426
        %2223 = vmatmul.mubr.bf16.gmra.mxu0 %v1410
        %v2224 = vpop.f32.mrf.mxu0
        %v2225 = vadd.f32 0.0, %v2224
        %v2226 = vpop.f32.mrf.mxu0
        %v2227 = vpop.f32.mrf.mxu0
        %v2228 = vadd.f32 0.0, %v2227
        %v2229 = vpop.f32.mrf.mxu0
        %2230 = vmatprep.mubr.bf16.mxu0 %v1427
        %2231 = vmatmul.mubr.bf16.gmra.mxu0 %v1411
        %v2232 = vpop.f32.mrf.mxu0
        %v2233 = vadd.f32 0.0, %v2232
        %v2234 = vpop.f32.mrf.mxu0
        %v2235 = vpop.f32.mrf.mxu0
        %v2236 = vadd.f32 0.0, %v2235
        %v2237 = vpop.f32.mrf.mxu0
        %2238 = vmatprep.mubr.bf16.mxu0 %v1428
        %2239 = vmatmul.mubr.bf16.gmra.mxu0 %v1412
        %v2240 = vpop.f32.mrf.mxu0
        %v2241 = vadd.f32 0.0, %v2240
        %v2242 = vpop.f32.mrf.mxu0
        %v2243 = vpop.f32.mrf.mxu0
        %v2244 = vadd.f32 0.0, %v2243
        %v2245 = vpop.f32.mrf.mxu0
        %2246 = vmatprep.mubr.bf16.mxu0 %v1429
        %2247 = vmatmul.mubr.bf16.gmra.mxu0 %v1413
        %v2248 = vpop.f32.mrf.mxu0
        %v2249 = vadd.f32 0.0, %v2248
        %v2250 = vpop.f32.mrf.mxu0
        %v2251 = vpop.f32.mrf.mxu0
        %v2252 = vadd.f32 0.0, %v2251
        %v2253 = vpop.f32.mrf.mxu0
        %2254 = vdwg.mxu0
        %2255 = vmatprep.subr.bf16.mxu0 0
        %2256 = vmatpush1.bf16.msra.mxu0 %v2069
        %2257 = vmatprep.subr.bf16.mxu0 0
        %2258 = vmatpush1.bf16.msra.mxu0 %v2068
        %2259 = vmatprep.subr.bf16.mxu0 0
        %2260 = vmatpush1.bf16.msra.mxu0 %v2067
        %2261 = vmatprep.subr.bf16.mxu0 0
        %2262 = vmatpush1.bf16.msra.mxu0 %v2066
        %2263 = vmatprep.subr.bf16.mxu0 0
        %2264 = vmatpush1.bf16.msra.mxu0 %v2065
        %2265 = vmatprep.subr.bf16.mxu0 0
        %2266 = vmatpush1.bf16.msra.mxu0 %v2064
        %2267 = vmatprep.subr.bf16.mxu0 0
        %2268 = vmatpush1.bf16.msra.mxu0 %v2063
        %2269 = vmatprep.subr.bf16.mxu0 0
        %2270 = vmatpush1.bf16.msra.mxu0 %v2062
        %2271 = vmatprep.subr.bf16.mxu0 0
        %2272 = vmatpush2.bf16.msra.mxu0 0
        %2273 = vmatprep.subr.bf16.mxu0 0
        %2274 = vmatpush2.bf16.msra.mxu0 0
        %2275 = vmatprep.subr.bf16.mxu0 0
        %2276 = vmatpush2.bf16.msra.mxu0 0
        %2277 = vmatprep.subr.bf16.mxu0 0
        %2278 = vmatpush2.bf16.msra.mxu0 0
        %2279 = vmatprep.subr.bf16.mxu0 0
        %2280 = vmatpush2.bf16.msra.mxu0 0
        %2281 = vmatprep.subr.bf16.mxu0 0
        %2282 = vmatpush2.bf16.msra.mxu0 0
        %2283 = vmatprep.subr.bf16.mxu0 0
        %2284 = vmatpush2.bf16.msra.mxu0 0
        %2285 = vmatprep.subr.bf16.mxu0 0
        %2286 = vmatpush2.bf16.msra.mxu0 0
        %2287 = vmatprep.mubr.bf16.mxu0 0
        %2288 = vmatmul.mubr.bf16.gmra.mxu0 %v1430
        %v2289 = vpop.f32.mrf.mxu0
        %v2290 = vadd.f32 %v2129, %v2289
        %v2291 = vpop.f32.mrf.mxu0
        %v2292 = vpop.f32.mrf.mxu0
        %v2293 = vadd.f32 %v2132, %v2292
        %v2294 = vpop.f32.mrf.mxu0
        %2295 = vmatprep.mubr.bf16.mxu0 0
        %2296 = vmatmul.mubr.bf16.gmra.mxu0 %v1431
        %v2297 = vpop.f32.mrf.mxu0
        %v2298 = vadd.f32 %v2137, %v2297
        %v2299 = vpop.f32.mrf.mxu0
        %v2300 = vpop.f32.mrf.mxu0
        %v2301 = vadd.f32 %v2140, %v2300
        %v2302 = vpop.f32.mrf.mxu0
        %2303 = vmatprep.mubr.bf16.mxu0 0
        %2304 = vmatmul.mubr.bf16.gmra.mxu0 %v1432
        %v2305 = vpop.f32.mrf.mxu0
        %v2306 = vadd.f32 %v2145, %v2305
        %v2307 = vpop.f32.mrf.mxu0
        %v2308 = vpop.f32.mrf.mxu0
        %v2309 = vadd.f32 %v2148, %v2308
        %v2310 = vpop.f32.mrf.mxu0
        %2311 = vmatprep.mubr.bf16.mxu0 0
        %2312 = vmatmul.mubr.bf16.gmra.mxu0 %v1433
        %v2313 = vpop.f32.mrf.mxu0
        %v2314 = vadd.f32 %v2153, %v2313
        %v2315 = vpop.f32.mrf.mxu0
        %v2316 = vpop.f32.mrf.mxu0
        %v2317 = vadd.f32 %v2156, %v2316
        %v2318 = vpop.f32.mrf.mxu0
        %2319 = vmatprep.mubr.bf16.mxu0 0
        %2320 = vmatmul.mubr.bf16.gmra.mxu0 %v1434
        %v2321 = vpop.f32.mrf.mxu0
        %v2322 = vadd.f32 %v2161, %v2321
        %v2323 = vpop.f32.mrf.mxu0
        %v2324 = vpop.f32.mrf.mxu0
        %v2325 = vadd.f32 %v2164, %v2324
        %v2326 = vpop.f32.mrf.mxu0
        %2327 = vmatprep.mubr.bf16.mxu0 0
        %2328 = vmatmul.mubr.bf16.gmra.mxu0 %v1435
        %v2329 = vpop.f32.mrf.mxu0
        %v2330 = vadd.f32 %v2169, %v2329
        %v2331 = vpop.f32.mrf.mxu0
        %v2332 = vpop.f32.mrf.mxu0
        %v2333 = vadd.f32 %v2172, %v2332
        %v2334 = vpop.f32.mrf.mxu0
        %2335 = vmatprep.mubr.bf16.mxu0 0
        %2336 = vmatmul.mubr.bf16.gmra.mxu0 %v1436
        %v2337 = vpop.f32.mrf.mxu0
        %v2338 = vadd.f32 %v2177, %v2337
        %v2339 = vpop.f32.mrf.mxu0
        %v2340 = vpop.f32.mrf.mxu0
        %v2341 = vadd.f32 %v2180, %v2340
        %v2342 = vpop.f32.mrf.mxu0
        %2343 = vmatprep.mubr.bf16.mxu0 0
        %2344 = vmatmul.mubr.bf16.gmra.mxu0 %v1437
        %v2345 = vpop.f32.mrf.mxu0
        %v2346 = vadd.f32 %v2185, %v2345
        %v2347 = vpop.f32.mrf.mxu0
        %v2348 = vpop.f32.mrf.mxu0
        %v2349 = vadd.f32 %v2188, %v2348
        %v2350 = vpop.f32.mrf.mxu0
        %2351 = vmatprep.mubr.bf16.mxu0 0
        %2352 = vmatmul.mubr.bf16.gmra.mxu0 %v1438
        %v2353 = vpop.f32.mrf.mxu0
        %v2354 = vadd.f32 %v2193, %v2353
        %v2355 = vpop.f32.mrf.mxu0
        %v2356 = vpop.f32.mrf.mxu0
        %v2357 = vadd.f32 %v2196, %v2356
        %v2358 = vpop.f32.mrf.mxu0
        %2359 = vmatprep.mubr.bf16.mxu0 0
        %2360 = vmatmul.mubr.bf16.gmra.mxu0 %v1439
        %v2361 = vpop.f32.mrf.mxu0
        %v2362 = vadd.f32 %v2201, %v2361
        %v2363 = vpop.f32.mrf.mxu0
        %v2364 = vpop.f32.mrf.mxu0
        %v2365 = vadd.f32 %v2204, %v2364
        %v2366 = vpop.f32.mrf.mxu0
        %2367 = vmatprep.mubr.bf16.mxu0 0
        %2368 = vmatmul.mubr.bf16.gmra.mxu0 %v1440
        %v2369 = vpop.f32.mrf.mxu0
        %v2370 = vadd.f32 %v2209, %v2369
        %v2371 = vpop.f32.mrf.mxu0
        %v2372 = vpop.f32.mrf.mxu0
        %v2373 = vadd.f32 %v2212, %v2372
        %v2374 = vpop.f32.mrf.mxu0
        %2375 = vmatprep.mubr.bf16.mxu0 0
        %2376 = vmatmul.mubr.bf16.gmra.mxu0 %v1441
        %v2377 = vpop.f32.mrf.mxu0
        %v2378 = vadd.f32 %v2217, %v2377
        %v2379 = vpop.f32.mrf.mxu0
        %v2380 = vpop.f32.mrf.mxu0
        %v2381 = vadd.f32 %v2220, %v2380
        %v2382 = vpop.f32.mrf.mxu0
        %2383 = vmatprep.mubr.bf16.mxu0 0
        %2384 = vmatmul.mubr.bf16.gmra.mxu0 %v1442
        %v2385 = vpop.f32.mrf.mxu0
        %v2386 = vadd.f32 %v2225, %v2385
        %v2387 = vpop.f32.mrf.mxu0
        %v2388 = vpop.f32.mrf.mxu0
        %v2389 = vadd.f32 %v2228, %v2388
        %v2390 = vpop.f32.mrf.mxu0
        %2391 = vmatprep.mubr.bf16.mxu0 0
        %2392 = vmatmul.mubr.bf16.gmra.mxu0 %v1443
        %v2393 = vpop.f32.mrf.mxu0
        %v2394 = vadd.f32 %v2233, %v2393
        %v2395 = vpop.f32.mrf.mxu0
        %v2396 = vpop.f32.mrf.mxu0
        %v2397 = vadd.f32 %v2236, %v2396
        %v2398 = vpop.f32.mrf.mxu0
        %2399 = vmatprep.mubr.bf16.mxu0 0
        %2400 = vmatmul.mubr.bf16.gmra.mxu0 %v1444
        %v2401 = vpop.f32.mrf.mxu0
        %v2402 = vadd.f32 %v2241, %v2401
        %v2403 = vpop.f32.mrf.mxu0
        %v2404 = vpop.f32.mrf.mxu0
        %v2405 = vadd.f32 %v2244, %v2404
        %v2406 = vpop.f32.mrf.mxu0
        %2407 = vmatprep.mubr.bf16.mxu0 0
        %2408 = vmatmul.mubr.bf16.gmra.mxu0 %v1445
        %v2409 = vpop.f32.mrf.mxu0
        %v2410 = vadd.f32 %v2249, %v2409
        %v2411 = vpop.f32.mrf.mxu0
        %v2412 = vpop.f32.mrf.mxu0
        %v2413 = vadd.f32 %v2252, %v2412
        %v2414 = vpop.f32.mrf.mxu0
        %2415 = vdwg.mxu0
        %v2416 = vadd.f32 %v1918, %v2290
        %v2417 = vadd.f32 %v1919, %v2293
        %v2418 = vadd.f32 %v1920, %v2298
        %v2419 = vadd.f32 %v1921, %v2301
        %v2420 = vadd.f32 %v1922, %v2306
        %v2421 = vadd.f32 %v1923, %v2309
        %v2422 = vadd.f32 %v1924, %v2314
        %v2423 = vadd.f32 %v1925, %v2317
        %v2424 = vadd.f32 %v1926, %v2322
        %v2425 = vadd.f32 %v1927, %v2325
        %v2426 = vadd.f32 %v1928, %v2330
        %v2427 = vadd.f32 %v1929, %v2333
        %v2428 = vadd.f32 %v1930, %v2338
        %v2429 = vadd.f32 %v1931, %v2341
        %v2430 = vadd.f32 %v1932, %v2346
        %v2431 = vadd.f32 %v1933, %v2349
        %v2432 = vadd.f32 %v1934, %v2354
        %v2433 = vadd.f32 %v1935, %v2357
        %v2434 = vadd.f32 %v1936, %v2362
        %v2435 = vadd.f32 %v1937, %v2365
        %v2436 = vadd.f32 %v1938, %v2370
        %v2437 = vadd.f32 %v1939, %v2373
        %v2438 = vadd.f32 %v1940, %v2378
        %v2439 = vadd.f32 %v1941, %v2381
        %v2440 = vadd.f32 %v1942, %v2386
        %v2441 = vadd.f32 %v1943, %v2389
        %v2442 = vadd.f32 %v1944, %v2394
        %v2443 = vadd.f32 %v1945, %v2397
        %v2444 = vadd.f32 %v1946, %v2402
        %v2445 = vadd.f32 %v1947, %v2405
        %v2446 = vadd.f32 %v1948, %v2410
        %v2447 = vadd.f32 %v1949, %v2413
        %v2496 = vunpack.c.l.b16 %v369
        %v2497 = vunpack.c.l.b16 %v370
        %v2498 = vunpack.c.l.b16 %v371
        %v2499 = vunpack.c.l.b16 %v372
        %v2500 = vunpack.c.l.b16 %v373
        %v2501 = vunpack.c.l.b16 %v374
        %v2502 = vunpack.c.l.b16 %v375
        %v2503 = vunpack.c.l.b16 %v376
        %v2504 = vunpack.c.l.b16 %v377
        %v2505 = vunpack.c.l.b16 %v378
        %v2506 = vunpack.c.l.b16 %v379
        %v2507 = vunpack.c.l.b16 %v380
        %v2508 = vunpack.c.l.b16 %v381
        %v2509 = vunpack.c.l.b16 %v382
        %v2510 = vunpack.c.l.b16 %v383
        %v2511 = vunpack.c.l.b16 %v384
        %v2512 = vunpack.c.l.b16 %v385
        %v2513 = vunpack.c.l.b16 %v386
        %v2514 = vunpack.c.l.b16 %v387
        %v2515 = vunpack.c.l.b16 %v388
        %v2516 = vunpack.c.l.b16 %v389
        %v2517 = vunpack.c.l.b16 %v390
        %v2518 = vunpack.c.l.b16 %v391
        %v2519 = vunpack.c.l.b16 %v392
        %v2520 = vunpack.c.l.b16 %v393
        %v2521 = vunpack.c.l.b16 %v394
        %v2522 = vunpack.c.l.b16 %v395
        %v2523 = vunpack.c.l.b16 %v396
        %v2524 = vunpack.c.l.b16 %v397
        %v2525 = vunpack.c.l.b16 %v398
        %v2526 = vunpack.c.l.b16 %v399
        %v2527 = vunpack.c.l.b16 %v400
        %v2528 = vunpack.c.l.b16 %v401
        %v2529 = vunpack.c.l.b16 %v402
        %v2530 = vunpack.c.l.b16 %v403
        %v2531 = vunpack.c.l.b16 %v404
        %v2532 = vunpack.c.l.b16 %v405
        %v2533 = vunpack.c.l.b16 %v406
        %v2534 = vunpack.c.l.b16 %v407
        %v2535 = vunpack.c.l.b16 %v408
        %v2536 = vunpack.c.l.b16 %v409
        %v2537 = vunpack.c.l.b16 %v410
        %v2538 = vunpack.c.l.b16 %v411
        %v2539 = vunpack.c.l.b16 %v412
        %v2540 = vunpack.c.l.b16 %v413
        %v2541 = vunpack.c.l.b16 %v414
        %v2542 = vunpack.c.l.b16 %v415
        %v2543 = vunpack.c.l.b16 %v416
        %v2544 = vpack.c.b16 %v2497, %v2496
        %v2545 = vpack.c.b16 %v2499, %v2498
        %v2546 = vpack.c.b16 %v2501, %v2500
        %v2547 = vpack.c.b16 %v2503, %v2502
        %v2548 = vpack.c.b16 %v2505, %v2504
        %v2549 = vpack.c.b16 %v2507, %v2506
        %v2550 = vpack.c.b16 %v2509, %v2508
        %v2551 = vpack.c.b16 %v2511, %v2510
        %v2552 = vpack.c.b16 %v2513, %v2512
        %v2553 = vpack.c.b16 %v2515, %v2514
        %v2554 = vpack.c.b16 %v2517, %v2516
        %v2555 = vpack.c.b16 %v2519, %v2518
        %v2556 = vpack.c.b16 %v2521, %v2520
        %v2557 = vpack.c.b16 %v2523, %v2522
        %v2558 = vpack.c.b16 %v2525, %v2524
        %v2559 = vpack.c.b16 %v2527, %v2526
        %v2560 = vpack.c.b16 %v2529, %v2528
        %v2561 = vpack.c.b16 %v2531, %v2530
        %v2562 = vpack.c.b16 %v2533, %v2532
        %v2563 = vpack.c.b16 %v2535, %v2534
        %v2564 = vpack.c.b16 %v2537, %v2536
        %v2565 = vpack.c.b16 %v2539, %v2538
        %v2566 = vpack.c.b16 %v2541, %v2540
        %v2567 = vpack.c.b16 %v2543, %v2542
        %2592 = vmatprep.subr.bf16.mxu0 0
        %2593 = vmatpush1.bf16.msra.mxu0 %v2551
        %2594 = vmatprep.subr.bf16.mxu0 0
        %2595 = vmatpush1.bf16.msra.mxu0 %v2550
        %2596 = vmatprep.subr.bf16.mxu0 0
        %2597 = vmatpush1.bf16.msra.mxu0 %v2549
        %2598 = vmatprep.subr.bf16.mxu0 0
        %2599 = vmatpush1.bf16.msra.mxu0 %v2548
        %2600 = vmatprep.subr.bf16.mxu0 0
        %2601 = vmatpush1.bf16.msra.mxu0 %v2547
        %2602 = vmatprep.subr.bf16.mxu0 0
        %2603 = vmatpush1.bf16.msra.mxu0 %v2546
        %2604 = vmatprep.subr.bf16.mxu0 0
        %2605 = vmatpush1.bf16.msra.mxu0 %v2545
        %2606 = vmatprep.subr.bf16.mxu0 0
        %2607 = vmatpush1.bf16.msra.mxu0 %v2544
        %2608 = vmatprep.subr.bf16.mxu0 0
        %2609 = vmatpush2.bf16.msra.mxu0 %v2559
        %2610 = vmatprep.subr.bf16.mxu0 0
        %2611 = vmatpush2.bf16.msra.mxu0 %v2558
        %2612 = vmatprep.subr.bf16.mxu0 0
        %2613 = vmatpush2.bf16.msra.mxu0 %v2557
        %2614 = vmatprep.subr.bf16.mxu0 0
        %2615 = vmatpush2.bf16.msra.mxu0 %v2556
        %2616 = vmatprep.subr.bf16.mxu0 0
        %2617 = vmatpush2.bf16.msra.mxu0 %v2555
        %2618 = vmatprep.subr.bf16.mxu0 0
        %2619 = vmatpush2.bf16.msra.mxu0 %v2554
        %2620 = vmatprep.subr.bf16.mxu0 0
        %2621 = vmatpush2.bf16.msra.mxu0 %v2553
        %2622 = vmatprep.subr.bf16.mxu0 0
        %2623 = vmatpush2.bf16.msra.mxu0 %v2552
        %2624 = vmatprep.mubr.bf16.mxu0 %v1415
        %2625 = vmatmul.mubr.bf16.gmra.mxu0 %v1399
        %v2626 = vpop.f32.mrf.mxu0
        %v2627 = vadd.f32 0.0, %v2626
        %v2628 = vpop.f32.mrf.mxu0
        %v2629 = vpop.f32.mrf.mxu0
        %v2630 = vadd.f32 0.0, %v2629
        %v2631 = vpop.f32.mrf.mxu0
        %2632 = vmatprep.mubr.bf16.mxu0 %v1416
        %2633 = vmatmul.mubr.bf16.gmra.mxu0 %v1400
        %v2634 = vpop.f32.mrf.mxu0
        %v2635 = vadd.f32 0.0, %v2634
        %v2636 = vpop.f32.mrf.mxu0
        %v2637 = vpop.f32.mrf.mxu0
        %v2638 = vadd.f32 0.0, %v2637
        %v2639 = vpop.f32.mrf.mxu0
        %2640 = vmatprep.mubr.bf16.mxu0 %v1417
        %2641 = vmatmul.mubr.bf16.gmra.mxu0 %v1401
        %v2642 = vpop.f32.mrf.mxu0
        %v2643 = vadd.f32 0.0, %v2642
        %v2644 = vpop.f32.mrf.mxu0
        %v2645 = vpop.f32.mrf.mxu0
        %v2646 = vadd.f32 0.0, %v2645
        %v2647 = vpop.f32.mrf.mxu0
        %2648 = vmatprep.mubr.bf16.mxu0 %v1418
        %2649 = vmatmul.mubr.bf16.gmra.mxu0 %v1402
        %v2650 = vpop.f32.mrf.mxu0
        %v2651 = vadd.f32 0.0, %v2650
        %v2652 = vpop.f32.mrf.mxu0
        %v2653 = vpop.f32.mrf.mxu0
        %v2654 = vadd.f32 0.0, %v2653
        %v2655 = vpop.f32.mrf.mxu0
        %2656 = vmatprep.mubr.bf16.mxu0 %v1419
        %2657 = vmatmul.mubr.bf16.gmra.mxu0 %v1403
        %v2658 = vpop.f32.mrf.mxu0
        %v2659 = vadd.f32 0.0, %v2658
        %v2660 = vpop.f32.mrf.mxu0
        %v2661 = vpop.f32.mrf.mxu0
        %v2662 = vadd.f32 0.0, %v2661
        %v2663 = vpop.f32.mrf.mxu0
        %2664 = vmatprep.mubr.bf16.mxu0 %v1420
        %2665 = vmatmul.mubr.bf16.gmra.mxu0 %v1404
        %v2666 = vpop.f32.mrf.mxu0
        %v2667 = vadd.f32 0.0, %v2666
        %v2668 = vpop.f32.mrf.mxu0
        %v2669 = vpop.f32.mrf.mxu0
        %v2670 = vadd.f32 0.0, %v2669
        %v2671 = vpop.f32.mrf.mxu0
        %2672 = vmatprep.mubr.bf16.mxu0 %v1421
        %2673 = vmatmul.mubr.bf16.gmra.mxu0 %v1405
        %v2674 = vpop.f32.mrf.mxu0
        %v2675 = vadd.f32 0.0, %v2674
        %v2676 = vpop.f32.mrf.mxu0
        %v2677 = vpop.f32.mrf.mxu0
        %v2678 = vadd.f32 0.0, %v2677
        %v2679 = vpop.f32.mrf.mxu0
        %2680 = vmatprep.mubr.bf16.mxu0 %v1422
        %2681 = vmatmul.mubr.bf16.gmra.mxu0 %v1406
        %v2682 = vpop.f32.mrf.mxu0
        %v2683 = vadd.f32 0.0, %v2682
        %v2684 = vpop.f32.mrf.mxu0
        %v2685 = vpop.f32.mrf.mxu0
        %v2686 = vadd.f32 0.0, %v2685
        %v2687 = vpop.f32.mrf.mxu0
        %2688 = vmatprep.mubr.bf16.mxu0 %v1423
        %2689 = vmatmul.mubr.bf16.gmra.mxu0 %v1407
        %v2690 = vpop.f32.mrf.mxu0
        %v2691 = vadd.f32 0.0, %v2690
        %v2692 = vpop.f32.mrf.mxu0
        %v2693 = vpop.f32.mrf.mxu0
        %v2694 = vadd.f32 0.0, %v2693
        %v2695 = vpop.f32.mrf.mxu0
        %2696 = vmatprep.mubr.bf16.mxu0 %v1424
        %2697 = vmatmul.mubr.bf16.gmra.mxu0 %v1408
        %v2698 = vpop.f32.mrf.mxu0
        %v2699 = vadd.f32 0.0, %v2698
        %v2700 = vpop.f32.mrf.mxu0
        %v2701 = vpop.f32.mrf.mxu0
        %v2702 = vadd.f32 0.0, %v2701
        %v2703 = vpop.f32.mrf.mxu0
        %2704 = vmatprep.mubr.bf16.mxu0 %v1425
        %2705 = vmatmul.mubr.bf16.gmra.mxu0 %v1409
        %v2706 = vpop.f32.mrf.mxu0
        %v2707 = vadd.f32 0.0, %v2706
        %v2708 = vpop.f32.mrf.mxu0
        %v2709 = vpop.f32.mrf.mxu0
        %v2710 = vadd.f32 0.0, %v2709
        %v2711 = vpop.f32.mrf.mxu0
        %2712 = vmatprep.mubr.bf16.mxu0 %v1426
        %2713 = vmatmul.mubr.bf16.gmra.mxu0 %v1410
        %v2714 = vpop.f32.mrf.mxu0
        %v2715 = vadd.f32 0.0, %v2714
        %v2716 = vpop.f32.mrf.mxu0
        %v2717 = vpop.f32.mrf.mxu0
        %v2718 = vadd.f32 0.0, %v2717
        %v2719 = vpop.f32.mrf.mxu0
        %2720 = vmatprep.mubr.bf16.mxu0 %v1427
        %2721 = vmatmul.mubr.bf16.gmra.mxu0 %v1411
        %v2722 = vpop.f32.mrf.mxu0
        %v2723 = vadd.f32 0.0, %v2722
        %v2724 = vpop.f32.mrf.mxu0
        %v2725 = vpop.f32.mrf.mxu0
        %v2726 = vadd.f32 0.0, %v2725
        %v2727 = vpop.f32.mrf.mxu0
        %2728 = vmatprep.mubr.bf16.mxu0 %v1428
        %2729 = vmatmul.mubr.bf16.gmra.mxu0 %v1412
        %v2730 = vpop.f32.mrf.mxu0
        %v2731 = vadd.f32 0.0, %v2730
        %v2732 = vpop.f32.mrf.mxu0
        %v2733 = vpop.f32.mrf.mxu0
        %v2734 = vadd.f32 0.0, %v2733
        %v2735 = vpop.f32.mrf.mxu0
        %2736 = vmatprep.mubr.bf16.mxu0 %v1429
        %2737 = vmatmul.mubr.bf16.gmra.mxu0 %v1413
        %v2738 = vpop.f32.mrf.mxu0
        %v2739 = vadd.f32 0.0, %v2738
        %v2740 = vpop.f32.mrf.mxu0
        %v2741 = vpop.f32.mrf.mxu0
        %v2742 = vadd.f32 0.0, %v2741
        %v2743 = vpop.f32.mrf.mxu0
        %2744 = vmatprep.mubr.bf16.mxu0 %v1428
        %2745 = vmatmul.mubr.bf16.gmra.mxu0 %v1412
        %v2746 = vpop.f32.mrf.mxu0
        %v2747 = vadd.f32 0.0, %v2746
        %v2748 = vpop.f32.mrf.mxu0
        %v2749 = vpop.f32.mrf.mxu0
        %v2750 = vadd.f32 0.0, %v2749
        %v2751 = vpop.f32.mrf.mxu0
        %2752 = vdwg.mxu0
        %2753 = vmatprep.subr.bf16.mxu0 0
        %2754 = vmatpush1.bf16.msra.mxu0 %v2567
        %2755 = vmatprep.subr.bf16.mxu0 0
        %2756 = vmatpush1.bf16.msra.mxu0 %v2566
        %2757 = vmatprep.subr.bf16.mxu0 0
        %2758 = vmatpush1.bf16.msra.mxu0 %v2565
        %2759 = vmatprep.subr.bf16.mxu0 0
        %2760 = vmatpush1.bf16.msra.mxu0 %v2564
        %2761 = vmatprep.subr.bf16.mxu0 0
        %2762 = vmatpush1.bf16.msra.mxu0 %v2563
        %2763 = vmatprep.subr.bf16.mxu0 0
        %2764 = vmatpush1.bf16.msra.mxu0 %v2562
        %2765 = vmatprep.subr.bf16.mxu0 0
        %2766 = vmatpush1.bf16.msra.mxu0 %v2561
        %2767 = vmatprep.subr.bf16.mxu0 0
        %2768 = vmatpush1.bf16.msra.mxu0 %v2560
        %2769 = vmatprep.subr.bf16.mxu0 0
        %2770 = vmatpush2.bf16.msra.mxu0 0
        %2771 = vmatprep.subr.bf16.mxu0 0
        %2772 = vmatpush2.bf16.msra.mxu0 0
        %2773 = vmatprep.subr.bf16.mxu0 0
        %2774 = vmatpush2.bf16.msra.mxu0 0
        %2775 = vmatprep.subr.bf16.mxu0 0
        %2776 = vmatpush2.bf16.msra.mxu0 0
        %2777 = vmatprep.subr.bf16.mxu0 0
        %2778 = vmatpush2.bf16.msra.mxu0 0
        %2779 = vmatprep.subr.bf16.mxu0 0
        %2780 = vmatpush2.bf16.msra.mxu0 0
        %2781 = vmatprep.subr.bf16.mxu0 0
        %2782 = vmatpush2.bf16.msra.mxu0 0
        %2783 = vmatprep.subr.bf16.mxu0 0
        %2784 = vmatpush2.bf16.msra.mxu0 0
        %2785 = vmatprep.mubr.bf16.mxu0 0
        %2786 = vmatmul.mubr.bf16.gmra.mxu0 %v1431
        %v2787 = vpop.f32.mrf.mxu0
        %v2788 = vadd.f32 %v2627, %v2787
        %v2789 = vpop.f32.mrf.mxu0
        %v2790 = vpop.f32.mrf.mxu0
        %v2791 = vadd.f32 %v2630, %v2790
        %v2792 = vpop.f32.mrf.mxu0
        %2793 = vmatprep.mubr.bf16.mxu0 0
        %2794 = vmatmul.mubr.bf16.gmra.mxu0 %v1432
        %v2795 = vpop.f32.mrf.mxu0
        %v2796 = vadd.f32 %v2635, %v2795
        %v2797 = vpop.f32.mrf.mxu0
        %v2798 = vpop.f32.mrf.mxu0
        %v2799 = vadd.f32 %v2638, %v2798
        %v2800 = vpop.f32.mrf.mxu0
        %2801 = vmatprep.mubr.bf16.mxu0 0
        %2802 = vmatmul.mubr.bf16.gmra.mxu0 %v1433
        %v2803 = vpop.f32.mrf.mxu0
        %v2804 = vadd.f32 %v2643, %v2803
        %v2805 = vpop.f32.mrf.mxu0
        %v2806 = vpop.f32.mrf.mxu0
        %v2807 = vadd.f32 %v2646, %v2806
        %v2808 = vpop.f32.mrf.mxu0
        %2809 = vmatprep.mubr.bf16.mxu0 0
        %2810 = vmatmul.mubr.bf16.gmra.mxu0 %v1434
        %v2811 = vpop.f32.mrf.mxu0
        %v2812 = vadd.f32 %v2651, %v2811
        %v2813 = vpop.f32.mrf.mxu0
        %v2814 = vpop.f32.mrf.mxu0
        %v2815 = vadd.f32 %v2654, %v2814
        %v2816 = vpop.f32.mrf.mxu0
        %2817 = vmatprep.mubr.bf16.mxu0 0
        %2818 = vmatmul.mubr.bf16.gmra.mxu0 %v1435
        %v2819 = vpop.f32.mrf.mxu0
        %v2820 = vadd.f32 %v2659, %v2819
        %v2821 = vpop.f32.mrf.mxu0
        %v2822 = vpop.f32.mrf.mxu0
        %v2823 = vadd.f32 %v2662, %v2822
        %v2824 = vpop.f32.mrf.mxu0
        %2825 = vmatprep.mubr.bf16.mxu0 0
        %2826 = vmatmul.mubr.bf16.gmra.mxu0 %v1436
        %v2827 = vpop.f32.mrf.mxu0
        %v2828 = vadd.f32 %v2667, %v2827
        %v2829 = vpop.f32.mrf.mxu0
        %v2830 = vpop.f32.mrf.mxu0
        %v2831 = vadd.f32 %v2670, %v2830
        %v2832 = vpop.f32.mrf.mxu0
        %2833 = vmatprep.mubr.bf16.mxu0 0
        %2834 = vmatmul.mubr.bf16.gmra.mxu0 %v1437
        %v2835 = vpop.f32.mrf.mxu0
        %v2836 = vadd.f32 %v2675, %v2835
        %v2837 = vpop.f32.mrf.mxu0
        %v2838 = vpop.f32.mrf.mxu0
        %v2839 = vadd.f32 %v2678, %v2838
        %v2840 = vpop.f32.mrf.mxu0
        %2841 = vmatprep.mubr.bf16.mxu0 0
        %2842 = vmatmul.mubr.bf16.gmra.mxu0 %v1438
        %v2843 = vpop.f32.mrf.mxu0
        %v2844 = vadd.f32 %v2683, %v2843
        %v2845 = vpop.f32.mrf.mxu0
        %v2846 = vpop.f32.mrf.mxu0
        %v2847 = vadd.f32 %v2686, %v2846
        %v2848 = vpop.f32.mrf.mxu0
        %2849 = vmatprep.mubr.bf16.mxu0 0
        %2850 = vmatmul.mubr.bf16.gmra.mxu0 %v1439
        %v2851 = vpop.f32.mrf.mxu0
        %v2852 = vadd.f32 %v2691, %v2851
        %v2853 = vpop.f32.mrf.mxu0
        %v2854 = vpop.f32.mrf.mxu0
        %v2855 = vadd.f32 %v2694, %v2854
        %v2856 = vpop.f32.mrf.mxu0
        %2857 = vmatprep.mubr.bf16.mxu0 0
        %2858 = vmatmul.mubr.bf16.gmra.mxu0 %v1440
        %v2859 = vpop.f32.mrf.mxu0
        %v2860 = vadd.f32 %v2699, %v2859
        %v2861 = vpop.f32.mrf.mxu0
        %v2862 = vpop.f32.mrf.mxu0
        %v2863 = vadd.f32 %v2702, %v2862
        %v2864 = vpop.f32.mrf.mxu0
        %2865 = vmatprep.mubr.bf16.mxu0 0
        %2866 = vmatmul.mubr.bf16.gmra.mxu0 %v1441
        %v2867 = vpop.f32.mrf.mxu0
        %v2868 = vadd.f32 %v2707, %v2867
        %v2869 = vpop.f32.mrf.mxu0
        %v2870 = vpop.f32.mrf.mxu0
        %v2871 = vadd.f32 %v2710, %v2870
        %v2872 = vpop.f32.mrf.mxu0
        %2873 = vmatprep.mubr.bf16.mxu0 0
        %2874 = vmatmul.mubr.bf16.gmra.mxu0 %v1442
        %v2875 = vpop.f32.mrf.mxu0
        %v2876 = vadd.f32 %v2715, %v2875
        %v2877 = vpop.f32.mrf.mxu0
        %v2878 = vpop.f32.mrf.mxu0
        %v2879 = vadd.f32 %v2718, %v2878
        %v2880 = vpop.f32.mrf.mxu0
        %2881 = vmatprep.mubr.bf16.mxu0 0
        %2882 = vmatmul.mubr.bf16.gmra.mxu0 %v1443
        %v2883 = vpop.f32.mrf.mxu0
        %v2884 = vadd.f32 %v2723, %v2883
        %v2885 = vpop.f32.mrf.mxu0
        %v2886 = vpop.f32.mrf.mxu0
        %v2887 = vadd.f32 %v2726, %v2886
        %v2888 = vpop.f32.mrf.mxu0
        %2889 = vmatprep.mubr.bf16.mxu0 0
        %2890 = vmatmul.mubr.bf16.gmra.mxu0 %v1444
        %v2891 = vpop.f32.mrf.mxu0
        %v2892 = vadd.f32 %v2731, %v2891
        %v2893 = vpop.f32.mrf.mxu0
        %v2894 = vpop.f32.mrf.mxu0
        %v2895 = vadd.f32 %v2734, %v2894
        %v2896 = vpop.f32.mrf.mxu0
        %2897 = vmatprep.mubr.bf16.mxu0 0
        %2898 = vmatmul.mubr.bf16.gmra.mxu0 %v1445
        %v2899 = vpop.f32.mrf.mxu0
        %v2900 = vadd.f32 %v2739, %v2899
        %v2901 = vpop.f32.mrf.mxu0
        %v2902 = vpop.f32.mrf.mxu0
        %v2903 = vadd.f32 %v2742, %v2902
        %v2904 = vpop.f32.mrf.mxu0
        %2905 = vmatprep.mubr.bf16.mxu0 0
        %2906 = vmatmul.mubr.bf16.gmra.mxu0 %v1444
        %v2907 = vpop.f32.mrf.mxu0
        %v2908 = vadd.f32 %v2747, %v2907
        %v2909 = vpop.f32.mrf.mxu0
        %v2910 = vpop.f32.mrf.mxu0
        %v2911 = vadd.f32 %v2750, %v2910
        %v2912 = vpop.f32.mrf.mxu0
        %2913 = vdwg.mxu0
        %v2914 = vadd.f32 %v2416, %v2788
        %v2915 = vadd.f32 %v2417, %v2791
        %v2916 = vadd.f32 %v2418, %v2796
        %v2917 = vadd.f32 %v2419, %v2799
        %v2918 = vadd.f32 %v2420, %v2804
        %v2919 = vadd.f32 %v2421, %v2807
        %v2920 = vadd.f32 %v2422, %v2812
        %v2921 = vadd.f32 %v2423, %v2815
        %v2922 = vadd.f32 %v2424, %v2820
        %v2923 = vadd.f32 %v2425, %v2823
        %v2924 = vadd.f32 %v2426, %v2828
        %v2925 = vadd.f32 %v2427, %v2831
        %v2926 = vadd.f32 %v2428, %v2836
        %v2927 = vadd.f32 %v2429, %v2839
        %v2928 = vadd.f32 %v2430, %v2844
        %v2929 = vadd.f32 %v2431, %v2847
        %v2930 = vadd.f32 %v2432, %v2852
        %v2931 = vadd.f32 %v2433, %v2855
        %v2932 = vadd.f32 %v2434, %v2860
        %v2933 = vadd.f32 %v2435, %v2863
        %v2934 = vadd.f32 %v2436, %v2868
        %v2935 = vadd.f32 %v2437, %v2871
        %v2936 = vadd.f32 %v2438, %v2876
        %v2937 = vadd.f32 %v2439, %v2879
        %v2938 = vadd.f32 %v2440, %v2884
        %v2939 = vadd.f32 %v2441, %v2887
        %v2940 = vadd.f32 %v2442, %v2892
        %v2941 = vadd.f32 %v2443, %v2895
        %v2942 = vadd.f32 %v2444, %v2900
        %v2943 = vadd.f32 %v2445, %v2903
        %v2944 = vadd.f32 %v2446, %v2908
        %v2945 = vadd.f32 %v2447, %v2911
        %v2946 = vadd.f32 %v2914, %v2915
        %v2947 = vadd.f32 %v2946, %v2916
        %v2948 = vadd.f32 %v2947, %v2917
        %v2949 = vadd.f32 %v2948, %v2918
        %v2950 = vadd.f32 %v2949, %v2919
        %v2951 = vadd.f32 %v2950, %v2920
        %v2952 = vadd.f32 %v2951, %v2921
        %v2953 = vadd.f32 %v2952, %v2922
        %v2954 = vadd.f32 %v2953, %v2923
        %v2955 = vadd.f32 %v2954, %v2924
        %v2956 = vadd.f32 %v2955, %v2925
        %v2957 = vadd.f32 %v2956, %v2926
        %v2958 = vadd.f32 %v2957, %v2927
        %v2959 = vadd.f32 %v2958, %v2928
        %v2960 = vadd.f32 %v2959, %v2929
        %v2961 = vadd.f32 %v2960, %v2930
        %v2962 = vadd.f32 %v2961, %v2931
        %v2963 = vadd.f32 %v2962, %v2932
        %v2964 = vadd.f32 %v2963, %v2933
        %v2965 = vadd.f32 %v2964, %v2934
        %v2966 = vadd.f32 %v2965, %v2935
        %v2967 = vadd.f32 %v2966, %v2936
        %v2968 = vadd.f32 %v2967, %v2937
        %v2969 = vadd.f32 %v2968, %v2938
        %v2970 = vadd.f32 %v2969, %v2939
        %v2971 = vadd.f32 %v2970, %v2940
        %v2972 = vadd.f32 %v2971, %v2941
        %v2973 = vadd.f32 %v2972, %v2942
        %v2974 = vadd.f32 %v2973, %v2943
        %v2975 = vadd.f32 %v2974, %v2944
        %v2976 = vadd.f32 %v2975, %v2945
        %v2977 = vrot.slane %v2976, 4
        %v2978 = vadd.f32 %v2976, %v2977
        %v2979 = vrot.slane %v2978, 2
        %v2980 = vadd.f32 %v2978, %v2979
        %v2981 = vrot.slane %v2980, 1
        %v2982 = vadd.f32 %v2980, %v2981
        %v2983 = vmul.f32 %v2914, %v2914
        %v2984 = vmul.f32 %v2915, %v2915
        %v2985 = vmul.f32 %v2916, %v2916
        %v2986 = vmul.f32 %v2917, %v2917
        %v2987 = vmul.f32 %v2918, %v2918
        %v2988 = vmul.f32 %v2919, %v2919
        %v2989 = vmul.f32 %v2920, %v2920
        %v2990 = vmul.f32 %v2921, %v2921
        %v2991 = vmul.f32 %v2922, %v2922
        %v2992 = vmul.f32 %v2923, %v2923
        %v2993 = vmul.f32 %v2924, %v2924
        %v2994 = vmul.f32 %v2925, %v2925
        %v2995 = vmul.f32 %v2926, %v2926
        %v2996 = vmul.f32 %v2927, %v2927
        %v2997 = vmul.f32 %v2928, %v2928
        %v2998 = vmul.f32 %v2929, %v2929
        %v2999 = vmul.f32 %v2930, %v2930
        %v3000 = vmul.f32 %v2931, %v2931
        %v3001 = vmul.f32 %v2932, %v2932
        %v3002 = vmul.f32 %v2933, %v2933
        %v3003 = vmul.f32 %v2934, %v2934
        %v3004 = vmul.f32 %v2935, %v2935
        %v3005 = vmul.f32 %v2936, %v2936
        %v3006 = vmul.f32 %v2937, %v2937
        %v3007 = vmul.f32 %v2938, %v2938
        %v3008 = vmul.f32 %v2939, %v2939
        %v3009 = vmul.f32 %v2940, %v2940
        %v3010 = vmul.f32 %v2941, %v2941
        %v3011 = vmul.f32 %v2942, %v2942
        %v3012 = vmul.f32 %v2943, %v2943
        %v3013 = vmul.f32 %v2944, %v2944
        %v3014 = vmul.f32 %v2945, %v2945
        %v3015 = vadd.f32 %v2983, %v2984
        %v3016 = vadd.f32 %v3015, %v2985
        %v3017 = vadd.f32 %v3016, %v2986
        %v3018 = vadd.f32 %v3017, %v2987
        %v3019 = vadd.f32 %v3018, %v2988
        %v3020 = vadd.f32 %v3019, %v2989
        %v3021 = vadd.f32 %v3020, %v2990
        %v3022 = vadd.f32 %v3021, %v2991
        %v3023 = vadd.f32 %v3022, %v2992
        %v3024 = vadd.f32 %v3023, %v2993
        %v3025 = vadd.f32 %v3024, %v2994
        %v3026 = vadd.f32 %v3025, %v2995
        %v3027 = vadd.f32 %v3026, %v2996
        %v3028 = vadd.f32 %v3027, %v2997
        %v3029 = vadd.f32 %v3028, %v2998
        %v3030 = vadd.f32 %v3029, %v2999
        %v3031 = vadd.f32 %v3030, %v3000
        %v3032 = vadd.f32 %v3031, %v3001
        %v3033 = vadd.f32 %v3032, %v3002
        %v3034 = vadd.f32 %v3033, %v3003
        %v3035 = vadd.f32 %v3034, %v3004
        %v3036 = vadd.f32 %v3035, %v3005
        %v3037 = vadd.f32 %v3036, %v3006
        %v3038 = vadd.f32 %v3037, %v3007
        %v3039 = vadd.f32 %v3038, %v3008
        %v3040 = vadd.f32 %v3039, %v3009
        %v3041 = vadd.f32 %v3040, %v3010
        %v3042 = vadd.f32 %v3041, %v3011
        %v3043 = vadd.f32 %v3042, %v3012
        %v3044 = vadd.f32 %v3043, %v3013
        %v3045 = vadd.f32 %v3044, %v3014
        %v3046 = vrot.slane %v3045, 4
        %v3047 = vadd.f32 %v3045, %v3046
        %v3048 = vrot.slane %v3047, 2
        %v3049 = vadd.f32 %v3047, %v3048
        %v3050 = vrot.slane %v3049, 1
        %v3051 = vadd.f32 %v3049, %v3050
        %v3052 = vmul.f32 %v2982, 0.00390625
        %v3053 = vmul.f32 %v3051, 0.00390625
        %v3054 = vmul.f32 %v3052, %v3052
        %v3055 = vsub.f32 %v3053, %v3054
        %v3056 = vmax.f32 %v3055, 0.0
        %v3057 = vsub.f32 %v2914, %v3052
        %v3058 = vsub.f32 %v2915, %v3052
        %v3059 = vsub.f32 %v2916, %v3052
        %v3060 = vsub.f32 %v2917, %v3052
        %v3061 = vsub.f32 %v2918, %v3052
        %v3062 = vsub.f32 %v2919, %v3052
        %v3063 = vsub.f32 %v2920, %v3052
        %v3064 = vsub.f32 %v2921, %v3052
        %v3065 = vsub.f32 %v2922, %v3052
        %v3066 = vsub.f32 %v2923, %v3052
        %v3067 = vsub.f32 %v2924, %v3052
        %v3068 = vsub.f32 %v2925, %v3052
        %v3069 = vsub.f32 %v2926, %v3052
        %v3070 = vsub.f32 %v2927, %v3052
        %v3071 = vsub.f32 %v2928, %v3052
        %v3072 = vsub.f32 %v2929, %v3052
        %v3073 = vsub.f32 %v2930, %v3052
        %v3074 = vsub.f32 %v2931, %v3052
        %v3075 = vsub.f32 %v2932, %v3052
        %v3076 = vsub.f32 %v2933, %v3052
        %v3077 = vsub.f32 %v2934, %v3052
        %v3078 = vsub.f32 %v2935, %v3052
        %v3079 = vsub.f32 %v2936, %v3052
        %v3080 = vsub.f32 %v2937, %v3052
        %v3081 = vsub.f32 %v2938, %v3052
        %v3082 = vsub.f32 %v2939, %v3052
        %v3083 = vsub.f32 %v2940, %v3052
        %v3084 = vsub.f32 %v2941, %v3052
        %v3085 = vsub.f32 %v2942, %v3052
        %v3086 = vsub.f32 %v2943, %v3052
        %v3087 = vsub.f32 %v2944, %v3052
        %v3088 = vsub.f32 %v2945, %v3052
        %v3089 = vadd.f32 %v3056, 1e-05
        %v3090 = vrsqrt.pop %v3089
        %v3091 = vmul.f32 %v3057, %v3090
        %v3092 = vmul.f32 %v3058, %v3090
        %v3093 = vmul.f32 %v3059, %v3090
        %v3094 = vmul.f32 %v3060, %v3090
        %v3095 = vmul.f32 %v3061, %v3090
        %v3096 = vmul.f32 %v3062, %v3090
        %v3097 = vmul.f32 %v3063, %v3090
        %v3098 = vmul.f32 %v3064, %v3090
        %v3099 = vmul.f32 %v3065, %v3090
        %v3100 = vmul.f32 %v3066, %v3090
        %v3101 = vmul.f32 %v3067, %v3090
        %v3102 = vmul.f32 %v3068, %v3090
        %v3103 = vmul.f32 %v3069, %v3090
        %v3104 = vmul.f32 %v3070, %v3090
        %v3105 = vmul.f32 %v3071, %v3090
        %v3106 = vmul.f32 %v3072, %v3090
        %v3107 = vmul.f32 %v3073, %v3090
        %v3108 = vmul.f32 %v3074, %v3090
        %v3109 = vmul.f32 %v3075, %v3090
        %v3110 = vmul.f32 %v3076, %v3090
        %v3111 = vmul.f32 %v3077, %v3090
        %v3112 = vmul.f32 %v3078, %v3090
        %v3113 = vmul.f32 %v3079, %v3090
        %v3114 = vmul.f32 %v3080, %v3090
        %v3115 = vmul.f32 %v3081, %v3090
        %v3116 = vmul.f32 %v3082, %v3090
        %v3117 = vmul.f32 %v3083, %v3090
        %v3118 = vmul.f32 %v3084, %v3090
        %v3119 = vmul.f32 %v3085, %v3090
        %v3120 = vmul.f32 %v3086, %v3090
        %v3121 = vmul.f32 %v3087, %v3090
        %v3122 = vmul.f32 %v3088, %v3090
        %v3123 = vmax.f32 %v3091, 0.0
        %v3124 = vmax.f32 %v3092, 0.0
        %v3125 = vmax.f32 %v3093, 0.0
        %v3126 = vmax.f32 %v3094, 0.0
        %v3127 = vmax.f32 %v3095, 0.0
        %v3128 = vmax.f32 %v3096, 0.0
        %v3129 = vmax.f32 %v3097, 0.0
        %v3130 = vmax.f32 %v3098, 0.0
        %v3131 = vmax.f32 %v3099, 0.0
        %v3132 = vmax.f32 %v3100, 0.0
        %v3133 = vmax.f32 %v3101, 0.0
        %v3134 = vmax.f32 %v3102, 0.0
        %v3135 = vmax.f32 %v3103, 0.0
        %v3136 = vmax.f32 %v3104, 0.0
        %v3137 = vmax.f32 %v3105, 0.0
        %v3138 = vmax.f32 %v3106, 0.0
        %v3139 = vmax.f32 %v3107, 0.0
        %v3140 = vmax.f32 %v3108, 0.0
        %v3141 = vmax.f32 %v3109, 0.0
        %v3142 = vmax.f32 %v3110, 0.0
        %v3143 = vmax.f32 %v3111, 0.0
        %v3144 = vmax.f32 %v3112, 0.0
        %v3145 = vmax.f32 %v3113, 0.0
        %v3146 = vmax.f32 %v3114, 0.0
        %v3147 = vmax.f32 %v3115, 0.0
        %v3148 = vmax.f32 %v3116, 0.0
        %v3149 = vmax.f32 %v3117, 0.0
        %v3150 = vmax.f32 %v3118, 0.0
        %v3151 = vmax.f32 %v3119, 0.0
        %v3152 = vmax.f32 %v3120, 0.0
        %v3153 = vmax.f32 %v3121, 0.0
        %v3154 = vmax.f32 %v3122, 0.0
        %v3155 = vrot.slane %v3123, 7
        %v3156 = vrot.slane %v3124, 7
        %v3157 = vrot.slane %v3125, 7
        %v3158 = vrot.slane %v3126, 7
        %v3159 = vrot.slane %v3127, 7
        %v3160 = vrot.slane %v3128, 7
        %v3161 = vrot.slane %v3129, 7
        %v3162 = vrot.slane %v3130, 7
        %v3163 = vrot.slane %v3131, 7
        %v3164 = vrot.slane %v3132, 7
        %v3165 = vrot.slane %v3133, 7
        %v3166 = vrot.slane %v3134, 7
        %v3167 = vrot.slane %v3135, 7
        %v3168 = vrot.slane %v3136, 7
        %v3169 = vrot.slane %v3137, 7
        %v3170 = vrot.slane %v3138, 7
        %v3171 = vrot.slane %v3139, 7
        %v3172 = vrot.slane %v3140, 7
        %v3173 = vrot.slane %v3141, 7
        %v3174 = vrot.slane %v3142, 7
        %v3175 = vrot.slane %v3143, 7
        %v3176 = vrot.slane %v3144, 7
        %v3177 = vrot.slane %v3145, 7
        %v3178 = vrot.slane %v3146, 7
        %v3179 = vrot.slane %v3147, 7
        %v3180 = vrot.slane %v3148, 7
        %v3181 = vrot.slane %v3149, 7
        %v3182 = vrot.slane %v3150, 7
        %v3183 = vrot.slane %v3151, 7
        %v3184 = vrot.slane %v3152, 7
        %v3185 = vrot.slane %v3153, 7
        %v3186 = vrot.slane %v3154, 7
        %v3187 = vsel %vm1108, %v3185, %v3186
        %v3188 = vsel %vm1108, %v3184, %v3185
        %v3189 = vsel %vm1108, %v3183, %v3184
        %v3190 = vsel %vm1108, %v3182, %v3183
        %v3191 = vsel %vm1108, %v3181, %v3182
        %v3192 = vsel %vm1108, %v3180, %v3181
        %v3193 = vsel %vm1108, %v3179, %v3180
        %v3194 = vsel %vm1108, %v3178, %v3179
        %v3195 = vsel %vm1108, %v3177, %v3178
        %v3196 = vsel %vm1108, %v3176, %v3177
        %v3197 = vsel %vm1108, %v3175, %v3176
        %v3198 = vsel %vm1108, %v3174, %v3175
        %v3199 = vsel %vm1108, %v3173, %v3174
        %v3200 = vsel %vm1108, %v3172, %v3173
        %v3201 = vsel %vm1108, %v3171, %v3172
        %v3202 = vsel %vm1108, %v3170, %v3171
        %v3203 = vsel %vm1108, %v3169, %v3170
        %v3204 = vsel %vm1108, %v3168, %v3169
        %v3205 = vsel %vm1108, %v3167, %v3168
        %v3206 = vsel %vm1108, %v3166, %v3167
        %v3207 = vsel %vm1108, %v3165, %v3166
        %v3208 = vsel %vm1108, %v3164, %v3165
        %v3209 = vsel %vm1108, %v3163, %v3164
        %v3210 = vsel %vm1108, %v3162, %v3163
        %v3211 = vsel %vm1108, %v3161, %v3162
        %v3212 = vsel %vm1108, %v3160, %v3161
        %v3213 = vsel %vm1108, %v3159, %v3160
        %v3214 = vsel %vm1108, %v3158, %v3159
        %v3215 = vsel %vm1108, %v3157, %v3158
        %v3216 = vsel %vm1108, %v3156, %v3157
        %v3217 = vsel %vm1108, %v3155, %v3156
        %v3218 = vsel %vm1108, %v3186, %v3155
        %v3219 = vrot.slane %v3123, 1
        %v3220 = vrot.slane %v3124, 1
        %v3221 = vrot.slane %v3125, 1
        %v3222 = vrot.slane %v3126, 1
        %v3223 = vrot.slane %v3127, 1
        %v3224 = vrot.slane %v3128, 1
        %v3225 = vrot.slane %v3129, 1
        %v3226 = vrot.slane %v3130, 1
        %v3227 = vrot.slane %v3131, 1
        %v3228 = vrot.slane %v3132, 1
        %v3229 = vrot.slane %v3133, 1
        %v3230 = vrot.slane %v3134, 1
        %v3231 = vrot.slane %v3135, 1
        %v3232 = vrot.slane %v3136, 1
        %v3233 = vrot.slane %v3137, 1
        %v3234 = vrot.slane %v3138, 1
        %v3235 = vrot.slane %v3139, 1
        %v3236 = vrot.slane %v3140, 1
        %v3237 = vrot.slane %v3141, 1
        %v3238 = vrot.slane %v3142, 1
        %v3239 = vrot.slane %v3143, 1
        %v3240 = vrot.slane %v3144, 1
        %v3241 = vrot.slane %v3145, 1
        %v3242 = vrot.slane %v3146, 1
        %v3243 = vrot.slane %v3147, 1
        %v3244 = vrot.slane %v3148, 1
        %v3245 = vrot.slane %v3149, 1
        %v3246 = vrot.slane %v3150, 1
        %v3247 = vrot.slane %v3151, 1
        %v3248 = vrot.slane %v3152, 1
        %v3249 = vrot.slane %v3153, 1
        %v3250 = vrot.slane %v3154, 1
        %v3251 = vsel %vm1173, %v3249, %v3250
        %v3252 = vsel %vm1173, %v3248, %v3249
        %v3253 = vsel %vm1173, %v3247, %v3248
        %v3254 = vsel %vm1173, %v3246, %v3247
        %v3255 = vsel %vm1173, %v3245, %v3246
        %v3256 = vsel %vm1173, %v3244, %v3245
        %v3257 = vsel %vm1173, %v3243, %v3244
        %v3258 = vsel %vm1173, %v3242, %v3243
        %v3259 = vsel %vm1173, %v3241, %v3242
        %v3260 = vsel %vm1173, %v3240, %v3241
        %v3261 = vsel %vm1173, %v3239, %v3240
        %v3262 = vsel %vm1173, %v3238, %v3239
        %v3263 = vsel %vm1173, %v3237, %v3238
        %v3264 = vsel %vm1173, %v3236, %v3237
        %v3265 = vsel %vm1173, %v3235, %v3236
        %v3266 = vsel %vm1173, %v3234, %v3235
        %v3267 = vsel %vm1173, %v3233, %v3234
        %v3268 = vsel %vm1173, %v3232, %v3233
        %v3269 = vsel %vm1173, %v3231, %v3232
        %v3270 = vsel %vm1173, %v3230, %v3231
        %v3271 = vsel %vm1173, %v3229, %v3230
        %v3272 = vsel %vm1173, %v3228, %v3229
        %v3273 = vsel %vm1173, %v3227, %v3228
        %v3274 = vsel %vm1173, %v3226, %v3227
        %v3275 = vsel %vm1173, %v3225, %v3226
        %v3276 = vsel %vm1173, %v3224, %v3225
        %v3277 = vsel %vm1173, %v3223, %v3224
        %v3278 = vsel %vm1173, %v3222, %v3223
        %v3279 = vsel %vm1173, %v3221, %v3222
        %v3280 = vsel %vm1173, %v3220, %v3221
        %v3281 = vsel %vm1173, %v3219, %v3220
        %v3282 = vsel %vm1173, %v3250, %v3219
        %v3283 = vsel %vm1238, %v3281, %v3218
        %v3284 = vsel %vm1239, %v3280, %v3217
        %v3285 = vsel %vm1240, %v3279, %v3216
        %v3286 = vsel %vm1241, %v3278, %v3215
        %v3287 = vsel %vm1242, %v3277, %v3214
        %v3288 = vsel %vm1243, %v3276, %v3213
        %v3289 = vsel %vm1244, %v3275, %v3212
        %v3290 = vsel %vm1245, %v3274, %v3211
        %v3291 = vsel %vm1246, %v3273, %v3210
        %v3292 = vsel %vm1247, %v3272, %v3209
        %v3293 = vsel %vm1248, %v3271, %v3208
        %v3294 = vsel %vm1249, %v3270, %v3207
        %v3295 = vsel %vm1250, %v3269, %v3206
        %v3296 = vsel %vm1251, %v3268, %v3205
        %v3297 = vsel %vm1252, %v3267, %v3204
        %v3298 = vsel %vm1253, %v3266, %v3203
        %v3299 = vsel %vm1254, %v3265, %v3202
        %v3300 = vsel %vm1255, %v3264, %v3201
        %v3301 = vsel %vm1256, %v3263, %v3200
        %v3302 = vsel %vm1257, %v3262, %v3199
        %v3303 = vsel %vm1258, %v3261, %v3198
        %v3304 = vsel %vm1259, %v3260, %v3197
        %v3305 = vsel %vm1260, %v3259, %v3196
        %v3306 = vsel %vm1261, %v3258, %v3195
        %v3307 = vsel %vm1262, %v3257, %v3194
        %v3308 = vsel %vm1263, %v3256, %v3193
        %v3309 = vsel %vm1264, %v3255, %v3192
        %v3310 = vsel %vm1265, %v3254, %v3191
        %v3311 = vsel %vm1266, %v3253, %v3190
        %v3312 = vsel %vm1267, %v3252, %v3189
        %v3313 = vsel %vm1268, %v3251, %v3188
        %v3314 = vsel %vm1269, %v3282, %v3187
        %v3315 = vsel %vm1334, %v3218, %v3281
        %v3316 = vsel %vm1335, %v3217, %v3280
        %v3317 = vsel %vm1336, %v3216, %v3279
        %v3318 = vsel %vm1337, %v3215, %v3278
        %v3319 = vsel %vm1338, %v3214, %v3277
        %v3320 = vsel %vm1339, %v3213, %v3276
        %v3321 = vsel %vm1340, %v3212, %v3275
        %v3322 = vsel %vm1341, %v3211, %v3274
        %v3323 = vsel %vm1342, %v3210, %v3273
        %v3324 = vsel %vm1343, %v3209, %v3272
        %v3325 = vsel %vm1344, %v3208, %v3271
        %v3326 = vsel %vm1345, %v3207, %v3270
        %v3327 = vsel %vm1346, %v3206, %v3269
        %v3328 = vsel %vm1347, %v3205, %v3268
        %v3329 = vsel %vm1348, %v3204, %v3267
        %v3330 = vsel %vm1349, %v3203, %v3266
        %v3331 = vsel %vm1350, %v3202, %v3265
        %v3332 = vsel %vm1351, %v3201, %v3264
        %v3333 = vsel %vm1352, %v3200, %v3263
        %v3334 = vsel %vm1353, %v3199, %v3262
        %v3335 = vsel %vm1354, %v3198, %v3261
        %v3336 = vsel %vm1355, %v3197, %v3260
        %v3337 = vsel %vm1356, %v3196, %v3259
        %v3338 = vsel %vm1357, %v3195, %v3258
        %v3339 = vsel %vm1358, %v3194, %v3257
        %v3340 = vsel %vm1359, %v3193, %v3256
        %v3341 = vsel %vm1360, %v3192, %v3255
        %v3342 = vsel %vm1361, %v3191, %v3254
        %v3343 = vsel %vm1362, %v3190, %v3253
        %v3344 = vsel %vm1363, %v3189, %v3252
        %v3345 = vsel %vm1364, %v3188, %v3251
        %v3346 = vsel %vm1365, %v3187, %v3282
        %v3347 = vpack.c.bf16 %v3284, %v3283
        %v3348 = vpack.c.bf16 %v3286, %v3285
        %v3349 = vpack.c.bf16 %v3288, %v3287
        %v3350 = vpack.c.bf16 %v3290, %v3289
        %v3351 = vpack.c.bf16 %v3292, %v3291
        %v3352 = vpack.c.bf16 %v3294, %v3293
        %v3353 = vpack.c.bf16 %v3296, %v3295
        %v3354 = vpack.c.bf16 %v3298, %v3297
        %v3355 = vpack.c.bf16 %v3300, %v3299
        %v3356 = vpack.c.bf16 %v3302, %v3301
        %v3357 = vpack.c.bf16 %v3304, %v3303
        %v3358 = vpack.c.bf16 %v3306, %v3305
        %v3359 = vpack.c.bf16 %v3308, %v3307
        %v3360 = vpack.c.bf16 %v3310, %v3309
        %v3361 = vpack.c.bf16 %v3312, %v3311
        %v3362 = vpack.c.bf16 %v3314, %v3313
        %v3363 = vpack.c.bf16 %v3124, %v3123
        %v3364 = vpack.c.bf16 %v3126, %v3125
        %v3365 = vpack.c.bf16 %v3128, %v3127
        %v3366 = vpack.c.bf16 %v3130, %v3129
        %v3367 = vpack.c.bf16 %v3132, %v3131
        %v3368 = vpack.c.bf16 %v3134, %v3133
        %v3369 = vpack.c.bf16 %v3136, %v3135
        %v3370 = vpack.c.bf16 %v3138, %v3137
        %v3371 = vpack.c.bf16 %v3140, %v3139
        %v3372 = vpack.c.bf16 %v3142, %v3141
        %v3373 = vpack.c.bf16 %v3144, %v3143
        %v3374 = vpack.c.bf16 %v3146, %v3145
        %v3375 = vpack.c.bf16 %v3148, %v3147
        %v3376 = vpack.c.bf16 %v3150, %v3149
        %v3377 = vpack.c.bf16 %v3152, %v3151
        %v3378 = vpack.c.bf16 %v3154, %v3153
        %v3379 = vpack.c.bf16 %v3316, %v3315
        %v3380 = vpack.c.bf16 %v3318, %v3317
        %v3381 = vpack.c.bf16 %v3320, %v3319
        %v3382 = vpack.c.bf16 %v3322, %v3321
        %v3383 = vpack.c.bf16 %v3324, %v3323
        %v3384 = vpack.c.bf16 %v3326, %v3325
        %v3385 = vpack.c.bf16 %v3328, %v3327
        %v3386 = vpack.c.bf16 %v3330, %v3329
        %v3387 = vpack.c.bf16 %v3332, %v3331
        %v3388 = vpack.c.bf16 %v3334, %v3333
        %v3389 = vpack.c.bf16 %v3336, %v3335
        %v3390 = vpack.c.bf16 %v3338, %v3337
        %v3391 = vpack.c.bf16 %v3340, %v3339
        %v3392 = vpack.c.bf16 %v3342, %v3341
        %v3393 = vpack.c.bf16 %v3344, %v3343
        %v3394 = vpack.c.bf16 %v3346, %v3345
        %v3443 = vunpack.c.l.b16 %v417
        %v3444 = vunpack.c.l.b16 %v418
        %v3445 = vunpack.c.l.b16 %v419
        %v3446 = vunpack.c.l.b16 %v420
        %v3447 = vunpack.c.l.b16 %v421
        %v3448 = vunpack.c.l.b16 %v422
        %v3449 = vunpack.c.l.b16 %v423
        %v3450 = vunpack.c.l.b16 %v424
        %v3451 = vunpack.c.l.b16 %v425
        %v3452 = vunpack.c.l.b16 %v426
        %v3453 = vunpack.c.l.b16 %v427
        %v3454 = vunpack.c.l.b16 %v428
        %v3455 = vunpack.c.l.b16 %v429
        %v3456 = vunpack.c.l.b16 %v430
        %v3457 = vunpack.c.l.b16 %v431
        %v3458 = vunpack.c.l.b16 %v432
        %v3459 = vunpack.c.l.b16 %v433
        %v3460 = vunpack.c.l.b16 %v434
        %v3461 = vunpack.c.l.b16 %v435
        %v3462 = vunpack.c.l.b16 %v436
        %v3463 = vunpack.c.l.b16 %v437
        %v3464 = vunpack.c.l.b16 %v438
        %v3465 = vunpack.c.l.b16 %v439
        %v3466 = vunpack.c.l.b16 %v440
        %v3467 = vunpack.c.l.b16 %v441
        %v3468 = vunpack.c.l.b16 %v442
        %v3469 = vunpack.c.l.b16 %v443
        %v3470 = vunpack.c.l.b16 %v444
        %v3471 = vunpack.c.l.b16 %v445
        %v3472 = vunpack.c.l.b16 %v446
        %v3473 = vunpack.c.l.b16 %v447
        %v3474 = vunpack.c.l.b16 %v448
        %v3475 = vunpack.c.l.b16 %v449
        %v3476 = vunpack.c.l.b16 %v450
        %v3477 = vunpack.c.l.b16 %v451
        %v3478 = vunpack.c.l.b16 %v452
        %v3479 = vunpack.c.l.b16 %v453
        %v3480 = vunpack.c.l.b16 %v454
        %v3481 = vunpack.c.l.b16 %v455
        %v3482 = vunpack.c.l.b16 %v456
        %v3483 = vunpack.c.l.b16 %v457
        %v3484 = vunpack.c.l.b16 %v458
        %v3485 = vunpack.c.l.b16 %v459
        %v3486 = vunpack.c.l.b16 %v460
        %v3487 = vunpack.c.l.b16 %v461
        %v3488 = vunpack.c.l.b16 %v462
        %v3489 = vunpack.c.l.b16 %v463
        %v3490 = vunpack.c.l.b16 %v464
        %v3491 = vpack.c.b16 %v3444, %v3443
        %v3492 = vpack.c.b16 %v3446, %v3445
        %v3493 = vpack.c.b16 %v3448, %v3447
        %v3494 = vpack.c.b16 %v3450, %v3449
        %v3495 = vpack.c.b16 %v3452, %v3451
        %v3496 = vpack.c.b16 %v3454, %v3453
        %v3497 = vpack.c.b16 %v3456, %v3455
        %v3498 = vpack.c.b16 %v3458, %v3457
        %v3499 = vpack.c.b16 %v3460, %v3459
        %v3500 = vpack.c.b16 %v3462, %v3461
        %v3501 = vpack.c.b16 %v3464, %v3463
        %v3502 = vpack.c.b16 %v3466, %v3465
        %v3503 = vpack.c.b16 %v3468, %v3467
        %v3504 = vpack.c.b16 %v3470, %v3469
        %v3505 = vpack.c.b16 %v3472, %v3471
        %v3506 = vpack.c.b16 %v3474, %v3473
        %v3507 = vpack.c.b16 %v3476, %v3475
        %v3508 = vpack.c.b16 %v3478, %v3477
        %v3509 = vpack.c.b16 %v3480, %v3479
        %v3510 = vpack.c.b16 %v3482, %v3481
        %v3511 = vpack.c.b16 %v3484, %v3483
        %v3512 = vpack.c.b16 %v3486, %v3485
        %v3513 = vpack.c.b16 %v3488, %v3487
        %v3514 = vpack.c.b16 %v3490, %v3489
        %3539 = vmatprep.subr.bf16.mxu0 0
        %3540 = vmatpush1.bf16.msra.mxu0 %v3498
        %3541 = vmatprep.subr.bf16.mxu0 0
        %3542 = vmatpush1.bf16.msra.mxu0 %v3497
        %3543 = vmatprep.subr.bf16.mxu0 0
        %3544 = vmatpush1.bf16.msra.mxu0 %v3496
        %3545 = vmatprep.subr.bf16.mxu0 0
        %3546 = vmatpush1.bf16.msra.mxu0 %v3495
        %3547 = vmatprep.subr.bf16.mxu0 0
        %3548 = vmatpush1.bf16.msra.mxu0 %v3494
        %3549 = vmatprep.subr.bf16.mxu0 0
        %3550 = vmatpush1.bf16.msra.mxu0 %v3493
        %3551 = vmatprep.subr.bf16.mxu0 0
        %3552 = vmatpush1.bf16.msra.mxu0 %v3492
        %3553 = vmatprep.subr.bf16.mxu0 0
        %3554 = vmatpush1.bf16.msra.mxu0 %v3491
        %3555 = vmatprep.subr.bf16.mxu0 0
        %3556 = vmatpush2.bf16.msra.mxu0 %v3506
        %3557 = vmatprep.subr.bf16.mxu0 0
        %3558 = vmatpush2.bf16.msra.mxu0 %v3505
        %3559 = vmatprep.subr.bf16.mxu0 0
        %3560 = vmatpush2.bf16.msra.mxu0 %v3504
        %3561 = vmatprep.subr.bf16.mxu0 0
        %3562 = vmatpush2.bf16.msra.mxu0 %v3503
        %3563 = vmatprep.subr.bf16.mxu0 0
        %3564 = vmatpush2.bf16.msra.mxu0 %v3502
        %3565 = vmatprep.subr.bf16.mxu0 0
        %3566 = vmatpush2.bf16.msra.mxu0 %v3501
        %3567 = vmatprep.subr.bf16.mxu0 0
        %3568 = vmatpush2.bf16.msra.mxu0 %v3500
        %3569 = vmatprep.subr.bf16.mxu0 0
        %3570 = vmatpush2.bf16.msra.mxu0 %v3499
        %3571 = vmatprep.mubr.bf16.mxu0 %v3364
        %3572 = vmatmul.mubr.bf16.gmra.mxu0 %v3348
        %v3573 = vpop.f32.mrf.mxu0
        %v3574 = vadd.f32 0.0, %v3573
        %v3575 = vpop.f32.mrf.mxu0
        %v3576 = vpop.f32.mrf.mxu0
        %v3577 = vadd.f32 0.0, %v3576
        %v3578 = vpop.f32.mrf.mxu0
        %3579 = vmatprep.mubr.bf16.mxu0 %v3363
        %3580 = vmatmul.mubr.bf16.gmra.mxu0 %v3347
        %v3581 = vpop.f32.mrf.mxu0
        %v3582 = vadd.f32 0.0, %v3581
        %v3583 = vpop.f32.mrf.mxu0
        %v3584 = vpop.f32.mrf.mxu0
        %v3585 = vadd.f32 0.0, %v3584
        %v3586 = vpop.f32.mrf.mxu0
        %3587 = vmatprep.mubr.bf16.mxu0 %v3364
        %3588 = vmatmul.mubr.bf16.gmra.mxu0 %v3348
        %v3589 = vpop.f32.mrf.mxu0
        %v3590 = vadd.f32 0.0, %v3589
        %v3591 = vpop.f32.mrf.mxu0
        %v3592 = vpop.f32.mrf.mxu0
        %v3593 = vadd.f32 0.0, %v3592
        %v3594 = vpop.f32.mrf.mxu0
        %3595 = vmatprep.mubr.bf16.mxu0 %v3365
        %3596 = vmatmul.mubr.bf16.gmra.mxu0 %v3349
        %v3597 = vpop.f32.mrf.mxu0
        %v3598 = vadd.f32 0.0, %v3597
        %v3599 = vpop.f32.mrf.mxu0
        %v3600 = vpop.f32.mrf.mxu0
        %v3601 = vadd.f32 0.0, %v3600
        %v3602 = vpop.f32.mrf.mxu0
        %3603 = vmatprep.mubr.bf16.mxu0 %v3366
        %3604 = vmatmul.mubr.bf16.gmra.mxu0 %v3350
        %v3605 = vpop.f32.mrf.mxu0
        %v3606 = vadd.f32 0.0, %v3605
        %v3607 = vpop.f32.mrf.mxu0
        %v3608 = vpop.f32.mrf.mxu0
        %v3609 = vadd.f32 0.0, %v3608
        %v3610 = vpop.f32.mrf.mxu0
        %3611 = vmatprep.mubr.bf16.mxu0 %v3367
        %3612 = vmatmul.mubr.bf16.gmra.mxu0 %v3351
        %v3613 = vpop.f32.mrf.mxu0
        %v3614 = vadd.f32 0.0, %v3613
        %v3615 = vpop.f32.mrf.mxu0
        %v3616 = vpop.f32.mrf.mxu0
        %v3617 = vadd.f32 0.0, %v3616
        %v3618 = vpop.f32.mrf.mxu0
        %3619 = vmatprep.mubr.bf16.mxu0 %v3368
        %3620 = vmatmul.mubr.bf16.gmra.mxu0 %v3352
        %v3621 = vpop.f32.mrf.mxu0
        %v3622 = vadd.f32 0.0, %v3621
        %v3623 = vpop.f32.mrf.mxu0
        %v3624 = vpop.f32.mrf.mxu0
        %v3625 = vadd.f32 0.0, %v3624
        %v3626 = vpop.f32.mrf.mxu0
        %3627 = vmatprep.mubr.bf16.mxu0 %v3369
        %3628 = vmatmul.mubr.bf16.gmra.mxu0 %v3353
        %v3629 = vpop.f32.mrf.mxu0
        %v3630 = vadd.f32 0.0, %v3629
        %v3631 = vpop.f32.mrf.mxu0
        %v3632 = vpop.f32.mrf.mxu0
        %v3633 = vadd.f32 0.0, %v3632
        %v3634 = vpop.f32.mrf.mxu0
        %3635 = vmatprep.mubr.bf16.mxu0 %v3370
        %3636 = vmatmul.mubr.bf16.gmra.mxu0 %v3354
        %v3637 = vpop.f32.mrf.mxu0
        %v3638 = vadd.f32 0.0, %v3637
        %v3639 = vpop.f32.mrf.mxu0
        %v3640 = vpop.f32.mrf.mxu0
        %v3641 = vadd.f32 0.0, %v3640
        %v3642 = vpop.f32.mrf.mxu0
        %3643 = vmatprep.mubr.bf16.mxu0 %v3371
        %3644 = vmatmul.mubr.bf16.gmra.mxu0 %v3355
        %v3645 = vpop.f32.mrf.mxu0
        %v3646 = vadd.f32 0.0, %v3645
        %v3647 = vpop.f32.mrf.mxu0
        %v3648 = vpop.f32.mrf.mxu0
        %v3649 = vadd.f32 0.0, %v3648
        %v3650 = vpop.f32.mrf.mxu0
        %3651 = vmatprep.mubr.bf16.mxu0 %v3372
        %3652 = vmatmul.mubr.bf16.gmra.mxu0 %v3356
        %v3653 = vpop.f32.mrf.mxu0
        %v3654 = vadd.f32 0.0, %v3653
        %v3655 = vpop.f32.mrf.mxu0
        %v3656 = vpop.f32.mrf.mxu0
        %v3657 = vadd.f32 0.0, %v3656
        %v3658 = vpop.f32.mrf.mxu0
        %3659 = vmatprep.mubr.bf16.mxu0 %v3373
        %3660 = vmatmul.mubr.bf16.gmra.mxu0 %v3357
        %v3661 = vpop.f32.mrf.mxu0
        %v3662 = vadd.f32 0.0, %v3661
        %v3663 = vpop.f32.mrf.mxu0
        %v3664 = vpop.f32.mrf.mxu0
        %v3665 = vadd.f32 0.0, %v3664
        %v3666 = vpop.f32.mrf.mxu0
        %3667 = vmatprep.mubr.bf16.mxu0 %v3374
        %3668 = vmatmul.mubr.bf16.gmra.mxu0 %v3358
        %v3669 = vpop.f32.mrf.mxu0
        %v3670 = vadd.f32 0.0, %v3669
        %v3671 = vpop.f32.mrf.mxu0
        %v3672 = vpop.f32.mrf.mxu0
        %v3673 = vadd.f32 0.0, %v3672
        %v3674 = vpop.f32.mrf.mxu0
        %3675 = vmatprep.mubr.bf16.mxu0 %v3375
        %3676 = vmatmul.mubr.bf16.gmra.mxu0 %v3359
        %v3677 = vpop.f32.mrf.mxu0
        %v3678 = vadd.f32 0.0, %v3677
        %v3679 = vpop.f32.mrf.mxu0
        %v3680 = vpop.f32.mrf.mxu0
        %v3681 = vadd.f32 0.0, %v3680
        %v3682 = vpop.f32.mrf.mxu0
        %3683 = vmatprep.mubr.bf16.mxu0 %v3376
        %3684 = vmatmul.mubr.bf16.gmra.mxu0 %v3360
        %v3685 = vpop.f32.mrf.mxu0
        %v3686 = vadd.f32 0.0, %v3685
        %v3687 = vpop.f32.mrf.mxu0
        %v3688 = vpop.f32.mrf.mxu0
        %v3689 = vadd.f32 0.0, %v3688
        %v3690 = vpop.f32.mrf.mxu0
        %3691 = vmatprep.mubr.bf16.mxu0 %v3377
        %3692 = vmatmul.mubr.bf16.gmra.mxu0 %v3361
        %v3693 = vpop.f32.mrf.mxu0
        %v3694 = vadd.f32 0.0, %v3693
        %v3695 = vpop.f32.mrf.mxu0
        %v3696 = vpop.f32.mrf.mxu0
        %v3697 = vadd.f32 0.0, %v3696
        %v3698 = vpop.f32.mrf.mxu0
        %3699 = vdwg.mxu0
        %3700 = vmatprep.subr.bf16.mxu0 0
        %3701 = vmatpush1.bf16.msra.mxu0 %v3514
        %3702 = vmatprep.subr.bf16.mxu0 0
        %3703 = vmatpush1.bf16.msra.mxu0 %v3513
        %3704 = vmatprep.subr.bf16.mxu0 0
        %3705 = vmatpush1.bf16.msra.mxu0 %v3512
        %3706 = vmatprep.subr.bf16.mxu0 0
        %3707 = vmatpush1.bf16.msra.mxu0 %v3511
        %3708 = vmatprep.subr.bf16.mxu0 0
        %3709 = vmatpush1.bf16.msra.mxu0 %v3510
        %3710 = vmatprep.subr.bf16.mxu0 0
        %3711 = vmatpush1.bf16.msra.mxu0 %v3509
        %3712 = vmatprep.subr.bf16.mxu0 0
        %3713 = vmatpush1.bf16.msra.mxu0 %v3508
        %3714 = vmatprep.subr.bf16.mxu0 0
        %3715 = vmatpush1.bf16.msra.mxu0 %v3507
        %3716 = vmatprep.subr.bf16.mxu0 0
        %3717 = vmatpush2.bf16.msra.mxu0 0
        %3718 = vmatprep.subr.bf16.mxu0 0
        %3719 = vmatpush2.bf16.msra.mxu0 0
        %3720 = vmatprep.subr.bf16.mxu0 0
        %3721 = vmatpush2.bf16.msra.mxu0 0
        %3722 = vmatprep.subr.bf16.mxu0 0
        %3723 = vmatpush2.bf16.msra.mxu0 0
        %3724 = vmatprep.subr.bf16.mxu0 0
        %3725 = vmatpush2.bf16.msra.mxu0 0
        %3726 = vmatprep.subr.bf16.mxu0 0
        %3727 = vmatpush2.bf16.msra.mxu0 0
        %3728 = vmatprep.subr.bf16.mxu0 0
        %3729 = vmatpush2.bf16.msra.mxu0 0
        %3730 = vmatprep.subr.bf16.mxu0 0
        %3731 = vmatpush2.bf16.msra.mxu0 0
        %3732 = vmatprep.mubr.bf16.mxu0 0
        %3733 = vmatmul.mubr.bf16.gmra.mxu0 %v3380
        %v3734 = vpop.f32.mrf.mxu0
        %v3735 = vadd.f32 %v3574, %v3734
        %v3736 = vpop.f32.mrf.mxu0
        %v3737 = vpop.f32.mrf.mxu0
        %v3738 = vadd.f32 %v3577, %v3737
        %v3739 = vpop.f32.mrf.mxu0
        %3740 = vmatprep.mubr.bf16.mxu0 0
        %3741 = vmatmul.mubr.bf16.gmra.mxu0 %v3379
        %v3742 = vpop.f32.mrf.mxu0
        %v3743 = vadd.f32 %v3582, %v3742
        %v3744 = vpop.f32.mrf.mxu0
        %v3745 = vpop.f32.mrf.mxu0
        %v3746 = vadd.f32 %v3585, %v3745
        %v3747 = vpop.f32.mrf.mxu0
        %3748 = vmatprep.mubr.bf16.mxu0 0
        %3749 = vmatmul.mubr.bf16.gmra.mxu0 %v3380
        %v3750 = vpop.f32.mrf.mxu0
        %v3751 = vadd.f32 %v3590, %v3750
        %v3752 = vpop.f32.mrf.mxu0
        %v3753 = vpop.f32.mrf.mxu0
        %v3754 = vadd.f32 %v3593, %v3753
        %v3755 = vpop.f32.mrf.mxu0
        %3756 = vmatprep.mubr.bf16.mxu0 0
        %3757 = vmatmul.mubr.bf16.gmra.mxu0 %v3381
        %v3758 = vpop.f32.mrf.mxu0
        %v3759 = vadd.f32 %v3598, %v3758
        %v3760 = vpop.f32.mrf.mxu0
        %v3761 = vpop.f32.mrf.mxu0
        %v3762 = vadd.f32 %v3601, %v3761
        %v3763 = vpop.f32.mrf.mxu0
        %3764 = vmatprep.mubr.bf16.mxu0 0
        %3765 = vmatmul.mubr.bf16.gmra.mxu0 %v3382
        %v3766 = vpop.f32.mrf.mxu0
        %v3767 = vadd.f32 %v3606, %v3766
        %v3768 = vpop.f32.mrf.mxu0
        %v3769 = vpop.f32.mrf.mxu0
        %v3770 = vadd.f32 %v3609, %v3769
        %v3771 = vpop.f32.mrf.mxu0
        %3772 = vmatprep.mubr.bf16.mxu0 0
        %3773 = vmatmul.mubr.bf16.gmra.mxu0 %v3383
        %v3774 = vpop.f32.mrf.mxu0
        %v3775 = vadd.f32 %v3614, %v3774
        %v3776 = vpop.f32.mrf.mxu0
        %v3777 = vpop.f32.mrf.mxu0
        %v3778 = vadd.f32 %v3617, %v3777
        %v3779 = vpop.f32.mrf.mxu0
        %3780 = vmatprep.mubr.bf16.mxu0 0
        %3781 = vmatmul.mubr.bf16.gmra.mxu0 %v3384
        %v3782 = vpop.f32.mrf.mxu0
        %v3783 = vadd.f32 %v3622, %v3782
        %v3784 = vpop.f32.mrf.mxu0
        %v3785 = vpop.f32.mrf.mxu0
        %v3786 = vadd.f32 %v3625, %v3785
        %v3787 = vpop.f32.mrf.mxu0
        %3788 = vmatprep.mubr.bf16.mxu0 0
        %3789 = vmatmul.mubr.bf16.gmra.mxu0 %v3385
        %v3790 = vpop.f32.mrf.mxu0
        %v3791 = vadd.f32 %v3630, %v3790
        %v3792 = vpop.f32.mrf.mxu0
        %v3793 = vpop.f32.mrf.mxu0
        %v3794 = vadd.f32 %v3633, %v3793
        %v3795 = vpop.f32.mrf.mxu0
        %3796 = vmatprep.mubr.bf16.mxu0 0
        %3797 = vmatmul.mubr.bf16.gmra.mxu0 %v3386
        %v3798 = vpop.f32.mrf.mxu0
        %v3799 = vadd.f32 %v3638, %v3798
        %v3800 = vpop.f32.mrf.mxu0
        %v3801 = vpop.f32.mrf.mxu0
        %v3802 = vadd.f32 %v3641, %v3801
        %v3803 = vpop.f32.mrf.mxu0
        %3804 = vmatprep.mubr.bf16.mxu0 0
        %3805 = vmatmul.mubr.bf16.gmra.mxu0 %v3387
        %v3806 = vpop.f32.mrf.mxu0
        %v3807 = vadd.f32 %v3646, %v3806
        %v3808 = vpop.f32.mrf.mxu0
        %v3809 = vpop.f32.mrf.mxu0
        %v3810 = vadd.f32 %v3649, %v3809
        %v3811 = vpop.f32.mrf.mxu0
        %3812 = vmatprep.mubr.bf16.mxu0 0
        %3813 = vmatmul.mubr.bf16.gmra.mxu0 %v3388
        %v3814 = vpop.f32.mrf.mxu0
        %v3815 = vadd.f32 %v3654, %v3814
        %v3816 = vpop.f32.mrf.mxu0
        %v3817 = vpop.f32.mrf.mxu0
        %v3818 = vadd.f32 %v3657, %v3817
        %v3819 = vpop.f32.mrf.mxu0
        %3820 = vmatprep.mubr.bf16.mxu0 0
        %3821 = vmatmul.mubr.bf16.gmra.mxu0 %v3389
        %v3822 = vpop.f32.mrf.mxu0
        %v3823 = vadd.f32 %v3662, %v3822
        %v3824 = vpop.f32.mrf.mxu0
        %v3825 = vpop.f32.mrf.mxu0
        %v3826 = vadd.f32 %v3665, %v3825
        %v3827 = vpop.f32.mrf.mxu0
        %3828 = vmatprep.mubr.bf16.mxu0 0
        %3829 = vmatmul.mubr.bf16.gmra.mxu0 %v3390
        %v3830 = vpop.f32.mrf.mxu0
        %v3831 = vadd.f32 %v3670, %v3830
        %v3832 = vpop.f32.mrf.mxu0
        %v3833 = vpop.f32.mrf.mxu0
        %v3834 = vadd.f32 %v3673, %v3833
        %v3835 = vpop.f32.mrf.mxu0
        %3836 = vmatprep.mubr.bf16.mxu0 0
        %3837 = vmatmul.mubr.bf16.gmra.mxu0 %v3391
        %v3838 = vpop.f32.mrf.mxu0
        %v3839 = vadd.f32 %v3678, %v3838
        %v3840 = vpop.f32.mrf.mxu0
        %v3841 = vpop.f32.mrf.mxu0
        %v3842 = vadd.f32 %v3681, %v3841
        %v3843 = vpop.f32.mrf.mxu0
        %3844 = vmatprep.mubr.bf16.mxu0 0
        %3845 = vmatmul.mubr.bf16.gmra.mxu0 %v3392
        %v3846 = vpop.f32.mrf.mxu0
        %v3847 = vadd.f32 %v3686, %v3846
        %v3848 = vpop.f32.mrf.mxu0
        %v3849 = vpop.f32.mrf.mxu0
        %v3850 = vadd.f32 %v3689, %v3849
        %v3851 = vpop.f32.mrf.mxu0
        %3852 = vmatprep.mubr.bf16.mxu0 0
        %3853 = vmatmul.mubr.bf16.gmra.mxu0 %v3393
        %v3854 = vpop.f32.mrf.mxu0
        %v3855 = vadd.f32 %v3694, %v3854
        %v3856 = vpop.f32.mrf.mxu0
        %v3857 = vpop.f32.mrf.mxu0
        %v3858 = vadd.f32 %v3697, %v3857
        %v3859 = vpop.f32.mrf.mxu0
        %3860 = vdwg.mxu0
        %v3862 = vlaneseq
        %v3863 = vshrl.u32 %v3862, 7
        %v3864 = vsub.s32 0, %v3863
        %v3865 = vrot.slane %v562, %v3864
        %v3867 = vadd.f32 %v3865, %v3735
        %v3868 = vadd.f32 %v3865, %v3738
        %v3869 = vadd.f32 %v3865, %v3743
        %v3870 = vadd.f32 %v3865, %v3746
        %v3871 = vadd.f32 %v3865, %v3751
        %v3872 = vadd.f32 %v3865, %v3754
        %v3873 = vadd.f32 %v3865, %v3759
        %v3874 = vadd.f32 %v3865, %v3762
        %v3875 = vadd.f32 %v3865, %v3767
        %v3876 = vadd.f32 %v3865, %v3770
        %v3877 = vadd.f32 %v3865, %v3775
        %v3878 = vadd.f32 %v3865, %v3778
        %v3879 = vadd.f32 %v3865, %v3783
        %v3880 = vadd.f32 %v3865, %v3786
        %v3881 = vadd.f32 %v3865, %v3791
        %v3882 = vadd.f32 %v3865, %v3794
        %v3883 = vadd.f32 %v3865, %v3799
        %v3884 = vadd.f32 %v3865, %v3802
        %v3885 = vadd.f32 %v3865, %v3807
        %v3886 = vadd.f32 %v3865, %v3810
        %v3887 = vadd.f32 %v3865, %v3815
        %v3888 = vadd.f32 %v3865, %v3818
        %v3889 = vadd.f32 %v3865, %v3823
        %v3890 = vadd.f32 %v3865, %v3826
        %v3891 = vadd.f32 %v3865, %v3831
        %v3892 = vadd.f32 %v3865, %v3834
        %v3893 = vadd.f32 %v3865, %v3839
        %v3894 = vadd.f32 %v3865, %v3842
        %v3895 = vadd.f32 %v3865, %v3847
        %v3896 = vadd.f32 %v3865, %v3850
        %v3897 = vadd.f32 %v3865, %v3855
        %v3898 = vadd.f32 %v3865, %v3858
        %v3947 = vunpack.c.l.b16 %v465
        %v3948 = vunpack.c.l.b16 %v466
        %v3949 = vunpack.c.l.b16 %v467
        %v3950 = vunpack.c.l.b16 %v468
        %v3951 = vunpack.c.l.b16 %v469
        %v3952 = vunpack.c.l.b16 %v470
        %v3953 = vunpack.c.l.b16 %v471
        %v3954 = vunpack.c.l.b16 %v472
        %v3955 = vunpack.c.l.b16 %v473
        %v3956 = vunpack.c.l.b16 %v474
        %v3957 = vunpack.c.l.b16 %v475
        %v3958 = vunpack.c.l.b16 %v476
        %v3959 = vunpack.c.l.b16 %v477
        %v3960 = vunpack.c.l.b16 %v478
        %v3961 = vunpack.c.l.b16 %v479
        %v3962 = vunpack.c.l.b16 %v480
        %v3963 = vunpack.c.l.b16 %v481
        %v3964 = vunpack.c.l.b16 %v482
        %v3965 = vunpack.c.l.b16 %v483
        %v3966 = vunpack.c.l.b16 %v484
        %v3967 = vunpack.c.l.b16 %v485
        %v3968 = vunpack.c.l.b16 %v486
        %v3969 = vunpack.c.l.b16 %v487
        %v3970 = vunpack.c.l.b16 %v488
        %v3971 = vunpack.c.l.b16 %v489
        %v3972 = vunpack.c.l.b16 %v490
        %v3973 = vunpack.c.l.b16 %v491
        %v3974 = vunpack.c.l.b16 %v492
        %v3975 = vunpack.c.l.b16 %v493
        %v3976 = vunpack.c.l.b16 %v494
        %v3977 = vunpack.c.l.b16 %v495
        %v3978 = vunpack.c.l.b16 %v496
        %v3979 = vunpack.c.l.b16 %v497
        %v3980 = vunpack.c.l.b16 %v498
        %v3981 = vunpack.c.l.b16 %v499
        %v3982 = vunpack.c.l.b16 %v500
        %v3983 = vunpack.c.l.b16 %v501
        %v3984 = vunpack.c.l.b16 %v502
        %v3985 = vunpack.c.l.b16 %v503
        %v3986 = vunpack.c.l.b16 %v504
        %v3987 = vunpack.c.l.b16 %v505
        %v3988 = vunpack.c.l.b16 %v506
        %v3989 = vunpack.c.l.b16 %v507
        %v3990 = vunpack.c.l.b16 %v508
        %v3991 = vunpack.c.l.b16 %v509
        %v3992 = vunpack.c.l.b16 %v510
        %v3993 = vunpack.c.l.b16 %v511
        %v3994 = vunpack.c.l.b16 %v512
        %v3995 = vpack.c.b16 %v3948, %v3947
        %v3996 = vpack.c.b16 %v3950, %v3949
        %v3997 = vpack.c.b16 %v3952, %v3951
        %v3998 = vpack.c.b16 %v3954, %v3953
        %v3999 = vpack.c.b16 %v3956, %v3955
        %v4000 = vpack.c.b16 %v3958, %v3957
        %v4001 = vpack.c.b16 %v3960, %v3959
        %v4002 = vpack.c.b16 %v3962, %v3961
        %v4003 = vpack.c.b16 %v3964, %v3963
        %v4004 = vpack.c.b16 %v3966, %v3965
        %v4005 = vpack.c.b16 %v3968, %v3967
        %v4006 = vpack.c.b16 %v3970, %v3969
        %v4007 = vpack.c.b16 %v3972, %v3971
        %v4008 = vpack.c.b16 %v3974, %v3973
        %v4009 = vpack.c.b16 %v3976, %v3975
        %v4010 = vpack.c.b16 %v3978, %v3977
        %v4011 = vpack.c.b16 %v3980, %v3979
        %v4012 = vpack.c.b16 %v3982, %v3981
        %v4013 = vpack.c.b16 %v3984, %v3983
        %v4014 = vpack.c.b16 %v3986, %v3985
        %v4015 = vpack.c.b16 %v3988, %v3987
        %v4016 = vpack.c.b16 %v3990, %v3989
        %v4017 = vpack.c.b16 %v3992, %v3991
        %v4018 = vpack.c.b16 %v3994, %v3993
        %4043 = vmatprep.subr.bf16.mxu0 0
        %4044 = vmatpush1.bf16.msra.mxu0 %v4002
        %4045 = vmatprep.subr.bf16.mxu0 0
        %4046 = vmatpush1.bf16.msra.mxu0 %v4001
        %4047 = vmatprep.subr.bf16.mxu0 0
        %4048 = vmatpush1.bf16.msra.mxu0 %v4000
        %4049 = vmatprep.subr.bf16.mxu0 0
        %4050 = vmatpush1.bf16.msra.mxu0 %v3999
        %4051 = vmatprep.subr.bf16.mxu0 0
        %4052 = vmatpush1.bf16.msra.mxu0 %v3998
        %4053 = vmatprep.subr.bf16.mxu0 0
        %4054 = vmatpush1.bf16.msra.mxu0 %v3997
        %4055 = vmatprep.subr.bf16.mxu0 0
        %4056 = vmatpush1.bf16.msra.mxu0 %v3996
        %4057 = vmatprep.subr.bf16.mxu0 0
        %4058 = vmatpush1.bf16.msra.mxu0 %v3995
        %4059 = vmatprep.subr.bf16.mxu0 0
        %4060 = vmatpush2.bf16.msra.mxu0 %v4010
        %4061 = vmatprep.subr.bf16.mxu0 0
        %4062 = vmatpush2.bf16.msra.mxu0 %v4009
        %4063 = vmatprep.subr.bf16.mxu0 0
        %4064 = vmatpush2.bf16.msra.mxu0 %v4008
        %4065 = vmatprep.subr.bf16.mxu0 0
        %4066 = vmatpush2.bf16.msra.mxu0 %v4007
        %4067 = vmatprep.subr.bf16.mxu0 0
        %4068 = vmatpush2.bf16.msra.mxu0 %v4006
        %4069 = vmatprep.subr.bf16.mxu0 0
        %4070 = vmatpush2.bf16.msra.mxu0 %v4005
        %4071 = vmatprep.subr.bf16.mxu0 0
        %4072 = vmatpush2.bf16.msra.mxu0 %v4004
        %4073 = vmatprep.subr.bf16.mxu0 0
        %4074 = vmatpush2.bf16.msra.mxu0 %v4003
        %4075 = vmatprep.mubr.bf16.mxu0 %v3363
        %4076 = vmatmul.mubr.bf16.gmra.mxu0 %v3347
        %v4077 = vpop.f32.mrf.mxu0
        %v4078 = vadd.f32 0.0, %v4077
        %v4079 = vpop.f32.mrf.mxu0
        %v4080 = vpop.f32.mrf.mxu0
        %v4081 = vadd.f32 0.0, %v4080
        %v4082 = vpop.f32.mrf.mxu0
        %4083 = vmatprep.mubr.bf16.mxu0 %v3364
        %4084 = vmatmul.mubr.bf16.gmra.mxu0 %v3348
        %v4085 = vpop.f32.mrf.mxu0
        %v4086 = vadd.f32 0.0, %v4085
        %v4087 = vpop.f32.mrf.mxu0
        %v4088 = vpop.f32.mrf.mxu0
        %v4089 = vadd.f32 0.0, %v4088
        %v4090 = vpop.f32.mrf.mxu0
        %4091 = vmatprep.mubr.bf16.mxu0 %v3365
        %4092 = vmatmul.mubr.bf16.gmra.mxu0 %v3349
        %v4093 = vpop.f32.mrf.mxu0
        %v4094 = vadd.f32 0.0, %v4093
        %v4095 = vpop.f32.mrf.mxu0
        %v4096 = vpop.f32.mrf.mxu0
        %v4097 = vadd.f32 0.0, %v4096
        %v4098 = vpop.f32.mrf.mxu0
        %4099 = vmatprep.mubr.bf16.mxu0 %v3366
        %4100 = vmatmul.mubr.bf16.gmra.mxu0 %v3350
        %v4101 = vpop.f32.mrf.mxu0
        %v4102 = vadd.f32 0.0, %v4101
        %v4103 = vpop.f32.mrf.mxu0
        %v4104 = vpop.f32.mrf.mxu0
        %v4105 = vadd.f32 0.0, %v4104
        %v4106 = vpop.f32.mrf.mxu0
        %4107 = vmatprep.mubr.bf16.mxu0 %v3367
        %4108 = vmatmul.mubr.bf16.gmra.mxu0 %v3351
        %v4109 = vpop.f32.mrf.mxu0
        %v4110 = vadd.f32 0.0, %v4109
        %v4111 = vpop.f32.mrf.mxu0
        %v4112 = vpop.f32.mrf.mxu0
        %v4113 = vadd.f32 0.0, %v4112
        %v4114 = vpop.f32.mrf.mxu0
        %4115 = vmatprep.mubr.bf16.mxu0 %v3368
        %4116 = vmatmul.mubr.bf16.gmra.mxu0 %v3352
        %v4117 = vpop.f32.mrf.mxu0
        %v4118 = vadd.f32 0.0, %v4117
        %v4119 = vpop.f32.mrf.mxu0
        %v4120 = vpop.f32.mrf.mxu0
        %v4121 = vadd.f32 0.0, %v4120
        %v4122 = vpop.f32.mrf.mxu0
        %4123 = vmatprep.mubr.bf16.mxu0 %v3369
        %4124 = vmatmul.mubr.bf16.gmra.mxu0 %v3353
        %v4125 = vpop.f32.mrf.mxu0
        %v4126 = vadd.f32 0.0, %v4125
        %v4127 = vpop.f32.mrf.mxu0
        %v4128 = vpop.f32.mrf.mxu0
        %v4129 = vadd.f32 0.0, %v4128
        %v4130 = vpop.f32.mrf.mxu0
        %4131 = vmatprep.mubr.bf16.mxu0 %v3370
        %4132 = vmatmul.mubr.bf16.gmra.mxu0 %v3354
        %v4133 = vpop.f32.mrf.mxu0
        %v4134 = vadd.f32 0.0, %v4133
        %v4135 = vpop.f32.mrf.mxu0
        %v4136 = vpop.f32.mrf.mxu0
        %v4137 = vadd.f32 0.0, %v4136
        %v4138 = vpop.f32.mrf.mxu0
        %4139 = vmatprep.mubr.bf16.mxu0 %v3371
        %4140 = vmatmul.mubr.bf16.gmra.mxu0 %v3355
        %v4141 = vpop.f32.mrf.mxu0
        %v4142 = vadd.f32 0.0, %v4141
        %v4143 = vpop.f32.mrf.mxu0
        %v4144 = vpop.f32.mrf.mxu0
        %v4145 = vadd.f32 0.0, %v4144
        %v4146 = vpop.f32.mrf.mxu0
        %4147 = vmatprep.mubr.bf16.mxu0 %v3372
        %4148 = vmatmul.mubr.bf16.gmra.mxu0 %v3356
        %v4149 = vpop.f32.mrf.mxu0
        %v4150 = vadd.f32 0.0, %v4149
        %v4151 = vpop.f32.mrf.mxu0
        %v4152 = vpop.f32.mrf.mxu0
        %v4153 = vadd.f32 0.0, %v4152
        %v4154 = vpop.f32.mrf.mxu0
        %4155 = vmatprep.mubr.bf16.mxu0 %v3373
        %4156 = vmatmul.mubr.bf16.gmra.mxu0 %v3357
        %v4157 = vpop.f32.mrf.mxu0
        %v4158 = vadd.f32 0.0, %v4157
        %v4159 = vpop.f32.mrf.mxu0
        %v4160 = vpop.f32.mrf.mxu0
        %v4161 = vadd.f32 0.0, %v4160
        %v4162 = vpop.f32.mrf.mxu0
        %4163 = vmatprep.mubr.bf16.mxu0 %v3374
        %4164 = vmatmul.mubr.bf16.gmra.mxu0 %v3358
        %v4165 = vpop.f32.mrf.mxu0
        %v4166 = vadd.f32 0.0, %v4165
        %v4167 = vpop.f32.mrf.mxu0
        %v4168 = vpop.f32.mrf.mxu0
        %v4169 = vadd.f32 0.0, %v4168
        %v4170 = vpop.f32.mrf.mxu0
        %4171 = vmatprep.mubr.bf16.mxu0 %v3375
        %4172 = vmatmul.mubr.bf16.gmra.mxu0 %v3359
        %v4173 = vpop.f32.mrf.mxu0
        %v4174 = vadd.f32 0.0, %v4173
        %v4175 = vpop.f32.mrf.mxu0
        %v4176 = vpop.f32.mrf.mxu0
        %v4177 = vadd.f32 0.0, %v4176
        %v4178 = vpop.f32.mrf.mxu0
        %4179 = vmatprep.mubr.bf16.mxu0 %v3376
        %4180 = vmatmul.mubr.bf16.gmra.mxu0 %v3360
        %v4181 = vpop.f32.mrf.mxu0
        %v4182 = vadd.f32 0.0, %v4181
        %v4183 = vpop.f32.mrf.mxu0
        %v4184 = vpop.f32.mrf.mxu0
        %v4185 = vadd.f32 0.0, %v4184
        %v4186 = vpop.f32.mrf.mxu0
        %4187 = vmatprep.mubr.bf16.mxu0 %v3377
        %4188 = vmatmul.mubr.bf16.gmra.mxu0 %v3361
        %v4189 = vpop.f32.mrf.mxu0
        %v4190 = vadd.f32 0.0, %v4189
        %v4191 = vpop.f32.mrf.mxu0
        %v4192 = vpop.f32.mrf.mxu0
        %v4193 = vadd.f32 0.0, %v4192
        %v4194 = vpop.f32.mrf.mxu0
        %4195 = vmatprep.mubr.bf16.mxu0 %v3378
        %4196 = vmatmul.mubr.bf16.gmra.mxu0 %v3362
        %v4197 = vpop.f32.mrf.mxu0
        %v4198 = vadd.f32 0.0, %v4197
        %v4199 = vpop.f32.mrf.mxu0
        %v4200 = vpop.f32.mrf.mxu0
        %v4201 = vadd.f32 0.0, %v4200
        %v4202 = vpop.f32.mrf.mxu0
        %4203 = vdwg.mxu0
        %4204 = vmatprep.subr.bf16.mxu0 0
        %4205 = vmatpush1.bf16.msra.mxu0 %v4018
        %4206 = vmatprep.subr.bf16.mxu0 0
        %4207 = vmatpush1.bf16.msra.mxu0 %v4017
        %4208 = vmatprep.subr.bf16.mxu0 0
        %4209 = vmatpush1.bf16.msra.mxu0 %v4016
        %4210 = vmatprep.subr.bf16.mxu0 0
        %4211 = vmatpush1.bf16.msra.mxu0 %v4015
        %4212 = vmatprep.subr.bf16.mxu0 0
        %4213 = vmatpush1.bf16.msra.mxu0 %v4014
        %4214 = vmatprep.subr.bf16.mxu0 0
        %4215 = vmatpush1.bf16.msra.mxu0 %v4013
        %4216 = vmatprep.subr.bf16.mxu0 0
        %4217 = vmatpush1.bf16.msra.mxu0 %v4012
        %4218 = vmatprep.subr.bf16.mxu0 0
        %4219 = vmatpush1.bf16.msra.mxu0 %v4011
        %4220 = vmatprep.subr.bf16.mxu0 0
        %4221 = vmatpush2.bf16.msra.mxu0 0
        %4222 = vmatprep.subr.bf16.mxu0 0
        %4223 = vmatpush2.bf16.msra.mxu0 0
        %4224 = vmatprep.subr.bf16.mxu0 0
        %4225 = vmatpush2.bf16.msra.mxu0 0
        %4226 = vmatprep.subr.bf16.mxu0 0
        %4227 = vmatpush2.bf16.msra.mxu0 0
        %4228 = vmatprep.subr.bf16.mxu0 0
        %4229 = vmatpush2.bf16.msra.mxu0 0
        %4230 = vmatprep.subr.bf16.mxu0 0
        %4231 = vmatpush2.bf16.msra.mxu0 0
        %4232 = vmatprep.subr.bf16.mxu0 0
        %4233 = vmatpush2.bf16.msra.mxu0 0
        %4234 = vmatprep.subr.bf16.mxu0 0
        %4235 = vmatpush2.bf16.msra.mxu0 0
        %4236 = vmatprep.mubr.bf16.mxu0 0
        %4237 = vmatmul.mubr.bf16.gmra.mxu0 %v3379
        %v4238 = vpop.f32.mrf.mxu0
        %v4239 = vadd.f32 %v4078, %v4238
        %v4240 = vpop.f32.mrf.mxu0
        %v4241 = vpop.f32.mrf.mxu0
        %v4242 = vadd.f32 %v4081, %v4241
        %v4243 = vpop.f32.mrf.mxu0
        %4244 = vmatprep.mubr.bf16.mxu0 0
        %4245 = vmatmul.mubr.bf16.gmra.mxu0 %v3380
        %v4246 = vpop.f32.mrf.mxu0
        %v4247 = vadd.f32 %v4086, %v4246
        %v4248 = vpop.f32.mrf.mxu0
        %v4249 = vpop.f32.mrf.mxu0
        %v4250 = vadd.f32 %v4089, %v4249
        %v4251 = vpop.f32.mrf.mxu0
        %4252 = vmatprep.mubr.bf16.mxu0 0
        %4253 = vmatmul.mubr.bf16.gmra.mxu0 %v3381
        %v4254 = vpop.f32.mrf.mxu0
        %v4255 = vadd.f32 %v4094, %v4254
        %v4256 = vpop.f32.mrf.mxu0
        %v4257 = vpop.f32.mrf.mxu0
        %v4258 = vadd.f32 %v4097, %v4257
        %v4259 = vpop.f32.mrf.mxu0
        %4260 = vmatprep.mubr.bf16.mxu0 0
        %4261 = vmatmul.mubr.bf16.gmra.mxu0 %v3382
        %v4262 = vpop.f32.mrf.mxu0
        %v4263 = vadd.f32 %v4102, %v4262
        %v4264 = vpop.f32.mrf.mxu0
        %v4265 = vpop.f32.mrf.mxu0
        %v4266 = vadd.f32 %v4105, %v4265
        %v4267 = vpop.f32.mrf.mxu0
        %4268 = vmatprep.mubr.bf16.mxu0 0
        %4269 = vmatmul.mubr.bf16.gmra.mxu0 %v3383
        %v4270 = vpop.f32.mrf.mxu0
        %v4271 = vadd.f32 %v4110, %v4270
        %v4272 = vpop.f32.mrf.mxu0
        %v4273 = vpop.f32.mrf.mxu0
        %v4274 = vadd.f32 %v4113, %v4273
        %v4275 = vpop.f32.mrf.mxu0
        %4276 = vmatprep.mubr.bf16.mxu0 0
        %4277 = vmatmul.mubr.bf16.gmra.mxu0 %v3384
        %v4278 = vpop.f32.mrf.mxu0
        %v4279 = vadd.f32 %v4118, %v4278
        %v4280 = vpop.f32.mrf.mxu0
        %v4281 = vpop.f32.mrf.mxu0
        %v4282 = vadd.f32 %v4121, %v4281
        %v4283 = vpop.f32.mrf.mxu0
        %4284 = vmatprep.mubr.bf16.mxu0 0
        %4285 = vmatmul.mubr.bf16.gmra.mxu0 %v3385
        %v4286 = vpop.f32.mrf.mxu0
        %v4287 = vadd.f32 %v4126, %v4286
        %v4288 = vpop.f32.mrf.mxu0
        %v4289 = vpop.f32.mrf.mxu0
        %v4290 = vadd.f32 %v4129, %v4289
        %v4291 = vpop.f32.mrf.mxu0
        %4292 = vmatprep.mubr.bf16.mxu0 0
        %4293 = vmatmul.mubr.bf16.gmra.mxu0 %v3386
        %v4294 = vpop.f32.mrf.mxu0
        %v4295 = vadd.f32 %v4134, %v4294
        %v4296 = vpop.f32.mrf.mxu0
        %v4297 = vpop.f32.mrf.mxu0
        %v4298 = vadd.f32 %v4137, %v4297
        %v4299 = vpop.f32.mrf.mxu0
        %4300 = vmatprep.mubr.bf16.mxu0 0
        %4301 = vmatmul.mubr.bf16.gmra.mxu0 %v3387
        %v4302 = vpop.f32.mrf.mxu0
        %v4303 = vadd.f32 %v4142, %v4302
        %v4304 = vpop.f32.mrf.mxu0
        %v4305 = vpop.f32.mrf.mxu0
        %v4306 = vadd.f32 %v4145, %v4305
        %v4307 = vpop.f32.mrf.mxu0
        %4308 = vmatprep.mubr.bf16.mxu0 0
        %4309 = vmatmul.mubr.bf16.gmra.mxu0 %v3388
        %v4310 = vpop.f32.mrf.mxu0
        %v4311 = vadd.f32 %v4150, %v4310
        %v4312 = vpop.f32.mrf.mxu0
        %v4313 = vpop.f32.mrf.mxu0
        %v4314 = vadd.f32 %v4153, %v4313
        %v4315 = vpop.f32.mrf.mxu0
        %4316 = vmatprep.mubr.bf16.mxu0 0
        %4317 = vmatmul.mubr.bf16.gmra.mxu0 %v3389
        %v4318 = vpop.f32.mrf.mxu0
        %v4319 = vadd.f32 %v4158, %v4318
        %v4320 = vpop.f32.mrf.mxu0
        %v4321 = vpop.f32.mrf.mxu0
        %v4322 = vadd.f32 %v4161, %v4321
        %v4323 = vpop.f32.mrf.mxu0
        %4324 = vmatprep.mubr.bf16.mxu0 0
        %4325 = vmatmul.mubr.bf16.gmra.mxu0 %v3390
        %v4326 = vpop.f32.mrf.mxu0
        %v4327 = vadd.f32 %v4166, %v4326
        %v4328 = vpop.f32.mrf.mxu0
        %v4329 = vpop.f32.mrf.mxu0
        %v4330 = vadd.f32 %v4169, %v4329
        %v4331 = vpop.f32.mrf.mxu0
        %4332 = vmatprep.mubr.bf16.mxu0 0
        %4333 = vmatmul.mubr.bf16.gmra.mxu0 %v3391
        %v4334 = vpop.f32.mrf.mxu0
        %v4335 = vadd.f32 %v4174, %v4334
        %v4336 = vpop.f32.mrf.mxu0
        %v4337 = vpop.f32.mrf.mxu0
        %v4338 = vadd.f32 %v4177, %v4337
        %v4339 = vpop.f32.mrf.mxu0
        %4340 = vmatprep.mubr.bf16.mxu0 0
        %4341 = vmatmul.mubr.bf16.gmra.mxu0 %v3392
        %v4342 = vpop.f32.mrf.mxu0
        %v4343 = vadd.f32 %v4182, %v4342
        %v4344 = vpop.f32.mrf.mxu0
        %v4345 = vpop.f32.mrf.mxu0
        %v4346 = vadd.f32 %v4185, %v4345
        %v4347 = vpop.f32.mrf.mxu0
        %4348 = vmatprep.mubr.bf16.mxu0 0
        %4349 = vmatmul.mubr.bf16.gmra.mxu0 %v3393
        %v4350 = vpop.f32.mrf.mxu0
        %v4351 = vadd.f32 %v4190, %v4350
        %v4352 = vpop.f32.mrf.mxu0
        %v4353 = vpop.f32.mrf.mxu0
        %v4354 = vadd.f32 %v4193, %v4353
        %v4355 = vpop.f32.mrf.mxu0
        %4356 = vmatprep.mubr.bf16.mxu0 0
        %4357 = vmatmul.mubr.bf16.gmra.mxu0 %v3394
        %v4358 = vpop.f32.mrf.mxu0
        %v4359 = vadd.f32 %v4198, %v4358
        %v4360 = vpop.f32.mrf.mxu0
        %v4361 = vpop.f32.mrf.mxu0
        %v4362 = vadd.f32 %v4201, %v4361
        %v4363 = vpop.f32.mrf.mxu0
        %4364 = vdwg.mxu0
        %v4365 = vadd.f32 %v3867, %v4239
        %v4366 = vadd.f32 %v3868, %v4242
        %v4367 = vadd.f32 %v3869, %v4247
        %v4368 = vadd.f32 %v3870, %v4250
        %v4369 = vadd.f32 %v3871, %v4255
        %v4370 = vadd.f32 %v3872, %v4258
        %v4371 = vadd.f32 %v3873, %v4263
        %v4372 = vadd.f32 %v3874, %v4266
        %v4373 = vadd.f32 %v3875, %v4271
        %v4374 = vadd.f32 %v3876, %v4274
        %v4375 = vadd.f32 %v3877, %v4279
        %v4376 = vadd.f32 %v3878, %v4282
        %v4377 = vadd.f32 %v3879, %v4287
        %v4378 = vadd.f32 %v3880, %v4290
        %v4379 = vadd.f32 %v3881, %v4295
        %v4380 = vadd.f32 %v3882, %v4298
        %v4381 = vadd.f32 %v3883, %v4303
        %v4382 = vadd.f32 %v3884, %v4306
        %v4383 = vadd.f32 %v3885, %v4311
        %v4384 = vadd.f32 %v3886, %v4314
        %v4385 = vadd.f32 %v3887, %v4319
        %v4386 = vadd.f32 %v3888, %v4322
        %v4387 = vadd.f32 %v3889, %v4327
        %v4388 = vadd.f32 %v3890, %v4330
        %v4389 = vadd.f32 %v3891, %v4335
        %v4390 = vadd.f32 %v3892, %v4338
        %v4391 = vadd.f32 %v3893, %v4343
        %v4392 = vadd.f32 %v3894, %v4346
        %v4393 = vadd.f32 %v3895, %v4351
        %v4394 = vadd.f32 %v3896, %v4354
        %v4395 = vadd.f32 %v3897, %v4359
        %v4396 = vadd.f32 %v3898, %v4362
        %v4445 = vunpack.c.l.b16 %v513
        %v4446 = vunpack.c.l.b16 %v514
        %v4447 = vunpack.c.l.b16 %v515
        %v4448 = vunpack.c.l.b16 %v516
        %v4449 = vunpack.c.l.b16 %v517
        %v4450 = vunpack.c.l.b16 %v518
        %v4451 = vunpack.c.l.b16 %v519
        %v4452 = vunpack.c.l.b16 %v520
        %v4453 = vunpack.c.l.b16 %v521
        %v4454 = vunpack.c.l.b16 %v522
        %v4455 = vunpack.c.l.b16 %v523
        %v4456 = vunpack.c.l.b16 %v524
        %v4457 = vunpack.c.l.b16 %v525
        %v4458 = vunpack.c.l.b16 %v526
        %v4459 = vunpack.c.l.b16 %v527
        %v4460 = vunpack.c.l.b16 %v528
        %v4461 = vunpack.c.l.b16 %v529
        %v4462 = vunpack.c.l.b16 %v530
        %v4463 = vunpack.c.l.b16 %v531
        %v4464 = vunpack.c.l.b16 %v532
        %v4465 = vunpack.c.l.b16 %v533
        %v4466 = vunpack.c.l.b16 %v534
        %v4467 = vunpack.c.l.b16 %v535
        %v4468 = vunpack.c.l.b16 %v536
        %v4469 = vunpack.c.l.b16 %v537
        %v4470 = vunpack.c.l.b16 %v538
        %v4471 = vunpack.c.l.b16 %v539
        %v4472 = vunpack.c.l.b16 %v540
        %v4473 = vunpack.c.l.b16 %v541
        %v4474 = vunpack.c.l.b16 %v542
        %v4475 = vunpack.c.l.b16 %v543
        %v4476 = vunpack.c.l.b16 %v544
        %v4477 = vunpack.c.l.b16 %v545
        %v4478 = vunpack.c.l.b16 %v546
        %v4479 = vunpack.c.l.b16 %v547
        %v4480 = vunpack.c.l.b16 %v548
        %v4481 = vunpack.c.l.b16 %v549
        %v4482 = vunpack.c.l.b16 %v550
        %v4483 = vunpack.c.l.b16 %v551
        %v4484 = vunpack.c.l.b16 %v552
        %v4485 = vunpack.c.l.b16 %v553
        %v4486 = vunpack.c.l.b16 %v554
        %v4487 = vunpack.c.l.b16 %v555
        %v4488 = vunpack.c.l.b16 %v556
        %v4489 = vunpack.c.l.b16 %v557
        %v4490 = vunpack.c.l.b16 %v558
        %v4491 = vunpack.c.l.b16 %v559
        %v4492 = vunpack.c.l.b16 %v560
        %v4493 = vpack.c.b16 %v4446, %v4445
        %v4494 = vpack.c.b16 %v4448, %v4447
        %v4495 = vpack.c.b16 %v4450, %v4449
        %v4496 = vpack.c.b16 %v4452, %v4451
        %v4497 = vpack.c.b16 %v4454, %v4453
        %v4498 = vpack.c.b16 %v4456, %v4455
        %v4499 = vpack.c.b16 %v4458, %v4457
        %v4500 = vpack.c.b16 %v4460, %v4459
        %v4501 = vpack.c.b16 %v4462, %v4461
        %v4502 = vpack.c.b16 %v4464, %v4463
        %v4503 = vpack.c.b16 %v4466, %v4465
        %v4504 = vpack.c.b16 %v4468, %v4467
        %v4505 = vpack.c.b16 %v4470, %v4469
        %v4506 = vpack.c.b16 %v4472, %v4471
        %v4507 = vpack.c.b16 %v4474, %v4473
        %v4508 = vpack.c.b16 %v4476, %v4475
        %v4509 = vpack.c.b16 %v4478, %v4477
        %v4510 = vpack.c.b16 %v4480, %v4479
        %v4511 = vpack.c.b16 %v4482, %v4481
        %v4512 = vpack.c.b16 %v4484, %v4483
        %v4513 = vpack.c.b16 %v4486, %v4485
        %v4514 = vpack.c.b16 %v4488, %v4487
        %v4515 = vpack.c.b16 %v4490, %v4489
        %v4516 = vpack.c.b16 %v4492, %v4491
        %4541 = vmatprep.subr.bf16.mxu0 0
        %4542 = vmatpush1.bf16.msra.mxu0 %v4500
        %4543 = vmatprep.subr.bf16.mxu0 0
        %4544 = vmatpush1.bf16.msra.mxu0 %v4499
        %4545 = vmatprep.subr.bf16.mxu0 0
        %4546 = vmatpush1.bf16.msra.mxu0 %v4498
        %4547 = vmatprep.subr.bf16.mxu0 0
        %4548 = vmatpush1.bf16.msra.mxu0 %v4497
        %4549 = vmatprep.subr.bf16.mxu0 0
        %4550 = vmatpush1.bf16.msra.mxu0 %v4496
        %4551 = vmatprep.subr.bf16.mxu0 0
        %4552 = vmatpush1.bf16.msra.mxu0 %v4495
        %4553 = vmatprep.subr.bf16.mxu0 0
        %4554 = vmatpush1.bf16.msra.mxu0 %v4494
        %4555 = vmatprep.subr.bf16.mxu0 0
        %4556 = vmatpush1.bf16.msra.mxu0 %v4493
        %4557 = vmatprep.subr.bf16.mxu0 0
        %4558 = vmatpush2.bf16.msra.mxu0 %v4508
        %4559 = vmatprep.subr.bf16.mxu0 0
        %4560 = vmatpush2.bf16.msra.mxu0 %v4507
        %4561 = vmatprep.subr.bf16.mxu0 0
        %4562 = vmatpush2.bf16.msra.mxu0 %v4506
        %4563 = vmatprep.subr.bf16.mxu0 0
        %4564 = vmatpush2.bf16.msra.mxu0 %v4505
        %4565 = vmatprep.subr.bf16.mxu0 0
        %4566 = vmatpush2.bf16.msra.mxu0 %v4504
        %4567 = vmatprep.subr.bf16.mxu0 0
        %4568 = vmatpush2.bf16.msra.mxu0 %v4503
        %4569 = vmatprep.subr.bf16.mxu0 0
        %4570 = vmatpush2.bf16.msra.mxu0 %v4502
        %4571 = vmatprep.subr.bf16.mxu0 0
        %4572 = vmatpush2.bf16.msra.mxu0 %v4501
        %4573 = vmatprep.mubr.bf16.mxu0 %v3364
        %4574 = vmatmul.mubr.bf16.gmra.mxu0 %v3348
        %v4575 = vpop.f32.mrf.mxu0
        %v4576 = vadd.f32 0.0, %v4575
        %v4577 = vpop.f32.mrf.mxu0
        %v4578 = vpop.f32.mrf.mxu0
        %v4579 = vadd.f32 0.0, %v4578
        %v4580 = vpop.f32.mrf.mxu0
        %4581 = vmatprep.mubr.bf16.mxu0 %v3365
        %4582 = vmatmul.mubr.bf16.gmra.mxu0 %v3349
        %v4583 = vpop.f32.mrf.mxu0
        %v4584 = vadd.f32 0.0, %v4583
        %v4585 = vpop.f32.mrf.mxu0
        %v4586 = vpop.f32.mrf.mxu0
        %v4587 = vadd.f32 0.0, %v4586
        %v4588 = vpop.f32.mrf.mxu0
        %4589 = vmatprep.mubr.bf16.mxu0 %v3366
        %4590 = vmatmul.mubr.bf16.gmra.mxu0 %v3350
        %v4591 = vpop.f32.mrf.mxu0
        %v4592 = vadd.f32 0.0, %v4591
        %v4593 = vpop.f32.mrf.mxu0
        %v4594 = vpop.f32.mrf.mxu0
        %v4595 = vadd.f32 0.0, %v4594
        %v4596 = vpop.f32.mrf.mxu0
        %4597 = vmatprep.mubr.bf16.mxu0 %v3367
        %4598 = vmatmul.mubr.bf16.gmra.mxu0 %v3351
        %v4599 = vpop.f32.mrf.mxu0
        %v4600 = vadd.f32 0.0, %v4599
        %v4601 = vpop.f32.mrf.mxu0
        %v4602 = vpop.f32.mrf.mxu0
        %v4603 = vadd.f32 0.0, %v4602
        %v4604 = vpop.f32.mrf.mxu0
        %4605 = vmatprep.mubr.bf16.mxu0 %v3368
        %4606 = vmatmul.mubr.bf16.gmra.mxu0 %v3352
        %v4607 = vpop.f32.mrf.mxu0
        %v4608 = vadd.f32 0.0, %v4607
        %v4609 = vpop.f32.mrf.mxu0
        %v4610 = vpop.f32.mrf.mxu0
        %v4611 = vadd.f32 0.0, %v4610
        %v4612 = vpop.f32.mrf.mxu0
        %4613 = vmatprep.mubr.bf16.mxu0 %v3369
        %4614 = vmatmul.mubr.bf16.gmra.mxu0 %v3353
        %v4615 = vpop.f32.mrf.mxu0
        %v4616 = vadd.f32 0.0, %v4615
        %v4617 = vpop.f32.mrf.mxu0
        %v4618 = vpop.f32.mrf.mxu0
        %v4619 = vadd.f32 0.0, %v4618
        %v4620 = vpop.f32.mrf.mxu0
        %4621 = vmatprep.mubr.bf16.mxu0 %v3370
        %4622 = vmatmul.mubr.bf16.gmra.mxu0 %v3354
        %v4623 = vpop.f32.mrf.mxu0
        %v4624 = vadd.f32 0.0, %v4623
        %v4625 = vpop.f32.mrf.mxu0
        %v4626 = vpop.f32.mrf.mxu0
        %v4627 = vadd.f32 0.0, %v4626
        %v4628 = vpop.f32.mrf.mxu0
        %4629 = vmatprep.mubr.bf16.mxu0 %v3371
        %4630 = vmatmul.mubr.bf16.gmra.mxu0 %v3355
        %v4631 = vpop.f32.mrf.mxu0
        %v4632 = vadd.f32 0.0, %v4631
        %v4633 = vpop.f32.mrf.mxu0
        %v4634 = vpop.f32.mrf.mxu0
        %v4635 = vadd.f32 0.0, %v4634
        %v4636 = vpop.f32.mrf.mxu0
        %4637 = vmatprep.mubr.bf16.mxu0 %v3372
        %4638 = vmatmul.mubr.bf16.gmra.mxu0 %v3356
        %v4639 = vpop.f32.mrf.mxu0
        %v4640 = vadd.f32 0.0, %v4639
        %v4641 = vpop.f32.mrf.mxu0
        %v4642 = vpop.f32.mrf.mxu0
        %v4643 = vadd.f32 0.0, %v4642
        %v4644 = vpop.f32.mrf.mxu0
        %4645 = vmatprep.mubr.bf16.mxu0 %v3373
        %4646 = vmatmul.mubr.bf16.gmra.mxu0 %v3357
        %v4647 = vpop.f32.mrf.mxu0
        %v4648 = vadd.f32 0.0, %v4647
        %v4649 = vpop.f32.mrf.mxu0
        %v4650 = vpop.f32.mrf.mxu0
        %v4651 = vadd.f32 0.0, %v4650
        %v4652 = vpop.f32.mrf.mxu0
        %4653 = vmatprep.mubr.bf16.mxu0 %v3374
        %4654 = vmatmul.mubr.bf16.gmra.mxu0 %v3358
        %v4655 = vpop.f32.mrf.mxu0
        %v4656 = vadd.f32 0.0, %v4655
        %v4657 = vpop.f32.mrf.mxu0
        %v4658 = vpop.f32.mrf.mxu0
        %v4659 = vadd.f32 0.0, %v4658
        %v4660 = vpop.f32.mrf.mxu0
        %4661 = vmatprep.mubr.bf16.mxu0 %v3375
        %4662 = vmatmul.mubr.bf16.gmra.mxu0 %v3359
        %v4663 = vpop.f32.mrf.mxu0
        %v4664 = vadd.f32 0.0, %v4663
        %v4665 = vpop.f32.mrf.mxu0
        %v4666 = vpop.f32.mrf.mxu0
        %v4667 = vadd.f32 0.0, %v4666
        %v4668 = vpop.f32.mrf.mxu0
        %4669 = vmatprep.mubr.bf16.mxu0 %v3376
        %4670 = vmatmul.mubr.bf16.gmra.mxu0 %v3360
        %v4671 = vpop.f32.mrf.mxu0
        %v4672 = vadd.f32 0.0, %v4671
        %v4673 = vpop.f32.mrf.mxu0
        %v4674 = vpop.f32.mrf.mxu0
        %v4675 = vadd.f32 0.0, %v4674
        %v4676 = vpop.f32.mrf.mxu0
        %4677 = vmatprep.mubr.bf16.mxu0 %v3377
        %4678 = vmatmul.mubr.bf16.gmra.mxu0 %v3361
        %v4679 = vpop.f32.mrf.mxu0
        %v4680 = vadd.f32 0.0, %v4679
        %v4681 = vpop.f32.mrf.mxu0
        %v4682 = vpop.f32.mrf.mxu0
        %v4683 = vadd.f32 0.0, %v4682
        %v4684 = vpop.f32.mrf.mxu0
        %4685 = vmatprep.mubr.bf16.mxu0 %v3378
        %4686 = vmatmul.mubr.bf16.gmra.mxu0 %v3362
        %v4687 = vpop.f32.mrf.mxu0
        %v4688 = vadd.f32 0.0, %v4687
        %v4689 = vpop.f32.mrf.mxu0
        %v4690 = vpop.f32.mrf.mxu0
        %v4691 = vadd.f32 0.0, %v4690
        %v4692 = vpop.f32.mrf.mxu0
        %4693 = vmatprep.mubr.bf16.mxu0 %v3377
        %4694 = vmatmul.mubr.bf16.gmra.mxu0 %v3361
        %v4695 = vpop.f32.mrf.mxu0
        %v4696 = vadd.f32 0.0, %v4695
        %v4697 = vpop.f32.mrf.mxu0
        %v4698 = vpop.f32.mrf.mxu0
        %v4699 = vadd.f32 0.0, %v4698
        %v4700 = vpop.f32.mrf.mxu0
        %4701 = vdwg.mxu0
        %4702 = vmatprep.subr.bf16.mxu0 0
        %4703 = vmatpush1.bf16.msra.mxu0 %v4516
        %4704 = vmatprep.subr.bf16.mxu0 0
        %4705 = vmatpush1.bf16.msra.mxu0 %v4515
        %4706 = vmatprep.subr.bf16.mxu0 0
        %4707 = vmatpush1.bf16.msra.mxu0 %v4514
        %4708 = vmatprep.subr.bf16.mxu0 0
        %4709 = vmatpush1.bf16.msra.mxu0 %v4513
        %4710 = vmatprep.subr.bf16.mxu0 0
        %4711 = vmatpush1.bf16.msra.mxu0 %v4512
        %4712 = vmatprep.subr.bf16.mxu0 0
        %4713 = vmatpush1.bf16.msra.mxu0 %v4511
        %4714 = vmatprep.subr.bf16.mxu0 0
        %4715 = vmatpush1.bf16.msra.mxu0 %v4510
        %4716 = vmatprep.subr.bf16.mxu0 0
        %4717 = vmatpush1.bf16.msra.mxu0 %v4509
        %4718 = vmatprep.subr.bf16.mxu0 0
        %4719 = vmatpush2.bf16.msra.mxu0 0
        %4720 = vmatprep.subr.bf16.mxu0 0
        %4721 = vmatpush2.bf16.msra.mxu0 0
        %4722 = vmatprep.subr.bf16.mxu0 0
        %4723 = vmatpush2.bf16.msra.mxu0 0
        %4724 = vmatprep.subr.bf16.mxu0 0
        %4725 = vmatpush2.bf16.msra.mxu0 0
        %4726 = vmatprep.subr.bf16.mxu0 0
        %4727 = vmatpush2.bf16.msra.mxu0 0
        %4728 = vmatprep.subr.bf16.mxu0 0
        %4729 = vmatpush2.bf16.msra.mxu0 0
        %4730 = vmatprep.subr.bf16.mxu0 0
        %4731 = vmatpush2.bf16.msra.mxu0 0
        %4732 = vmatprep.subr.bf16.mxu0 0
        %4733 = vmatpush2.bf16.msra.mxu0 0
        %4734 = vmatprep.mubr.bf16.mxu0 0
        %4735 = vmatmul.mubr.bf16.gmra.mxu0 %v3380
        %v4736 = vpop.f32.mrf.mxu0
        %v4737 = vadd.f32 %v4576, %v4736
        %v4738 = vpop.f32.mrf.mxu0
        %v4739 = vpop.f32.mrf.mxu0
        %v4740 = vadd.f32 %v4579, %v4739
        %v4741 = vpop.f32.mrf.mxu0
        %4742 = vmatprep.mubr.bf16.mxu0 0
        %4743 = vmatmul.mubr.bf16.gmra.mxu0 %v3381
        %v4744 = vpop.f32.mrf.mxu0
        %v4745 = vadd.f32 %v4584, %v4744
        %v4746 = vpop.f32.mrf.mxu0
        %v4747 = vpop.f32.mrf.mxu0
        %v4748 = vadd.f32 %v4587, %v4747
        %v4749 = vpop.f32.mrf.mxu0
        %4750 = vmatprep.mubr.bf16.mxu0 0
        %4751 = vmatmul.mubr.bf16.gmra.mxu0 %v3382
        %v4752 = vpop.f32.mrf.mxu0
        %v4753 = vadd.f32 %v4592, %v4752
        %v4754 = vpop.f32.mrf.mxu0
        %v4755 = vpop.f32.mrf.mxu0
        %v4756 = vadd.f32 %v4595, %v4755
        %v4757 = vpop.f32.mrf.mxu0
        %4758 = vmatprep.mubr.bf16.mxu0 0
        %4759 = vmatmul.mubr.bf16.gmra.mxu0 %v3383
        %v4760 = vpop.f32.mrf.mxu0
        %v4761 = vadd.f32 %v4600, %v4760
        %v4762 = vpop.f32.mrf.mxu0
        %v4763 = vpop.f32.mrf.mxu0
        %v4764 = vadd.f32 %v4603, %v4763
        %v4765 = vpop.f32.mrf.mxu0
        %4766 = vmatprep.mubr.bf16.mxu0 0
        %4767 = vmatmul.mubr.bf16.gmra.mxu0 %v3384
        %v4768 = vpop.f32.mrf.mxu0
        %v4769 = vadd.f32 %v4608, %v4768
        %v4770 = vpop.f32.mrf.mxu0
        %v4771 = vpop.f32.mrf.mxu0
        %v4772 = vadd.f32 %v4611, %v4771
        %v4773 = vpop.f32.mrf.mxu0
        %4774 = vmatprep.mubr.bf16.mxu0 0
        %4775 = vmatmul.mubr.bf16.gmra.mxu0 %v3385
        %v4776 = vpop.f32.mrf.mxu0
        %v4777 = vadd.f32 %v4616, %v4776
        %v4778 = vpop.f32.mrf.mxu0
        %v4779 = vpop.f32.mrf.mxu0
        %v4780 = vadd.f32 %v4619, %v4779
        %v4781 = vpop.f32.mrf.mxu0
        %4782 = vmatprep.mubr.bf16.mxu0 0
        %4783 = vmatmul.mubr.bf16.gmra.mxu0 %v3386
        %v4784 = vpop.f32.mrf.mxu0
        %v4785 = vadd.f32 %v4624, %v4784
        %v4786 = vpop.f32.mrf.mxu0
        %v4787 = vpop.f32.mrf.mxu0
        %v4788 = vadd.f32 %v4627, %v4787
        %v4789 = vpop.f32.mrf.mxu0
        %4790 = vmatprep.mubr.bf16.mxu0 0
        %4791 = vmatmul.mubr.bf16.gmra.mxu0 %v3387
        %v4792 = vpop.f32.mrf.mxu0
        %v4793 = vadd.f32 %v4632, %v4792
        %v4794 = vpop.f32.mrf.mxu0
        %v4795 = vpop.f32.mrf.mxu0
        %v4796 = vadd.f32 %v4635, %v4795
        %v4797 = vpop.f32.mrf.mxu0
        %4798 = vmatprep.mubr.bf16.mxu0 0
        %4799 = vmatmul.mubr.bf16.gmra.mxu0 %v3388
        %v4800 = vpop.f32.mrf.mxu0
        %v4801 = vadd.f32 %v4640, %v4800
        %v4802 = vpop.f32.mrf.mxu0
        %v4803 = vpop.f32.mrf.mxu0
        %v4804 = vadd.f32 %v4643, %v4803
        %v4805 = vpop.f32.mrf.mxu0
        %4806 = vmatprep.mubr.bf16.mxu0 0
        %4807 = vmatmul.mubr.bf16.gmra.mxu0 %v3389
        %v4808 = vpop.f32.mrf.mxu0
        %v4809 = vadd.f32 %v4648, %v4808
        %v4810 = vpop.f32.mrf.mxu0
        %v4811 = vpop.f32.mrf.mxu0
        %v4812 = vadd.f32 %v4651, %v4811
        %v4813 = vpop.f32.mrf.mxu0
        %4814 = vmatprep.mubr.bf16.mxu0 0
        %4815 = vmatmul.mubr.bf16.gmra.mxu0 %v3390
        %v4816 = vpop.f32.mrf.mxu0
        %v4817 = vadd.f32 %v4656, %v4816
        %v4818 = vpop.f32.mrf.mxu0
        %v4819 = vpop.f32.mrf.mxu0
        %v4820 = vadd.f32 %v4659, %v4819
        %v4821 = vpop.f32.mrf.mxu0
        %4822 = vmatprep.mubr.bf16.mxu0 0
        %4823 = vmatmul.mubr.bf16.gmra.mxu0 %v3391
        %v4824 = vpop.f32.mrf.mxu0
        %v4825 = vadd.f32 %v4664, %v4824
        %v4826 = vpop.f32.mrf.mxu0
        %v4827 = vpop.f32.mrf.mxu0
        %v4828 = vadd.f32 %v4667, %v4827
        %v4829 = vpop.f32.mrf.mxu0
        %4830 = vmatprep.mubr.bf16.mxu0 0
        %4831 = vmatmul.mubr.bf16.gmra.mxu0 %v3392
        %v4832 = vpop.f32.mrf.mxu0
        %v4833 = vadd.f32 %v4672, %v4832
        %v4834 = vpop.f32.mrf.mxu0
        %v4835 = vpop.f32.mrf.mxu0
        %v4836 = vadd.f32 %v4675, %v4835
        %v4837 = vpop.f32.mrf.mxu0
        %4838 = vmatprep.mubr.bf16.mxu0 0
        %4839 = vmatmul.mubr.bf16.gmra.mxu0 %v3393
        %v4840 = vpop.f32.mrf.mxu0
        %v4841 = vadd.f32 %v4680, %v4840
        %v4842 = vpop.f32.mrf.mxu0
        %v4843 = vpop.f32.mrf.mxu0
        %v4844 = vadd.f32 %v4683, %v4843
        %v4845 = vpop.f32.mrf.mxu0
        %4846 = vmatprep.mubr.bf16.mxu0 0
        %4847 = vmatmul.mubr.bf16.gmra.mxu0 %v3394
        %v4848 = vpop.f32.mrf.mxu0
        %v4849 = vadd.f32 %v4688, %v4848
        %v4850 = vpop.f32.mrf.mxu0
        %v4851 = vpop.f32.mrf.mxu0
        %v4852 = vadd.f32 %v4691, %v4851
        %v4853 = vpop.f32.mrf.mxu0
        %4854 = vmatprep.mubr.bf16.mxu0 0
        %4855 = vmatmul.mubr.bf16.gmra.mxu0 %v3393
        %v4856 = vpop.f32.mrf.mxu0
        %v4857 = vadd.f32 %v4696, %v4856
        %v4858 = vpop.f32.mrf.mxu0
        %v4859 = vpop.f32.mrf.mxu0
        %v4860 = vadd.f32 %v4699, %v4859
        %v4861 = vpop.f32.mrf.mxu0
        %4862 = vdwg.mxu0
        %v4863 = vadd.f32 %v4365, %v4737
        %v4864 = vadd.f32 %v4366, %v4740
        %v4865 = vadd.f32 %v4367, %v4745
        %v4866 = vadd.f32 %v4368, %v4748
        %v4867 = vadd.f32 %v4369, %v4753
        %v4868 = vadd.f32 %v4370, %v4756
        %v4869 = vadd.f32 %v4371, %v4761
        %v4870 = vadd.f32 %v4372, %v4764
        %v4871 = vadd.f32 %v4373, %v4769
        %v4872 = vadd.f32 %v4374, %v4772
        %v4873 = vadd.f32 %v4375, %v4777
        %v4874 = vadd.f32 %v4376, %v4780
        %v4875 = vadd.f32 %v4377, %v4785
        %v4876 = vadd.f32 %v4378, %v4788
        %v4877 = vadd.f32 %v4379, %v4793
        %v4878 = vadd.f32 %v4380, %v4796
        %v4879 = vadd.f32 %v4381, %v4801
        %v4880 = vadd.f32 %v4382, %v4804
        %v4881 = vadd.f32 %v4383, %v4809
        %v4882 = vadd.f32 %v4384, %v4812
        %v4883 = vadd.f32 %v4385, %v4817
        %v4884 = vadd.f32 %v4386, %v4820
        %v4885 = vadd.f32 %v4387, %v4825
        %v4886 = vadd.f32 %v4388, %v4828
        %v4887 = vadd.f32 %v4389, %v4833
        %v4888 = vadd.f32 %v4390, %v4836
        %v4889 = vadd.f32 %v4391, %v4841
        %v4890 = vadd.f32 %v4392, %v4844
        %v4891 = vadd.f32 %v4393, %v4849
        %v4892 = vadd.f32 %v4394, %v4852
        %v4893 = vadd.f32 %v4395, %v4857
        %v4894 = vadd.f32 %v4396, %v4860
        %v4895 = vadd.f32 %v4863, %v4864
        %v4896 = vadd.f32 %v4895, %v4865
        %v4897 = vadd.f32 %v4896, %v4866
        %v4898 = vadd.f32 %v4897, %v4867
        %v4899 = vadd.f32 %v4898, %v4868
        %v4900 = vadd.f32 %v4899, %v4869
        %v4901 = vadd.f32 %v4900, %v4870
        %v4902 = vadd.f32 %v4901, %v4871
        %v4903 = vadd.f32 %v4902, %v4872
        %v4904 = vadd.f32 %v4903, %v4873
        %v4905 = vadd.f32 %v4904, %v4874
        %v4906 = vadd.f32 %v4905, %v4875
        %v4907 = vadd.f32 %v4906, %v4876
        %v4908 = vadd.f32 %v4907, %v4877
        %v4909 = vadd.f32 %v4908, %v4878
        %v4910 = vadd.f32 %v4909, %v4879
        %v4911 = vadd.f32 %v4910, %v4880
        %v4912 = vadd.f32 %v4911, %v4881
        %v4913 = vadd.f32 %v4912, %v4882
        %v4914 = vadd.f32 %v4913, %v4883
        %v4915 = vadd.f32 %v4914, %v4884
        %v4916 = vadd.f32 %v4915, %v4885
        %v4917 = vadd.f32 %v4916, %v4886
        %v4918 = vadd.f32 %v4917, %v4887
        %v4919 = vadd.f32 %v4918, %v4888
        %v4920 = vadd.f32 %v4919, %v4889
        %v4921 = vadd.f32 %v4920, %v4890
        %v4922 = vadd.f32 %v4921, %v4891
        %v4923 = vadd.f32 %v4922, %v4892
        %v4924 = vadd.f32 %v4923, %v4893
        %v4925 = vadd.f32 %v4924, %v4894
        %v4926 = vrot.slane %v4925, 4
        %v4927 = vadd.f32 %v4925, %v4926
        %v4928 = vrot.slane %v4927, 2
        %v4929 = vadd.f32 %v4927, %v4928
        %v4930 = vrot.slane %v4929, 1
        %v4931 = vadd.f32 %v4929, %v4930
        %v4932 = vmul.f32 %v4863, %v4863
        %v4933 = vmul.f32 %v4864, %v4864
        %v4934 = vmul.f32 %v4865, %v4865
        %v4935 = vmul.f32 %v4866, %v4866
        %v4936 = vmul.f32 %v4867, %v4867
        %v4937 = vmul.f32 %v4868, %v4868
        %v4938 = vmul.f32 %v4869, %v4869
        %v4939 = vmul.f32 %v4870, %v4870
        %v4940 = vmul.f32 %v4871, %v4871
        %v4941 = vmul.f32 %v4872, %v4872
        %v4942 = vmul.f32 %v4873, %v4873
        %v4943 = vmul.f32 %v4874, %v4874
        %v4944 = vmul.f32 %v4875, %v4875
        %v4945 = vmul.f32 %v4876, %v4876
        %v4946 = vmul.f32 %v4877, %v4877
        %v4947 = vmul.f32 %v4878, %v4878
        %v4948 = vmul.f32 %v4879, %v4879
        %v4949 = vmul.f32 %v4880, %v4880
        %v4950 = vmul.f32 %v4881, %v4881
        %v4951 = vmul.f32 %v4882, %v4882
        %v4952 = vmul.f32 %v4883, %v4883
        %v4953 = vmul.f32 %v4884, %v4884
        %v4954 = vmul.f32 %v4885, %v4885
        %v4955 = vmul.f32 %v4886, %v4886
        %v4956 = vmul.f32 %v4887, %v4887
        %v4957 = vmul.f32 %v4888, %v4888
        %v4958 = vmul.f32 %v4889, %v4889
        %v4959 = vmul.f32 %v4890, %v4890
        %v4960 = vmul.f32 %v4891, %v4891
        %v4961 = vmul.f32 %v4892, %v4892
        %v4962 = vmul.f32 %v4893, %v4893
        %v4963 = vmul.f32 %v4894, %v4894
        %v4964 = vadd.f32 %v4932, %v4933
        %v4965 = vadd.f32 %v4964, %v4934
        %v4966 = vadd.f32 %v4965, %v4935
        %v4967 = vadd.f32 %v4966, %v4936
        %v4968 = vadd.f32 %v4967, %v4937
        %v4969 = vadd.f32 %v4968, %v4938
        %v4970 = vadd.f32 %v4969, %v4939
        %v4971 = vadd.f32 %v4970, %v4940
        %v4972 = vadd.f32 %v4971, %v4941
        %v4973 = vadd.f32 %v4972, %v4942
        %v4974 = vadd.f32 %v4973, %v4943
        %v4975 = vadd.f32 %v4974, %v4944
        %v4976 = vadd.f32 %v4975, %v4945
        %v4977 = vadd.f32 %v4976, %v4946
        %v4978 = vadd.f32 %v4977, %v4947
        %v4979 = vadd.f32 %v4978, %v4948
        %v4980 = vadd.f32 %v4979, %v4949
        %v4981 = vadd.f32 %v4980, %v4950
        %v4982 = vadd.f32 %v4981, %v4951
        %v4983 = vadd.f32 %v4982, %v4952
        %v4984 = vadd.f32 %v4983, %v4953
        %v4985 = vadd.f32 %v4984, %v4954
        %v4986 = vadd.f32 %v4985, %v4955
        %v4987 = vadd.f32 %v4986, %v4956
        %v4988 = vadd.f32 %v4987, %v4957
        %v4989 = vadd.f32 %v4988, %v4958
        %v4990 = vadd.f32 %v4989, %v4959
        %v4991 = vadd.f32 %v4990, %v4960
        %v4992 = vadd.f32 %v4991, %v4961
        %v4993 = vadd.f32 %v4992, %v4962
        %v4994 = vadd.f32 %v4993, %v4963
        %v4995 = vrot.slane %v4994, 4
        %v4996 = vadd.f32 %v4994, %v4995
        %v4997 = vrot.slane %v4996, 2
        %v4998 = vadd.f32 %v4996, %v4997
        %v4999 = vrot.slane %v4998, 1
        %v5000 = vadd.f32 %v4998, %v4999
        %v5001 = vmul.f32 %v4931, 0.00390625
        %v5002 = vmul.f32 %v5000, 0.00390625
        %v5003 = vmul.f32 %v5001, %v5001
        %v5004 = vsub.f32 %v5002, %v5003
        %v5005 = vmax.f32 %v5004, 0.0
        %v5006 = vsub.f32 %v4863, %v5001
        %v5007 = vsub.f32 %v4864, %v5001
        %v5008 = vsub.f32 %v4865, %v5001
        %v5009 = vsub.f32 %v4866, %v5001
        %v5010 = vsub.f32 %v4867, %v5001
        %v5011 = vsub.f32 %v4868, %v5001
        %v5012 = vsub.f32 %v4869, %v5001
        %v5013 = vsub.f32 %v4870, %v5001
        %v5014 = vsub.f32 %v4871, %v5001
        %v5015 = vsub.f32 %v4872, %v5001
        %v5016 = vsub.f32 %v4873, %v5001
        %v5017 = vsub.f32 %v4874, %v5001
        %v5018 = vsub.f32 %v4875, %v5001
        %v5019 = vsub.f32 %v4876, %v5001
        %v5020 = vsub.f32 %v4877, %v5001
        %v5021 = vsub.f32 %v4878, %v5001
        %v5022 = vsub.f32 %v4879, %v5001
        %v5023 = vsub.f32 %v4880, %v5001
        %v5024 = vsub.f32 %v4881, %v5001
        %v5025 = vsub.f32 %v4882, %v5001
        %v5026 = vsub.f32 %v4883, %v5001
        %v5027 = vsub.f32 %v4884, %v5001
        %v5028 = vsub.f32 %v4885, %v5001
        %v5029 = vsub.f32 %v4886, %v5001
        %v5030 = vsub.f32 %v4887, %v5001
        %v5031 = vsub.f32 %v4888, %v5001
        %v5032 = vsub.f32 %v4889, %v5001
        %v5033 = vsub.f32 %v4890, %v5001
        %v5034 = vsub.f32 %v4891, %v5001
        %v5035 = vsub.f32 %v4892, %v5001
        %v5036 = vsub.f32 %v4893, %v5001
        %v5037 = vsub.f32 %v4894, %v5001
        %v5038 = vadd.f32 %v5005, 1e-05
        %v5039 = vrsqrt.pop %v5038
        %v5040 = vmul.f32 %v5006, %v5039
        %v5041 = vmul.f32 %v5007, %v5039
        %v5042 = vmul.f32 %v5008, %v5039
        %v5043 = vmul.f32 %v5009, %v5039
        %v5044 = vmul.f32 %v5010, %v5039
        %v5045 = vmul.f32 %v5011, %v5039
        %v5046 = vmul.f32 %v5012, %v5039
        %v5047 = vmul.f32 %v5013, %v5039
        %v5048 = vmul.f32 %v5014, %v5039
        %v5049 = vmul.f32 %v5015, %v5039
        %v5050 = vmul.f32 %v5016, %v5039
        %v5051 = vmul.f32 %v5017, %v5039
        %v5052 = vmul.f32 %v5018, %v5039
        %v5053 = vmul.f32 %v5019, %v5039
        %v5054 = vmul.f32 %v5020, %v5039
        %v5055 = vmul.f32 %v5021, %v5039
        %v5056 = vmul.f32 %v5022, %v5039
        %v5057 = vmul.f32 %v5023, %v5039
        %v5058 = vmul.f32 %v5024, %v5039
        %v5059 = vmul.f32 %v5025, %v5039
        %v5060 = vmul.f32 %v5026, %v5039
        %v5061 = vmul.f32 %v5027, %v5039
        %v5062 = vmul.f32 %v5028, %v5039
        %v5063 = vmul.f32 %v5029, %v5039
        %v5064 = vmul.f32 %v5030, %v5039
        %v5065 = vmul.f32 %v5031, %v5039
        %v5066 = vmul.f32 %v5032, %v5039
        %v5067 = vmul.f32 %v5033, %v5039
        %v5068 = vmul.f32 %v5034, %v5039
        %v5069 = vmul.f32 %v5035, %v5039
        %v5070 = vmul.f32 %v5036, %v5039
        %v5071 = vmul.f32 %v5037, %v5039
        %v5072 = vadd.f32 %v1044, %v5040
        %v5073 = vadd.f32 %v1045, %v5041
        %v5074 = vadd.f32 %v1046, %v5042
        %v5075 = vadd.f32 %v1047, %v5043
        %v5076 = vadd.f32 %v1048, %v5044
        %v5077 = vadd.f32 %v1049, %v5045
        %v5078 = vadd.f32 %v1050, %v5046
        %v5079 = vadd.f32 %v1051, %v5047
        %v5080 = vadd.f32 %v1052, %v5048
        %v5081 = vadd.f32 %v1053, %v5049
        %v5082 = vadd.f32 %v1054, %v5050
        %v5083 = vadd.f32 %v1055, %v5051
        %v5084 = vadd.f32 %v1056, %v5052
        %v5085 = vadd.f32 %v1057, %v5053
        %v5086 = vadd.f32 %v1058, %v5054
        %v5087 = vadd.f32 %v1059, %v5055
        %v5088 = vadd.f32 %v1060, %v5056
        %v5089 = vadd.f32 %v1061, %v5057
        %v5090 = vadd.f32 %v1062, %v5058
        %v5091 = vadd.f32 %v1063, %v5059
        %v5092 = vadd.f32 %v1064, %v5060
        %v5093 = vadd.f32 %v1065, %v5061
        %v5094 = vadd.f32 %v1066, %v5062
        %v5095 = vadd.f32 %v1067, %v5063
        %v5096 = vadd.f32 %v1068, %v5064
        %v5097 = vadd.f32 %v1069, %v5065
        %v5098 = vadd.f32 %v1070, %v5066
        %v5099 = vadd.f32 %v1071, %v5067
        %v5100 = vadd.f32 %v1072, %v5068
        %v5101 = vadd.f32 %v1073, %v5069
        %v5102 = vadd.f32 %v1074, %v5070
        %v5103 = vadd.f32 %v1075, %v5071
        %5104 = vst [vmem:[%s271] sm:$0xff] %v5072
        %5105 = vst [vmem:[%s271 + $0x8] sm:$0xff] %v5073
        %5106 = vst [vmem:[%s271 + $0x10] sm:$0xff] %v5074
        %5107 = vst [vmem:[%s271 + $0x18] sm:$0xff] %v5075
        %5108 = vst [vmem:[%s271 + $0x20] sm:$0xff] %v5076
        %5109 = vst [vmem:[%s271 + $0x28] sm:$0xff] %v5077
        %5110 = vst [vmem:[%s271 + $0x30] sm:$0xff] %v5078
        %5111 = vst [vmem:[%s271 + $0x38] sm:$0xff] %v5079
        %5112 = vst [vmem:[%s271 + $0x40] sm:$0xff] %v5080
        %5113 = vst [vmem:[%s271 + $0x48] sm:$0xff] %v5081
        %5114 = vst [vmem:[%s271 + $0x50] sm:$0xff] %v5082
        %5115 = vst [vmem:[%s271 + $0x58] sm:$0xff] %v5083
        %5116 = vst [vmem:[%s271 + $0x60] sm:$0xff] %v5084
        %5117 = vst [vmem:[%s271 + $0x68] sm:$0xff] %v5085
        %5118 = vst [vmem:[%s271 + $0x70] sm:$0xff] %v5086
        %5119 = vst [vmem:[%s271 + $0x78] sm:$0xff] %v5087
        %5120 = vst [vmem:[%s271 + $0x80] sm:$0xff] %v5088
        %5121 = vst [vmem:[%s271 + $0x88] sm:$0xff] %v5089
        %5122 = vst [vmem:[%s271 + $0x90] sm:$0xff] %v5090
        %5123 = vst [vmem:[%s271 + $0x98] sm:$0xff] %v5091
        %5124 = vst [vmem:[%s271 + $0xa0] sm:$0xff] %v5092
        %5125 = vst [vmem:[%s271 + $0xa8] sm:$0xff] %v5093
        %5126 = vst [vmem:[%s271 + $0xb0] sm:$0xff] %v5094
        %5127 = vst [vmem:[%s271 + $0xb8] sm:$0xff] %v5095
        %5128 = vst [vmem:[%s271 + $0xc0] sm:$0xff] %v5096
        %5129 = vst [vmem:[%s271 + $0xc8] sm:$0xff] %v5097
        %5130 = vst [vmem:[%s271 + $0xd0] sm:$0xff] %v5098
        %5131 = vst [vmem:[%s271 + $0xd8] sm:$0xff] %v5099
        %5132 = vst [vmem:[%s271 + $0xe0] sm:$0xff] %v5100
        %5133 = vst [vmem:[%s271 + $0xe8] sm:$0xff] %v5101
        %5134 = vst [vmem:[%s271 + $0xf0] sm:$0xff] %v5102
        %5135 = vst [vmem:[%s271 + $0xf8] sm:$0xff] %v5103
        %s5136 = sand.u32 %s141, 1
        %s5137 = scalar_lea.sflag [#allocation4], %s5136
        %s5138 = sand.u32 %s141, 1
        %s5139 = smul.addr %s5138, 256
        %s5140 = scalar_lea.vmem [#allocation8], %s5139
        // Predicated region
        $region53: #{tpu_custom_call.1} parent=39 // pred_check
          %p5141 = pneg %p151
        $region54: #{tpu_custom_call.1} parent=39 // pred_check_branch
          %5143 = sbr.rel (%p5141) target = $region56
        $region55: #{tpu_custom_call.1} parent=39 // pred_region
          %s5145 = ssub.s32 4096, 4096
          %5146 = vsyncadd %s5137, %s5145
          %s5147 = smul.addr %s23, 32
          %s5148 = smul.addr %s5147, 128
          %s5149 = scalar_lea.hbm %s5, %s5148
          %s5150 = sshll.u32 %s5140, 4
          %s5151 = int_to_ptr.vmem [resolvable:$true] %s5150
          %5156 = dma.vmem_to_hbm [thread:$0]  %s5151, 4096, %s5149, %s5137, 128, 128, 8
        $region56: #{tpu_custom_call.1} parent=39 // pred_fallthru
          _
      $region40: #{tpu_custom_call.1} parent=5 // pred_fallthru
        _
      %p5157 = scmp.le.s32.totalorder 2, %s18
      // Predicated region
      $region57: #{tpu_custom_call.1} parent=5 // pred_check
        %p5158 = pneg %p5157
      $region58: #{tpu_custom_call.1} parent=5 // pred_check_branch
        %5160 = sbr.rel (%p5158) target = $region60
      $region59: #{tpu_custom_call.1} parent=5 // pred_region
        %s5161 = ssub.s32 %s18, 2
        // Predicated region
        $region61: #{tpu_custom_call.1} parent=59 // pred_check
          %p5162 = pneg %p157
        $region62: #{tpu_custom_call.1} parent=59 // pred_check_branch
          %5164 = sbr.rel (%p5162) target = $region64
        $region63: #{tpu_custom_call.1} parent=59 // pred_region
          %s5165 = sand.u32 %s142, 1
          %s5166 = scalar_lea.sflag [#allocation4], %s5165
          %s5167 = sand.u32 %s142, 1
          %s5168 = smul.addr %s5167, 256
          %s5169 = scalar_lea.vmem [#allocation8], %s5168
          %5170 = dma.done %s5166, 4096
        $region64: #{tpu_custom_call.1} parent=59 // pred_fallthru
          _
      $region60: #{tpu_custom_call.1} parent=5 // pred_fallthru
        _
    $region6: #{tpu_custom_call.1} parent=1 // loop_footer
      %s22 = sadd.s32 1, %s18
    $region7: #{tpu_custom_call.1} parent=1 // loop_footer_branch
      %17 = sbr.rel target = $region3
    $region8: #{tpu_custom_call.1} parent=1 // loop_exit
      _
    %5171 = vsyncpa [#allocation3], 1
    %s5172 = scalar_lea.sflag [#allocation3], 1
    %5173 = vsyncpa %s5172, 1
    %5174 = vsyncpa [#allocation6], 1
    %5175 = vsyncpa [#allocation4], 1
    %s5176 = scalar_lea.sflag [#allocation4], 1
    %5177 = vsyncpa %s5176, 1

// kernel: tpu_custom_call.1
$region0: #{tpu_custom_call.1}
  #allocation0 [shape = 'u32[]', space=smem, size = 0x4, offset = 0x4, fixed_abs, tag = 'smem constant byte address 0x4 - core index']
  #allocation1 [shape = 'u32[144,128]{1,0:T(1,128)}', space=vmem, size = 0x12000, scoped, tag = 'internal scratch']
  %s0 = inlined_call_operand.hbm [shape: f32[2,16,16,128], index: 0, kind: input, shape index: {}]
  %s1 = inlined_call_operand.hbm [shape: bf16[3,384,128], index: 1, kind: input, shape index: {}]
  %s2 = inlined_call_operand.vmem [shape: f32[1,128], index: 2, kind: input, shape index: {}]
  %s3 = inlined_call_operand.hbm [shape: bf16[3,384,128], index: 3, kind: input, shape index: {}]
  %s4 = inlined_call_operand.vmem [shape: f32[1,128], index: 4, kind: input, shape index: {}]
  %s5 = inlined_call_operand.hbm [shape: f32[2,16,16,128], index: 5, kind: output, shape index: {}]
  %s6 = sld [smem:[#allocation0]]
  $region65: #{tpu_custom_call.1} parent=0
    _
  %s8 = ssub.s32 1, %s6
  %s9 = scalar_select 0, %s8, %s6
  $region1: #{tpu_custom_call.1} parent=0
    #allocation2 [shape = 'u8[262144]{0}', space=vmem, size = 0x40000, scoped, tag = 'input window, operand 0']
    #allocation3 [shape = 's32[2]{0}', space=sflag, size = 0x8, scoped, tag = 'scoped memory for tpu_custom_call.1']
    #allocation4 [shape = 's32[2]{0}', space=sflag, size = 0x8, scoped, tag = 'scoped memory for tpu_custom_call.1']
    #allocation5 [shape = 'u8[294912]{0}', space=vmem, size = 0x48000, scoped, tag = 'input window, operand 1, single buffered']
    #allocation6 [shape = 's32[1]{0}', space=sflag, size = 0x4, scoped, tag = 'scoped memory for tpu_custom_call.1']
    #allocation7 [shape = 'u8[294912]{0}', space=vmem, size = 0x48000, scoped, tag = 'input window, operand 3, single buffered']
    #allocation8 [shape = 'u8[262144]{0}', space=vmem, size = 0x40000, scoped, tag = 'output window, operand 0']
    %10 = vsyncpa [#allocation3], 0
    %s11 = scalar_lea.sflag [#allocation3], 1
    %12 = vsyncpa %s11, 0
    %13 = vsyncpa [#allocation6], 0
    %14 = vsyncpa [#allocation4], 0
    %s15 = scalar_lea.sflag [#allocation4], 1
    %16 = vsyncpa %s15, 0
    loop: start=0, step=1, limit=4
    $region2: #{tpu_custom_call.1} parent=1 // loop_pre_header
      _
    $region3: #{tpu_custom_call.1} parent=1 // loop_header
      %s18 = sphi 0, %s22
      %p19 = scmp.ge.s32.totalorder %s18, 4
      %s28 = sphi 0, %s30
      %s31 = sphi 0, %s28
      %s32 = sphi 0, %s31
      %s48 = sphi 0, %s32
      %s52 = sphi 0, %s52
      %s54 = sphi 0, %s52
      %s55 = sphi 0, %s54
      %s69 = sphi 0, %s55
      %s73 = sphi 0, %s73
      %s75 = sphi 0, %s73
      %s76 = sphi 0, %s75
      %s90 = sphi 0, %s76
      %s94 = sphi 0, %s94
      %s96 = sphi 0, %s94
      %s97 = sphi 0, %s96
      %s111 = sphi 0, %s97
      %s115 = sphi 0, %s115
      %s117 = sphi 0, %s115
      %s118 = sphi 0, %s117
      %s132 = sphi 0, %s118
      %s138 = sphi 0, %s140
      %s141 = sphi 0, %s138
      %s142 = sphi 0, %s141
      %s158 = sphi 0, %s142
    $region4: #{tpu_custom_call.1} parent=1 // loop_header_branch
      %21 = sbr.rel (%p19) target = $region8
    $region5: #{tpu_custom_call.1} parent=1 // loop_body
      %s23 = ssub.s32 %s18, 1
      %s24 = ssub.s32 %s18, 2
      %s25 = sadd.s32 %s18, 1
      %s26 = ssub.s32 %s18, %s25
      %p27 = scmp.eq.s32.totalorder %s26, 0
      %s29 = sadd.s32 %s28, 1
      %s30 = scalar_select %p27, %s28, %s29
      %p33 = pneg %p27
      %p34 = scmp.eq.s32.totalorder %s18, 1
      %p35 = por %p33, %p34
      %p36 = scmp.ne.s32.totalorder %s28, %s31
      %p37 = scmp.eq.s32.totalorder %s18, 0
      %p38 = por %p36, %p37
      %p39 = scmp.ne.s32.totalorder %s28, %s31
      %p40 = scmp.eq.s32.totalorder %s23, 1
      %p41 = por %p39, %p40
      %p42 = scmp.ne.s32.totalorder %s31, %s32
      %p43 = scmp.eq.s32.totalorder %s23, 0
      %p44 = por %p42, %p43
      %p45 = scmp.ne.s32.totalorder %s31, %s32
      %p46 = scmp.eq.s32.totalorder %s24, 1
      %p47 = por %p45, %p46
      %p49 = scmp.ne.s32.totalorder %s32, %s48
      %p50 = scmp.eq.s32.totalorder %s24, 0
      %p51 = por %p49, %p50
      %s53 = sadd.s32 %s52, 1
      %p56 = scmp.eq.s32.totalorder %s18, 1
      %p57 = scmp.ne.s32.totalorder %s52, %s54
      %p58 = scmp.eq.s32.totalorder %s18, 0
      %p59 = por %p57, %p58
      %p60 = scmp.ne.s32.totalorder %s52, %s54
      %p61 = scmp.eq.s32.totalorder %s23, 1
      %p62 = por %p60, %p61
      %p63 = scmp.ne.s32.totalorder %s54, %s55
      %p64 = scmp.eq.s32.totalorder %s23, 0
      %p65 = por %p63, %p64
      %p66 = scmp.ne.s32.totalorder %s54, %s55
      %p67 = scmp.eq.s32.totalorder %s24, 1
      %p68 = por %p66, %p67
      %p70 = scmp.ne.s32.totalorder %s55, %s69
      %p71 = scmp.eq.s32.totalorder %s24, 0
      %p72 = por %p70, %p71
      %s74 = sadd.s32 %s73, 1
      %p77 = scmp.eq.s32.totalorder %s18, 1
      %p78 = scmp.ne.s32.totalorder %s73, %s75
      %p79 = scmp.eq.s32.totalorder %s18, 0
      %p80 = por %p78, %p79
      %p81 = scmp.ne.s32.totalorder %s73, %s75
      %p82 = scmp.eq.s32.totalorder %s23, 1
      %p83 = por %p81, %p82
      %p84 = scmp.ne.s32.totalorder %s75, %s76
      %p85 = scmp.eq.s32.totalorder %s23, 0
      %p86 = por %p84, %p85
      %p87 = scmp.ne.s32.totalorder %s75, %s76
      %p88 = scmp.eq.s32.totalorder %s24, 1
      %p89 = por %p87, %p88
      %p91 = scmp.ne.s32.totalorder %s76, %s90
      %p92 = scmp.eq.s32.totalorder %s24, 0
      %p93 = por %p91, %p92
      %s95 = sadd.s32 %s94, 1
      %p98 = scmp.eq.s32.totalorder %s18, 1
      %p99 = scmp.ne.s32.totalorder %s94, %s96
      %p100 = scmp.eq.s32.totalorder %s18, 0
      %p101 = por %p99, %p100
      %p102 = scmp.ne.s32.totalorder %s94, %s96
      %p103 = scmp.eq.s32.totalorder %s23, 1
      %p104 = por %p102, %p103
      %p105 = scmp.ne.s32.totalorder %s96, %s97
      %p106 = scmp.eq.s32.totalorder %s23, 0
      %p107 = por %p105, %p106
      %p108 = scmp.ne.s32.totalorder %s96, %s97
      %p109 = scmp.eq.s32.totalorder %s24, 1
      %p110 = por %p108, %p109
      %p112 = scmp.ne.s32.totalorder %s97, %s111
      %p113 = scmp.eq.s32.totalorder %s24, 0
      %p114 = por %p112, %p113
      %s116 = sadd.s32 %s115, 1
      %p119 = scmp.eq.s32.totalorder %s18, 1
      %p120 = scmp.ne.s32.totalorder %s115, %s117
      %p121 = scmp.eq.s32.totalorder %s18, 0
      %p122 = por %p120, %p121
      %p123 = scmp.ne.s32.totalorder %s115, %s117
      %p124 = scmp.eq.s32.totalorder %s23, 1
      %p125 = por %p123, %p124
      %p126 = scmp.ne.s32.totalorder %s117, %s118
      %p127 = scmp.eq.s32.totalorder %s23, 0
      %p128 = por %p126, %p127
      %p129 = scmp.ne.s32.totalorder %s117, %s118
      %p130 = scmp.eq.s32.totalorder %s24, 1
      %p131 = por %p129, %p130
      %p133 = scmp.ne.s32.totalorder %s118, %s132
      %p134 = scmp.eq.s32.totalorder %s24, 0
      %p135 = por %p133, %p134
      %s136 = ssub.s32 %s18, %s25
      %p137 = scmp.eq.s32.totalorder %s136, 0
      %s139 = sadd.s32 %s138, 1
      %s140 = scalar_select %p137, %s138, %s139
      %p143 = pneg %p137
      %p144 = scmp.eq.s32.totalorder %s18, 1
      %p145 = por %p143, %p144
      %p146 = scmp.ne.s32.totalorder %s138, %s141
      %p147 = scmp.eq.s32.totalorder %s18, 0
      %p148 = por %p146, %p147
      %p149 = scmp.ne.s32.totalorder %s138, %s141
      %p150 = scmp.eq.s32.totalorder %s23, 1
      %p151 = por %p149, %p150
      %p152 = scmp.ne.s32.totalorder %s141, %s142
      %p153 = scmp.eq.s32.totalorder %s23, 0
      %p154 = por %p152, %p153
      %p155 = scmp.ne.s32.totalorder %s141, %s142
      %p156 = scmp.eq.s32.totalorder %s24, 1
      %p157 = por %p155, %p156
      %p159 = scmp.ne.s32.totalorder %s142, %s158
      %p160 = scmp.eq.s32.totalorder %s24, 0
      %p161 = por %p159, %p160
      %p162 = scmp.le.s32.totalorder 1, %s18
      %p163 = scmp.lt.s32.totalorder %s18, 3
      %p164 = pnand %p162, %p163
      %p165 = pneg %p164
      // Predicated region
      $region9: #{tpu_custom_call.1} parent=5 // pred_check
        _
      $region10: #{tpu_custom_call.1} parent=5 // pred_check_branch
        %167 = sbr.rel (%p164) target = $region12
      $region11: #{tpu_custom_call.1} parent=5 // pred_region
        %s168 = ssub.s32 %s18, 1
        // Predicated region
        $region13: #{tpu_custom_call.1} parent=11 // pred_check
          %p169 = pneg %p65
        $region14: #{tpu_custom_call.1} parent=11 // pred_check_branch
          %171 = sbr.rel (%p169) target = $region16
        $region15: #{tpu_custom_call.1} parent=11 // pred_region
          %s173 = ssub.s32 9216, 9216
          %174 = vsyncadd [#allocation6], %s173
          %s175 = sshll.u32 [#allocation5], 4
          %s176 = int_to_ptr.vmem [resolvable:$true] %s175
          %181 = dma.hbm_to_vmem [thread:$0]  %s1, 9216, %s176, [#allocation6], 64, 64, 4
        $region16: #{tpu_custom_call.1} parent=11 // pred_fallthru
          _
        // Predicated region
        $region17: #{tpu_custom_call.1} parent=11 // pred_check
          %p182 = pneg %p86
        $region18: #{tpu_custom_call.1} parent=11 // pred_check_branch
          %184 = sbr.rel (%p182) target = $region20
        $region19: #{tpu_custom_call.1} parent=11 // pred_region
          _
        $region20: #{tpu_custom_call.1} parent=11 // pred_fallthru
          _
        // Predicated region
        $region21: #{tpu_custom_call.1} parent=11 // pred_check
          %p185 = pneg %p107
        $region22: #{tpu_custom_call.1} parent=11 // pred_check_branch
          %187 = sbr.rel (%p185) target = $region24
        $region23: #{tpu_custom_call.1} parent=11 // pred_region
          %s189 = ssub.s32 9216, 9216
          %190 = vsyncadd [#allocation6], %s189
          %s191 = sshll.u32 [#allocation7], 4
          %s192 = int_to_ptr.vmem [resolvable:$true] %s191
          %197 = dma.hbm_to_vmem [thread:$0]  %s3, 9216, %s192, [#allocation6], 64, 64, 4
        $region24: #{tpu_custom_call.1} parent=11 // pred_fallthru
          _
        // Predicated region
        $region25: #{tpu_custom_call.1} parent=11 // pred_check
          %p198 = pneg %p128
        $region26: #{tpu_custom_call.1} parent=11 // pred_check_branch
          %200 = sbr.rel (%p198) target = $region28
        $region27: #{tpu_custom_call.1} parent=11 // pred_region
          _
        $region28: #{tpu_custom_call.1} parent=11 // pred_fallthru
          _
      $region12: #{tpu_custom_call.1} parent=5 // pred_fallthru
        _
      %p201 = scmp.lt.s32.totalorder %s18, 2
      // Predicated region
      $region29: #{tpu_custom_call.1} parent=5 // pred_check
        %p202 = pneg %p201
      $region30: #{tpu_custom_call.1} parent=5 // pred_check_branch
        %204 = sbr.rel (%p202) target = $region32
      $region31: #{tpu_custom_call.1} parent=5 // pred_region
        // Predicated region
        $region33: #{tpu_custom_call.1} parent=31 // pred_check
          %p205 = pneg %p38
        $region34: #{tpu_custom_call.1} parent=31 // pred_check_branch
          %207 = sbr.rel (%p205) target = $region36
        $region35: #{tpu_custom_call.1} parent=31 // pred_region
          %s208 = sand.u32 %s28, 1
          %s209 = scalar_lea.sflag [#allocation3], %s208
          %s210 = sand.u32 %s28, 1
          %s211 = smul.addr %s210, 256
          %s212 = scalar_lea.vmem [#allocation2], %s211
          %s214 = ssub.s32 4096, 4096
          %215 = vsyncadd %s209, %s214
          %s216 = smul.addr %s18, 32
          %s217 = smul.addr %s216, 128
          %s218 = scalar_lea.hbm %s0, %s217
          %s219 = sshll.u32 %s212, 4
          %s220 = int_to_ptr.vmem [resolvable:$true] %s219
          %225 = dma.hbm_to_vmem [thread:$0]  %s218, 4096, %s220, %s209, 128, 128, 8
        $region36: #{tpu_custom_call.1} parent=31 // pred_fallthru
          _
      $region32: #{tpu_custom_call.1} parent=5 // pred_fallthru
        _
      %p226 = scmp.le.s32.totalorder 1, %s18
      %p227 = scmp.lt.s32.totalorder %s18, 3
      %p228 = pnand %p226, %p227
      %p229 = pneg %p228
      // Predicated region
      $region37: #{tpu_custom_call.1} parent=5 // pred_check
        _
      $region38: #{tpu_custom_call.1} parent=5 // pred_check_branch
        %231 = sbr.rel (%p228) target = $region40
      $region39: #{tpu_custom_call.1} parent=5 // pred_region
        %s232 = ssub.s32 %s18, 1
        %s233 = sand.u32 %s31, 1
        %s234 = scalar_lea.sflag [#allocation3], %s233
        %s235 = sand.u32 %s31, 1
        %s236 = smul.addr %s235, 256
        %s237 = scalar_lea.vmem [#allocation2], %s236
        // Predicated region
        $region41: #{tpu_custom_call.1} parent=39 // pred_check
          %p238 = pneg %p44
        $region42: #{tpu_custom_call.1} parent=39 // pred_check_branch
          %240 = sbr.rel (%p238) target = $region44
        $region43: #{tpu_custom_call.1} parent=39 // pred_region
          %241 = dma.done %s234, 4096
        $region44: #{tpu_custom_call.1} parent=39 // pred_fallthru
          _
        // Predicated region
        $region45: #{tpu_custom_call.1} parent=39 // pred_check
          %p242 = pneg %p65
        $region46: #{tpu_custom_call.1} parent=39 // pred_check_branch
          %244 = sbr.rel (%p242) target = $region48
        $region47: #{tpu_custom_call.1} parent=39 // pred_region
          %245 = dma.done [#allocation6], 9216
        $region48: #{tpu_custom_call.1} parent=39 // pred_fallthru
          _
        // Predicated region
        $region49: #{tpu_custom_call.1} parent=39 // pred_check
          %p246 = pneg %p107
        $region50: #{tpu_custom_call.1} parent=39 // pred_check_branch
          %248 = sbr.rel (%p246) target = $region52
        $region51: #{tpu_custom_call.1} parent=39 // pred_region
          %249 = dma.done [#allocation6], 9216
        $region52: #{tpu_custom_call.1} parent=39 // pred_fallthru
          _
        %s250 = sand.u32 %s31, 1
        %s251 = scalar_lea.sflag [#allocation3], %s250
        %s252 = sand.u32 %s31, 1
        %s253 = smul.addr %s252, 256
        %s254 = scalar_lea.vmem [#allocation2], %s253
        %p255 = pneg %p44
        %p256 = pneg %p41
        %p257 = pneg %p65
        %p258 = pneg %p62
        %p259 = pneg %p86
        %p260 = pneg %p83
        %p261 = pneg %p107
        %p262 = pneg %p104
        %p263 = pneg %p128
        %p264 = pneg %p125
        %p265 = pneg %p154
        %p266 = pneg %p151
        %s267 = sand.u32 %s141, 1
        %s268 = scalar_lea.sflag [#allocation4], %s267
        %s269 = sand.u32 %s141, 1
        %s270 = smul.addr %s269, 256
        %s271 = scalar_lea.vmem [#allocation8], %s270
        %v273 = vld [vmem:[#allocation5] sm:$0xf]
        %v274 = vld [vmem:[#allocation5 + $0x4] sm:$0xf]
        %v275 = vld [vmem:[#allocation5 + $0x8] sm:$0xf]
        %v276 = vld [vmem:[#allocation5 + $0xc] sm:$0xf]
        %v277 = vld [vmem:[#allocation5 + $0x10] sm:$0xf]
        %v278 = vld [vmem:[#allocation5 + $0x14] sm:$0xf]
        %v279 = vld [vmem:[#allocation5 + $0x18] sm:$0xf]
        %v280 = vld [vmem:[#allocation5 + $0x1c] sm:$0xf]
        %v281 = vld [vmem:[#allocation5 + $0x20] sm:$0xf]
        %v282 = vld [vmem:[#allocation5 + $0x24] sm:$0xf]
        %v283 = vld [vmem:[#allocation5 + $0x28] sm:$0xf]
        %v284 = vld [vmem:[#allocation5 + $0x2c] sm:$0xf]
        %v285 = vld [vmem:[#allocation5 + $0x30] sm:$0xf]
        %v286 = vld [vmem:[#allocation5 + $0x34] sm:$0xf]
        %v287 = vld [vmem:[#allocation5 + $0x38] sm:$0xf]
        %v288 = vld [vmem:[#allocation5 + $0x3c] sm:$0xf]
        %v289 = vld [vmem:[#allocation5 + $0x40] sm:$0xf]
        %v290 = vld [vmem:[#allocation5 + $0x44] sm:$0xf]
        %v291 = vld [vmem:[#allocation5 + $0x48] sm:$0xf]
        %v292 = vld [vmem:[#allocation5 + $0x4c] sm:$0xf]
        %v293 = vld [vmem:[#allocation5 + $0x50] sm:$0xf]
        %v294 = vld [vmem:[#allocation5 + $0x54] sm:$0xf]
        %v295 = vld [vmem:[#allocation5 + $0x58] sm:$0xf]
        %v296 = vld [vmem:[#allocation5 + $0x5c] sm:$0xf]
        %v297 = vld [vmem:[#allocation5 + $0x60] sm:$0xf]
        %v298 = vld [vmem:[#allocation5 + $0x64] sm:$0xf]
        %v299 = vld [vmem:[#allocation5 + $0x68] sm:$0xf]
        %v300 = vld [vmem:[#allocation5 + $0x6c] sm:$0xf]
        %v301 = vld [vmem:[#allocation5 + $0x70] sm:$0xf]
        %v302 = vld [vmem:[#allocation5 + $0x74] sm:$0xf]
        %v303 = vld [vmem:[#allocation5 + $0x78] sm:$0xf]
        %v304 = vld [vmem:[#allocation5 + $0x7c] sm:$0xf]
        %v305 = vld [vmem:[#allocation5 + $0x80] sm:$0xf]
        %v306 = vld [vmem:[#allocation5 + $0x84] sm:$0xf]
        %v307 = vld [vmem:[#allocation5 + $0x88] sm:$0xf]
        %v308 = vld [vmem:[#allocation5 + $0x8c] sm:$0xf]
        %v309 = vld [vmem:[#allocation5 + $0x90] sm:$0xf]
        %v310 = vld [vmem:[#allocation5 + $0x94] sm:$0xf]
        %v311 = vld [vmem:[#allocation5 + $0x98] sm:$0xf]
        %v312 = vld [vmem:[#allocation5 + $0x9c] sm:$0xf]
        %v313 = vld [vmem:[#allocation5 + $0xa0] sm:$0xf]
        %v314 = vld [vmem:[#allocation5 + $0xa4] sm:$0xf]
        %v315 = vld [vmem:[#allocation5 + $0xa8] sm:$0xf]
        %v316 = vld [vmem:[#allocation5 + $0xac] sm:$0xf]
        %v317 = vld [vmem:[#allocation5 + $0xb0] sm:$0xf]
        %v318 = vld [vmem:[#allocation5 + $0xb4] sm:$0xf]
        %v319 = vld [vmem:[#allocation5 + $0xb8] sm:$0xf]
        %v320 = vld [vmem:[#allocation5 + $0xbc] sm:$0xf]
        %v321 = vld [vmem:[#allocation5 + $0xc0] sm:$0xf]
        %v322 = vld [vmem:[#allocation5 + $0xc4] sm:$0xf]
        %v323 = vld [vmem:[#allocation5 + $0xc8] sm:$0xf]
        %v324 = vld [vmem:[#allocation5 + $0xcc] sm:$0xf]
        %v325 = vld [vmem:[#allocation5 + $0xd0] sm:$0xf]
        %v326 = vld [vmem:[#allocation5 + $0xd4] sm:$0xf]
        %v327 = vld [vmem:[#allocation5 + $0xd8] sm:$0xf]
        %v328 = vld [vmem:[#allocation5 + $0xdc] sm:$0xf]
        %v329 = vld [vmem:[#allocation5 + $0xe0] sm:$0xf]
        %v330 = vld [vmem:[#allocation5 + $0xe4] sm:$0xf]
        %v331 = vld [vmem:[#allocation5 + $0xe8] sm:$0xf]
        %v332 = vld [vmem:[#allocation5 + $0xec] sm:$0xf]
        %v333 = vld [vmem:[#allocation5 + $0xf0] sm:$0xf]
        %v334 = vld [vmem:[#allocation5 + $0xf4] sm:$0xf]
        %v335 = vld [vmem:[#allocation5 + $0xf8] sm:$0xf]
        %v336 = vld [vmem:[#allocation5 + $0xfc] sm:$0xf]
        %v337 = vld [vmem:[#allocation5 + $0x100] sm:$0xf]
        %v338 = vld [vmem:[#allocation5 + $0x104] sm:$0xf]
        %v339 = vld [vmem:[#allocation5 + $0x108] sm:$0xf]
        %v340 = vld [vmem:[#allocation5 + $0x10c] sm:$0xf]
        %v341 = vld [vmem:[#allocation5 + $0x110] sm:$0xf]
        %v342 = vld [vmem:[#allocation5 + $0x114] sm:$0xf]
        %v343 = vld [vmem:[#allocation5 + $0x118] sm:$0xf]
        %v344 = vld [vmem:[#allocation5 + $0x11c] sm:$0xf]
        %v345 = vld [vmem:[#allocation5 + $0x120] sm:$0xf]
        %v346 = vld [vmem:[#allocation5 + $0x124] sm:$0xf]
        %v347 = vld [vmem:[#allocation5 + $0x128] sm:$0xf]
        %v348 = vld [vmem:[#allocation5 + $0x12c] sm:$0xf]
        %v349 = vld [vmem:[#allocation5 + $0x130] sm:$0xf]
        %v350 = vld [vmem:[#allocation5 + $0x134] sm:$0xf]
        %v351 = vld [vmem:[#allocation5 + $0x138] sm:$0xf]
        %v352 = vld [vmem:[#allocation5 + $0x13c] sm:$0xf]
        %v353 = vld [vmem:[#allocation5 + $0x140] sm:$0xf]
        %v354 = vld [vmem:[#allocation5 + $0x144] sm:$0xf]
        %v355 = vld [vmem:[#allocation5 + $0x148] sm:$0xf]
        %v356 = vld [vmem:[#allocation5 + $0x14c] sm:$0xf]
        %v357 = vld [vmem:[#allocation5 + $0x150] sm:$0xf]
        %v358 = vld [vmem:[#allocation5 + $0x154] sm:$0xf]
        %v359 = vld [vmem:[#allocation5 + $0x158] sm:$0xf]
        %v360 = vld [vmem:[#allocation5 + $0x15c] sm:$0xf]
        %v361 = vld [vmem:[#allocation5 + $0x160] sm:$0xf]
        %v362 = vld [vmem:[#allocation5 + $0x164] sm:$0xf]
        %v363 = vld [vmem:[#allocation5 + $0x168] sm:$0xf]
        %v364 = vld [vmem:[#allocation5 + $0x16c] sm:$0xf]
        %v365 = vld [vmem:[#allocation5 + $0x170] sm:$0xf]
        %v366 = vld [vmem:[#allocation5 + $0x174] sm:$0xf]
        %v367 = vld [vmem:[#allocation5 + $0x178] sm:$0xf]
        %v368 = vld [vmem:[#allocation5 + $0x17c] sm:$0xf]
        %v369 = vld [vmem:[#allocation5 + $0x180] sm:$0xf]
        %v370 = vld [vmem:[#allocation5 + $0x184] sm:$0xf]
        %v371 = vld [vmem:[#allocation5 + $0x188] sm:$0xf]
        %v372 = vld [vmem:[#allocation5 + $0x18c] sm:$0xf]
        %v373 = vld [vmem:[#allocation5 + $0x190] sm:$0xf]
        %v374 = vld [vmem:[#allocation5 + $0x194] sm:$0xf]
        %v375 = vld [vmem:[#allocation5 + $0x198] sm:$0xf]
        %v376 = vld [vmem:[#allocation5 + $0x19c] sm:$0xf]
        %v377 = vld [vmem:[#allocation5 + $0x1a0] sm:$0xf]
        %v378 = vld [vmem:[#allocation5 + $0x1a4] sm:$0xf]
        %v379 = vld [vmem:[#allocation5 + $0x1a8] sm:$0xf]
        %v380 = vld [vmem:[#allocation5 + $0x1ac] sm:$0xf]
        %v381 = vld [vmem:[#allocation5 + $0x1b0] sm:$0xf]
        %v382 = vld [vmem:[#allocation5 + $0x1b4] sm:$0xf]
        %v383 = vld [vmem:[#allocation5 + $0x1b8] sm:$0xf]
        %v384 = vld [vmem:[#allocation5 + $0x1bc] sm:$0xf]
        %v385 = vld [vmem:[#allocation5 + $0x1c0] sm:$0xf]
        %v386 = vld [vmem:[#allocation5 + $0x1c4] sm:$0xf]
        %v387 = vld [vmem:[#allocation5 + $0x1c8] sm:$0xf]
        %v388 = vld [vmem:[#allocation5 + $0x1cc] sm:$0xf]
        %v389 = vld [vmem:[#allocation5 + $0x1d0] sm:$0xf]
        %v390 = vld [vmem:[#allocation5 + $0x1d4] sm:$0xf]
        %v391 = vld [vmem:[#allocation5 + $0x1d8] sm:$0xf]
        %v392 = vld [vmem:[#allocation5 + $0x1dc] sm:$0xf]
        %v393 = vld [vmem:[#allocation5 + $0x1e0] sm:$0xf]
        %v394 = vld [vmem:[#allocation5 + $0x1e4] sm:$0xf]
        %v395 = vld [vmem:[#allocation5 + $0x1e8] sm:$0xf]
        %v396 = vld [vmem:[#allocation5 + $0x1ec] sm:$0xf]
        %v397 = vld [vmem:[#allocation5 + $0x1f0] sm:$0xf]
        %v398 = vld [vmem:[#allocation5 + $0x1f4] sm:$0xf]
        %v399 = vld [vmem:[#allocation5 + $0x1f8] sm:$0xf]
        %v400 = vld [vmem:[#allocation5 + $0x1fc] sm:$0xf]
        %v401 = vld [vmem:[#allocation5 + $0x200] sm:$0xf]
        %v402 = vld [vmem:[#allocation5 + $0x204] sm:$0xf]
        %v403 = vld [vmem:[#allocation5 + $0x208] sm:$0xf]
        %v404 = vld [vmem:[#allocation5 + $0x20c] sm:$0xf]
        %v405 = vld [vmem:[#allocation5 + $0x210] sm:$0xf]
        %v406 = vld [vmem:[#allocation5 + $0x214] sm:$0xf]
        %v407 = vld [vmem:[#allocation5 + $0x218] sm:$0xf]
        %v408 = vld [vmem:[#allocation5 + $0x21c] sm:$0xf]
        %v409 = vld [vmem:[#allocation5 + $0x220] sm:$0xf]
        %v410 = vld [vmem:[#allocation5 + $0x224] sm:$0xf]
        %v411 = vld [vmem:[#allocation5 + $0x228] sm:$0xf]
        %v412 = vld [vmem:[#allocation5 + $0x22c] sm:$0xf]
        %v413 = vld [vmem:[#allocation5 + $0x230] sm:$0xf]
        %v414 = vld [vmem:[#allocation5 + $0x234] sm:$0xf]
        %v415 = vld [vmem:[#allocation5 + $0x238] sm:$0xf]
        %v416 = vld [vmem:[#allocation5 + $0x23c] sm:$0xf]
        %v417 = vld [vmem:[#allocation7] sm:$0xf]
        %v418 = vld [vmem:[#allocation7 + $0x4] sm:$0xf]
        %v419 = vld [vmem:[#allocation7 + $0x8] sm:$0xf]
        %v420 = vld [vmem:[#allocation7 + $0xc] sm:$0xf]
        %v421 = vld [vmem:[#allocation7 + $0x10] sm:$0xf]
        %v422 = vld [vmem:[#allocation7 + $0x14] sm:$0xf]
        %v423 = vld [vmem:[#allocation7 + $0x18] sm:$0xf]
        %v424 = vld [vmem:[#allocation7 + $0x1c] sm:$0xf]
        %v425 = vld [vmem:[#allocation7 + $0x20] sm:$0xf]
        %v426 = vld [vmem:[#allocation7 + $0x24] sm:$0xf]
        %v427 = vld [vmem:[#allocation7 + $0x28] sm:$0xf]
        %v428 = vld [vmem:[#allocation7 + $0x2c] sm:$0xf]
        %v429 = vld [vmem:[#allocation7 + $0x30] sm:$0xf]
        %v430 = vld [vmem:[#allocation7 + $0x34] sm:$0xf]
        %v431 = vld [vmem:[#allocation7 + $0x38] sm:$0xf]
        %v432 = vld [vmem:[#allocation7 + $0x3c] sm:$0xf]
        %v433 = vld [vmem:[#allocation7 + $0x40] sm:$0xf]
        %v434 = vld [vmem:[#allocation7 + $0x44] sm:$0xf]
        %v435 = vld [vmem:[#allocation7 + $0x48] sm:$0xf]
        %v436 = vld [vmem:[#allocation7 + $0x4c] sm:$0xf]
        %v437 = vld [vmem:[#allocation7 + $0x50] sm:$0xf]
        %v438 = vld [vmem:[#allocation7 + $0x54] sm:$0xf]
        %v439 = vld [vmem:[#allocation7 + $0x58] sm:$0xf]
        %v440 = vld [vmem:[#allocation7 + $0x5c] sm:$0xf]
        %v441 = vld [vmem:[#allocation7 + $0x60] sm:$0xf]
        %v442 = vld [vmem:[#allocation7 + $0x64] sm:$0xf]
        %v443 = vld [vmem:[#allocation7 + $0x68] sm:$0xf]
        %v444 = vld [vmem:[#allocation7 + $0x6c] sm:$0xf]
        %v445 = vld [vmem:[#allocation7 + $0x70] sm:$0xf]
        %v446 = vld [vmem:[#allocation7 + $0x74] sm:$0xf]
        %v447 = vld [vmem:[#allocation7 + $0x78] sm:$0xf]
        %v448 = vld [vmem:[#allocation7 + $0x7c] sm:$0xf]
        %v449 = vld [vmem:[#allocation7 + $0x80] sm:$0xf]
        %v450 = vld [vmem:[#allocation7 + $0x84] sm:$0xf]
        %v451 = vld [vmem:[#allocation7 + $0x88] sm:$0xf]
        %v452 = vld [vmem:[#allocation7 + $0x8c] sm:$0xf]
        %v453 = vld [vmem:[#allocation7 + $0x90] sm:$0xf]
        %v454 = vld [vmem:[#allocation7 + $0x94] sm:$0xf]
        %v455 = vld [vmem:[#allocation7 + $0x98] sm:$0xf]
        %v456 = vld [vmem:[#allocation7 + $0x9c] sm:$0xf]
        %v457 = vld [vmem:[#allocation7 + $0xa0] sm:$0xf]
        %v458 = vld [vmem:[#allocation7 + $0xa4] sm:$0xf]
        %v459 = vld [vmem:[#allocation7 + $0xa8] sm:$0xf]
        %v460 = vld [vmem:[#allocation7 + $0xac] sm:$0xf]
        %v461 = vld [vmem:[#allocation7 + $0xb0] sm:$0xf]
        %v462 = vld [vmem:[#allocation7 + $0xb4] sm:$0xf]
        %v463 = vld [vmem:[#allocation7 + $0xb8] sm:$0xf]
        %v464 = vld [vmem:[#allocation7 + $0xbc] sm:$0xf]
        %v465 = vld [vmem:[#allocation7 + $0xc0] sm:$0xf]
        %v466 = vld [vmem:[#allocation7 + $0xc4] sm:$0xf]
        %v467 = vld [vmem:[#allocation7 + $0xc8] sm:$0xf]
        %v468 = vld [vmem:[#allocation7 + $0xcc] sm:$0xf]
        %v469 = vld [vmem:[#allocation7 + $0xd0] sm:$0xf]
        %v470 = vld [vmem:[#allocation7 + $0xd4] sm:$0xf]
        %v471 = vld [vmem:[#allocation7 + $0xd8] sm:$0xf]
        %v472 = vld [vmem:[#allocation7 + $0xdc] sm:$0xf]
        %v473 = vld [vmem:[#allocation7 + $0xe0] sm:$0xf]
        %v474 = vld [vmem:[#allocation7 + $0xe4] sm:$0xf]
        %v475 = vld [vmem:[#allocation7 + $0xe8] sm:$0xf]
        %v476 = vld [vmem:[#allocation7 + $0xec] sm:$0xf]
        %v477 = vld [vmem:[#allocation7 + $0xf0] sm:$0xf]
        %v478 = vld [vmem:[#allocation7 + $0xf4] sm:$0xf]
        %v479 = vld [vmem:[#allocation7 + $0xf8] sm:$0xf]
        %v480 = vld [vmem:[#allocation7 + $0xfc] sm:$0xf]
        %v481 = vld [vmem:[#allocation7 + $0x100] sm:$0xf]
        %v482 = vld [vmem:[#allocation7 + $0x104] sm:$0xf]
        %v483 = vld [vmem:[#allocation7 + $0x108] sm:$0xf]
        %v484 = vld [vmem:[#allocation7 + $0x10c] sm:$0xf]
        %v485 = vld [vmem:[#allocation7 + $0x110] sm:$0xf]
        %v486 = vld [vmem:[#allocation7 + $0x114] sm:$0xf]
        %v487 = vld [vmem:[#allocation7 + $0x118] sm:$0xf]
        %v488 = vld [vmem:[#allocation7 + $0x11c] sm:$0xf]
        %v489 = vld [vmem:[#allocation7 + $0x120] sm:$0xf]
        %v490 = vld [vmem:[#allocation7 + $0x124] sm:$0xf]
        %v491 = vld [vmem:[#allocation7 + $0x128] sm:$0xf]
        %v492 = vld [vmem:[#allocation7 + $0x12c] sm:$0xf]
        %v493 = vld [vmem:[#allocation7 + $0x130] sm:$0xf]
        %v494 = vld [vmem:[#allocation7 + $0x134] sm:$0xf]
        %v495 = vld [vmem:[#allocation7 + $0x138] sm:$0xf]
        %v496 = vld [vmem:[#allocation7 + $0x13c] sm:$0xf]
        %v497 = vld [vmem:[#allocation7 + $0x140] sm:$0xf]
        %v498 = vld [vmem:[#allocation7 + $0x144] sm:$0xf]
        %v499 = vld [vmem:[#allocation7 + $0x148] sm:$0xf]
        %v500 = vld [vmem:[#allocation7 + $0x14c] sm:$0xf]
        %v501 = vld [vmem:[#allocation7 + $0x150] sm:$0xf]
        %v502 = vld [vmem:[#allocation7 + $0x154] sm:$0xf]
        %v503 = vld [vmem:[#allocation7 + $0x158] sm:$0xf]
        %v504 = vld [vmem:[#allocation7 + $0x15c] sm:$0xf]
        %v505 = vld [vmem:[#allocation7 + $0x160] sm:$0xf]
        %v506 = vld [vmem:[#allocation7 + $0x164] sm:$0xf]
        %v507 = vld [vmem:[#allocation7 + $0x168] sm:$0xf]
        %v508 = vld [vmem:[#allocation7 + $0x16c] sm:$0xf]
        %v509 = vld [vmem:[#allocation7 + $0x170] sm:$0xf]
        %v510 = vld [vmem:[#allocation7 + $0x174] sm:$0xf]
        %v511 = vld [vmem:[#allocation7 + $0x178] sm:$0xf]
        %v512 = vld [vmem:[#allocation7 + $0x17c] sm:$0xf]
        %v513 = vld [vmem:[#allocation7 + $0x180] sm:$0xf]
        %v514 = vld [vmem:[#allocation7 + $0x184] sm:$0xf]
        %v515 = vld [vmem:[#allocation7 + $0x188] sm:$0xf]
        %v516 = vld [vmem:[#allocation7 + $0x18c] sm:$0xf]
        %v517 = vld [vmem:[#allocation7 + $0x190] sm:$0xf]
        %v518 = vld [vmem:[#allocation7 + $0x194] sm:$0xf]
        %v519 = vld [vmem:[#allocation7 + $0x198] sm:$0xf]
        %v520 = vld [vmem:[#allocation7 + $0x19c] sm:$0xf]
        %v521 = vld [vmem:[#allocation7 + $0x1a0] sm:$0xf]
        %v522 = vld [vmem:[#allocation7 + $0x1a4] sm:$0xf]
        %v523 = vld [vmem:[#allocation7 + $0x1a8] sm:$0xf]
        %v524 = vld [vmem:[#allocation7 + $0x1ac] sm:$0xf]
        %v525 = vld [vmem:[#allocation7 + $0x1b0] sm:$0xf]
        %v526 = vld [vmem:[#allocation7 + $0x1b4] sm:$0xf]
        %v527 = vld [vmem:[#allocation7 + $0x1b8] sm:$0xf]
        %v528 = vld [vmem:[#allocation7 + $0x1bc] sm:$0xf]
        %v529 = vld [vmem:[#allocation7 + $0x1c0] sm:$0xf]
        %v530 = vld [vmem:[#allocation7 + $0x1c4] sm:$0xf]
        %v531 = vld [vmem:[#allocation7 + $0x1c8] sm:$0xf]
        %v532 = vld [vmem:[#allocation7 + $0x1cc] sm:$0xf]
        %v533 = vld [vmem:[#allocation7 + $0x1d0] sm:$0xf]
        %v534 = vld [vmem:[#allocation7 + $0x1d4] sm:$0xf]
        %v535 = vld [vmem:[#allocation7 + $0x1d8] sm:$0xf]
        %v536 = vld [vmem:[#allocation7 + $0x1dc] sm:$0xf]
        %v537 = vld [vmem:[#allocation7 + $0x1e0] sm:$0xf]
        %v538 = vld [vmem:[#allocation7 + $0x1e4] sm:$0xf]
        %v539 = vld [vmem:[#allocation7 + $0x1e8] sm:$0xf]
        %v540 = vld [vmem:[#allocation7 + $0x1ec] sm:$0xf]
        %v541 = vld [vmem:[#allocation7 + $0x1f0] sm:$0xf]
        %v542 = vld [vmem:[#allocation7 + $0x1f4] sm:$0xf]
        %v543 = vld [vmem:[#allocation7 + $0x1f8] sm:$0xf]
        %v544 = vld [vmem:[#allocation7 + $0x1fc] sm:$0xf]
        %v545 = vld [vmem:[#allocation7 + $0x200] sm:$0xf]
        %v546 = vld [vmem:[#allocation7 + $0x204] sm:$0xf]
        %v547 = vld [vmem:[#allocation7 + $0x208] sm:$0xf]
        %v548 = vld [vmem:[#allocation7 + $0x20c] sm:$0xf]
        %v549 = vld [vmem:[#allocation7 + $0x210] sm:$0xf]
        %v550 = vld [vmem:[#allocation7 + $0x214] sm:$0xf]
        %v551 = vld [vmem:[#allocation7 + $0x218] sm:$0xf]
        %v552 = vld [vmem:[#allocation7 + $0x21c] sm:$0xf]
        %v553 = vld [vmem:[#allocation7 + $0x220] sm:$0xf]
        %v554 = vld [vmem:[#allocation7 + $0x224] sm:$0xf]
        %v555 = vld [vmem:[#allocation7 + $0x228] sm:$0xf]
        %v556 = vld [vmem:[#allocation7 + $0x22c] sm:$0xf]
        %v557 = vld [vmem:[#allocation7 + $0x230] sm:$0xf]
        %v558 = vld [vmem:[#allocation7 + $0x234] sm:$0xf]
        %v559 = vld [vmem:[#allocation7 + $0x238] sm:$0xf]
        %v560 = vld [vmem:[#allocation7 + $0x23c] sm:$0xf]
        %v561 = vld [vmem:[%s2] sm:$0x1]
        %v562 = vld [vmem:[%s4] sm:$0x1]
        %v563 = vlaneseq
        %v564 = vshrl.u32 %v563, 7
        %v565 = vadd.s32 %v564, 8
        %v566 = vadd.s32 %v564, 16
        %v567 = vadd.s32 %v564, 24
        %v568 = vadd.s32 %v564, 32
        %v569 = vadd.s32 %v564, 40
        %v570 = vadd.s32 %v564, 48
        %v571 = vadd.s32 %v564, 56
        %v572 = vadd.s32 %v564, 64
        %v573 = vadd.s32 %v564, 72
        %v574 = vadd.s32 %v564, 80
        %v575 = vadd.s32 %v564, 88
        %v576 = vadd.s32 %v564, 96
        %v577 = vadd.s32 %v564, 104
        %v578 = vadd.s32 %v564, 112
        %v579 = vadd.s32 %v564, 120
        %v580 = vadd.s32 %v564, 128
        %v581 = vadd.s32 %v564, 136
        %v582 = vadd.s32 %v564, 144
        %v583 = vadd.s32 %v564, 152
        %v584 = vadd.s32 %v564, 160
        %v585 = vadd.s32 %v564, 168
        %v586 = vadd.s32 %v564, 176
        %v587 = vadd.s32 %v564, 184
        %v588 = vadd.s32 %v564, 192
        %v589 = vadd.s32 %v564, 200
        %v590 = vadd.s32 %v564, 208
        %v591 = vadd.s32 %v564, 216
        %v592 = vadd.s32 %v564, 224
        %v593 = vadd.s32 %v564, 232
        %v594 = vadd.s32 %v564, 240
        %v595 = vadd.s32 %v564, 248
        %vm596 = vcmp.lt.s32.totalorder %v564, 0
        %v597 = vsub.s32 0, %v564
        %v598 = vsel %vm596, %v597, %v564
        %v599 = vshrl.u32 %v598, 4
        %v600 = vand.u32 %v598, 15
        %v601 = vsub.s32 0, %v600
        %v602 = vsel %vm596, %v601, %v600
        %vm603 = vcmp.lt.s32.totalorder %v565, 0
        %v604 = vsub.s32 0, %v565
        %v605 = vsel %vm603, %v604, %v565
        %v606 = vshrl.u32 %v605, 4
        %v607 = vand.u32 %v605, 15
        %v608 = vsub.s32 0, %v607
        %v609 = vsel %vm603, %v608, %v607
        %vm610 = vcmp.lt.s32.totalorder %v566, 0
        %v611 = vsub.s32 0, %v566
        %v612 = vsel %vm610, %v611, %v566
        %v613 = vshrl.u32 %v612, 4
        %v614 = vand.u32 %v612, 15
        %v615 = vsub.s32 0, %v614
        %v616 = vsel %vm610, %v615, %v614
        %vm617 = vcmp.lt.s32.totalorder %v567, 0
        %v618 = vsub.s32 0, %v567
        %v619 = vsel %vm617, %v618, %v567
        %v620 = vshrl.u32 %v619, 4
        %v621 = vand.u32 %v619, 15
        %v622 = vsub.s32 0, %v621
        %v623 = vsel %vm617, %v622, %v621
        %vm624 = vcmp.lt.s32.totalorder %v568, 0
        %v625 = vsub.s32 0, %v568
        %v626 = vsel %vm624, %v625, %v568
        %v627 = vshrl.u32 %v626, 4
        %v628 = vand.u32 %v626, 15
        %v629 = vsub.s32 0, %v628
        %v630 = vsel %vm624, %v629, %v628
        %vm631 = vcmp.lt.s32.totalorder %v569, 0
        %v632 = vsub.s32 0, %v569
        %v633 = vsel %vm631, %v632, %v569
        %v634 = vshrl.u32 %v633, 4
        %v635 = vand.u32 %v633, 15
        %v636 = vsub.s32 0, %v635
        %v637 = vsel %vm631, %v636, %v635
        %vm638 = vcmp.lt.s32.totalorder %v570, 0
        %v639 = vsub.s32 0, %v570
        %v640 = vsel %vm638, %v639, %v570
        %v641 = vshrl.u32 %v640, 4
        %v642 = vand.u32 %v640, 15
        %v643 = vsub.s32 0, %v642
        %v644 = vsel %vm638, %v643, %v642
        %vm645 = vcmp.lt.s32.totalorder %v571, 0
        %v646 = vsub.s32 0, %v571
        %v647 = vsel %vm645, %v646, %v571
        %v648 = vshrl.u32 %v647, 4
        %v649 = vand.u32 %v647, 15
        %v650 = vsub.s32 0, %v649
        %v651 = vsel %vm645, %v650, %v649
        %vm652 = vcmp.lt.s32.totalorder %v572, 0
        %v653 = vsub.s32 0, %v572
        %v654 = vsel %vm652, %v653, %v572
        %v655 = vshrl.u32 %v654, 4
        %v656 = vand.u32 %v654, 15
        %v657 = vsub.s32 0, %v656
        %v658 = vsel %vm652, %v657, %v656
        %vm659 = vcmp.lt.s32.totalorder %v573, 0
        %v660 = vsub.s32 0, %v573
        %v661 = vsel %vm659, %v660, %v573
        %v662 = vshrl.u32 %v661, 4
        %v663 = vand.u32 %v661, 15
        %v664 = vsub.s32 0, %v663
        %v665 = vsel %vm659, %v664, %v663
        %vm666 = vcmp.lt.s32.totalorder %v574, 0
        %v667 = vsub.s32 0, %v574
        %v668 = vsel %vm666, %v667, %v574
        %v669 = vshrl.u32 %v668, 4
        %v670 = vand.u32 %v668, 15
        %v671 = vsub.s32 0, %v670
        %v672 = vsel %vm666, %v671, %v670
        %vm673 = vcmp.lt.s32.totalorder %v575, 0
        %v674 = vsub.s32 0, %v575
        %v675 = vsel %vm673, %v674, %v575
        %v676 = vshrl.u32 %v675, 4
        %v677 = vand.u32 %v675, 15
        %v678 = vsub.s32 0, %v677
        %v679 = vsel %vm673, %v678, %v677
        %vm680 = vcmp.lt.s32.totalorder %v576, 0
        %v681 = vsub.s32 0, %v576
        %v682 = vsel %vm680, %v681, %v576
        %v683 = vshrl.u32 %v682, 4
        %v684 = vand.u32 %v682, 15
        %v685 = vsub.s32 0, %v684
        %v686 = vsel %vm680, %v685, %v684
        %vm687 = vcmp.lt.s32.totalorder %v577, 0
        %v688 = vsub.s32 0, %v577
        %v689 = vsel %vm687, %v688, %v577
        %v690 = vshrl.u32 %v689, 4
        %v691 = vand.u32 %v689, 15
        %v692 = vsub.s32 0, %v691
        %v693 = vsel %vm687, %v692, %v691
        %vm694 = vcmp.lt.s32.totalorder %v578, 0
        %v695 = vsub.s32 0, %v578
        %v696 = vsel %vm694, %v695, %v578
        %v697 = vshrl.u32 %v696, 4
        %v698 = vand.u32 %v696, 15
        %v699 = vsub.s32 0, %v698
        %v700 = vsel %vm694, %v699, %v698
        %vm701 = vcmp.lt.s32.totalorder %v579, 0
        %v702 = vsub.s32 0, %v579
        %v703 = vsel %vm701, %v702, %v579
        %v704 = vshrl.u32 %v703, 4
        %v705 = vand.u32 %v703, 15
        %v706 = vsub.s32 0, %v705
        %v707 = vsel %vm701, %v706, %v705
        %vm708 = vcmp.lt.s32.totalorder %v580, 0
        %v709 = vsub.s32 0, %v580
        %v710 = vsel %vm708, %v709, %v580
        %v711 = vshrl.u32 %v710, 4
        %v712 = vand.u32 %v710, 15
        %v713 = vsub.s32 0, %v712
        %v714 = vsel %vm708, %v713, %v712
        %vm715 = vcmp.lt.s32.totalorder %v581, 0
        %v716 = vsub.s32 0, %v581
        %v717 = vsel %vm715, %v716, %v581
        %v718 = vshrl.u32 %v717, 4
        %v719 = vand.u32 %v717, 15
        %v720 = vsub.s32 0, %v719
        %v721 = vsel %vm715, %v720, %v719
        %vm722 = vcmp.lt.s32.totalorder %v582, 0
        %v723 = vsub.s32 0, %v582
        %v724 = vsel %vm722, %v723, %v582
        %v725 = vshrl.u32 %v724, 4
        %v726 = vand.u32 %v724, 15
        %v727 = vsub.s32 0, %v726
        %v728 = vsel %vm722, %v727, %v726
        %vm729 = vcmp.lt.s32.totalorder %v583, 0
        %v730 = vsub.s32 0, %v583
        %v731 = vsel %vm729, %v730, %v583
        %v732 = vshrl.u32 %v731, 4
        %v733 = vand.u32 %v731, 15
        %v734 = vsub.s32 0, %v733
        %v735 = vsel %vm729, %v734, %v733
        %vm736 = vcmp.lt.s32.totalorder %v584, 0
        %v737 = vsub.s32 0, %v584
        %v738 = vsel %vm736, %v737, %v584
        %v739 = vshrl.u32 %v738, 4
        %v740 = vand.u32 %v738, 15
        %v741 = vsub.s32 0, %v740
        %v742 = vsel %vm736, %v741, %v740
        %vm743 = vcmp.lt.s32.totalorder %v585, 0
        %v744 = vsub.s32 0, %v585
        %v745 = vsel %vm743, %v744, %v585
        %v746 = vshrl.u32 %v745, 4
        %v747 = vand.u32 %v745, 15
        %v748 = vsub.s32 0, %v747
        %v749 = vsel %vm743, %v748, %v747
        %vm750 = vcmp.lt.s32.totalorder %v586, 0
        %v751 = vsub.s32 0, %v586
        %v752 = vsel %vm750, %v751, %v586
        %v753 = vshrl.u32 %v752, 4
        %v754 = vand.u32 %v752, 15
        %v755 = vsub.s32 0, %v754
        %v756 = vsel %vm750, %v755, %v754
        %vm757 = vcmp.lt.s32.totalorder %v587, 0
        %v758 = vsub.s32 0, %v587
        %v759 = vsel %vm757, %v758, %v587
        %v760 = vshrl.u32 %v759, 4
        %v761 = vand.u32 %v759, 15
        %v762 = vsub.s32 0, %v761
        %v763 = vsel %vm757, %v762, %v761
        %vm764 = vcmp.lt.s32.totalorder %v588, 0
        %v765 = vsub.s32 0, %v588
        %v766 = vsel %vm764, %v765, %v588
        %v767 = vshrl.u32 %v766, 4
        %v768 = vand.u32 %v766, 15
        %v769 = vsub.s32 0, %v768
        %v770 = vsel %vm764, %v769, %v768
        %vm771 = vcmp.lt.s32.totalorder %v589, 0
        %v772 = vsub.s32 0, %v589
        %v773 = vsel %vm771, %v772, %v589
        %v774 = vshrl.u32 %v773, 4
        %v775 = vand.u32 %v773, 15
        %v776 = vsub.s32 0, %v775
        %v777 = vsel %vm771, %v776, %v775
        %vm778 = vcmp.lt.s32.totalorder %v590, 0
        %v779 = vsub.s32 0, %v590
        %v780 = vsel %vm778, %v779, %v590
        %v781 = vshrl.u32 %v780, 4
        %v782 = vand.u32 %v780, 15
        %v783 = vsub.s32 0, %v782
        %v784 = vsel %vm778, %v783, %v782
        %vm785 = vcmp.lt.s32.totalorder %v591, 0
        %v786 = vsub.s32 0, %v591
        %v787 = vsel %vm785, %v786, %v591
        %v788 = vshrl.u32 %v787, 4
        %v789 = vand.u32 %v787, 15
        %v790 = vsub.s32 0, %v789
        %v791 = vsel %vm785, %v790, %v789
        %vm792 = vcmp.lt.s32.totalorder %v592, 0
        %v793 = vsub.s32 0, %v592
        %v794 = vsel %vm792, %v793, %v592
        %v795 = vshrl.u32 %v794, 4
        %v796 = vand.u32 %v794, 15
        %v797 = vsub.s32 0, %v796
        %v798 = vsel %vm792, %v797, %v796
        %vm799 = vcmp.lt.s32.totalorder %v593, 0
        %v800 = vsub.s32 0, %v593
        %v801 = vsel %vm799, %v800, %v593
        %v802 = vshrl.u32 %v801, 4
        %v803 = vand.u32 %v801, 15
        %v804 = vsub.s32 0, %v803
        %v805 = vsel %vm799, %v804, %v803
        %vm806 = vcmp.lt.s32.totalorder %v594, 0
        %v807 = vsub.s32 0, %v594
        %v808 = vsel %vm806, %v807, %v594
        %v809 = vshrl.u32 %v808, 4
        %v810 = vand.u32 %v808, 15
        %v811 = vsub.s32 0, %v810
        %v812 = vsel %vm806, %v811, %v810
        %vm813 = vcmp.lt.s32.totalorder %v595, 0
        %v814 = vsub.s32 0, %v595
        %v815 = vsel %vm813, %v814, %v595
        %v816 = vshrl.u32 %v815, 4
        %v817 = vand.u32 %v815, 15
        %v818 = vsub.s32 0, %v817
        %v819 = vsel %vm813, %v818, %v817
        %vm820 = vcmp.ne.s32.totalorder %v602, 0
        %vm821 = vcmp.ne.s32.totalorder %v609, 0
        %vm822 = vcmp.ne.s32.totalorder %v616, 0
        %vm823 = vcmp.ne.s32.totalorder %v623, 0
        %vm824 = vcmp.ne.s32.totalorder %v630, 0
        %vm825 = vcmp.ne.s32.totalorder %v637, 0
        %vm826 = vcmp.ne.s32.totalorder %v644, 0
        %vm827 = vcmp.ne.s32.totalorder %v651, 0
        %vm828 = vcmp.ne.s32.totalorder %v658, 0
        %vm829 = vcmp.ne.s32.totalorder %v665, 0
        %vm830 = vcmp.ne.s32.totalorder %v672, 0
        %vm831 = vcmp.ne.s32.totalorder %v679, 0
        %vm832 = vcmp.ne.s32.totalorder %v686, 0
        %vm833 = vcmp.ne.s32.totalorder %v693, 0
        %vm834 = vcmp.ne.s32.totalorder %v700, 0
        %vm835 = vcmp.ne.s32.totalorder %v707, 0
        %vm836 = vcmp.ne.s32.totalorder %v714, 0
        %vm837 = vcmp.ne.s32.totalorder %v721, 0
        %vm838 = vcmp.ne.s32.totalorder %v728, 0
        %vm839 = vcmp.ne.s32.totalorder %v735, 0
        %vm840 = vcmp.ne.s32.totalorder %v742, 0
        %vm841 = vcmp.ne.s32.totalorder %v749, 0
        %vm842 = vcmp.ne.s32.totalorder %v756, 0
        %vm843 = vcmp.ne.s32.totalorder %v763, 0
        %vm844 = vcmp.ne.s32.totalorder %v770, 0
        %vm845 = vcmp.ne.s32.totalorder %v777, 0
        %vm846 = vcmp.ne.s32.totalorder %v784, 0
        %vm847 = vcmp.ne.s32.totalorder %v791, 0
        %vm848 = vcmp.ne.s32.totalorder %v798, 0
        %vm849 = vcmp.ne.s32.totalorder %v805, 0
        %vm850 = vcmp.ne.s32.totalorder %v812, 0
        %vm851 = vcmp.ne.s32.totalorder %v819, 0
        %vm852 = vcmp.lt.s32.totalorder %v602, 0
        %vm853 = vcmp.lt.s32.totalorder %v609, 0
        %vm854 = vcmp.lt.s32.totalorder %v616, 0
        %vm855 = vcmp.lt.s32.totalorder %v623, 0
        %vm856 = vcmp.lt.s32.totalorder %v630, 0
        %vm857 = vcmp.lt.s32.totalorder %v637, 0
        %vm858 = vcmp.lt.s32.totalorder %v644, 0
        %vm859 = vcmp.lt.s32.totalorder %v651, 0
        %vm860 = vcmp.lt.s32.totalorder %v658, 0
        %vm861 = vcmp.lt.s32.totalorder %v665, 0
        %vm862 = vcmp.lt.s32.totalorder %v672, 0
        %vm863 = vcmp.lt.s32.totalorder %v679, 0
        %vm864 = vcmp.lt.s32.totalorder %v686, 0
        %vm865 = vcmp.lt.s32.totalorder %v693, 0
        %vm866 = vcmp.lt.s32.totalorder %v700, 0
        %vm867 = vcmp.lt.s32.totalorder %v707, 0
        %vm868 = vcmp.lt.s32.totalorder %v714, 0
        %vm869 = vcmp.lt.s32.totalorder %v721, 0
        %vm870 = vcmp.lt.s32.totalorder %v728, 0
        %vm871 = vcmp.lt.s32.totalorder %v735, 0
        %vm872 = vcmp.lt.s32.totalorder %v742, 0
        %vm873 = vcmp.lt.s32.totalorder %v749, 0
        %vm874 = vcmp.lt.s32.totalorder %v756, 0
        %vm875 = vcmp.lt.s32.totalorder %v763, 0
        %vm876 = vcmp.lt.s32.totalorder %v770, 0
        %vm877 = vcmp.lt.s32.totalorder %v777, 0
        %vm878 = vcmp.lt.s32.totalorder %v784, 0
        %vm879 = vcmp.lt.s32.totalorder %v791, 0
        %vm880 = vcmp.lt.s32.totalorder %v798, 0
        %vm881 = vcmp.lt.s32.totalorder %v805, 0
        %vm882 = vcmp.lt.s32.totalorder %v812, 0
        %vm883 = vcmp.lt.s32.totalorder %v819, 0
        %vm884 = vmand %vm852, %vm820
        %vm885 = vmand %vm853, %vm821
        %vm886 = vmand %vm854, %vm822
        %vm887 = vmand %vm855, %vm823
        %vm888 = vmand %vm856, %vm824
        %vm889 = vmand %vm857, %vm825
        %vm890 = vmand %vm858, %vm826
        %vm891 = vmand %vm859, %vm827
        %vm892 = vmand %vm860, %vm828
        %vm893 = vmand %vm861, %vm829
        %vm894 = vmand %vm862, %vm830
        %vm895 = vmand %vm863, %vm831
        %vm896 = vmand %vm864, %vm832
        %vm897 = vmand %vm865, %vm833
        %vm898 = vmand %vm866, %vm834
        %vm899 = vmand %vm867, %vm835
        %vm900 = vmand %vm868, %vm836
        %vm901 = vmand %vm869, %vm837
        %vm902 = vmand %vm870, %vm838
        %vm903 = vmand %vm871, %vm839
        %vm904 = vmand %vm872, %vm840
        %vm905 = vmand %vm873, %vm841
        %vm906 = vmand %vm874, %vm842
        %vm907 = vmand %vm875, %vm843
        %vm908 = vmand %vm876, %vm844
        %vm909 = vmand %vm877, %vm845
        %vm910 = vmand %vm878, %vm846
        %vm911 = vmand %vm879, %vm847
        %vm912 = vmand %vm880, %vm848
        %vm913 = vmand %vm881, %vm849
        %vm914 = vmand %vm882, %vm850
        %vm915 = vmand %vm883, %vm851
        %v916 = vadd.s32 %v602, 16
        %v917 = vadd.s32 %v609, 16
        %v918 = vadd.s32 %v616, 16
        %v919 = vadd.s32 %v623, 16
        %v920 = vadd.s32 %v630, 16
        %v921 = vadd.s32 %v637, 16
        %v922 = vadd.s32 %v644, 16
        %v923 = vadd.s32 %v651, 16
        %v924 = vadd.s32 %v658, 16
        %v925 = vadd.s32 %v665, 16
        %v926 = vadd.s32 %v672, 16
        %v927 = vadd.s32 %v679, 16
        %v928 = vadd.s32 %v686, 16
        %v929 = vadd.s32 %v693, 16
        %v930 = vadd.s32 %v700, 16
        %v931 = vadd.s32 %v707, 16
        %v932 = vadd.s32 %v714, 16
        %v933 = vadd.s32 %v721, 16
        %v934 = vadd.s32 %v728, 16
        %v935 = vadd.s32 %v735, 16
        %v936 = vadd.s32 %v742, 16
        %v937 = vadd.s32 %v749, 16
        %v938 = vadd.s32 %v756, 16
        %v939 = vadd.s32 %v763, 16
        %v940 = vadd.s32 %v770, 16
        %v941 = vadd.s32 %v777, 16
        %v942 = vadd.s32 %v784, 16
        %v943 = vadd.s32 %v791, 16
        %v944 = vadd.s32 %v798, 16
        %v945 = vadd.s32 %v805, 16
        %v946 = vadd.s32 %v812, 16
        %v947 = vadd.s32 %v819, 16
        %v948 = vsel %vm884, %v916, %v602
        %v949 = vsel %vm885, %v917, %v609
        %v950 = vsel %vm886, %v918, %v616
        %v951 = vsel %vm887, %v919, %v623
        %v952 = vsel %vm888, %v920, %v630
        %v953 = vsel %vm889, %v921, %v637
        %v954 = vsel %vm890, %v922, %v644
        %v955 = vsel %vm891, %v923, %v651
        %v956 = vsel %vm892, %v924, %v658
        %v957 = vsel %vm893, %v925, %v665
        %v958 = vsel %vm894, %v926, %v672
        %v959 = vsel %vm895, %v927, %v679
        %v960 = vsel %vm896, %v928, %v686
        %v961 = vsel %vm897, %v929, %v693
        %v962 = vsel %vm898, %v930, %v700
        %v963 = vsel %vm899, %v931, %v707
        %v964 = vsel %vm900, %v932, %v714
        %v965 = vsel %vm901, %v933, %v721
        %v966 = vsel %vm902, %v934, %v728
        %v967 = vsel %vm903, %v935, %v735
        %v968 = vsel %vm904, %v936, %v742
        %v969 = vsel %vm905, %v937, %v749
        %v970 = vsel %vm906, %v938, %v756
        %v971 = vsel %vm907, %v939, %v763
        %v972 = vsel %vm908, %v940, %v770
        %v973 = vsel %vm909, %v941, %v777
        %v974 = vsel %vm910, %v942, %v784
        %v975 = vsel %vm911, %v943, %v791
        %v976 = vsel %vm912, %v944, %v798
        %v977 = vsel %vm913, %v945, %v805
        %v978 = vsel %vm914, %v946, %v812
        %v979 = vsel %vm915, %v947, %v819
        %vm980 = vcmp.eq.s32.totalorder %v948, 0
        %vm981 = vcmp.eq.s32.totalorder %v949, 0
        %vm982 = vcmp.eq.s32.totalorder %v950, 0
        %vm983 = vcmp.eq.s32.totalorder %v951, 0
        %vm984 = vcmp.eq.s32.totalorder %v952, 0
        %vm985 = vcmp.eq.s32.totalorder %v953, 0
        %vm986 = vcmp.eq.s32.totalorder %v954, 0
        %vm987 = vcmp.eq.s32.totalorder %v955, 0
        %vm988 = vcmp.eq.s32.totalorder %v956, 0
        %vm989 = vcmp.eq.s32.totalorder %v957, 0
        %vm990 = vcmp.eq.s32.totalorder %v958, 0
        %vm991 = vcmp.eq.s32.totalorder %v959, 0
        %vm992 = vcmp.eq.s32.totalorder %v960, 0
        %vm993 = vcmp.eq.s32.totalorder %v961, 0
        %vm994 = vcmp.eq.s32.totalorder %v962, 0
        %vm995 = vcmp.eq.s32.totalorder %v963, 0
        %vm996 = vcmp.eq.s32.totalorder %v964, 0
        %vm997 = vcmp.eq.s32.totalorder %v965, 0
        %vm998 = vcmp.eq.s32.totalorder %v966, 0
        %vm999 = vcmp.eq.s32.totalorder %v967, 0
        %vm1000 = vcmp.eq.s32.totalorder %v968, 0
        %vm1001 = vcmp.eq.s32.totalorder %v969, 0
        %vm1002 = vcmp.eq.s32.totalorder %v970, 0
        %vm1003 = vcmp.eq.s32.totalorder %v971, 0
        %vm1004 = vcmp.eq.s32.totalorder %v972, 0
        %vm1005 = vcmp.eq.s32.totalorder %v973, 0
        %vm1006 = vcmp.eq.s32.totalorder %v974, 0
        %vm1007 = vcmp.eq.s32.totalorder %v975, 0
        %vm1008 = vcmp.eq.s32.totalorder %v976, 0
        %vm1009 = vcmp.eq.s32.totalorder %v977, 0
        %vm1010 = vcmp.eq.s32.totalorder %v978, 0
        %vm1011 = vcmp.eq.s32.totalorder %v979, 0
        %vm1012 = vcmp.eq.s32.totalorder %v948, 15
        %vm1013 = vcmp.eq.s32.totalorder %v949, 15
        %vm1014 = vcmp.eq.s32.totalorder %v950, 15
        %vm1015 = vcmp.eq.s32.totalorder %v951, 15
        %vm1016 = vcmp.eq.s32.totalorder %v952, 15
        %vm1017 = vcmp.eq.s32.totalorder %v953, 15
        %vm1018 = vcmp.eq.s32.totalorder %v954, 15
        %vm1019 = vcmp.eq.s32.totalorder %v955, 15
        %vm1020 = vcmp.eq.s32.totalorder %v956, 15
        %vm1021 = vcmp.eq.s32.totalorder %v957, 15
        %vm1022 = vcmp.eq.s32.totalorder %v958, 15
        %vm1023 = vcmp.eq.s32.totalorder %v959, 15
        %vm1024 = vcmp.eq.s32.totalorder %v960, 15
        %vm1025 = vcmp.eq.s32.totalorder %v961, 15
        %vm1026 = vcmp.eq.s32.totalorder %v962, 15
        %vm1027 = vcmp.eq.s32.totalorder %v963, 15
        %vm1028 = vcmp.eq.s32.totalorder %v964, 15
        %vm1029 = vcmp.eq.s32.totalorder %v965, 15
        %vm1030 = vcmp.eq.s32.totalorder %v966, 15
        %vm1031 = vcmp.eq.s32.totalorder %v967, 15
        %vm1032 = vcmp.eq.s32.totalorder %v968, 15
        %vm1033 = vcmp.eq.s32.totalorder %v969, 15
        %vm1034 = vcmp.eq.s32.totalorder %v970, 15
        %vm1035 = vcmp.eq.s32.totalorder %v971, 15
        %vm1036 = vcmp.eq.s32.totalorder %v972, 15
        %vm1037 = vcmp.eq.s32.totalorder %v973, 15
        %vm1038 = vcmp.eq.s32.totalorder %v974, 15
        %vm1039 = vcmp.eq.s32.totalorder %v975, 15
        %vm1040 = vcmp.eq.s32.totalorder %v976, 15
        %vm1041 = vcmp.eq.s32.totalorder %v977, 15
        %vm1042 = vcmp.eq.s32.totalorder %v978, 15
        %vm1043 = vcmp.eq.s32.totalorder %v979, 15
        %v1044 = vld [vmem:[%s237] sm:$0xff]
        %v1045 = vld [vmem:[%s237 + $0x8] sm:$0xff]
        %v1046 = vld [vmem:[%s237 + $0x10] sm:$0xff]
        %v1047 = vld [vmem:[%s237 + $0x18] sm:$0xff]
        %v1048 = vld [vmem:[%s237 + $0x20] sm:$0xff]
        %v1049 = vld [vmem:[%s237 + $0x28] sm:$0xff]
        %v1050 = vld [vmem:[%s237 + $0x30] sm:$0xff]
        %v1051 = vld [vmem:[%s237 + $0x38] sm:$0xff]
        %v1052 = vld [vmem:[%s237 + $0x40] sm:$0xff]
        %v1053 = vld [vmem:[%s237 + $0x48] sm:$0xff]
        %v1054 = vld [vmem:[%s237 + $0x50] sm:$0xff]
        %v1055 = vld [vmem:[%s237 + $0x58] sm:$0xff]
        %v1056 = vld [vmem:[%s237 + $0x60] sm:$0xff]
        %v1057 = vld [vmem:[%s237 + $0x68] sm:$0xff]
        %v1058 = vld [vmem:[%s237 + $0x70] sm:$0xff]
        %v1059 = vld [vmem:[%s237 + $0x78] sm:$0xff]
        %v1060 = vld [vmem:[%s237 + $0x80] sm:$0xff]
        %v1061 = vld [vmem:[%s237 + $0x88] sm:$0xff]
        %v1062 = vld [vmem:[%s237 + $0x90] sm:$0xff]
        %v1063 = vld [vmem:[%s237 + $0x98] sm:$0xff]
        %v1064 = vld [vmem:[%s237 + $0xa0] sm:$0xff]
        %v1065 = vld [vmem:[%s237 + $0xa8] sm:$0xff]
        %v1066 = vld [vmem:[%s237 + $0xb0] sm:$0xff]
        %v1067 = vld [vmem:[%s237 + $0xb8] sm:$0xff]
        %v1068 = vld [vmem:[%s237 + $0xc0] sm:$0xff]
        %v1069 = vld [vmem:[%s237 + $0xc8] sm:$0xff]
        %v1070 = vld [vmem:[%s237 + $0xd0] sm:$0xff]
        %v1071 = vld [vmem:[%s237 + $0xd8] sm:$0xff]
        %v1072 = vld [vmem:[%s237 + $0xe0] sm:$0xff]
        %v1073 = vld [vmem:[%s237 + $0xe8] sm:$0xff]
        %v1074 = vld [vmem:[%s237 + $0xf0] sm:$0xff]
        %v1075 = vld [vmem:[%s237 + $0xf8] sm:$0xff]
        %v1076 = vrot.slane %v1044, 7
        %v1077 = vrot.slane %v1045, 7
        %v1078 = vrot.slane %v1046, 7
        %v1079 = vrot.slane %v1047, 7
        %v1080 = vrot.slane %v1048, 7
        %v1081 = vrot.slane %v1049, 7
        %v1082 = vrot.slane %v1050, 7
        %v1083 = vrot.slane %v1051, 7
        %v1084 = vrot.slane %v1052, 7
        %v1085 = vrot.slane %v1053, 7
        %v1086 = vrot.slane %v1054, 7
        %v1087 = vrot.slane %v1055, 7
        %v1088 = vrot.slane %v1056, 7
        %v1089 = vrot.slane %v1057, 7
        %v1090 = vrot.slane %v1058, 7
        %v1091 = vrot.slane %v1059, 7
        %v1092 = vrot.slane %v1060, 7
        %v1093 = vrot.slane %v1061, 7
        %v1094 = vrot.slane %v1062, 7
        %v1095 = vrot.slane %v1063, 7
        %v1096 = vrot.slane %v1064, 7
        %v1097 = vrot.slane %v1065, 7
        %v1098 = vrot.slane %v1066, 7
        %v1099 = vrot.slane %v1067, 7
        %v1100 = vrot.slane %v1068, 7
        %v1101 = vrot.slane %v1069, 7
        %v1102 = vrot.slane %v1070, 7
        %v1103 = vrot.slane %v1071, 7
        %v1104 = vrot.slane %v1072, 7
        %v1105 = vrot.slane %v1073, 7
        %v1106 = vrot.slane %v1074, 7
        %v1107 = vrot.slane %v1075, 7
        %vm1108 = vcmp.lt.s32.totalorder %v564, 1
        %v1109 = vsel %vm1108, %v1106, %v1107
        %v1110 = vsel %vm1108, %v1105, %v1106
        %v1111 = vsel %vm1108, %v1104, %v1105
        %v1112 = vsel %vm1108, %v1103, %v1104
        %v1113 = vsel %vm1108, %v1102, %v1103
        %v1114 = vsel %vm1108, %v1101, %v1102
        %v1115 = vsel %vm1108, %v1100, %v1101
        %v1116 = vsel %vm1108, %v1099, %v1100
        %v1117 = vsel %vm1108, %v1098, %v1099
        %v1118 = vsel %vm1108, %v1097, %v1098
        %v1119 = vsel %vm1108, %v1096, %v1097
        %v1120 = vsel %vm1108, %v1095, %v1096
        %v1121 = vsel %vm1108, %v1094, %v1095
        %v1122 = vsel %vm1108, %v1093, %v1094
        %v1123 = vsel %vm1108, %v1092, %v1093
        %v1124 = vsel %vm1108, %v1091, %v1092
        %v1125 = vsel %vm1108, %v1090, %v1091
        %v1126 = vsel %vm1108, %v1089, %v1090
        %v1127 = vsel %vm1108, %v1088, %v1089
        %v1128 = vsel %vm1108, %v1087, %v1088
        %v1129 = vsel %vm1108, %v1086, %v1087
        %v1130 = vsel %vm1108, %v1085, %v1086
        %v1131 = vsel %vm1108, %v1084, %v1085
        %v1132 = vsel %vm1108, %v1083, %v1084
        %v1133 = vsel %vm1108, %v1082, %v1083
        %v1134 = vsel %vm1108, %v1081, %v1082
        %v1135 = vsel %vm1108, %v1080, %v1081
        %v1136 = vsel %vm1108, %v1079, %v1080
        %v1137 = vsel %vm1108, %v1078, %v1079
        %v1138 = vsel %vm1108, %v1077, %v1078
        %v1139 = vsel %vm1108, %v1076, %v1077
        %v1140 = vsel %vm1108, %v1107, %v1076
        %v1141 = vrot.slane %v1044, 1
        %v1142 = vrot.slane %v1045, 1
        %v1143 = vrot.slane %v1046, 1
        %v1144 = vrot.slane %v1047, 1
        %v1145 = vrot.slane %v1048, 1
        %v1146 = vrot.slane %v1049, 1
        %v1147 = vrot.slane %v1050, 1
        %v1148 = vrot.slane %v1051, 1
        %v1149 = vrot.slane %v1052, 1
        %v1150 = vrot.slane %v1053, 1
        %v1151 = vrot.slane %v1054, 1
        %v1152 = vrot.slane %v1055, 1
        %v1153 = vrot.slane %v1056, 1
        %v1154 = vrot.slane %v1057, 1
        %v1155 = vrot.slane %v1058, 1
        %v1156 = vrot.slane %v1059, 1
        %v1157 = vrot.slane %v1060, 1
        %v1158 = vrot.slane %v1061, 1
        %v1159 = vrot.slane %v1062, 1
        %v1160 = vrot.slane %v1063, 1
        %v1161 = vrot.slane %v1064, 1
        %v1162 = vrot.slane %v1065, 1
        %v1163 = vrot.slane %v1066, 1
        %v1164 = vrot.slane %v1067, 1
        %v1165 = vrot.slane %v1068, 1
        %v1166 = vrot.slane %v1069, 1
        %v1167 = vrot.slane %v1070, 1
        %v1168 = vrot.slane %v1071, 1
        %v1169 = vrot.slane %v1072, 1
        %v1170 = vrot.slane %v1073, 1
        %v1171 = vrot.slane %v1074, 1
        %v1172 = vrot.slane %v1075, 1
        %vm1173 = vcmp.lt.s32.totalorder %v564, 7
        %v1174 = vsel %vm1173, %v1171, %v1172
        %v1175 = vsel %vm1173, %v1170, %v1171
        %v1176 = vsel %vm1173, %v1169, %v1170
        %v1177 = vsel %vm1173, %v1168, %v1169
        %v1178 = vsel %vm1173, %v1167, %v1168
        %v1179 = vsel %vm1173, %v1166, %v1167
        %v1180 = vsel %vm1173, %v1165, %v1166
        %v1181 = vsel %vm1173, %v1164, %v1165
        %v1182 = vsel %vm1173, %v1163, %v1164
        %v1183 = vsel %vm1173, %v1162, %v1163
        %v1184 = vsel %vm1173, %v1161, %v1162
        %v1185 = vsel %vm1173, %v1160, %v1161
        %v1186 = vsel %vm1173, %v1159, %v1160
        %v1187 = vsel %vm1173, %v1158, %v1159
        %v1188 = vsel %vm1173, %v1157, %v1158
        %v1189 = vsel %vm1173, %v1156, %v1157
        %v1190 = vsel %vm1173, %v1155, %v1156
        %v1191 = vsel %vm1173, %v1154, %v1155
        %v1192 = vsel %vm1173, %v1153, %v1154
        %v1193 = vsel %vm1173, %v1152, %v1153
        %v1194 = vsel %vm1173, %v1151, %v1152
        %v1195 = vsel %vm1173, %v1150, %v1151
        %v1196 = vsel %vm1173, %v1149, %v1150
        %v1197 = vsel %vm1173, %v1148, %v1149
        %v1198 = vsel %vm1173, %v1147, %v1148
        %v1199 = vsel %vm1173, %v1146, %v1147
        %v1200 = vsel %vm1173, %v1145, %v1146
        %v1201 = vsel %vm1173, %v1144, %v1145
        %v1202 = vsel %vm1173, %v1143, %v1144
        %v1203 = vsel %vm1173, %v1142, %v1143
        %v1204 = vsel %vm1173, %v1141, %v1142
        %v1205 = vsel %vm1173, %v1172, %v1141
        %v1206 = vsel %vm980, 1, 0
        %v1207 = vsel %vm981, 1, 0
        %v1208 = vsel %vm982, 1, 0
        %v1209 = vsel %vm983, 1, 0
        %v1210 = vsel %vm984, 1, 0
        %v1211 = vsel %vm985, 1, 0
        %v1212 = vsel %vm986, 1, 0
        %v1213 = vsel %vm987, 1, 0
        %v1214 = vsel %vm988, 1, 0
        %v1215 = vsel %vm989, 1, 0
        %v1216 = vsel %vm990, 1, 0
        %v1217 = vsel %vm991, 1, 0
        %v1218 = vsel %vm992, 1, 0
        %v1219 = vsel %vm993, 1, 0
        %v1220 = vsel %vm994, 1, 0
        %v1221 = vsel %vm995, 1, 0
        %v1222 = vsel %vm996, 1, 0
        %v1223 = vsel %vm997, 1, 0
        %v1224 = vsel %vm998, 1, 0
        %v1225 = vsel %vm999, 1, 0
        %v1226 = vsel %vm1000, 1, 0
        %v1227 = vsel %vm1001, 1, 0
        %v1228 = vsel %vm1002, 1, 0
        %v1229 = vsel %vm1003, 1, 0
        %v1230 = vsel %vm1004, 1, 0
        %v1231 = vsel %vm1005, 1, 0
        %v1232 = vsel %vm1006, 1, 0
        %v1233 = vsel %vm1007, 1, 0
        %v1234 = vsel %vm1008, 1, 0
        %v1235 = vsel %vm1009, 1, 0
        %v1236 = vsel %vm1010, 1, 0
        %v1237 = vsel %vm1011, 1, 0
        %vm1238 = vcmp.eq.s32.totalorder %v1206, 1
        %vm1239 = vcmp.eq.s32.totalorder %v1207, 1
        %vm1240 = vcmp.eq.s32.totalorder %v1208, 1
        %vm1241 = vcmp.eq.s32.totalorder %v1209, 1
        %vm1242 = vcmp.eq.s32.totalorder %v1210, 1
        %vm1243 = vcmp.eq.s32.totalorder %v1211, 1
        %vm1244 = vcmp.eq.s32.totalorder %v1212, 1
        %vm1245 = vcmp.eq.s32.totalorder %v1213, 1
        %vm1246 = vcmp.eq.s32.totalorder %v1214, 1
        %vm1247 = vcmp.eq.s32.totalorder %v1215, 1
        %vm1248 = vcmp.eq.s32.totalorder %v1216, 1
        %vm1249 = vcmp.eq.s32.totalorder %v1217, 1
        %vm1250 = vcmp.eq.s32.totalorder %v1218, 1
        %vm1251 = vcmp.eq.s32.totalorder %v1219, 1
        %vm1252 = vcmp.eq.s32.totalorder %v1220, 1
        %vm1253 = vcmp.eq.s32.totalorder %v1221, 1
        %vm1254 = vcmp.eq.s32.totalorder %v1222, 1
        %vm1255 = vcmp.eq.s32.totalorder %v1223, 1
        %vm1256 = vcmp.eq.s32.totalorder %v1224, 1
        %vm1257 = vcmp.eq.s32.totalorder %v1225, 1
        %vm1258 = vcmp.eq.s32.totalorder %v1226, 1
        %vm1259 = vcmp.eq.s32.totalorder %v1227, 1
        %vm1260 = vcmp.eq.s32.totalorder %v1228, 1
        %vm1261 = vcmp.eq.s32.totalorder %v1229, 1
        %vm1262 = vcmp.eq.s32.totalorder %v1230, 1
        %vm1263 = vcmp.eq.s32.totalorder %v1231, 1
        %vm1264 = vcmp.eq.s32.totalorder %v1232, 1
        %vm1265 = vcmp.eq.s32.totalorder %v1233, 1
        %vm1266 = vcmp.eq.s32.totalorder %v1234, 1
        %vm1267 = vcmp.eq.s32.totalorder %v1235, 1
        %vm1268 = vcmp.eq.s32.totalorder %v1236, 1
        %vm1269 = vcmp.eq.s32.totalorder %v1237, 1
        %v1270 = vsel %vm1238, %v1204, %v1140
        %v1271 = vsel %vm1239, %v1203, %v1139
        %v1272 = vsel %vm1240, %v1202, %v1138
        %v1273 = vsel %vm1241, %v1201, %v1137
        %v1274 = vsel %vm1242, %v1200, %v1136
        %v1275 = vsel %vm1243, %v1199, %v1135
        %v1276 = vsel %vm1244, %v1198, %v1134
        %v1277 = vsel %vm1245, %v1197, %v1133
        %v1278 = vsel %vm1246, %v1196, %v1132
        %v1279 = vsel %vm1247, %v1195, %v1131
        %v1280 = vsel %vm1248, %v1194, %v1130
        %v1281 = vsel %vm1249, %v1193, %v1129
        %v1282 = vsel %vm1250, %v1192, %v1128
        %v1283 = vsel %vm1251, %v1191, %v1127
        %v1284 = vsel %vm1252, %v1190, %v1126
        %v1285 = vsel %vm1253, %v1189, %v1125
        %v1286 = vsel %vm1254, %v1188, %v1124
        %v1287 = vsel %vm1255, %v1187, %v1123
        %v1288 = vsel %vm1256, %v1186, %v1122
        %v1289 = vsel %vm1257, %v1185, %v1121
        %v1290 = vsel %vm1258, %v1184, %v1120
        %v1291 = vsel %vm1259, %v1183, %v1119
        %v1292 = vsel %vm1260, %v1182, %v1118
        %v1293 = vsel %vm1261, %v1181, %v1117
        %v1294 = vsel %vm1262, %v1180, %v1116
        %v1295 = vsel %vm1263, %v1179, %v1115
        %v1296 = vsel %vm1264, %v1178, %v1114
        %v1297 = vsel %vm1265, %v1177, %v1113
        %v1298 = vsel %vm1266, %v1176, %v1112
        %v1299 = vsel %vm1267, %v1175, %v1111
        %v1300 = vsel %vm1268, %v1174, %v1110
        %v1301 = vsel %vm1269, %v1205, %v1109
        %v1302 = vsel %vm1012, 1, 0
        %v1303 = vsel %vm1013, 1, 0
        %v1304 = vsel %vm1014, 1, 0
        %v1305 = vsel %vm1015, 1, 0
        %v1306 = vsel %vm1016, 1, 0
        %v1307 = vsel %vm1017, 1, 0
        %v1308 = vsel %vm1018, 1, 0
        %v1309 = vsel %vm1019, 1, 0
        %v1310 = vsel %vm1020, 1, 0
        %v1311 = vsel %vm1021, 1, 0
        %v1312 = vsel %vm1022, 1, 0
        %v1313 = vsel %vm1023, 1, 0
        %v1314 = vsel %vm1024, 1, 0
        %v1315 = vsel %vm1025, 1, 0
        %v1316 = vsel %vm1026, 1, 0
        %v1317 = vsel %vm1027, 1, 0
        %v1318 = vsel %vm1028, 1, 0
        %v1319 = vsel %vm1029, 1, 0
        %v1320 = vsel %vm1030, 1, 0
        %v1321 = vsel %vm1031, 1, 0
        %v1322 = vsel %vm1032, 1, 0
        %v1323 = vsel %vm1033, 1, 0
        %v1324 = vsel %vm1034, 1, 0
        %v1325 = vsel %vm1035, 1, 0
        %v1326 = vsel %vm1036, 1, 0
        %v1327 = vsel %vm1037, 1, 0
        %v1328 = vsel %vm1038, 1, 0
        %v1329 = vsel %vm1039, 1, 0
        %v1330 = vsel %vm1040, 1, 0
        %v1331 = vsel %vm1041, 1, 0
        %v1332 = vsel %vm1042, 1, 0
        %v1333 = vsel %vm1043, 1, 0
        %vm1334 = vcmp.eq.s32.totalorder %v1302, 1
        %vm1335 = vcmp.eq.s32.totalorder %v1303, 1
        %vm1336 = vcmp.eq.s32.totalorder %v1304, 1
        %vm1337 = vcmp.eq.s32.totalorder %v1305, 1
        %vm1338 = vcmp.eq.s32.totalorder %v1306, 1
        %vm1339 = vcmp.eq.s32.totalorder %v1307, 1
        %vm1340 = vcmp.eq.s32.totalorder %v1308, 1
        %vm1341 = vcmp.eq.s32.totalorder %v1309, 1
        %vm1342 = vcmp.eq.s32.totalorder %v1310, 1
        %vm1343 = vcmp.eq.s32.totalorder %v1311, 1
        %vm1344 = vcmp.eq.s32.totalorder %v1312, 1
        %vm1345 = vcmp.eq.s32.totalorder %v1313, 1
        %vm1346 = vcmp.eq.s32.totalorder %v1314, 1
        %vm1347 = vcmp.eq.s32.totalorder %v1315, 1
        %vm1348 = vcmp.eq.s32.totalorder %v1316, 1
        %vm1349 = vcmp.eq.s32.totalorder %v1317, 1
        %vm1350 = vcmp.eq.s32.totalorder %v1318, 1
        %vm1351 = vcmp.eq.s32.totalorder %v1319, 1
        %vm1352 = vcmp.eq.s32.totalorder %v1320, 1
        %vm1353 = vcmp.eq.s32.totalorder %v1321, 1
        %vm1354 = vcmp.eq.s32.totalorder %v1322, 1
        %vm1355 = vcmp.eq.s32.totalorder %v1323, 1
        %vm1356 = vcmp.eq.s32.totalorder %v1324, 1
        %vm1357 = vcmp.eq.s32.totalorder %v1325, 1
        %vm1358 = vcmp.eq.s32.totalorder %v1326, 1
        %vm1359 = vcmp.eq.s32.totalorder %v1327, 1
        %vm1360 = vcmp.eq.s32.totalorder %v1328, 1
        %vm1361 = vcmp.eq.s32.totalorder %v1329, 1
        %vm1362 = vcmp.eq.s32.totalorder %v1330, 1
        %vm1363 = vcmp.eq.s32.totalorder %v1331, 1
        %vm1364 = vcmp.eq.s32.totalorder %v1332, 1
        %vm1365 = vcmp.eq.s32.totalorder %v1333, 1
        %v1366 = vsel %vm1334, %v1140, %v1204
        %v1367 = vsel %vm1335, %v1139, %v1203
        %v1368 = vsel %vm1336, %v1138, %v1202
        %v1369 = vsel %vm1337, %v1137, %v1201
        %v1370 = vsel %vm1338, %v1136, %v1200
        %v1371 = vsel %vm1339, %v1135, %v1199
        %v1372 = vsel %vm1340, %v1134, %v1198
        %v1373 = vsel %vm1341, %v1133, %v1197
        %v1374 = vsel %vm1342, %v1132, %v1196
        %v1375 = vsel %vm1343, %v1131, %v1195
        %v1376 = vsel %vm1344, %v1130, %v1194
        %v1377 = vsel %vm1345, %v1129, %v1193
        %v1378 = vsel %vm1346, %v1128, %v1192
        %v1379 = vsel %vm1347, %v1127, %v1191
        %v1380 = vsel %vm1348, %v1126, %v1190
        %v1381 = vsel %vm1349, %v1125, %v1189
        %v1382 = vsel %vm1350, %v1124, %v1188
        %v1383 = vsel %vm1351, %v1123, %v1187
        %v1384 = vsel %vm1352, %v1122, %v1186
        %v1385 = vsel %vm1353, %v1121, %v1185
        %v1386 = vsel %vm1354, %v1120, %v1184
        %v1387 = vsel %vm1355, %v1119, %v1183
        %v1388 = vsel %vm1356, %v1118, %v1182
        %v1389 = vsel %vm1357, %v1117, %v1181
        %v1390 = vsel %vm1358, %v1116, %v1180
        %v1391 = vsel %vm1359, %v1115, %v1179
        %v1392 = vsel %vm1360, %v1114, %v1178
        %v1393 = vsel %vm1361, %v1113, %v1177
        %v1394 = vsel %vm1362, %v1112, %v1176
        %v1395 = vsel %vm1363, %v1111, %v1175
        %v1396 = vsel %vm1364, %v1110, %v1174
        %v1397 = vsel %vm1365, %v1109, %v1205
        %v1398 = vpack.c.bf16 %v1271, %v1270
        %v1399 = vpack.c.bf16 %v1273, %v1272
        %v1400 = vpack.c.bf16 %v1275, %v1274
        %v1401 = vpack.c.bf16 %v1277, %v1276
        %v1402 = vpack.c.bf16 %v1279, %v1278
        %v1403 = vpack.c.bf16 %v1281, %v1280
        %v1404 = vpack.c.bf16 %v1283, %v1282
        %v1405 = vpack.c.bf16 %v1285, %v1284
        %v1406 = vpack.c.bf16 %v1287, %v1286
        %v1407 = vpack.c.bf16 %v1289, %v1288
        %v1408 = vpack.c.bf16 %v1291, %v1290
        %v1409 = vpack.c.bf16 %v1293, %v1292
        %v1410 = vpack.c.bf16 %v1295, %v1294
        %v1411 = vpack.c.bf16 %v1297, %v1296
        %v1412 = vpack.c.bf16 %v1299, %v1298
        %v1413 = vpack.c.bf16 %v1301, %v1300
        %v1414 = vpack.c.bf16 %v1045, %v1044
        %v1415 = vpack.c.bf16 %v1047, %v1046
        %v1416 = vpack.c.bf16 %v1049, %v1048
        %v1417 = vpack.c.bf16 %v1051, %v1050
        %v1418 = vpack.c.bf16 %v1053, %v1052
        %v1419 = vpack.c.bf16 %v1055, %v1054
        %v1420 = vpack.c.bf16 %v1057, %v1056
        %v1421 = vpack.c.bf16 %v1059, %v1058
        %v1422 = vpack.c.bf16 %v1061, %v1060
        %v1423 = vpack.c.bf16 %v1063, %v1062
        %v1424 = vpack.c.bf16 %v1065, %v1064
        %v1425 = vpack.c.bf16 %v1067, %v1066
        %v1426 = vpack.c.bf16 %v1069, %v1068
        %v1427 = vpack.c.bf16 %v1071, %v1070
        %v1428 = vpack.c.bf16 %v1073, %v1072
        %v1429 = vpack.c.bf16 %v1075, %v1074
        %v1430 = vpack.c.bf16 %v1367, %v1366
        %v1431 = vpack.c.bf16 %v1369, %v1368
        %v1432 = vpack.c.bf16 %v1371, %v1370
        %v1433 = vpack.c.bf16 %v1373, %v1372
        %v1434 = vpack.c.bf16 %v1375, %v1374
        %v1435 = vpack.c.bf16 %v1377, %v1376
        %v1436 = vpack.c.bf16 %v1379, %v1378
        %v1437 = vpack.c.bf16 %v1381, %v1380
        %v1438 = vpack.c.bf16 %v1383, %v1382
        %v1439 = vpack.c.bf16 %v1385, %v1384
        %v1440 = vpack.c.bf16 %v1387, %v1386
        %v1441 = vpack.c.bf16 %v1389, %v1388
        %v1442 = vpack.c.bf16 %v1391, %v1390
        %v1443 = vpack.c.bf16 %v1393, %v1392
        %v1444 = vpack.c.bf16 %v1395, %v1394
        %v1445 = vpack.c.bf16 %v1397, %v1396
        %v1494 = vunpack.c.l.b16 %v273
        %v1495 = vunpack.c.l.b16 %v274
        %v1496 = vunpack.c.l.b16 %v275
        %v1497 = vunpack.c.l.b16 %v276
        %v1498 = vunpack.c.l.b16 %v277
        %v1499 = vunpack.c.l.b16 %v278
        %v1500 = vunpack.c.l.b16 %v279
        %v1501 = vunpack.c.l.b16 %v280
        %v1502 = vunpack.c.l.b16 %v281
        %v1503 = vunpack.c.l.b16 %v282
        %v1504 = vunpack.c.l.b16 %v283
        %v1505 = vunpack.c.l.b16 %v284
        %v1506 = vunpack.c.l.b16 %v285
        %v1507 = vunpack.c.l.b16 %v286
        %v1508 = vunpack.c.l.b16 %v287
        %v1509 = vunpack.c.l.b16 %v288
        %v1510 = vunpack.c.l.b16 %v289
        %v1511 = vunpack.c.l.b16 %v290
        %v1512 = vunpack.c.l.b16 %v291
        %v1513 = vunpack.c.l.b16 %v292
        %v1514 = vunpack.c.l.b16 %v293
        %v1515 = vunpack.c.l.b16 %v294
        %v1516 = vunpack.c.l.b16 %v295
        %v1517 = vunpack.c.l.b16 %v296
        %v1518 = vunpack.c.l.b16 %v297
        %v1519 = vunpack.c.l.b16 %v298
        %v1520 = vunpack.c.l.b16 %v299
        %v1521 = vunpack.c.l.b16 %v300
        %v1522 = vunpack.c.l.b16 %v301
        %v1523 = vunpack.c.l.b16 %v302
        %v1524 = vunpack.c.l.b16 %v303
        %v1525 = vunpack.c.l.b16 %v304
        %v1526 = vunpack.c.l.b16 %v305
        %v1527 = vunpack.c.l.b16 %v306
        %v1528 = vunpack.c.l.b16 %v307
        %v1529 = vunpack.c.l.b16 %v308
        %v1530 = vunpack.c.l.b16 %v309
        %v1531 = vunpack.c.l.b16 %v310
        %v1532 = vunpack.c.l.b16 %v311
        %v1533 = vunpack.c.l.b16 %v312
        %v1534 = vunpack.c.l.b16 %v313
        %v1535 = vunpack.c.l.b16 %v314
        %v1536 = vunpack.c.l.b16 %v315
        %v1537 = vunpack.c.l.b16 %v316
        %v1538 = vunpack.c.l.b16 %v317
        %v1539 = vunpack.c.l.b16 %v318
        %v1540 = vunpack.c.l.b16 %v319
        %v1541 = vunpack.c.l.b16 %v320
        %v1542 = vpack.c.b16 %v1495, %v1494
        %v1543 = vpack.c.b16 %v1497, %v1496
        %v1544 = vpack.c.b16 %v1499, %v1498
        %v1545 = vpack.c.b16 %v1501, %v1500
        %v1546 = vpack.c.b16 %v1503, %v1502
        %v1547 = vpack.c.b16 %v1505, %v1504
        %v1548 = vpack.c.b16 %v1507, %v1506
        %v1549 = vpack.c.b16 %v1509, %v1508
        %v1550 = vpack.c.b16 %v1511, %v1510
        %v1551 = vpack.c.b16 %v1513, %v1512
        %v1552 = vpack.c.b16 %v1515, %v1514
        %v1553 = vpack.c.b16 %v1517, %v1516
        %v1554 = vpack.c.b16 %v1519, %v1518
        %v1555 = vpack.c.b16 %v1521, %v1520
        %v1556 = vpack.c.b16 %v1523, %v1522
        %v1557 = vpack.c.b16 %v1525, %v1524
        %v1558 = vpack.c.b16 %v1527, %v1526
        %v1559 = vpack.c.b16 %v1529, %v1528
        %v1560 = vpack.c.b16 %v1531, %v1530
        %v1561 = vpack.c.b16 %v1533, %v1532
        %v1562 = vpack.c.b16 %v1535, %v1534
        %v1563 = vpack.c.b16 %v1537, %v1536
        %v1564 = vpack.c.b16 %v1539, %v1538
        %v1565 = vpack.c.b16 %v1541, %v1540
        %1590 = vmatprep.subr.bf16.mxu0 0
        %1591 = vmatpush1.bf16.msra.mxu0 %v1549
        %1592 = vmatprep.subr.bf16.mxu0 0
        %1593 = vmatpush1.bf16.msra.mxu0 %v1548
        %1594 = vmatprep.subr.bf16.mxu0 0
        %1595 = vmatpush1.bf16.msra.mxu0 %v1547
        %1596 = vmatprep.subr.bf16.mxu0 0
        %1597 = vmatpush1.bf16.msra.mxu0 %v1546
        %1598 = vmatprep.subr.bf16.mxu0 0
        %1599 = vmatpush1.bf16.msra.mxu0 %v1545
        %1600 = vmatprep.subr.bf16.mxu0 0
        %1601 = vmatpush1.bf16.msra.mxu0 %v1544
        %1602 = vmatprep.subr.bf16.mxu0 0
        %1603 = vmatpush1.bf16.msra.mxu0 %v1543
        %1604 = vmatprep.subr.bf16.mxu0 0
        %1605 = vmatpush1.bf16.msra.mxu0 %v1542
        %1606 = vmatprep.subr.bf16.mxu0 0
        %1607 = vmatpush2.bf16.msra.mxu0 %v1557
        %1608 = vmatprep.subr.bf16.mxu0 0
        %1609 = vmatpush2.bf16.msra.mxu0 %v1556
        %1610 = vmatprep.subr.bf16.mxu0 0
        %1611 = vmatpush2.bf16.msra.mxu0 %v1555
        %1612 = vmatprep.subr.bf16.mxu0 0
        %1613 = vmatpush2.bf16.msra.mxu0 %v1554
        %1614 = vmatprep.subr.bf16.mxu0 0
        %1615 = vmatpush2.bf16.msra.mxu0 %v1553
        %1616 = vmatprep.subr.bf16.mxu0 0
        %1617 = vmatpush2.bf16.msra.mxu0 %v1552
        %1618 = vmatprep.subr.bf16.mxu0 0
        %1619 = vmatpush2.bf16.msra.mxu0 %v1551
        %1620 = vmatprep.subr.bf16.mxu0 0
        %1621 = vmatpush2.bf16.msra.mxu0 %v1550
        %1622 = vmatprep.mubr.bf16.mxu0 %v1415
        %1623 = vmatmul.mubr.bf16.gmra.mxu0 %v1399
        %v1624 = vpop.f32.mrf.mxu0
        %v1625 = vadd.f32 0.0, %v1624
        %v1626 = vpop.f32.mrf.mxu0
        %v1627 = vpop.f32.mrf.mxu0
        %v1628 = vadd.f32 0.0, %v1627
        %v1629 = vpop.f32.mrf.mxu0
        %1630 = vmatprep.mubr.bf16.mxu0 %v1414
        %1631 = vmatmul.mubr.bf16.gmra.mxu0 %v1398
        %v1632 = vpop.f32.mrf.mxu0
        %v1633 = vadd.f32 0.0, %v1632
        %v1634 = vpop.f32.mrf.mxu0
        %v1635 = vpop.f32.mrf.mxu0
        %v1636 = vadd.f32 0.0, %v1635
        %v1637 = vpop.f32.mrf.mxu0
        %1638 = vmatprep.mubr.bf16.mxu0 %v1415
        %1639 = vmatmul.mubr.bf16.gmra.mxu0 %v1399
        %v1640 = vpop.f32.mrf.mxu0
        %v1641 = vadd.f32 0.0, %v1640
        %v1642 = vpop.f32.mrf.mxu0
        %v1643 = vpop.f32.mrf.mxu0
        %v1644 = vadd.f32 0.0, %v1643
        %v1645 = vpop.f32.mrf.mxu0
        %1646 = vmatprep.mubr.bf16.mxu0 %v1416
        %1647 = vmatmul.mubr.bf16.gmra.mxu0 %v1400
        %v1648 = vpop.f32.mrf.mxu0
        %v1649 = vadd.f32 0.0, %v1648
        %v1650 = vpop.f32.mrf.mxu0
        %v1651 = vpop.f32.mrf.mxu0
        %v1652 = vadd.f32 0.0, %v1651
        %v1653 = vpop.f32.mrf.mxu0
        %1654 = vmatprep.mubr.bf16.mxu0 %v1417
        %1655 = vmatmul.mubr.bf16.gmra.mxu0 %v1401
        %v1656 = vpop.f32.mrf.mxu0
        %v1657 = vadd.f32 0.0, %v1656
        %v1658 = vpop.f32.mrf.mxu0
        %v1659 = vpop.f32.mrf.mxu0
        %v1660 = vadd.f32 0.0, %v1659
        %v1661 = vpop.f32.mrf.mxu0
        %1662 = vmatprep.mubr.bf16.mxu0 %v1418
        %1663 = vmatmul.mubr.bf16.gmra.mxu0 %v1402
        %v1664 = vpop.f32.mrf.mxu0
        %v1665 = vadd.f32 0.0, %v1664
        %v1666 = vpop.f32.mrf.mxu0
        %v1667 = vpop.f32.mrf.mxu0
        %v1668 = vadd.f32 0.0, %v1667
        %v1669 = vpop.f32.mrf.mxu0
        %1670 = vmatprep.mubr.bf16.mxu0 %v1419
        %1671 = vmatmul.mubr.bf16.gmra.mxu0 %v1403
        %v1672 = vpop.f32.mrf.mxu0
        %v1673 = vadd.f32 0.0, %v1672
        %v1674 = vpop.f32.mrf.mxu0
        %v1675 = vpop.f32.mrf.mxu0
        %v1676 = vadd.f32 0.0, %v1675
        %v1677 = vpop.f32.mrf.mxu0
        %1678 = vmatprep.mubr.bf16.mxu0 %v1420
        %1679 = vmatmul.mubr.bf16.gmra.mxu0 %v1404
        %v1680 = vpop.f32.mrf.mxu0
        %v1681 = vadd.f32 0.0, %v1680
        %v1682 = vpop.f32.mrf.mxu0
        %v1683 = vpop.f32.mrf.mxu0
        %v1684 = vadd.f32 0.0, %v1683
        %v1685 = vpop.f32.mrf.mxu0
        %1686 = vmatprep.mubr.bf16.mxu0 %v1421
        %1687 = vmatmul.mubr.bf16.gmra.mxu0 %v1405
        %v1688 = vpop.f32.mrf.mxu0
        %v1689 = vadd.f32 0.0, %v1688
        %v1690 = vpop.f32.mrf.mxu0
        %v1691 = vpop.f32.mrf.mxu0
        %v1692 = vadd.f32 0.0, %v1691
        %v1693 = vpop.f32.mrf.mxu0
        %1694 = vmatprep.mubr.bf16.mxu0 %v1422
        %1695 = vmatmul.mubr.bf16.gmra.mxu0 %v1406
        %v1696 = vpop.f32.mrf.mxu0
        %v1697 = vadd.f32 0.0, %v1696
        %v1698 = vpop.f32.mrf.mxu0
        %v1699 = vpop.f32.mrf.mxu0
        %v1700 = vadd.f32 0.0, %v1699
        %v1701 = vpop.f32.mrf.mxu0
        %1702 = vmatprep.mubr.bf16.mxu0 %v1423
        %1703 = vmatmul.mubr.bf16.gmra.mxu0 %v1407
        %v1704 = vpop.f32.mrf.mxu0
        %v1705 = vadd.f32 0.0, %v1704
        %v1706 = vpop.f32.mrf.mxu0
        %v1707 = vpop.f32.mrf.mxu0
        %v1708 = vadd.f32 0.0, %v1707
        %v1709 = vpop.f32.mrf.mxu0
        %1710 = vmatprep.mubr.bf16.mxu0 %v1424
        %1711 = vmatmul.mubr.bf16.gmra.mxu0 %v1408
        %v1712 = vpop.f32.mrf.mxu0
        %v1713 = vadd.f32 0.0, %v1712
        %v1714 = vpop.f32.mrf.mxu0
        %v1715 = vpop.f32.mrf.mxu0
        %v1716 = vadd.f32 0.0, %v1715
        %v1717 = vpop.f32.mrf.mxu0
        %1718 = vmatprep.mubr.bf16.mxu0 %v1425
        %1719 = vmatmul.mubr.bf16.gmra.mxu0 %v1409
        %v1720 = vpop.f32.mrf.mxu0
        %v1721 = vadd.f32 0.0, %v1720
        %v1722 = vpop.f32.mrf.mxu0
        %v1723 = vpop.f32.mrf.mxu0
        %v1724 = vadd.f32 0.0, %v1723
        %v1725 = vpop.f32.mrf.mxu0
        %1726 = vmatprep.mubr.bf16.mxu0 %v1426
        %1727 = vmatmul.mubr.bf16.gmra.mxu0 %v1410
        %v1728 = vpop.f32.mrf.mxu0
        %v1729 = vadd.f32 0.0, %v1728
        %v1730 = vpop.f32.mrf.mxu0
        %v1731 = vpop.f32.mrf.mxu0
        %v1732 = vadd.f32 0.0, %v1731
        %v1733 = vpop.f32.mrf.mxu0
        %1734 = vmatprep.mubr.bf16.mxu0 %v1427
        %1735 = vmatmul.mubr.bf16.gmra.mxu0 %v1411
        %v1736 = vpop.f32.mrf.mxu0
        %v1737 = vadd.f32 0.0, %v1736
        %v1738 = vpop.f32.mrf.mxu0
        %v1739 = vpop.f32.mrf.mxu0
        %v1740 = vadd.f32 0.0, %v1739
        %v1741 = vpop.f32.mrf.mxu0
        %1742 = vmatprep.mubr.bf16.mxu0 %v1428
        %1743 = vmatmul.mubr.bf16.gmra.mxu0 %v1412
        %v1744 = vpop.f32.mrf.mxu0
        %v1745 = vadd.f32 0.0, %v1744
        %v1746 = vpop.f32.mrf.mxu0
        %v1747 = vpop.f32.mrf.mxu0
        %v1748 = vadd.f32 0.0, %v1747
        %v1749 = vpop.f32.mrf.mxu0
        %1750 = vdwg.mxu0
        %1751 = vmatprep.subr.bf16.mxu0 0
        %1752 = vmatpush1.bf16.msra.mxu0 %v1565
        %1753 = vmatprep.subr.bf16.mxu0 0
        %1754 = vmatpush1.bf16.msra.mxu0 %v1564
        %1755 = vmatprep.subr.bf16.mxu0 0
        %1756 = vmatpush1.bf16.msra.mxu0 %v1563
        %1757 = vmatprep.subr.bf16.mxu0 0
        %1758 = vmatpush1.bf16.msra.mxu0 %v1562
        %1759 = vmatprep.subr.bf16.mxu0 0
        %1760 = vmatpush1.bf16.msra.mxu0 %v1561
        %1761 = vmatprep.subr.bf16.mxu0 0
        %1762 = vmatpush1.bf16.msra.mxu0 %v1560
        %1763 = vmatprep.subr.bf16.mxu0 0
        %1764 = vmatpush1.bf16.msra.mxu0 %v1559
        %1765 = vmatprep.subr.bf16.mxu0 0
        %1766 = vmatpush1.bf16.msra.mxu0 %v1558
        %1767 = vmatprep.subr.bf16.mxu0 0
        %1768 = vmatpush2.bf16.msra.mxu0 0
        %1769 = vmatprep.subr.bf16.mxu0 0
        %1770 = vmatpush2.bf16.msra.mxu0 0
        %1771 = vmatprep.subr.bf16.mxu0 0
        %1772 = vmatpush2.bf16.msra.mxu0 0
        %1773 = vmatprep.subr.bf16.mxu0 0
        %1774 = vmatpush2.bf16.msra.mxu0 0
        %1775 = vmatprep.subr.bf16.mxu0 0
        %1776 = vmatpush2.bf16.msra.mxu0 0
        %1777 = vmatprep.subr.bf16.mxu0 0
        %1778 = vmatpush2.bf16.msra.mxu0 0
        %1779 = vmatprep.subr.bf16.mxu0 0
        %1780 = vmatpush2.bf16.msra.mxu0 0
        %1781 = vmatprep.subr.bf16.mxu0 0
        %1782 = vmatpush2.bf16.msra.mxu0 0
        %1783 = vmatprep.mubr.bf16.mxu0 0
        %1784 = vmatmul.mubr.bf16.gmra.mxu0 %v1431
        %v1785 = vpop.f32.mrf.mxu0
        %v1786 = vadd.f32 %v1625, %v1785
        %v1787 = vpop.f32.mrf.mxu0
        %v1788 = vpop.f32.mrf.mxu0
        %v1789 = vadd.f32 %v1628, %v1788
        %v1790 = vpop.f32.mrf.mxu0
        %1791 = vmatprep.mubr.bf16.mxu0 0
        %1792 = vmatmul.mubr.bf16.gmra.mxu0 %v1430
        %v1793 = vpop.f32.mrf.mxu0
        %v1794 = vadd.f32 %v1633, %v1793
        %v1795 = vpop.f32.mrf.mxu0
        %v1796 = vpop.f32.mrf.mxu0
        %v1797 = vadd.f32 %v1636, %v1796
        %v1798 = vpop.f32.mrf.mxu0
        %1799 = vmatprep.mubr.bf16.mxu0 0
        %1800 = vmatmul.mubr.bf16.gmra.mxu0 %v1431
        %v1801 = vpop.f32.mrf.mxu0
        %v1802 = vadd.f32 %v1641, %v1801
        %v1803 = vpop.f32.mrf.mxu0
        %v1804 = vpop.f32.mrf.mxu0
        %v1805 = vadd.f32 %v1644, %v1804
        %v1806 = vpop.f32.mrf.mxu0
        %1807 = vmatprep.mubr.bf16.mxu0 0
        %1808 = vmatmul.mubr.bf16.gmra.mxu0 %v1432
        %v1809 = vpop.f32.mrf.mxu0
        %v1810 = vadd.f32 %v1649, %v1809
        %v1811 = vpop.f32.mrf.mxu0
        %v1812 = vpop.f32.mrf.mxu0
        %v1813 = vadd.f32 %v1652, %v1812
        %v1814 = vpop.f32.mrf.mxu0
        %1815 = vmatprep.mubr.bf16.mxu0 0
        %1816 = vmatmul.mubr.bf16.gmra.mxu0 %v1433
        %v1817 = vpop.f32.mrf.mxu0
        %v1818 = vadd.f32 %v1657, %v1817
        %v1819 = vpop.f32.mrf.mxu0
        %v1820 = vpop.f32.mrf.mxu0
        %v1821 = vadd.f32 %v1660, %v1820
        %v1822 = vpop.f32.mrf.mxu0
        %1823 = vmatprep.mubr.bf16.mxu0 0
        %1824 = vmatmul.mubr.bf16.gmra.mxu0 %v1434
        %v1825 = vpop.f32.mrf.mxu0
        %v1826 = vadd.f32 %v1665, %v1825
        %v1827 = vpop.f32.mrf.mxu0
        %v1828 = vpop.f32.mrf.mxu0
        %v1829 = vadd.f32 %v1668, %v1828
        %v1830 = vpop.f32.mrf.mxu0
        %1831 = vmatprep.mubr.bf16.mxu0 0
        %1832 = vmatmul.mubr.bf16.gmra.mxu0 %v1435
        %v1833 = vpop.f32.mrf.mxu0
        %v1834 = vadd.f32 %v1673, %v1833
        %v1835 = vpop.f32.mrf.mxu0
        %v1836 = vpop.f32.mrf.mxu0
        %v1837 = vadd.f32 %v1676, %v1836
        %v1838 = vpop.f32.mrf.mxu0
        %1839 = vmatprep.mubr.bf16.mxu0 0
        %1840 = vmatmul.mubr.bf16.gmra.mxu0 %v1436
        %v1841 = vpop.f32.mrf.mxu0
        %v1842 = vadd.f32 %v1681, %v1841
        %v1843 = vpop.f32.mrf.mxu0
        %v1844 = vpop.f32.mrf.mxu0
        %v1845 = vadd.f32 %v1684, %v1844
        %v1846 = vpop.f32.mrf.mxu0
        %1847 = vmatprep.mubr.bf16.mxu0 0
        %1848 = vmatmul.mubr.bf16.gmra.mxu0 %v1437
        %v1849 = vpop.f32.mrf.mxu0
        %v1850 = vadd.f32 %v1689, %v1849
        %v1851 = vpop.f32.mrf.mxu0
        %v1852 = vpop.f32.mrf.mxu0
        %v1853 = vadd.f32 %v1692, %v1852
        %v1854 = vpop.f32.mrf.mxu0
        %1855 = vmatprep.mubr.bf16.mxu0 0
        %1856 = vmatmul.mubr.bf16.gmra.mxu0 %v1438
        %v1857 = vpop.f32.mrf.mxu0
        %v1858 = vadd.f32 %v1697, %v1857
        %v1859 = vpop.f32.mrf.mxu0
        %v1860 = vpop.f32.mrf.mxu0
        %v1861 = vadd.f32 %v1700, %v1860
        %v1862 = vpop.f32.mrf.mxu0
        %1863 = vmatprep.mubr.bf16.mxu0 0
        %1864 = vmatmul.mubr.bf16.gmra.mxu0 %v1439
        %v1865 = vpop.f32.mrf.mxu0
        %v1866 = vadd.f32 %v1705, %v1865
        %v1867 = vpop.f32.mrf.mxu0
        %v1868 = vpop.f32.mrf.mxu0
        %v1869 = vadd.f32 %v1708, %v1868
        %v1870 = vpop.f32.mrf.mxu0
        %1871 = vmatprep.mubr.bf16.mxu0 0
        %1872 = vmatmul.mubr.bf16.gmra.mxu0 %v1440
        %v1873 = vpop.f32.mrf.mxu0
        %v1874 = vadd.f32 %v1713, %v1873
        %v1875 = vpop.f32.mrf.mxu0
        %v1876 = vpop.f32.mrf.mxu0
        %v1877 = vadd.f32 %v1716, %v1876
        %v1878 = vpop.f32.mrf.mxu0
        %1879 = vmatprep.mubr.bf16.mxu0 0
        %1880 = vmatmul.mubr.bf16.gmra.mxu0 %v1441
        %v1881 = vpop.f32.mrf.mxu0
        %v1882 = vadd.f32 %v1721, %v1881
        %v1883 = vpop.f32.mrf.mxu0
        %v1884 = vpop.f32.mrf.mxu0
        %v1885 = vadd.f32 %v1724, %v1884
        %v1886 = vpop.f32.mrf.mxu0
        %1887 = vmatprep.mubr.bf16.mxu0 0
        %1888 = vmatmul.mubr.bf16.gmra.mxu0 %v1442
        %v1889 = vpop.f32.mrf.mxu0
        %v1890 = vadd.f32 %v1729, %v1889
        %v1891 = vpop.f32.mrf.mxu0
        %v1892 = vpop.f32.mrf.mxu0
        %v1893 = vadd.f32 %v1732, %v1892
        %v1894 = vpop.f32.mrf.mxu0
        %1895 = vmatprep.mubr.bf16.mxu0 0
        %1896 = vmatmul.mubr.bf16.gmra.mxu0 %v1443
        %v1897 = vpop.f32.mrf.mxu0
        %v1898 = vadd.f32 %v1737, %v1897
        %v1899 = vpop.f32.mrf.mxu0
        %v1900 = vpop.f32.mrf.mxu0
        %v1901 = vadd.f32 %v1740, %v1900
        %v1902 = vpop.f32.mrf.mxu0
        %1903 = vmatprep.mubr.bf16.mxu0 0
        %1904 = vmatmul.mubr.bf16.gmra.mxu0 %v1444
        %v1905 = vpop.f32.mrf.mxu0
        %v1906 = vadd.f32 %v1745, %v1905
        %v1907 = vpop.f32.mrf.mxu0
        %v1908 = vpop.f32.mrf.mxu0
        %v1909 = vadd.f32 %v1748, %v1908
        %v1910 = vpop.f32.mrf.mxu0
        %1911 = vdwg.mxu0
        %v1913 = vlaneseq
        %v1914 = vshrl.u32 %v1913, 7
        %v1915 = vsub.s32 0, %v1914
        %v1916 = vrot.slane %v561, %v1915
        %v1918 = vadd.f32 %v1916, %v1786
        %v1919 = vadd.f32 %v1916, %v1789
        %v1920 = vadd.f32 %v1916, %v1794
        %v1921 = vadd.f32 %v1916, %v1797
        %v1922 = vadd.f32 %v1916, %v1802
        %v1923 = vadd.f32 %v1916, %v1805
        %v1924 = vadd.f32 %v1916, %v1810
        %v1925 = vadd.f32 %v1916, %v1813
        %v1926 = vadd.f32 %v1916, %v1818
        %v1927 = vadd.f32 %v1916, %v1821
        %v1928 = vadd.f32 %v1916, %v1826
        %v1929 = vadd.f32 %v1916, %v1829
        %v1930 = vadd.f32 %v1916, %v1834
        %v1931 = vadd.f32 %v1916, %v1837
        %v1932 = vadd.f32 %v1916, %v1842
        %v1933 = vadd.f32 %v1916, %v1845
        %v1934 = vadd.f32 %v1916, %v1850
        %v1935 = vadd.f32 %v1916, %v1853
        %v1936 = vadd.f32 %v1916, %v1858
        %v1937 = vadd.f32 %v1916, %v1861
        %v1938 = vadd.f32 %v1916, %v1866
        %v1939 = vadd.f32 %v1916, %v1869
        %v1940 = vadd.f32 %v1916, %v1874
        %v1941 = vadd.f32 %v1916, %v1877
        %v1942 = vadd.f32 %v1916, %v1882
        %v1943 = vadd.f32 %v1916, %v1885
        %v1944 = vadd.f32 %v1916, %v1890
        %v1945 = vadd.f32 %v1916, %v1893
        %v1946 = vadd.f32 %v1916, %v1898
        %v1947 = vadd.f32 %v1916, %v1901
        %v1948 = vadd.f32 %v1916, %v1906
        %v1949 = vadd.f32 %v1916, %v1909
        %v1998 = vunpack.c.l.b16 %v321
        %v1999 = vunpack.c.l.b16 %v322
        %v2000 = vunpack.c.l.b16 %v323
        %v2001 = vunpack.c.l.b16 %v324
        %v2002 = vunpack.c.l.b16 %v325
        %v2003 = vunpack.c.l.b16 %v326
        %v2004 = vunpack.c.l.b16 %v327
        %v2005 = vunpack.c.l.b16 %v328
        %v2006 = vunpack.c.l.b16 %v329
        %v2007 = vunpack.c.l.b16 %v330
        %v2008 = vunpack.c.l.b16 %v331
        %v2009 = vunpack.c.l.b16 %v332
        %v2010 = vunpack.c.l.b16 %v333
        %v2011 = vunpack.c.l.b16 %v334
        %v2012 = vunpack.c.l.b16 %v335
        %v2013 = vunpack.c.l.b16 %v336
        %v2014 = vunpack.c.l.b16 %v337
        %v2015 = vunpack.c.l.b16 %v338
        %v2016 = vunpack.c.l.b16 %v339
        %v2017 = vunpack.c.l.b16 %v340
        %v2018 = vunpack.c.l.b16 %v341
        %v2019 = vunpack.c.l.b16 %v342
        %v2020 = vunpack.c.l.b16 %v343
        %v2021 = vunpack.c.l.b16 %v344
        %v2022 = vunpack.c.l.b16 %v345
        %v2023 = vunpack.c.l.b16 %v346
        %v2024 = vunpack.c.l.b16 %v347
        %v2025 = vunpack.c.l.b16 %v348
        %v2026 = vunpack.c.l.b16 %v349
        %v2027 = vunpack.c.l.b16 %v350
        %v2028 = vunpack.c.l.b16 %v351
        %v2029 = vunpack.c.l.b16 %v352
        %v2030 = vunpack.c.l.b16 %v353
        %v2031 = vunpack.c.l.b16 %v354
        %v2032 = vunpack.c.l.b16 %v355
        %v2033 = vunpack.c.l.b16 %v356
        %v2034 = vunpack.c.l.b16 %v357
        %v2035 = vunpack.c.l.b16 %v358
        %v2036 = vunpack.c.l.b16 %v359
        %v2037 = vunpack.c.l.b16 %v360
        %v2038 = vunpack.c.l.b16 %v361
        %v2039 = vunpack.c.l.b16 %v362
        %v2040 = vunpack.c.l.b16 %v363
        %v2041 = vunpack.c.l.b16 %v364
        %v2042 = vunpack.c.l.b16 %v365
        %v2043 = vunpack.c.l.b16 %v366
        %v2044 = vunpack.c.l.b16 %v367
        %v2045 = vunpack.c.l.b16 %v368
        %v2046 = vpack.c.b16 %v1999, %v1998
        %v2047 = vpack.c.b16 %v2001, %v2000
        %v2048 = vpack.c.b16 %v2003, %v2002
        %v2049 = vpack.c.b16 %v2005, %v2004
        %v2050 = vpack.c.b16 %v2007, %v2006
        %v2051 = vpack.c.b16 %v2009, %v2008
        %v2052 = vpack.c.b16 %v2011, %v2010
        %v2053 = vpack.c.b16 %v2013, %v2012
        %v2054 = vpack.c.b16 %v2015, %v2014
        %v2055 = vpack.c.b16 %v2017, %v2016
        %v2056 = vpack.c.b16 %v2019, %v2018
        %v2057 = vpack.c.b16 %v2021, %v2020
        %v2058 = vpack.c.b16 %v2023, %v2022
        %v2059 = vpack.c.b16 %v2025, %v2024
        %v2060 = vpack.c.b16 %v2027, %v2026
        %v2061 = vpack.c.b16 %v2029, %v2028
        %v2062 = vpack.c.b16 %v2031, %v2030
        %v2063 = vpack.c.b16 %v2033, %v2032
        %v2064 = vpack.c.b16 %v2035, %v2034
        %v2065 = vpack.c.b16 %v2037, %v2036
        %v2066 = vpack.c.b16 %v2039, %v2038
        %v2067 = vpack.c.b16 %v2041, %v2040
        %v2068 = vpack.c.b16 %v2043, %v2042
        %v2069 = vpack.c.b16 %v2045, %v2044
        %2094 = vmatprep.subr.bf16.mxu0 0
        %2095 = vmatpush1.bf16.msra.mxu0 %v2053
        %2096 = vmatprep.subr.bf16.mxu0 0
        %2097 = vmatpush1.bf16.msra.mxu0 %v2052
        %2098 = vmatprep.subr.bf16.mxu0 0
        %2099 = vmatpush1.bf16.msra.mxu0 %v2051
        %2100 = vmatprep.subr.bf16.mxu0 0
        %2101 = vmatpush1.bf16.msra.mxu0 %v2050
        %2102 = vmatprep.subr.bf16.mxu0 0
        %2103 = vmatpush1.bf16.msra.mxu0 %v2049
        %2104 = vmatprep.subr.bf16.mxu0 0
        %2105 = vmatpush1.bf16.msra.mxu0 %v2048
        %2106 = vmatprep.subr.bf16.mxu0 0
        %2107 = vmatpush1.bf16.msra.mxu0 %v2047
        %2108 = vmatprep.subr.bf16.mxu0 0
        %2109 = vmatpush1.bf16.msra.mxu0 %v2046
        %2110 = vmatprep.subr.bf16.mxu0 0
        %2111 = vmatpush2.bf16.msra.mxu0 %v2061
        %2112 = vmatprep.subr.bf16.mxu0 0
        %2113 = vmatpush2.bf16.msra.mxu0 %v2060
        %2114 = vmatprep.subr.bf16.mxu0 0
        %2115 = vmatpush2.bf16.msra.mxu0 %v2059
        %2116 = vmatprep.subr.bf16.mxu0 0
        %2117 = vmatpush2.bf16.msra.mxu0 %v2058
        %2118 = vmatprep.subr.bf16.mxu0 0
        %2119 = vmatpush2.bf16.msra.mxu0 %v2057
        %2120 = vmatprep.subr.bf16.mxu0 0
        %2121 = vmatpush2.bf16.msra.mxu0 %v2056
        %2122 = vmatprep.subr.bf16.mxu0 0
        %2123 = vmatpush2.bf16.msra.mxu0 %v2055
        %2124 = vmatprep.subr.bf16.mxu0 0
        %2125 = vmatpush2.bf16.msra.mxu0 %v2054
        %2126 = vmatprep.mubr.bf16.mxu0 %v1414
        %2127 = vmatmul.mubr.bf16.gmra.mxu0 %v1398
        %v2128 = vpop.f32.mrf.mxu0
        %v2129 = vadd.f32 0.0, %v2128
        %v2130 = vpop.f32.mrf.mxu0
        %v2131 = vpop.f32.mrf.mxu0
        %v2132 = vadd.f32 0.0, %v2131
        %v2133 = vpop.f32.mrf.mxu0
        %2134 = vmatprep.mubr.bf16.mxu0 %v1415
        %2135 = vmatmul.mubr.bf16.gmra.mxu0 %v1399
        %v2136 = vpop.f32.mrf.mxu0
        %v2137 = vadd.f32 0.0, %v2136
        %v2138 = vpop.f32.mrf.mxu0
        %v2139 = vpop.f32.mrf.mxu0
        %v2140 = vadd.f32 0.0, %v2139
        %v2141 = vpop.f32.mrf.mxu0
        %2142 = vmatprep.mubr.bf16.mxu0 %v1416
        %2143 = vmatmul.mubr.bf16.gmra.mxu0 %v1400
        %v2144 = vpop.f32.mrf.mxu0
        %v2145 = vadd.f32 0.0, %v2144
        %v2146 = vpop.f32.mrf.mxu0
        %v2147 = vpop.f32.mrf.mxu0
        %v2148 = vadd.f32 0.0, %v2147
        %v2149 = vpop.f32.mrf.mxu0
        %2150 = vmatprep.mubr.bf16.mxu0 %v1417
        %2151 = vmatmul.mubr.bf16.gmra.mxu0 %v1401
        %v2152 = vpop.f32.mrf.mxu0
        %v2153 = vadd.f32 0.0, %v2152
        %v2154 = vpop.f32.mrf.mxu0
        %v2155 = vpop.f32.mrf.mxu0
        %v2156 = vadd.f32 0.0, %v2155
        %v2157 = vpop.f32.mrf.mxu0
        %2158 = vmatprep.mubr.bf16.mxu0 %v1418
        %2159 = vmatmul.mubr.bf16.gmra.mxu0 %v1402
        %v2160 = vpop.f32.mrf.mxu0
        %v2161 = vadd.f32 0.0, %v2160
        %v2162 = vpop.f32.mrf.mxu0
        %v2163 = vpop.f32.mrf.mxu0
        %v2164 = vadd.f32 0.0, %v2163
        %v2165 = vpop.f32.mrf.mxu0
        %2166 = vmatprep.mubr.bf16.mxu0 %v1419
        %2167 = vmatmul.mubr.bf16.gmra.mxu0 %v1403
        %v2168 = vpop.f32.mrf.mxu0
        %v2169 = vadd.f32 0.0, %v2168
        %v2170 = vpop.f32.mrf.mxu0
        %v2171 = vpop.f32.mrf.mxu0
        %v2172 = vadd.f32 0.0, %v2171
        %v2173 = vpop.f32.mrf.mxu0
        %2174 = vmatprep.mubr.bf16.mxu0 %v1420
        %2175 = vmatmul.mubr.bf16.gmra.mxu0 %v1404
        %v2176 = vpop.f32.mrf.mxu0
        %v2177 = vadd.f32 0.0, %v2176
        %v2178 = vpop.f32.mrf.mxu0
        %v2179 = vpop.f32.mrf.mxu0
        %v2180 = vadd.f32 0.0, %v2179
        %v2181 = vpop.f32.mrf.mxu0
        %2182 = vmatprep.mubr.bf16.mxu0 %v1421
        %2183 = vmatmul.mubr.bf16.gmra.mxu0 %v1405
        %v2184 = vpop.f32.mrf.mxu0
        %v2185 = vadd.f32 0.0, %v2184
        %v2186 = vpop.f32.mrf.mxu0
        %v2187 = vpop.f32.mrf.mxu0
        %v2188 = vadd.f32 0.0, %v2187
        %v2189 = vpop.f32.mrf.mxu0
        %2190 = vmatprep.mubr.bf16.mxu0 %v1422
        %2191 = vmatmul.mubr.bf16.gmra.mxu0 %v1406
        %v2192 = vpop.f32.mrf.mxu0
        %v2193 = vadd.f32 0.0, %v2192
        %v2194 = vpop.f32.mrf.mxu0
        %v2195 = vpop.f32.mrf.mxu0
        %v2196 = vadd.f32 0.0, %v2195
        %v2197 = vpop.f32.mrf.mxu0
        %2198 = vmatprep.mubr.bf16.mxu0 %v1423
        %2199 = vmatmul.mubr.bf16.gmra.mxu0 %v1407
        %v2200 = vpop.f32.mrf.mxu0
        %v2201 = vadd.f32 0.0, %v2200
        %v2202 = vpop.f32.mrf.mxu0
        %v2203 = vpop.f32.mrf.mxu0
        %v2204 = vadd.f32 0.0, %v2203
        %v2205 = vpop.f32.mrf.mxu0
        %2206 = vmatprep.mubr.bf16.mxu0 %v1424
        %2207 = vmatmul.mubr.bf16.gmra.mxu0 %v1408
        %v2208 = vpop.f32.mrf.mxu0
        %v2209 = vadd.f32 0.0, %v2208
        %v2210 = vpop.f32.mrf.mxu0
        %v2211 = vpop.f32.mrf.mxu0
        %v2212 = vadd.f32 0.0, %v2211
        %v2213 = vpop.f32.mrf.mxu0
        %2214 = vmatprep.mubr.bf16.mxu0 %v1425
        %2215 = vmatmul.mubr.bf16.gmra.mxu0 %v1409
        %v2216 = vpop.f32.mrf.mxu0
        %v2217 = vadd.f32 0.0, %v2216
        %v2218 = vpop.f32.mrf.mxu0
        %v2219 = vpop.f32.mrf.mxu0
        %v2220 = vadd.f32 0.0, %v2219
        %v2221 = vpop.f32.mrf.mxu0
        %2222 = vmatprep.mubr.bf16.mxu0 %v1426
        %2223 = vmatmul.mubr.bf16.gmra.mxu0 %v1410
        %v2224 = vpop.f32.mrf.mxu0
        %v2225 = vadd.f32 0.0, %v2224
        %v2226 = vpop.f32.mrf.mxu0
        %v2227 = vpop.f32.mrf.mxu0
        %v2228 = vadd.f32 0.0, %v2227
        %v2229 = vpop.f32.mrf.mxu0
        %2230 = vmatprep.mubr.bf16.mxu0 %v1427
        %2231 = vmatmul.mubr.bf16.gmra.mxu0 %v1411
        %v2232 = vpop.f32.mrf.mxu0
        %v2233 = vadd.f32 0.0, %v2232
        %v2234 = vpop.f32.mrf.mxu0
        %v2235 = vpop.f32.mrf.mxu0
        %v2236 = vadd.f32 0.0, %v2235
        %v2237 = vpop.f32.mrf.mxu0
        %2238 = vmatprep.mubr.bf16.mxu0 %v1428
        %2239 = vmatmul.mubr.bf16.gmra.mxu0 %v1412
        %v2240 = vpop.f32.mrf.mxu0
        %v2241 = vadd.f32 0.0, %v2240
        %v2242 = vpop.f32.mrf.mxu0
        %v2243 = vpop.f32.mrf.mxu0
        %v2244 = vadd.f32 0.0, %v2243
        %v2245 = vpop.f32.mrf.mxu0
        %2246 = vmatprep.mubr.bf16.mxu0 %v1429
        %2247 = vmatmul.mubr.bf16.gmra.mxu0 %v1413
        %v2248 = vpop.f32.mrf.mxu0
        %v2249 = vadd.f32 0.0, %v2248
        %v2250 = vpop.f32.mrf.mxu0
        %v2251 = vpop.f32.mrf.mxu0
        %v2252 = vadd.f32 0.0, %v2251
        %v2253 = vpop.f32.mrf.mxu0
        %2254 = vdwg.mxu0
        %2255 = vmatprep.subr.bf16.mxu0 0
        %2256 = vmatpush1.bf16.msra.mxu0 %v2069
        %2257 = vmatprep.subr.bf16.mxu0 0
        %2258 = vmatpush1.bf16.msra.mxu0 %v2068
        %2259 = vmatprep.subr.bf16.mxu0 0
        %2260 = vmatpush1.bf16.msra.mxu0 %v2067
        %2261 = vmatprep.subr.bf16.mxu0 0
        %2262 = vmatpush1.bf16.msra.mxu0 %v2066
        %2263 = vmatprep.subr.bf16.mxu0 0
        %2264 = vmatpush1.bf16.msra.mxu0 %v2065
        %2265 = vmatprep.subr.bf16.mxu0 0
        %2266 = vmatpush1.bf16.msra.mxu0 %v2064
        %2267 = vmatprep.subr.bf16.mxu0 0
        %2268 = vmatpush1.bf16.msra.mxu0 %v2063
        %2269 = vmatprep.subr.bf16.mxu0 0
        %2270 = vmatpush1.bf16.msra.mxu0 %v2062
        %2271 = vmatprep.subr.bf16.mxu0 0
        %2272 = vmatpush2.bf16.msra.mxu0 0
        %2273 = vmatprep.subr.bf16.mxu0 0
        %2274 = vmatpush2.bf16.msra.mxu0 0
        %2275 = vmatprep.subr.bf16.mxu0 0
        %2276 = vmatpush2.bf16.msra.mxu0 0
        %2277 = vmatprep.subr.bf16.mxu0 0
        %2278 = vmatpush2.bf16.msra.mxu0 0
        %2279 = vmatprep.subr.bf16.mxu0 0
        %2280 = vmatpush2.bf16.msra.mxu0 0
        %2281 = vmatprep.subr.bf16.mxu0 0
        %2282 = vmatpush2.bf16.msra.mxu0 0
        %2283 = vmatprep.subr.bf16.mxu0 0
        %2284 = vmatpush2.bf16.msra.mxu0 0
        %2285 = vmatprep.subr.bf16.mxu0 0
        %2286 = vmatpush2.bf16.msra.mxu0 0
        %2287 = vmatprep.mubr.bf16.mxu0 0
        %2288 = vmatmul.mubr.bf16.gmra.mxu0 %v1430
        %v2289 = vpop.f32.mrf.mxu0
        %v2290 = vadd.f32 %v2129, %v2289
        %v2291 = vpop.f32.mrf.mxu0
        %v2292 = vpop.f32.mrf.mxu0
        %v2293 = vadd.f32 %v2132, %v2292
        %v2294 = vpop.f32.mrf.mxu0
        %2295 = vmatprep.mubr.bf16.mxu0 0
        %2296 = vmatmul.mubr.bf16.gmra.mxu0 %v1431
        %v2297 = vpop.f32.mrf.mxu0
        %v2298 = vadd.f32 %v2137, %v2297
        %v2299 = vpop.f32.mrf.mxu0
        %v2300 = vpop.f32.mrf.mxu0
        %v2301 = vadd.f32 %v2140, %v2300
        %v2302 = vpop.f32.mrf.mxu0
        %2303 = vmatprep.mubr.bf16.mxu0 0
        %2304 = vmatmul.mubr.bf16.gmra.mxu0 %v1432
        %v2305 = vpop.f32.mrf.mxu0
        %v2306 = vadd.f32 %v2145, %v2305
        %v2307 = vpop.f32.mrf.mxu0
        %v2308 = vpop.f32.mrf.mxu0
        %v2309 = vadd.f32 %v2148, %v2308
        %v2310 = vpop.f32.mrf.mxu0
        %2311 = vmatprep.mubr.bf16.mxu0 0
        %2312 = vmatmul.mubr.bf16.gmra.mxu0 %v1433
        %v2313 = vpop.f32.mrf.mxu0
        %v2314 = vadd.f32 %v2153, %v2313
        %v2315 = vpop.f32.mrf.mxu0
        %v2316 = vpop.f32.mrf.mxu0
        %v2317 = vadd.f32 %v2156, %v2316
        %v2318 = vpop.f32.mrf.mxu0
        %2319 = vmatprep.mubr.bf16.mxu0 0
        %2320 = vmatmul.mubr.bf16.gmra.mxu0 %v1434
        %v2321 = vpop.f32.mrf.mxu0
        %v2322 = vadd.f32 %v2161, %v2321
        %v2323 = vpop.f32.mrf.mxu0
        %v2324 = vpop.f32.mrf.mxu0
        %v2325 = vadd.f32 %v2164, %v2324
        %v2326 = vpop.f32.mrf.mxu0
        %2327 = vmatprep.mubr.bf16.mxu0 0
        %2328 = vmatmul.mubr.bf16.gmra.mxu0 %v1435
        %v2329 = vpop.f32.mrf.mxu0
        %v2330 = vadd.f32 %v2169, %v2329
        %v2331 = vpop.f32.mrf.mxu0
        %v2332 = vpop.f32.mrf.mxu0
        %v2333 = vadd.f32 %v2172, %v2332
        %v2334 = vpop.f32.mrf.mxu0
        %2335 = vmatprep.mubr.bf16.mxu0 0
        %2336 = vmatmul.mubr.bf16.gmra.mxu0 %v1436
        %v2337 = vpop.f32.mrf.mxu0
        %v2338 = vadd.f32 %v2177, %v2337
        %v2339 = vpop.f32.mrf.mxu0
        %v2340 = vpop.f32.mrf.mxu0
        %v2341 = vadd.f32 %v2180, %v2340
        %v2342 = vpop.f32.mrf.mxu0
        %2343 = vmatprep.mubr.bf16.mxu0 0
        %2344 = vmatmul.mubr.bf16.gmra.mxu0 %v1437
        %v2345 = vpop.f32.mrf.mxu0
        %v2346 = vadd.f32 %v2185, %v2345
        %v2347 = vpop.f32.mrf.mxu0
        %v2348 = vpop.f32.mrf.mxu0
        %v2349 = vadd.f32 %v2188, %v2348
        %v2350 = vpop.f32.mrf.mxu0
        %2351 = vmatprep.mubr.bf16.mxu0 0
        %2352 = vmatmul.mubr.bf16.gmra.mxu0 %v1438
        %v2353 = vpop.f32.mrf.mxu0
        %v2354 = vadd.f32 %v2193, %v2353
        %v2355 = vpop.f32.mrf.mxu0
        %v2356 = vpop.f32.mrf.mxu0
        %v2357 = vadd.f32 %v2196, %v2356
        %v2358 = vpop.f32.mrf.mxu0
        %2359 = vmatprep.mubr.bf16.mxu0 0
        %2360 = vmatmul.mubr.bf16.gmra.mxu0 %v1439
        %v2361 = vpop.f32.mrf.mxu0
        %v2362 = vadd.f32 %v2201, %v2361
        %v2363 = vpop.f32.mrf.mxu0
        %v2364 = vpop.f32.mrf.mxu0
        %v2365 = vadd.f32 %v2204, %v2364
        %v2366 = vpop.f32.mrf.mxu0
        %2367 = vmatprep.mubr.bf16.mxu0 0
        %2368 = vmatmul.mubr.bf16.gmra.mxu0 %v1440
        %v2369 = vpop.f32.mrf.mxu0
        %v2370 = vadd.f32 %v2209, %v2369
        %v2371 = vpop.f32.mrf.mxu0
        %v2372 = vpop.f32.mrf.mxu0
        %v2373 = vadd.f32 %v2212, %v2372
        %v2374 = vpop.f32.mrf.mxu0
        %2375 = vmatprep.mubr.bf16.mxu0 0
        %2376 = vmatmul.mubr.bf16.gmra.mxu0 %v1441
        %v2377 = vpop.f32.mrf.mxu0
        %v2378 = vadd.f32 %v2217, %v2377
        %v2379 = vpop.f32.mrf.mxu0
        %v2380 = vpop.f32.mrf.mxu0
        %v2381 = vadd.f32 %v2220, %v2380
        %v2382 = vpop.f32.mrf.mxu0
        %2383 = vmatprep.mubr.bf16.mxu0 0
        %2384 = vmatmul.mubr.bf16.gmra.mxu0 %v1442
        %v2385 = vpop.f32.mrf.mxu0
        %v2386 = vadd.f32 %v2225, %v2385
        %v2387 = vpop.f32.mrf.mxu0
        %v2388 = vpop.f32.mrf.mxu0
        %v2389 = vadd.f32 %v2228, %v2388
        %v2390 = vpop.f32.mrf.mxu0
        %2391 = vmatprep.mubr.bf16.mxu0 0
        %2392 = vmatmul.mubr.bf16.gmra.mxu0 %v1443
        %v2393 = vpop.f32.mrf.mxu0
        %v2394 = vadd.f32 %v2233, %v2393
        %v2395 = vpop.f32.mrf.mxu0
        %v2396 = vpop.f32.mrf.mxu0
        %v2397 = vadd.f32 %v2236, %v2396
        %v2398 = vpop.f32.mrf.mxu0
        %2399 = vmatprep.mubr.bf16.mxu0 0
        %2400 = vmatmul.mubr.bf16.gmra.mxu0 %v1444
        %v2401 = vpop.f32.mrf.mxu0
        %v2402 = vadd.f32 %v2241, %v2401
        %v2403 = vpop.f32.mrf.mxu0
        %v2404 = vpop.f32.mrf.mxu0
        %v2405 = vadd.f32 %v2244, %v2404
        %v2406 = vpop.f32.mrf.mxu0
        %2407 = vmatprep.mubr.bf16.mxu0 0
        %2408 = vmatmul.mubr.bf16.gmra.mxu0 %v1445
        %v2409 = vpop.f32.mrf.mxu0
        %v2410 = vadd.f32 %v2249, %v2409
        %v2411 = vpop.f32.mrf.mxu0
        %v2412 = vpop.f32.mrf.mxu0
        %v2413 = vadd.f32 %v2252, %v2412
        %v2414 = vpop.f32.mrf.mxu0
        %2415 = vdwg.mxu0
        %v2416 = vadd.f32 %v1918, %v2290
        %v2417 = vadd.f32 %v1919, %v2293
        %v2418 = vadd.f32 %v1920, %v2298
        %v2419 = vadd.f32 %v1921, %v2301
        %v2420 = vadd.f32 %v1922, %v2306
        %v2421 = vadd.f32 %v1923, %v2309
        %v2422 = vadd.f32 %v1924, %v2314
        %v2423 = vadd.f32 %v1925, %v2317
        %v2424 = vadd.f32 %v1926, %v2322
        %v2425 = vadd.f32 %v1927, %v2325
        %v2426 = vadd.f32 %v1928, %v2330
        %v2427 = vadd.f32 %v1929, %v2333
        %v2428 = vadd.f32 %v1930, %v2338
        %v2429 = vadd.f32 %v1931, %v2341
        %v2430 = vadd.f32 %v1932, %v2346
        %v2431 = vadd.f32 %v1933, %v2349
        %v2432 = vadd.f32 %v1934, %v2354
        %v2433 = vadd.f32 %v1935, %v2357
        %v2434 = vadd.f32 %v1936, %v2362
        %v2435 = vadd.f32 %v1937, %v2365
        %v2436 = vadd.f32 %v1938, %v2370
        %v2437 = vadd.f32 %v1939, %v2373
        %v2438 = vadd.f32 %v1940, %v2378
        %v2439 = vadd.f32 %v1941, %v2381
        %v2440 = vadd.f32 %v1942, %v2386
        %v2441 = vadd.f32 %v1943, %v2389
        %v2442 = vadd.f32 %v1944, %v2394
        %v2443 = vadd.f32 %v1945, %v2397
        %v2444 = vadd.f32 %v1946, %v2402
        %v2445 = vadd.f32 %v1947, %v2405
        %v2446 = vadd.f32 %v1948, %v2410
        %v2447 = vadd.f32 %v1949, %v2413
        %v2496 = vunpack.c.l.b16 %v369
        %v2497 = vunpack.c.l.b16 %v370
        %v2498 = vunpack.c.l.b16 %v371
        %v2499 = vunpack.c.l.b16 %v372
        %v2500 = vunpack.c.l.b16 %v373
        %v2501 = vunpack.c.l.b16 %v374
        %v2502 = vunpack.c.l.b16 %v375
        %v2503 = vunpack.c.l.b16 %v376
        %v2504 = vunpack.c.l.b16 %v377
        %v2505 = vunpack.c.l.b16 %v378
        %v2506 = vunpack.c.l.b16 %v379
        %v2507 = vunpack.c.l.b16 %v380
        %v2508 = vunpack.c.l.b16 %v381
        %v2509 = vunpack.c.l.b16 %v382
        %v2510 = vunpack.c.l.b16 %v383
        %v2511 = vunpack.c.l.b16 %v384
        %v2512 = vunpack.c.l.b16 %v385
        %v2513 = vunpack.c.l.b16 %v386
        %v2514 = vunpack.c.l.b16 %v387
        %v2515 = vunpack.c.l.b16 %v388
        %v2516 = vunpack.c.l.b16 %v389
        %v2517 = vunpack.c.l.b16 %v390
        %v2518 = vunpack.c.l.b16 %v391
        %v2519 = vunpack.c.l.b16 %v392
        %v2520 = vunpack.c.l.b16 %v393
        %v2521 = vunpack.c.l.b16 %v394
        %v2522 = vunpack.c.l.b16 %v395
        %v2523 = vunpack.c.l.b16 %v396
        %v2524 = vunpack.c.l.b16 %v397
        %v2525 = vunpack.c.l.b16 %v398
        %v2526 = vunpack.c.l.b16 %v399
        %v2527 = vunpack.c.l.b16 %v400
        %v2528 = vunpack.c.l.b16 %v401
        %v2529 = vunpack.c.l.b16 %v402
        %v2530 = vunpack.c.l.b16 %v403
        %v2531 = vunpack.c.l.b16 %v404
        %v2532 = vunpack.c.l.b16 %v405
        %v2533 = vunpack.c.l.b16 %v406
        %v2534 = vunpack.c.l.b16 %v407
        %v2535 = vunpack.c.l.b16 %v408
        %v2536 = vunpack.c.l.b16 %v409
        %v2537 = vunpack.c.l.b16 %v410
        %v2538 = vunpack.c.l.b16 %v411
        %v2539 = vunpack.c.l.b16 %v412
        %v2540 = vunpack.c.l.b16 %v413
        %v2541 = vunpack.c.l.b16 %v414
        %v2542 = vunpack.c.l.b16 %v415
        %v2543 = vunpack.c.l.b16 %v416
        %v2544 = vpack.c.b16 %v2497, %v2496
        %v2545 = vpack.c.b16 %v2499, %v2498
        %v2546 = vpack.c.b16 %v2501, %v2500
        %v2547 = vpack.c.b16 %v2503, %v2502
        %v2548 = vpack.c.b16 %v2505, %v2504
        %v2549 = vpack.c.b16 %v2507, %v2506
        %v2550 = vpack.c.b16 %v2509, %v2508
        %v2551 = vpack.c.b16 %v2511, %v2510
        %v2552 = vpack.c.b16 %v2513, %v2512
        %v2553 = vpack.c.b16 %v2515, %v2514
        %v2554 = vpack.c.b16 %v2517, %v2516
        %v2555 = vpack.c.b16 %v2519, %v2518
        %v2556 = vpack.c.b16 %v2521, %v2520
        %v2557 = vpack.c.b16 %v2523, %v2522
        %v2558 = vpack.c.b16 %v2525, %v2524
        %v2559 = vpack.c.b16 %v2527, %v2526
        %v2560 = vpack.c.b16 %v2529, %v2528
        %v2561 = vpack.c.b16 %v2531, %v2530
        %v2562 = vpack.c.b16 %v2533, %v2532
        %v2563 = vpack.c.b16 %v2535, %v2534
        %v2564 = vpack.c.b16 %v2537, %v2536
        %v2565 = vpack.c.b16 %v2539, %v2538
        %v2566 = vpack.c.b16 %v2541, %v2540
        %v2567 = vpack.c.b16 %v2543, %v2542
        %2592 = vmatprep.subr.bf16.mxu0 0
        %2593 = vmatpush1.bf16.msra.mxu0 %v2551
        %2594 = vmatprep.subr.bf16.mxu0 0
        %2595 = vmatpush1.bf16.msra.mxu0 %v2550
        %2596 = vmatprep.subr.bf16.mxu0 0
        %2597 = vmatpush1.bf16.msra.mxu0 %v2549
        %2598 = vmatprep.subr.bf16.mxu0 0
        %2599 = vmatpush1.bf16.msra.mxu0 %v2548
        %2600 = vmatprep.subr.bf16.mxu0 0
        %2601 = vmatpush1.bf16.msra.mxu0 %v2547
        %2602 = vmatprep.subr.bf16.mxu0 0
        %2603 = vmatpush1.bf16.msra.mxu0 %v2546
        %2604 = vmatprep.subr.bf16.mxu0 0
        %2605 = vmatpush1.bf16.msra.mxu0 %v2545
        %2606 = vmatprep.subr.bf16.mxu0 0
        %2607 = vmatpush1.bf16.msra.mxu0 %v2544
        %2608 = vmatprep.subr.bf16.mxu0 0
        %2609 = vmatpush2.bf16.msra.mxu0 %v2559
        %2610 = vmatprep.subr.bf16.mxu0 0
        %2611 = vmatpush2.bf16.msra.mxu0 %v2558
        %2612 = vmatprep.subr.bf16.mxu0 0
        %2613 = vmatpush2.bf16.msra.mxu0 %v2557
        %2614 = vmatprep.subr.bf16.mxu0 0
        %2615 = vmatpush2.bf16.msra.mxu0 %v2556
        %2616 = vmatprep.subr.bf16.mxu0 0
        %2617 = vmatpush2.bf16.msra.mxu0 %v2555
        %2618 = vmatprep.subr.bf16.mxu0 0
        %2619 = vmatpush2.bf16.msra.mxu0 %v2554
        %2620 = vmatprep.subr.bf16.mxu0 0
        %2621 = vmatpush2.bf16.msra.mxu0 %v2553
        %2622 = vmatprep.subr.bf16.mxu0 0
        %2623 = vmatpush2.bf16.msra.mxu0 %v2552
        %2624 = vmatprep.mubr.bf16.mxu0 %v1415
        %2625 = vmatmul.mubr.bf16.gmra.mxu0 %v1399
        %v2626 = vpop.f32.mrf.mxu0
        %v2627 = vadd.f32 0.0, %v2626
        %v2628 = vpop.f32.mrf.mxu0
        %v2629 = vpop.f32.mrf.mxu0
        %v2630 = vadd.f32 0.0, %v2629
        %v2631 = vpop.f32.mrf.mxu0
        %2632 = vmatprep.mubr.bf16.mxu0 %v1416
        %2633 = vmatmul.mubr.bf16.gmra.mxu0 %v1400
        %v2634 = vpop.f32.mrf.mxu0
        %v2635 = vadd.f32 0.0, %v2634
        %v2636 = vpop.f32.mrf.mxu0
        %v2637 = vpop.f32.mrf.mxu0
        %v2638 = vadd.f32 0.0, %v2637
        %v2639 = vpop.f32.mrf.mxu0
        %2640 = vmatprep.mubr.bf16.mxu0 %v1417
        %2641 = vmatmul.mubr.bf16.gmra.mxu0 %v1401
        %v2642 = vpop.f32.mrf.mxu0
        %v2643 = vadd.f32 0.0, %v2642
        %v2644 = vpop.f32.mrf.mxu0
        %v2645 = vpop.f32.mrf.mxu0
        %v2646 = vadd.f32 0.0, %v2645
        %v2647 = vpop.f32.mrf.mxu0
        %2648 = vmatprep.mubr.bf16.mxu0 %v1418
        %2649 = vmatmul.mubr.bf16.gmra.mxu0 %v1402
        %v2650 = vpop.f32.mrf.mxu0
        %v2651 = vadd.f32 0.0, %v2650
        %v2652 = vpop.f32.mrf.mxu0
        %v2653 = vpop.f32.mrf.mxu0
        %v2654 = vadd.f32 0.0, %v2653
        %v2655 = vpop.f32.mrf.mxu0
        %2656 = vmatprep.mubr.bf16.mxu0 %v1419
        %2657 = vmatmul.mubr.bf16.gmra.mxu0 %v1403
        %v2658 = vpop.f32.mrf.mxu0
        %v2659 = vadd.f32 0.0, %v2658
        %v2660 = vpop.f32.mrf.mxu0
        %v2661 = vpop.f32.mrf.mxu0
        %v2662 = vadd.f32 0.0, %v2661
        %v2663 = vpop.f32.mrf.mxu0
        %2664 = vmatprep.mubr.bf16.mxu0 %v1420
        %2665 = vmatmul.mubr.bf16.gmra.mxu0 %v1404
        %v2666 = vpop.f32.mrf.mxu0
        %v2667 = vadd.f32 0.0, %v2666
        %v2668 = vpop.f32.mrf.mxu0
        %v2669 = vpop.f32.mrf.mxu0
        %v2670 = vadd.f32 0.0, %v2669
        %v2671 = vpop.f32.mrf.mxu0
        %2672 = vmatprep.mubr.bf16.mxu0 %v1421
        %2673 = vmatmul.mubr.bf16.gmra.mxu0 %v1405
        %v2674 = vpop.f32.mrf.mxu0
        %v2675 = vadd.f32 0.0, %v2674
        %v2676 = vpop.f32.mrf.mxu0
        %v2677 = vpop.f32.mrf.mxu0
        %v2678 = vadd.f32 0.0, %v2677
        %v2679 = vpop.f32.mrf.mxu0
        %2680 = vmatprep.mubr.bf16.mxu0 %v1422
        %2681 = vmatmul.mubr.bf16.gmra.mxu0 %v1406
        %v2682 = vpop.f32.mrf.mxu0
        %v2683 = vadd.f32 0.0, %v2682
        %v2684 = vpop.f32.mrf.mxu0
        %v2685 = vpop.f32.mrf.mxu0
        %v2686 = vadd.f32 0.0, %v2685
        %v2687 = vpop.f32.mrf.mxu0
        %2688 = vmatprep.mubr.bf16.mxu0 %v1423
        %2689 = vmatmul.mubr.bf16.gmra.mxu0 %v1407
        %v2690 = vpop.f32.mrf.mxu0
        %v2691 = vadd.f32 0.0, %v2690
        %v2692 = vpop.f32.mrf.mxu0
        %v2693 = vpop.f32.mrf.mxu0
        %v2694 = vadd.f32 0.0, %v2693
        %v2695 = vpop.f32.mrf.mxu0
        %2696 = vmatprep.mubr.bf16.mxu0 %v1424
        %2697 = vmatmul.mubr.bf16.gmra.mxu0 %v1408
        %v2698 = vpop.f32.mrf.mxu0
        %v2699 = vadd.f32 0.0, %v2698
        %v2700 = vpop.f32.mrf.mxu0
        %v2701 = vpop.f32.mrf.mxu0
        %v2702 = vadd.f32 0.0, %v2701
        %v2703 = vpop.f32.mrf.mxu0
        %2704 = vmatprep.mubr.bf16.mxu0 %v1425
        %2705 = vmatmul.mubr.bf16.gmra.mxu0 %v1409
        %v2706 = vpop.f32.mrf.mxu0
        %v2707 = vadd.f32 0.0, %v2706
        %v2708 = vpop.f32.mrf.mxu0
        %v2709 = vpop.f32.mrf.mxu0
        %v2710 = vadd.f32 0.0, %v2709
        %v2711 = vpop.f32.mrf.mxu0
        %2712 = vmatprep.mubr.bf16.mxu0 %v1426
        %2713 = vmatmul.mubr.bf16.gmra.mxu0 %v1410
        %v2714 = vpop.f32.mrf.mxu0
        %v2715 = vadd.f32 0.0, %v2714
        %v2716 = vpop.f32.mrf.mxu0
        %v2717 = vpop.f32.mrf.mxu0
        %v2718 = vadd.f32 0.0, %v2717
        %v2719 = vpop.f32.mrf.mxu0
        %2720 = vmatprep.mubr.bf16.mxu0 %v1427
        %2721 = vmatmul.mubr.bf16.gmra.mxu0 %v1411
        %v2722 = vpop.f32.mrf.mxu0
        %v2723 = vadd.f32 0.0, %v2722
        %v2724 = vpop.f32.mrf.mxu0
        %v2725 = vpop.f32.mrf.mxu0
        %v2726 = vadd.f32 0.0, %v2725
        %v2727 = vpop.f32.mrf.mxu0
        %2728 = vmatprep.mubr.bf16.mxu0 %v1428
        %2729 = vmatmul.mubr.bf16.gmra.mxu0 %v1412
        %v2730 = vpop.f32.mrf.mxu0
        %v2731 = vadd.f32 0.0, %v2730
        %v2732 = vpop.f32.mrf.mxu0
        %v2733 = vpop.f32.mrf.mxu0
        %v2734 = vadd.f32 0.0, %v2733
        %v2735 = vpop.f32.mrf.mxu0
        %2736 = vmatprep.mubr.bf16.mxu0 %v1429
        %2737 = vmatmul.mubr.bf16.gmra.mxu0 %v1413
        %v2738 = vpop.f32.mrf.mxu0
        %v2739 = vadd.f32 0.0, %v2738
        %v2740 = vpop.f32.mrf.mxu0
        %v2741 = vpop.f32.mrf.mxu0
        %v2742 = vadd.f32 0.0, %v2741
        %v2743 = vpop.f32.mrf.mxu0
        %2744 = vmatprep.mubr.bf16.mxu0 %v1428
        %2745 = vmatmul.mubr.bf16.gmra.mxu0 %v1412
        %v2746 = vpop.f32.mrf.mxu0
        %v2747 = vadd.f32 0.0, %v2746
        %v2748 = vpop.f32.mrf.mxu0
        %v2749 = vpop.f32.mrf.mxu0
        %v2750 = vadd.f32 0.0, %v2749
        %v2751 = vpop.f32.mrf.mxu0
        %2752 = vdwg.mxu0
        %2753 = vmatprep.subr.bf16.mxu0 0
        %2754 = vmatpush1.bf16.msra.mxu0 %v2567
        %2755 = vmatprep.subr.bf16.mxu0 0
        %2756 = vmatpush1.bf16.msra.mxu0 %v2566
        %2757 = vmatprep.subr.bf16.mxu0 0
        %2758 = vmatpush1.bf16.msra.mxu0 %v2565
        %2759 = vmatprep.subr.bf16.mxu0 0
        %2760 = vmatpush1.bf16.msra.mxu0 %v2564
        %2761 = vmatprep.subr.bf16.mxu0 0
        %2762 = vmatpush1.bf16.msra.mxu0 %v2563
        %2763 = vmatprep.subr.bf16.mxu0 0
        %2764 = vmatpush1.bf16.msra.mxu0 %v2562
        %2765 = vmatprep.subr.bf16.mxu0 0
        %2766 = vmatpush1.bf16.msra.mxu0 %v2561
        %2767 = vmatprep.subr.bf16.mxu0 0
        %2768 = vmatpush1.bf16.msra.mxu0 %v2560
        %2769 = vmatprep.subr.bf16.mxu0 0
        %2770 = vmatpush2.bf16.msra.mxu0 0
        %2771 = vmatprep.subr.bf16.mxu0 0
        %2772 = vmatpush2.bf16.msra.mxu0 0
        %2773 = vmatprep.subr.bf16.mxu0 0
        %2774 = vmatpush2.bf16.msra.mxu0 0
        %2775 = vmatprep.subr.bf16.mxu0 0
        %2776 = vmatpush2.bf16.msra.mxu0 0
        %2777 = vmatprep.subr.bf16.mxu0 0
        %2778 = vmatpush2.bf16.msra.mxu0 0
        %2779 = vmatprep.subr.bf16.mxu0 0
        %2780 = vmatpush2.bf16.msra.mxu0 0
        %2781 = vmatprep.subr.bf16.mxu0 0
        %2782 = vmatpush2.bf16.msra.mxu0 0
        %2783 = vmatprep.subr.bf16.mxu0 0
        %2784 = vmatpush2.bf16.msra.mxu0 0
        %2785 = vmatprep.mubr.bf16.mxu0 0
        %2786 = vmatmul.mubr.bf16.gmra.mxu0 %v1431
        %v2787 = vpop.f32.mrf.mxu0
        %v2788 = vadd.f32 %v2627, %v2787
        %v2789 = vpop.f32.mrf.mxu0
        %v2790 = vpop.f32.mrf.mxu0
        %v2791 = vadd.f32 %v2630, %v2790
        %v2792 = vpop.f32.mrf.mxu0
        %2793 = vmatprep.mubr.bf16.mxu0 0
        %2794 = vmatmul.mubr.bf16.gmra.mxu0 %v1432
        %v2795 = vpop.f32.mrf.mxu0
        %v2796 = vadd.f32 %v2635, %v2795
        %v2797 = vpop.f32.mrf.mxu0
        %v2798 = vpop.f32.mrf.mxu0
        %v2799 = vadd.f32 %v2638, %v2798
        %v2800 = vpop.f32.mrf.mxu0
        %2801 = vmatprep.mubr.bf16.mxu0 0
        %2802 = vmatmul.mubr.bf16.gmra.mxu0 %v1433
        %v2803 = vpop.f32.mrf.mxu0
        %v2804 = vadd.f32 %v2643, %v2803
        %v2805 = vpop.f32.mrf.mxu0
        %v2806 = vpop.f32.mrf.mxu0
        %v2807 = vadd.f32 %v2646, %v2806
        %v2808 = vpop.f32.mrf.mxu0
        %2809 = vmatprep.mubr.bf16.mxu0 0
        %2810 = vmatmul.mubr.bf16.gmra.mxu0 %v1434
        %v2811 = vpop.f32.mrf.mxu0
        %v2812 = vadd.f32 %v2651, %v2811
        %v2813 = vpop.f32.mrf.mxu0
        %v2814 = vpop.f32.mrf.mxu0
        %v2815 = vadd.f32 %v2654, %v2814
        %v2816 = vpop.f32.mrf.mxu0
        %2817 = vmatprep.mubr.bf16.mxu0 0
        %2818 = vmatmul.mubr.bf16.gmra.mxu0 %v1435
        %v2819 = vpop.f32.mrf.mxu0
        %v2820 = vadd.f32 %v2659, %v2819
        %v2821 = vpop.f32.mrf.mxu0
        %v2822 = vpop.f32.mrf.mxu0
        %v2823 = vadd.f32 %v2662, %v2822
        %v2824 = vpop.f32.mrf.mxu0
        %2825 = vmatprep.mubr.bf16.mxu0 0
        %2826 = vmatmul.mubr.bf16.gmra.mxu0 %v1436
        %v2827 = vpop.f32.mrf.mxu0
        %v2828 = vadd.f32 %v2667, %v2827
        %v2829 = vpop.f32.mrf.mxu0
        %v2830 = vpop.f32.mrf.mxu0
        %v2831 = vadd.f32 %v2670, %v2830
        %v2832 = vpop.f32.mrf.mxu0
        %2833 = vmatprep.mubr.bf16.mxu0 0
        %2834 = vmatmul.mubr.bf16.gmra.mxu0 %v1437
        %v2835 = vpop.f32.mrf.mxu0
        %v2836 = vadd.f32 %v2675, %v2835
        %v2837 = vpop.f32.mrf.mxu0
        %v2838 = vpop.f32.mrf.mxu0
        %v2839 = vadd.f32 %v2678, %v2838
        %v2840 = vpop.f32.mrf.mxu0
        %2841 = vmatprep.mubr.bf16.mxu0 0
        %2842 = vmatmul.mubr.bf16.gmra.mxu0 %v1438
        %v2843 = vpop.f32.mrf.mxu0
        %v2844 = vadd.f32 %v2683, %v2843
        %v2845 = vpop.f32.mrf.mxu0
        %v2846 = vpop.f32.mrf.mxu0
        %v2847 = vadd.f32 %v2686, %v2846
        %v2848 = vpop.f32.mrf.mxu0
        %2849 = vmatprep.mubr.bf16.mxu0 0
        %2850 = vmatmul.mubr.bf16.gmra.mxu0 %v1439
        %v2851 = vpop.f32.mrf.mxu0
        %v2852 = vadd.f32 %v2691, %v2851
        %v2853 = vpop.f32.mrf.mxu0
        %v2854 = vpop.f32.mrf.mxu0
        %v2855 = vadd.f32 %v2694, %v2854
        %v2856 = vpop.f32.mrf.mxu0
        %2857 = vmatprep.mubr.bf16.mxu0 0
        %2858 = vmatmul.mubr.bf16.gmra.mxu0 %v1440
        %v2859 = vpop.f32.mrf.mxu0
        %v2860 = vadd.f32 %v2699, %v2859
        %v2861 = vpop.f32.mrf.mxu0
        %v2862 = vpop.f32.mrf.mxu0
        %v2863 = vadd.f32 %v2702, %v2862
        %v2864 = vpop.f32.mrf.mxu0
        %2865 = vmatprep.mubr.bf16.mxu0 0
        %2866 = vmatmul.mubr.bf16.gmra.mxu0 %v1441
        %v2867 = vpop.f32.mrf.mxu0
        %v2868 = vadd.f32 %v2707, %v2867
        %v2869 = vpop.f32.mrf.mxu0
        %v2870 = vpop.f32.mrf.mxu0
        %v2871 = vadd.f32 %v2710, %v2870
        %v2872 = vpop.f32.mrf.mxu0
        %2873 = vmatprep.mubr.bf16.mxu0 0
        %2874 = vmatmul.mubr.bf16.gmra.mxu0 %v1442
        %v2875 = vpop.f32.mrf.mxu0
        %v2876 = vadd.f32 %v2715, %v2875
        %v2877 = vpop.f32.mrf.mxu0
        %v2878 = vpop.f32.mrf.mxu0
        %v2879 = vadd.f32 %v2718, %v2878
        %v2880 = vpop.f32.mrf.mxu0
        %2881 = vmatprep.mubr.bf16.mxu0 0
        %2882 = vmatmul.mubr.bf16.gmra.mxu0 %v1443
        %v2883 = vpop.f32.mrf.mxu0
        %v2884 = vadd.f32 %v2723, %v2883
        %v2885 = vpop.f32.mrf.mxu0
        %v2886 = vpop.f32.mrf.mxu0
        %v2887 = vadd.f32 %v2726, %v2886
        %v2888 = vpop.f32.mrf.mxu0
        %2889 = vmatprep.mubr.bf16.mxu0 0
        %2890 = vmatmul.mubr.bf16.gmra.mxu0 %v1444
        %v2891 = vpop.f32.mrf.mxu0
        %v2892 = vadd.f32 %v2731, %v2891
        %v2893 = vpop.f32.mrf.mxu0
        %v2894 = vpop.f32.mrf.mxu0
        %v2895 = vadd.f32 %v2734, %v2894
        %v2896 = vpop.f32.mrf.mxu0
        %2897 = vmatprep.mubr.bf16.mxu0 0
        %2898 = vmatmul.mubr.bf16.gmra.mxu0 %v1445
        %v2899 = vpop.f32.mrf.mxu0
        %v2900 = vadd.f32 %v2739, %v2899
        %v2901 = vpop.f32.mrf.mxu0
        %v2902 = vpop.f32.mrf.mxu0
        %v2903 = vadd.f32 %v2742, %v2902
        %v2904 = vpop.f32.mrf.mxu0
        %2905 = vmatprep.mubr.bf16.mxu0 0
        %2906 = vmatmul.mubr.bf16.gmra.mxu0 %v1444
        %v2907 = vpop.f32.mrf.mxu0
        %v2908 = vadd.f32 %v2747, %v2907
        %v2909 = vpop.f32.mrf.mxu0
        %v2910 = vpop.f32.mrf.mxu0
        %v2911 = vadd.f32 %v2750, %v2910
        %v2912 = vpop.f32.mrf.mxu0
        %2913 = vdwg.mxu0
        %v2914 = vadd.f32 %v2416, %v2788
        %v2915 = vadd.f32 %v2417, %v2791
        %v2916 = vadd.f32 %v2418, %v2796
        %v2917 = vadd.f32 %v2419, %v2799
        %v2918 = vadd.f32 %v2420, %v2804
        %v2919 = vadd.f32 %v2421, %v2807
        %v2920 = vadd.f32 %v2422, %v2812
        %v2921 = vadd.f32 %v2423, %v2815
        %v2922 = vadd.f32 %v2424, %v2820
        %v2923 = vadd.f32 %v2425, %v2823
        %v2924 = vadd.f32 %v2426, %v2828
        %v2925 = vadd.f32 %v2427, %v2831
        %v2926 = vadd.f32 %v2428, %v2836
        %v2927 = vadd.f32 %v2429, %v2839
        %v2928 = vadd.f32 %v2430, %v2844
        %v2929 = vadd.f32 %v2431, %v2847
        %v2930 = vadd.f32 %v2432, %v2852
        %v2931 = vadd.f32 %v2433, %v2855
        %v2932 = vadd.f32 %v2434, %v2860
        %v2933 = vadd.f32 %v2435, %v2863
        %v2934 = vadd.f32 %v2436, %v2868
        %v2935 = vadd.f32 %v2437, %v2871
        %v2936 = vadd.f32 %v2438, %v2876
        %v2937 = vadd.f32 %v2439, %v2879
        %v2938 = vadd.f32 %v2440, %v2884
        %v2939 = vadd.f32 %v2441, %v2887
        %v2940 = vadd.f32 %v2442, %v2892
        %v2941 = vadd.f32 %v2443, %v2895
        %v2942 = vadd.f32 %v2444, %v2900
        %v2943 = vadd.f32 %v2445, %v2903
        %v2944 = vadd.f32 %v2446, %v2908
        %v2945 = vadd.f32 %v2447, %v2911
        %v2946 = vadd.f32 %v2914, %v2915
        %v2947 = vadd.f32 %v2946, %v2916
        %v2948 = vadd.f32 %v2947, %v2917
        %v2949 = vadd.f32 %v2948, %v2918
        %v2950 = vadd.f32 %v2949, %v2919
        %v2951 = vadd.f32 %v2950, %v2920
        %v2952 = vadd.f32 %v2951, %v2921
        %v2953 = vadd.f32 %v2952, %v2922
        %v2954 = vadd.f32 %v2953, %v2923
        %v2955 = vadd.f32 %v2954, %v2924
        %v2956 = vadd.f32 %v2955, %v2925
        %v2957 = vadd.f32 %v2956, %v2926
        %v2958 = vadd.f32 %v2957, %v2927
        %v2959 = vadd.f32 %v2958, %v2928
        %v2960 = vadd.f32 %v2959, %v2929
        %v2961 = vadd.f32 %v2960, %v2930
        %v2962 = vadd.f32 %v2961, %v2931
        %v2963 = vadd.f32 %v2962, %v2932
        %v2964 = vadd.f32 %v2963, %v2933
        %v2965 = vadd.f32 %v2964, %v2934
        %v2966 = vadd.f32 %v2965, %v2935
        %v2967 = vadd.f32 %v2966, %v2936
        %v2968 = vadd.f32 %v2967, %v2937
        %v2969 = vadd.f32 %v2968, %v2938
        %v2970 = vadd.f32 %v2969, %v2939
        %v2971 = vadd.f32 %v2970, %v2940
        %v2972 = vadd.f32 %v2971, %v2941
        %v2973 = vadd.f32 %v2972, %v2942
        %v2974 = vadd.f32 %v2973, %v2943
        %v2975 = vadd.f32 %v2974, %v2944
        %v2976 = vadd.f32 %v2975, %v2945
        %v2977 = vrot.slane %v2976, 4
        %v2978 = vadd.f32 %v2976, %v2977
        %v2979 = vrot.slane %v2978, 2
        %v2980 = vadd.f32 %v2978, %v2979
        %v2981 = vrot.slane %v2980, 1
        %v2982 = vadd.f32 %v2980, %v2981
        %v2983 = vmul.f32 %v2914, %v2914
        %v2984 = vmul.f32 %v2915, %v2915
        %v2985 = vmul.f32 %v2916, %v2916
        %v2986 = vmul.f32 %v2917, %v2917
        %v2987 = vmul.f32 %v2918, %v2918
        %v2988 = vmul.f32 %v2919, %v2919
        %v2989 = vmul.f32 %v2920, %v2920
        %v2990 = vmul.f32 %v2921, %v2921
        %v2991 = vmul.f32 %v2922, %v2922
        %v2992 = vmul.f32 %v2923, %v2923
        %v2993 = vmul.f32 %v2924, %v2924
        %v2994 = vmul.f32 %v2925, %v2925
        %v2995 = vmul.f32 %v2926, %v2926
        %v2996 = vmul.f32 %v2927, %v2927
        %v2997 = vmul.f32 %v2928, %v2928
        %v2998 = vmul.f32 %v2929, %v2929
        %v2999 = vmul.f32 %v2930, %v2930
        %v3000 = vmul.f32 %v2931, %v2931
        %v3001 = vmul.f32 %v2932, %v2932
        %v3002 = vmul.f32 %v2933, %v2933
        %v3003 = vmul.f32 %v2934, %v2934
        %v3004 = vmul.f32 %v2935, %v2935
        %v3005 = vmul.f32 %v2936, %v2936
        %v3006 = vmul.f32 %v2937, %v2937
        %v3007 = vmul.f32 %v2938, %v2938
        %v3008 = vmul.f32 %v2939, %v2939
        %v3009 = vmul.f32 %v2940, %v2940
        %v3010 = vmul.f32 %v2941, %v2941
        %v3011 = vmul.f32 %v2942, %v2942
        %v3012 = vmul.f32 %v2943, %v2943
        %v3013 = vmul.f32 %v2944, %v2944
        %v3014 = vmul.f32 %v2945, %v2945
        %v3015 = vadd.f32 %v2983, %v2984
        %v3016 = vadd.f32 %v3015, %v2985
        %v3017 = vadd.f32 %v3016, %v2986
        %v3018 = vadd.f32 %v3017, %v2987
        %v3019 = vadd.f32 %v3018, %v2988
        %v3020 = vadd.f32 %v3019, %v2989
        %v3021 = vadd.f32 %v3020, %v2990
        %v3022 = vadd.f32 %v3021, %v2991
        %v3023 = vadd.f32 %v3022, %v2992
        %v3024 = vadd.f32 %v3023, %v2993
        %v3025 = vadd.f32 %v3024, %v2994
        %v3026 = vadd.f32 %v3025, %v2995
        %v3027 = vadd.f32 %v3026, %v2996
        %v3028 = vadd.f32 %v3027, %v2997
        %v3029 = vadd.f32 %v3028, %v2998
        %v3030 = vadd.f32 %v3029, %v2999
        %v3031 = vadd.f32 %v3030, %v3000
        %v3032 = vadd.f32 %v3031, %v3001
        %v3033 = vadd.f32 %v3032, %v3002
        %v3034 = vadd.f32 %v3033, %v3003
        %v3035 = vadd.f32 %v3034, %v3004
        %v3036 = vadd.f32 %v3035, %v3005
        %v3037 = vadd.f32 %v3036, %v3006
        %v3038 = vadd.f32 %v3037, %v3007
        %v3039 = vadd.f32 %v3038, %v3008
        %v3040 = vadd.f32 %v3039, %v3009
        %v3041 = vadd.f32 %v3040, %v3010
        %v3042 = vadd.f32 %v3041, %v3011
        %v3043 = vadd.f32 %v3042, %v3012
        %v3044 = vadd.f32 %v3043, %v3013
        %v3045 = vadd.f32 %v3044, %v3014
        %v3046 = vrot.slane %v3045, 4
        %v3047 = vadd.f32 %v3045, %v3046
        %v3048 = vrot.slane %v3047, 2
        %v3049 = vadd.f32 %v3047, %v3048
        %v3050 = vrot.slane %v3049, 1
        %v3051 = vadd.f32 %v3049, %v3050
        %v3052 = vmul.f32 %v2982, 0.00390625
        %v3053 = vmul.f32 %v3051, 0.00390625
        %v3054 = vmul.f32 %v3052, %v3052
        %v3055 = vsub.f32 %v3053, %v3054
        %v3056 = vmax.f32 %v3055, 0.0
        %v3057 = vsub.f32 %v2914, %v3052
        %v3058 = vsub.f32 %v2915, %v3052
        %v3059 = vsub.f32 %v2916, %v3052
        %v3060 = vsub.f32 %v2917, %v3052
        %v3061 = vsub.f32 %v2918, %v3052
        %v3062 = vsub.f32 %v2919, %v3052
        %v3063 = vsub.f32 %v2920, %v3052
        %v3064 = vsub.f32 %v2921, %v3052
        %v3065 = vsub.f32 %v2922, %v3052
        %v3066 = vsub.f32 %v2923, %v3052
        %v3067 = vsub.f32 %v2924, %v3052
        %v3068 = vsub.f32 %v2925, %v3052
        %v3069 = vsub.f32 %v2926, %v3052
        %v3070 = vsub.f32 %v2927, %v3052
        %v3071 = vsub.f32 %v2928, %v3052
        %v3072 = vsub.f32 %v2929, %v3052
        %v3073 = vsub.f32 %v2930, %v3052
        %v3074 = vsub.f32 %v2931, %v3052
        %v3075 = vsub.f32 %v2932, %v3052
        %v3076 = vsub.f32 %v2933, %v3052
        %v3077 = vsub.f32 %v2934, %v3052
        %v3078 = vsub.f32 %v2935, %v3052
        %v3079 = vsub.f32 %v2936, %v3052
        %v3080 = vsub.f32 %v2937, %v3052
        %v3081 = vsub.f32 %v2938, %v3052
        %v3082 = vsub.f32 %v2939, %v3052
        %v3083 = vsub.f32 %v2940, %v3052
        %v3084 = vsub.f32 %v2941, %v3052
        %v3085 = vsub.f32 %v2942, %v3052
        %v3086 = vsub.f32 %v2943, %v3052
        %v3087 = vsub.f32 %v2944, %v3052
        %v3088 = vsub.f32 %v2945, %v3052
        %v3089 = vadd.f32 %v3056, 1e-05
        %v3090 = vrsqrt.pop %v3089
        %v3091 = vmul.f32 %v3057, %v3090
        %v3092 = vmul.f32 %v3058, %v3090
        %v3093 = vmul.f32 %v3059, %v3090
        %v3094 = vmul.f32 %v3060, %v3090
        %v3095 = vmul.f32 %v3061, %v3090
        %v3096 = vmul.f32 %v3062, %v3090
        %v3097 = vmul.f32 %v3063, %v3090
        %v3098 = vmul.f32 %v3064, %v3090
        %v3099 = vmul.f32 %v3065, %v3090
        %v3100 = vmul.f32 %v3066, %v3090
        %v3101 = vmul.f32 %v3067, %v3090
        %v3102 = vmul.f32 %v3068, %v3090
        %v3103 = vmul.f32 %v3069, %v3090
        %v3104 = vmul.f32 %v3070, %v3090
        %v3105 = vmul.f32 %v3071, %v3090
        %v3106 = vmul.f32 %v3072, %v3090
        %v3107 = vmul.f32 %v3073, %v3090
        %v3108 = vmul.f32 %v3074, %v3090
        %v3109 = vmul.f32 %v3075, %v3090
        %v3110 = vmul.f32 %v3076, %v3090
        %v3111 = vmul.f32 %v3077, %v3090
        %v3112 = vmul.f32 %v3078, %v3090
        %v3113 = vmul.f32 %v3079, %v3090
        %v3114 = vmul.f32 %v3080, %v3090
        %v3115 = vmul.f32 %v3081, %v3090
        %v3116 = vmul.f32 %v3082, %v3090
        %v3117 = vmul.f32 %v3083, %v3090
        %v3118 = vmul.f32 %v3084, %v3090
        %v3119 = vmul.f32 %v3085, %v3090
        %v3120 = vmul.f32 %v3086, %v3090
        %v3121 = vmul.f32 %v3087, %v3090
        %v3122 = vmul.f32 %v3088, %v3090
        %v3123 = vmax.f32 %v3091, 0.0
        %v3124 = vmax.f32 %v3092, 0.0
        %v3125 = vmax.f32 %v3093, 0.0
        %v3126 = vmax.f32 %v3094, 0.0
        %v3127 = vmax.f32 %v3095, 0.0
        %v3128 = vmax.f32 %v3096, 0.0
        %v3129 = vmax.f32 %v3097, 0.0
        %v3130 = vmax.f32 %v3098, 0.0
        %v3131 = vmax.f32 %v3099, 0.0
        %v3132 = vmax.f32 %v3100, 0.0
        %v3133 = vmax.f32 %v3101, 0.0
        %v3134 = vmax.f32 %v3102, 0.0
        %v3135 = vmax.f32 %v3103, 0.0
        %v3136 = vmax.f32 %v3104, 0.0
        %v3137 = vmax.f32 %v3105, 0.0
        %v3138 = vmax.f32 %v3106, 0.0
        %v3139 = vmax.f32 %v3107, 0.0
        %v3140 = vmax.f32 %v3108, 0.0
        %v3141 = vmax.f32 %v3109, 0.0
        %v3142 = vmax.f32 %v3110, 0.0
        %v3143 = vmax.f32 %v3111, 0.0
        %v3144 = vmax.f32 %v3112, 0.0
        %v3145 = vmax.f32 %v3113, 0.0
        %v3146 = vmax.f32 %v3114, 0.0
        %v3147 = vmax.f32 %v3115, 0.0
        %v3148 = vmax.f32 %v3116, 0.0
        %v3149 = vmax.f32 %v3117, 0.0
        %v3150 = vmax.f32 %v3118, 0.0
        %v3151 = vmax.f32 %v3119, 0.0
        %v3152 = vmax.f32 %v3120, 0.0
        %v3153 = vmax.f32 %v3121, 0.0
        %v3154 = vmax.f32 %v3122, 0.0
        %v3155 = vrot.slane %v3123, 7
        %v3156 = vrot.slane %v3124, 7
        %v3157 = vrot.slane %v3125, 7
        %v3158 = vrot.slane %v3126, 7
        %v3159 = vrot.slane %v3127, 7
        %v3160 = vrot.slane %v3128, 7
        %v3161 = vrot.slane %v3129, 7
        %v3162 = vrot.slane %v3130, 7
        %v3163 = vrot.slane %v3131, 7
        %v3164 = vrot.slane %v3132, 7
        %v3165 = vrot.slane %v3133, 7
        %v3166 = vrot.slane %v3134, 7
        %v3167 = vrot.slane %v3135, 7
        %v3168 = vrot.slane %v3136, 7
        %v3169 = vrot.slane %v3137, 7
        %v3170 = vrot.slane %v3138, 7
        %v3171 = vrot.slane %v3139, 7
        %v3172 = vrot.slane %v3140, 7
        %v3173 = vrot.slane %v3141, 7
        %v3174 = vrot.slane %v3142, 7
        %v3175 = vrot.slane %v3143, 7
        %v3176 = vrot.slane %v3144, 7
        %v3177 = vrot.slane %v3145, 7
        %v3178 = vrot.slane %v3146, 7
        %v3179 = vrot.slane %v3147, 7
        %v3180 = vrot.slane %v3148, 7
        %v3181 = vrot.slane %v3149, 7
        %v3182 = vrot.slane %v3150, 7
        %v3183 = vrot.slane %v3151, 7
        %v3184 = vrot.slane %v3152, 7
        %v3185 = vrot.slane %v3153, 7
        %v3186 = vrot.slane %v3154, 7
        %v3187 = vsel %vm1108, %v3185, %v3186
        %v3188 = vsel %vm1108, %v3184, %v3185
        %v3189 = vsel %vm1108, %v3183, %v3184
        %v3190 = vsel %vm1108, %v3182, %v3183
        %v3191 = vsel %vm1108, %v3181, %v3182
        %v3192 = vsel %vm1108, %v3180, %v3181
        %v3193 = vsel %vm1108, %v3179, %v3180
        %v3194 = vsel %vm1108, %v3178, %v3179
        %v3195 = vsel %vm1108, %v3177, %v3178
        %v3196 = vsel %vm1108, %v3176, %v3177
        %v3197 = vsel %vm1108, %v3175, %v3176
        %v3198 = vsel %vm1108, %v3174, %v3175
        %v3199 = vsel %vm1108, %v3173, %v3174
        %v3200 = vsel %vm1108, %v3172, %v3173
        %v3201 = vsel %vm1108, %v3171, %v3172
        %v3202 = vsel %vm1108, %v3170, %v3171
        %v3203 = vsel %vm1108, %v3169, %v3170
        %v3204 = vsel %vm1108, %v3168, %v3169
        %v3205 = vsel %vm1108, %v3167, %v3168
        %v3206 = vsel %vm1108, %v3166, %v3167
        %v3207 = vsel %vm1108, %v3165, %v3166
        %v3208 = vsel %vm1108, %v3164, %v3165
        %v3209 = vsel %vm1108, %v3163, %v3164
        %v3210 = vsel %vm1108, %v3162, %v3163
        %v3211 = vsel %vm1108, %v3161, %v3162
        %v3212 = vsel %vm1108, %v3160, %v3161
        %v3213 = vsel %vm1108, %v3159, %v3160
        %v3214 = vsel %vm1108, %v3158, %v3159
        %v3215 = vsel %vm1108, %v3157, %v3158
        %v3216 = vsel %vm1108, %v3156, %v3157
        %v3217 = vsel %vm1108, %v3155, %v3156
        %v3218 = vsel %vm1108, %v3186, %v3155
        %v3219 = vrot.slane %v3123, 1
        %v3220 = vrot.slane %v3124, 1
        %v3221 = vrot.slane %v3125, 1
        %v3222 = vrot.slane %v3126, 1
        %v3223 = vrot.slane %v3127, 1
        %v3224 = vrot.slane %v3128, 1
        %v3225 = vrot.slane %v3129, 1
        %v3226 = vrot.slane %v3130, 1
        %v3227 = vrot.slane %v3131, 1
        %v3228 = vrot.slane %v3132, 1
        %v3229 = vrot.slane %v3133, 1
        %v3230 = vrot.slane %v3134, 1
        %v3231 = vrot.slane %v3135, 1
        %v3232 = vrot.slane %v3136, 1
        %v3233 = vrot.slane %v3137, 1
        %v3234 = vrot.slane %v3138, 1
        %v3235 = vrot.slane %v3139, 1
        %v3236 = vrot.slane %v3140, 1
        %v3237 = vrot.slane %v3141, 1
        %v3238 = vrot.slane %v3142, 1
        %v3239 = vrot.slane %v3143, 1
        %v3240 = vrot.slane %v3144, 1
        %v3241 = vrot.slane %v3145, 1
        %v3242 = vrot.slane %v3146, 1
        %v3243 = vrot.slane %v3147, 1
        %v3244 = vrot.slane %v3148, 1
        %v3245 = vrot.slane %v3149, 1
        %v3246 = vrot.slane %v3150, 1
        %v3247 = vrot.slane %v3151, 1
        %v3248 = vrot.slane %v3152, 1
        %v3249 = vrot.slane %v3153, 1
        %v3250 = vrot.slane %v3154, 1
        %v3251 = vsel %vm1173, %v3249, %v3250
        %v3252 = vsel %vm1173, %v3248, %v3249
        %v3253 = vsel %vm1173, %v3247, %v3248
        %v3254 = vsel %vm1173, %v3246, %v3247
        %v3255 = vsel %vm1173, %v3245, %v3246
        %v3256 = vsel %vm1173, %v3244, %v3245
        %v3257 = vsel %vm1173, %v3243, %v3244
        %v3258 = vsel %vm1173, %v3242, %v3243
        %v3259 = vsel %vm1173, %v3241, %v3242
        %v3260 = vsel %vm1173, %v3240, %v3241
        %v3261 = vsel %vm1173, %v3239, %v3240
        %v3262 = vsel %vm1173, %v3238, %v3239
        %v3263 = vsel %vm1173, %v3237, %v3238
        %v3264 = vsel %vm1173, %v3236, %v3237
        %v3265 = vsel %vm1173, %v3235, %v3236
        %v3266 = vsel %vm1173, %v3234, %v3235
        %v3267 = vsel %vm1173, %v3233, %v3234
        %v3268 = vsel %vm1173, %v3232, %v3233
        %v3269 = vsel %vm1173, %v3231, %v3232
        %v3270 = vsel %vm1173, %v3230, %v3231
        %v3271 = vsel %vm1173, %v3229, %v3230
        %v3272 = vsel %vm1173, %v3228, %v3229
        %v3273 = vsel %vm1173, %v3227, %v3228
        %v3274 = vsel %vm1173, %v3226, %v3227
        %v3275 = vsel %vm1173, %v3225, %v3226
        %v3276 = vsel %vm1173, %v3224, %v3225
        %v3277 = vsel %vm1173, %v3223, %v3224
        %v3278 = vsel %vm1173, %v3222, %v3223
        %v3279 = vsel %vm1173, %v3221, %v3222
        %v3280 = vsel %vm1173, %v3220, %v3221
        %v3281 = vsel %vm1173, %v3219, %v3220
        %v3282 = vsel %vm1173, %v3250, %v3219
        %v3283 = vsel %vm1238, %v3281, %v3218
        %v3284 = vsel %vm1239, %v3280, %v3217
        %v3285 = vsel %vm1240, %v3279, %v3216
        %v3286 = vsel %vm1241, %v3278, %v3215
        %v3287 = vsel %vm1242, %v3277, %v3214
        %v3288 = vsel %vm1243, %v3276, %v3213
        %v3289 = vsel %vm1244, %v3275, %v3212
        %v3290 = vsel %vm1245, %v3274, %v3211
        %v3291 = vsel %vm1246, %v3273, %v3210
        %v3292 = vsel %vm1247, %v3272, %v3209
        %v3293 = vsel %vm1248, %v3271, %v3208
        %v3294 = vsel %vm1249, %v3270, %v3207
        %v3295 = vsel %vm1250, %v3269, %v3206
        %v3296 = vsel %vm1251, %v3268, %v3205
        %v3297 = vsel %vm1252, %v3267, %v3204
        %v3298 = vsel %vm1253, %v3266, %v3203
        %v3299 = vsel %vm1254, %v3265, %v3202
        %v3300 = vsel %vm1255, %v3264, %v3201
        %v3301 = vsel %vm1256, %v3263, %v3200
        %v3302 = vsel %vm1257, %v3262, %v3199
        %v3303 = vsel %vm1258, %v3261, %v3198
        %v3304 = vsel %vm1259, %v3260, %v3197
        %v3305 = vsel %vm1260, %v3259, %v3196
        %v3306 = vsel %vm1261, %v3258, %v3195
        %v3307 = vsel %vm1262, %v3257, %v3194
        %v3308 = vsel %vm1263, %v3256, %v3193
        %v3309 = vsel %vm1264, %v3255, %v3192
        %v3310 = vsel %vm1265, %v3254, %v3191
        %v3311 = vsel %vm1266, %v3253, %v3190
        %v3312 = vsel %vm1267, %v3252, %v3189
        %v3313 = vsel %vm1268, %v3251, %v3188
        %v3314 = vsel %vm1269, %v3282, %v3187
        %v3315 = vsel %vm1334, %v3218, %v3281
        %v3316 = vsel %vm1335, %v3217, %v3280
        %v3317 = vsel %vm1336, %v3216, %v3279
        %v3318 = vsel %vm1337, %v3215, %v3278
        %v3319 = vsel %vm1338, %v3214, %v3277
        %v3320 = vsel %vm1339, %v3213, %v3276
        %v3321 = vsel %vm1340, %v3212, %v3275
        %v3322 = vsel %vm1341, %v3211, %v3274
        %v3323 = vsel %vm1342, %v3210, %v3273
        %v3324 = vsel %vm1343, %v3209, %v3272
        %v3325 = vsel %vm1344, %v3208, %v3271
        %v3326 = vsel %vm1345, %v3207, %v3270
        %v3327 = vsel %vm1346, %v3206, %v3269
        %v3328 = vsel %vm1347, %v3205, %v3268
        %v3329 = vsel %vm1348, %v3204, %v3267
        %v3330 = vsel %vm1349, %v3203, %v3266
        %v3331 = vsel %vm1350, %v3202, %v3265
        %v3332 = vsel %vm1351, %v3201, %v3264
        %v3333 = vsel %vm1352, %v3200, %v3263
        %v3334 = vsel %vm1353, %v3199, %v3262
        %v3335 = vsel %vm1354, %v3198, %v3261
        %v3336 = vsel %vm1355, %v3197, %v3260
        %v3337 = vsel %vm1356, %v3196, %v3259
        %v3338 = vsel %vm1357, %v3195, %v3258
        %v3339 = vsel %vm1358, %v3194, %v3257
        %v3340 = vsel %vm1359, %v3193, %v3256
        %v3341 = vsel %vm1360, %v3192, %v3255
        %v3342 = vsel %vm1361, %v3191, %v3254
        %v3343 = vsel %vm1362, %v3190, %v3253
        %v3344 = vsel %vm1363, %v3189, %v3252
        %v3345 = vsel %vm1364, %v3188, %v3251
        %v3346 = vsel %vm1365, %v3187, %v3282
        %v3347 = vpack.c.bf16 %v3284, %v3283
        %v3348 = vpack.c.bf16 %v3286, %v3285
        %v3349 = vpack.c.bf16 %v3288, %v3287
        %v3350 = vpack.c.bf16 %v3290, %v3289
        %v3351 = vpack.c.bf16 %v3292, %v3291
        %v3352 = vpack.c.bf16 %v3294, %v3293
        %v3353 = vpack.c.bf16 %v3296, %v3295
        %v3354 = vpack.c.bf16 %v3298, %v3297
        %v3355 = vpack.c.bf16 %v3300, %v3299
        %v3356 = vpack.c.bf16 %v3302, %v3301
        %v3357 = vpack.c.bf16 %v3304, %v3303
        %v3358 = vpack.c.bf16 %v3306, %v3305
        %v3359 = vpack.c.bf16 %v3308, %v3307
        %v3360 = vpack.c.bf16 %v3310, %v3309
        %v3361 = vpack.c.bf16 %v3312, %v3311
        %v3362 = vpack.c.bf16 %v3314, %v3313
        %v3363 = vpack.c.bf16 %v3124, %v3123
        %v3364 = vpack.c.bf16 %v3126, %v3125
        %v3365 = vpack.c.bf16 %v3128, %v3127
        %v3366 = vpack.c.bf16 %v3130, %v3129
        %v3367 = vpack.c.bf16 %v3132, %v3131
        %v3368 = vpack.c.bf16 %v3134, %v3133
        %v3369 = vpack.c.bf16 %v3136, %v3135
        %v3370 = vpack.c.bf16 %v3138, %v3137
        %v3371 = vpack.c.bf16 %v3140, %v3139
        %v3372 = vpack.c.bf16 %v3142, %v3141
        %v3373 = vpack.c.bf16 %v3144, %v3143
        %v3374 = vpack.c.bf16 %v3146, %v3145
        %v3375 = vpack.c.bf16 %v3148, %v3147
        %v3376 = vpack.c.bf16 %v3150, %v3149
        %v3377 = vpack.c.bf16 %v3152, %v3151
        %v3378 = vpack.c.bf16 %v3154, %v3153
        %v3379 = vpack.c.bf16 %v3316, %v3315
        %v3380 = vpack.c.bf16 %v3318, %v3317
        %v3381 = vpack.c.bf16 %v3320, %v3319
        %v3382 = vpack.c.bf16 %v3322, %v3321
        %v3383 = vpack.c.bf16 %v3324, %v3323
        %v3384 = vpack.c.bf16 %v3326, %v3325
        %v3385 = vpack.c.bf16 %v3328, %v3327
        %v3386 = vpack.c.bf16 %v3330, %v3329
        %v3387 = vpack.c.bf16 %v3332, %v3331
        %v3388 = vpack.c.bf16 %v3334, %v3333
        %v3389 = vpack.c.bf16 %v3336, %v3335
        %v3390 = vpack.c.bf16 %v3338, %v3337
        %v3391 = vpack.c.bf16 %v3340, %v3339
        %v3392 = vpack.c.bf16 %v3342, %v3341
        %v3393 = vpack.c.bf16 %v3344, %v3343
        %v3394 = vpack.c.bf16 %v3346, %v3345
        %v3443 = vunpack.c.l.b16 %v417
        %v3444 = vunpack.c.l.b16 %v418
        %v3445 = vunpack.c.l.b16 %v419
        %v3446 = vunpack.c.l.b16 %v420
        %v3447 = vunpack.c.l.b16 %v421
        %v3448 = vunpack.c.l.b16 %v422
        %v3449 = vunpack.c.l.b16 %v423
        %v3450 = vunpack.c.l.b16 %v424
        %v3451 = vunpack.c.l.b16 %v425
        %v3452 = vunpack.c.l.b16 %v426
        %v3453 = vunpack.c.l.b16 %v427
        %v3454 = vunpack.c.l.b16 %v428
        %v3455 = vunpack.c.l.b16 %v429
        %v3456 = vunpack.c.l.b16 %v430
        %v3457 = vunpack.c.l.b16 %v431
        %v3458 = vunpack.c.l.b16 %v432
        %v3459 = vunpack.c.l.b16 %v433
        %v3460 = vunpack.c.l.b16 %v434
        %v3461 = vunpack.c.l.b16 %v435
        %v3462 = vunpack.c.l.b16 %v436
        %v3463 = vunpack.c.l.b16 %v437
        %v3464 = vunpack.c.l.b16 %v438
        %v3465 = vunpack.c.l.b16 %v439
        %v3466 = vunpack.c.l.b16 %v440
        %v3467 = vunpack.c.l.b16 %v441
        %v3468 = vunpack.c.l.b16 %v442
        %v3469 = vunpack.c.l.b16 %v443
        %v3470 = vunpack.c.l.b16 %v444
        %v3471 = vunpack.c.l.b16 %v445
        %v3472 = vunpack.c.l.b16 %v446
        %v3473 = vunpack.c.l.b16 %v447
        %v3474 = vunpack.c.l.b16 %v448
        %v3475 = vunpack.c.l.b16 %v449
        %v3476 = vunpack.c.l.b16 %v450
        %v3477 = vunpack.c.l.b16 %v451
        %v3478 = vunpack.c.l.b16 %v452
        %v3479 = vunpack.c.l.b16 %v453
        %v3480 = vunpack.c.l.b16 %v454
        %v3481 = vunpack.c.l.b16 %v455
        %v3482 = vunpack.c.l.b16 %v456
        %v3483 = vunpack.c.l.b16 %v457
        %v3484 = vunpack.c.l.b16 %v458
        %v3485 = vunpack.c.l.b16 %v459
        %v3486 = vunpack.c.l.b16 %v460
        %v3487 = vunpack.c.l.b16 %v461
        %v3488 = vunpack.c.l.b16 %v462
        %v3489 = vunpack.c.l.b16 %v463
        %v3490 = vunpack.c.l.b16 %v464
        %v3491 = vpack.c.b16 %v3444, %v3443
        %v3492 = vpack.c.b16 %v3446, %v3445
        %v3493 = vpack.c.b16 %v3448, %v3447
        %v3494 = vpack.c.b16 %v3450, %v3449
        %v3495 = vpack.c.b16 %v3452, %v3451
        %v3496 = vpack.c.b16 %v3454, %v3453
        %v3497 = vpack.c.b16 %v3456, %v3455
        %v3498 = vpack.c.b16 %v3458, %v3457
        %v3499 = vpack.c.b16 %v3460, %v3459
        %v3500 = vpack.c.b16 %v3462, %v3461
        %v3501 = vpack.c.b16 %v3464, %v3463
        %v3502 = vpack.c.b16 %v3466, %v3465
        %v3503 = vpack.c.b16 %v3468, %v3467
        %v3504 = vpack.c.b16 %v3470, %v3469
        %v3505 = vpack.c.b16 %v3472, %v3471
        %v3506 = vpack.c.b16 %v3474, %v3473
        %v3507 = vpack.c.b16 %v3476, %v3475
        %v3508 = vpack.c.b16 %v3478, %v3477
        %v3509 = vpack.c.b16 %v3480, %v3479
        %v3510 = vpack.c.b16 %v3482, %v3481
        %v3511 = vpack.c.b16 %v3484, %v3483
        %v3512 = vpack.c.b16 %v3486, %v3485
        %v3513 = vpack.c.b16 %v3488, %v3487
        %v3514 = vpack.c.b16 %v3490, %v3489
        %3539 = vmatprep.subr.bf16.mxu0 0
        %3540 = vmatpush1.bf16.msra.mxu0 %v3498
        %3541 = vmatprep.subr.bf16.mxu0 0
        %3542 = vmatpush1.bf16.msra.mxu0 %v3497
        %3543 = vmatprep.subr.bf16.mxu0 0
        %3544 = vmatpush1.bf16.msra.mxu0 %v3496
        %3545 = vmatprep.subr.bf16.mxu0 0
        %3546 = vmatpush1.bf16.msra.mxu0 %v3495
        %3547 = vmatprep.subr.bf16.mxu0 0
        %3548 = vmatpush1.bf16.msra.mxu0 %v3494
        %3549 = vmatprep.subr.bf16.mxu0 0
        %3550 = vmatpush1.bf16.msra.mxu0 %v3493
        %3551 = vmatprep.subr.bf16.mxu0 0
        %3552 = vmatpush1.bf16.msra.mxu0 %v3492
        %3553 = vmatprep.subr.bf16.mxu0 0
        %3554 = vmatpush1.bf16.msra.mxu0 %v3491
        %3555 = vmatprep.subr.bf16.mxu0 0
        %3556 = vmatpush2.bf16.msra.mxu0 %v3506
        %3557 = vmatprep.subr.bf16.mxu0 0
        %3558 = vmatpush2.bf16.msra.mxu0 %v3505
        %3559 = vmatprep.subr.bf16.mxu0 0
        %3560 = vmatpush2.bf16.msra.mxu0 %v3504
        %3561 = vmatprep.subr.bf16.mxu0 0
        %3562 = vmatpush2.bf16.msra.mxu0 %v3503
        %3563 = vmatprep.subr.bf16.mxu0 0
        %3564 = vmatpush2.bf16.msra.mxu0 %v3502
        %3565 = vmatprep.subr.bf16.mxu0 0
        %3566 = vmatpush2.bf16.msra.mxu0 %v3501
        %3567 = vmatprep.subr.bf16.mxu0 0
        %3568 = vmatpush2.bf16.msra.mxu0 %v3500
        %3569 = vmatprep.subr.bf16.mxu0 0
        %3570 = vmatpush2.bf16.msra.mxu0 %v3499
        %3571 = vmatprep.mubr.bf16.mxu0 %v3364
        %3572 = vmatmul.mubr.bf16.gmra.mxu0 %v3348
        %v3573 = vpop.f32.mrf.mxu0
        %v3574 = vadd.f32 0.0, %v3573
        %v3575 = vpop.f32.mrf.mxu0
        %v3576 = vpop.f32.mrf.mxu0
        %v3577 = vadd.f32 0.0, %v3576
        %v3578 = vpop.f32.mrf.mxu0
        %3579 = vmatprep.mubr.bf16.mxu0 %v3363
        %3580 = vmatmul.mubr.bf16.gmra.mxu0 %v3347
        %v3581 = vpop.f32.mrf.mxu0
        %v3582 = vadd.f32 0.0, %v3581
        %v3583 = vpop.f32.mrf.mxu0
        %v3584 = vpop.f32.mrf.mxu0
        %v3585 = vadd.f32 0.0, %v3584
        %v3586 = vpop.f32.mrf.mxu0
        %3587 = vmatprep.mubr.bf16.mxu0 %v3364
        %3588 = vmatmul.mubr.bf16.gmra.mxu0 %v3348
        %v3589 = vpop.f32.mrf.mxu0
        %v3590 = vadd.f32 0.0, %v3589
        %v3591 = vpop.f32.mrf.mxu0
        %v3592 = vpop.f32.mrf.mxu0
        %v3593 = vadd.f32 0.0, %v3592
        %v3594 = vpop.f32.mrf.mxu0
        %3595 = vmatprep.mubr.bf16.mxu0 %v3365
        %3596 = vmatmul.mubr.bf16.gmra.mxu0 %v3349
        %v3597 = vpop.f32.mrf.mxu0
        %v3598 = vadd.f32 0.0, %v3597
        %v3599 = vpop.f32.mrf.mxu0
        %v3600 = vpop.f32.mrf.mxu0
        %v3601 = vadd.f32 0.0, %v3600
        %v3602 = vpop.f32.mrf.mxu0
        %3603 = vmatprep.mubr.bf16.mxu0 %v3366
        %3604 = vmatmul.mubr.bf16.gmra.mxu0 %v3350
        %v3605 = vpop.f32.mrf.mxu0
        %v3606 = vadd.f32 0.0, %v3605
        %v3607 = vpop.f32.mrf.mxu0
        %v3608 = vpop.f32.mrf.mxu0
        %v3609 = vadd.f32 0.0, %v3608
        %v3610 = vpop.f32.mrf.mxu0
        %3611 = vmatprep.mubr.bf16.mxu0 %v3367
        %3612 = vmatmul.mubr.bf16.gmra.mxu0 %v3351
        %v3613 = vpop.f32.mrf.mxu0
        %v3614 = vadd.f32 0.0, %v3613
        %v3615 = vpop.f32.mrf.mxu0
        %v3616 = vpop.f32.mrf.mxu0
        %v3617 = vadd.f32 0.0, %v3616
        %v3618 = vpop.f32.mrf.mxu0
        %3619 = vmatprep.mubr.bf16.mxu0 %v3368
        %3620 = vmatmul.mubr.bf16.gmra.mxu0 %v3352
        %v3621 = vpop.f32.mrf.mxu0
        %v3622 = vadd.f32 0.0, %v3621
        %v3623 = vpop.f32.mrf.mxu0
        %v3624 = vpop.f32.mrf.mxu0
        %v3625 = vadd.f32 0.0, %v3624
        %v3626 = vpop.f32.mrf.mxu0
        %3627 = vmatprep.mubr.bf16.mxu0 %v3369
        %3628 = vmatmul.mubr.bf16.gmra.mxu0 %v3353
        %v3629 = vpop.f32.mrf.mxu0
        %v3630 = vadd.f32 0.0, %v3629
        %v3631 = vpop.f32.mrf.mxu0
        %v3632 = vpop.f32.mrf.mxu0
        %v3633 = vadd.f32 0.0, %v3632
        %v3634 = vpop.f32.mrf.mxu0
        %3635 = vmatprep.mubr.bf16.mxu0 %v3370
        %3636 = vmatmul.mubr.bf16.gmra.mxu0 %v3354
        %v3637 = vpop.f32.mrf.mxu0
        %v3638 = vadd.f32 0.0, %v3637
        %v3639 = vpop.f32.mrf.mxu0
        %v3640 = vpop.f32.mrf.mxu0
        %v3641 = vadd.f32 0.0, %v3640
        %v3642 = vpop.f32.mrf.mxu0
        %3643 = vmatprep.mubr.bf16.mxu0 %v3371
        %3644 = vmatmul.mubr.bf16.gmra.mxu0 %v3355
        %v3645 = vpop.f32.mrf.mxu0
        %v3646 = vadd.f32 0.0, %v3645
        %v3647 = vpop.f32.mrf.mxu0
        %v3648 = vpop.f32.mrf.mxu0
        %v3649 = vadd.f32 0.0, %v3648
        %v3650 = vpop.f32.mrf.mxu0
        %3651 = vmatprep.mubr.bf16.mxu0 %v3372
        %3652 = vmatmul.mubr.bf16.gmra.mxu0 %v3356
        %v3653 = vpop.f32.mrf.mxu0
        %v3654 = vadd.f32 0.0, %v3653
        %v3655 = vpop.f32.mrf.mxu0
        %v3656 = vpop.f32.mrf.mxu0
        %v3657 = vadd.f32 0.0, %v3656
        %v3658 = vpop.f32.mrf.mxu0
        %3659 = vmatprep.mubr.bf16.mxu0 %v3373
        %3660 = vmatmul.mubr.bf16.gmra.mxu0 %v3357
        %v3661 = vpop.f32.mrf.mxu0
        %v3662 = vadd.f32 0.0, %v3661
        %v3663 = vpop.f32.mrf.mxu0
        %v3664 = vpop.f32.mrf.mxu0
        %v3665 = vadd.f32 0.0, %v3664
        %v3666 = vpop.f32.mrf.mxu0
        %3667 = vmatprep.mubr.bf16.mxu0 %v3374
        %3668 = vmatmul.mubr.bf16.gmra.mxu0 %v3358
        %v3669 = vpop.f32.mrf.mxu0
        %v3670 = vadd.f32 0.0, %v3669
        %v3671 = vpop.f32.mrf.mxu0
        %v3672 = vpop.f32.mrf.mxu0
        %v3673 = vadd.f32 0.0, %v3672
        %v3674 = vpop.f32.mrf.mxu0
        %3675 = vmatprep.mubr.bf16.mxu0 %v3375
        %3676 = vmatmul.mubr.bf16.gmra.mxu0 %v3359
        %v3677 = vpop.f32.mrf.mxu0
        %v3678 = vadd.f32 0.0, %v3677
        %v3679 = vpop.f32.mrf.mxu0
        %v3680 = vpop.f32.mrf.mxu0
        %v3681 = vadd.f32 0.0, %v3680
        %v3682 = vpop.f32.mrf.mxu0
        %3683 = vmatprep.mubr.bf16.mxu0 %v3376
        %3684 = vmatmul.mubr.bf16.gmra.mxu0 %v3360
        %v3685 = vpop.f32.mrf.mxu0
        %v3686 = vadd.f32 0.0, %v3685
        %v3687 = vpop.f32.mrf.mxu0
        %v3688 = vpop.f32.mrf.mxu0
        %v3689 = vadd.f32 0.0, %v3688
        %v3690 = vpop.f32.mrf.mxu0
        %3691 = vmatprep.mubr.bf16.mxu0 %v3377
        %3692 = vmatmul.mubr.bf16.gmra.mxu0 %v3361
        %v3693 = vpop.f32.mrf.mxu0
        %v3694 = vadd.f32 0.0, %v3693
        %v3695 = vpop.f32.mrf.mxu0
        %v3696 = vpop.f32.mrf.mxu0
        %v3697 = vadd.f32 0.0, %v3696
        %v3698 = vpop.f32.mrf.mxu0
        %3699 = vdwg.mxu0
        %3700 = vmatprep.subr.bf16.mxu0 0
        %3701 = vmatpush1.bf16.msra.mxu0 %v3514
        %3702 = vmatprep.subr.bf16.mxu0 0
        %3703 = vmatpush1.bf16.msra.mxu0 %v3513
        %3704 = vmatprep.subr.bf16.mxu0 0
        %3705 = vmatpush1.bf16.msra.mxu0 %v3512
        %3706 = vmatprep.subr.bf16.mxu0 0
        %3707 = vmatpush1.bf16.msra.mxu0 %v3511
        %3708 = vmatprep.subr.bf16.mxu0 0
        %3709 = vmatpush1.bf16.msra.mxu0 %v3510
        %3710 = vmatprep.subr.bf16.mxu0 0
        %3711 = vmatpush1.bf16.msra.mxu0 %v3509
        %3712 = vmatprep.subr.bf16.mxu0 0
        %3713 = vmatpush1.bf16.msra.mxu0 %v3508
        %3714 = vmatprep.subr.bf16.mxu0 0
        %3715 = vmatpush1.bf16.msra.mxu0 %v3507
        %3716 = vmatprep.subr.bf16.mxu0 0
        %3717 = vmatpush2.bf16.msra.mxu0 0
        %3718 = vmatprep.subr.bf16.mxu0 0
        %3719 = vmatpush2.bf16.msra.mxu0 0
        %3720 = vmatprep.subr.bf16.mxu0 0
        %3721 = vmatpush2.bf16.msra.mxu0 0
        %3722 = vmatprep.subr.bf16.mxu0 0
        %3723 = vmatpush2.bf16.msra.mxu0 0
        %3724 = vmatprep.subr.bf16.mxu0 0
        %3725 = vmatpush2.bf16.msra.mxu0 0
        %3726 = vmatprep.subr.bf16.mxu0 0
        %3727 = vmatpush2.bf16.msra.mxu0 0
        %3728 = vmatprep.subr.bf16.mxu0 0
        %3729 = vmatpush2.bf16.msra.mxu0 0
        %3730 = vmatprep.subr.bf16.mxu0 0
        %3731 = vmatpush2.bf16.msra.mxu0 0
        %3732 = vmatprep.mubr.bf16.mxu0 0
        %3733 = vmatmul.mubr.bf16.gmra.mxu0 %v3380
        %v3734 = vpop.f32.mrf.mxu0
        %v3735 = vadd.f32 %v3574, %v3734
        %v3736 = vpop.f32.mrf.mxu0
        %v3737 = vpop.f32.mrf.mxu0
        %v3738 = vadd.f32 %v3577, %v3737
        %v3739 = vpop.f32.mrf.mxu0
        %3740 = vmatprep.mubr.bf16.mxu0 0
        %3741 = vmatmul.mubr.bf16.gmra.mxu0 %v3379
        %v3742 = vpop.f32.mrf.mxu0
        %v3743 = vadd.f32 %v3582, %v3742
        %v3744 = vpop.f32.mrf.mxu0
        %v3745 = vpop.f32.mrf.mxu0
        %v3746 = vadd.f32 %v3585, %v3745
        %v3747 = vpop.f32.mrf.mxu0
        %3748 = vmatprep.mubr.bf16.mxu0 0
        %3749 = vmatmul.mubr.bf16.gmra.mxu0 %v3380
        %v3750 = vpop.f32.mrf.mxu0
        %v3751 = vadd.f32 %v3590, %v3750
        %v3752 = vpop.f32.mrf.mxu0
        %v3753 = vpop.f32.mrf.mxu0
        %v3754 = vadd.f32 %v3593, %v3753
        %v3755 = vpop.f32.mrf.mxu0
        %3756 = vmatprep.mubr.bf16.mxu0 0
        %3757 = vmatmul.mubr.bf16.gmra.mxu0 %v3381
        %v3758 = vpop.f32.mrf.mxu0
        %v3759 = vadd.f32 %v3598, %v3758
        %v3760 = vpop.f32.mrf.mxu0
        %v3761 = vpop.f32.mrf.mxu0
        %v3762 = vadd.f32 %v3601, %v3761
        %v3763 = vpop.f32.mrf.mxu0
        %3764 = vmatprep.mubr.bf16.mxu0 0
        %3765 = vmatmul.mubr.bf16.gmra.mxu0 %v3382
        %v3766 = vpop.f32.mrf.mxu0
        %v3767 = vadd.f32 %v3606, %v3766
        %v3768 = vpop.f32.mrf.mxu0
        %v3769 = vpop.f32.mrf.mxu0
        %v3770 = vadd.f32 %v3609, %v3769
        %v3771 = vpop.f32.mrf.mxu0
        %3772 = vmatprep.mubr.bf16.mxu0 0
        %3773 = vmatmul.mubr.bf16.gmra.mxu0 %v3383
        %v3774 = vpop.f32.mrf.mxu0
        %v3775 = vadd.f32 %v3614, %v3774
        %v3776 = vpop.f32.mrf.mxu0
        %v3777 = vpop.f32.mrf.mxu0
        %v3778 = vadd.f32 %v3617, %v3777
        %v3779 = vpop.f32.mrf.mxu0
        %3780 = vmatprep.mubr.bf16.mxu0 0
        %3781 = vmatmul.mubr.bf16.gmra.mxu0 %v3384
        %v3782 = vpop.f32.mrf.mxu0
        %v3783 = vadd.f32 %v3622, %v3782
        %v3784 = vpop.f32.mrf.mxu0
        %v3785 = vpop.f32.mrf.mxu0
        %v3786 = vadd.f32 %v3625, %v3785
        %v3787 = vpop.f32.mrf.mxu0
        %3788 = vmatprep.mubr.bf16.mxu0 0
        %3789 = vmatmul.mubr.bf16.gmra.mxu0 %v3385
        %v3790 = vpop.f32.mrf.mxu0
        %v3791 = vadd.f32 %v3630, %v3790
        %v3792 = vpop.f32.mrf.mxu0
        %v3793 = vpop.f32.mrf.mxu0
        %v3794 = vadd.f32 %v3633, %v3793
        %v3795 = vpop.f32.mrf.mxu0
        %3796 = vmatprep.mubr.bf16.mxu0 0
        %3797 = vmatmul.mubr.bf16.gmra.mxu0 %v3386
        %v3798 = vpop.f32.mrf.mxu0
        %v3799 = vadd.f32 %v3638, %v3798
        %v3800 = vpop.f32.mrf.mxu0
        %v3801 = vpop.f32.mrf.mxu0
        %v3802 = vadd.f32 %v3641, %v3801
        %v3803 = vpop.f32.mrf.mxu0
        %3804 = vmatprep.mubr.bf16.mxu0 0
        %3805 = vmatmul.mubr.bf16.gmra.mxu0 %v3387
        %v3806 = vpop.f32.mrf.mxu0
        %v3807 = vadd.f32 %v3646, %v3806
        %v3808 = vpop.f32.mrf.mxu0
        %v3809 = vpop.f32.mrf.mxu0
        %v3810 = vadd.f32 %v3649, %v3809
        %v3811 = vpop.f32.mrf.mxu0
        %3812 = vmatprep.mubr.bf16.mxu0 0
        %3813 = vmatmul.mubr.bf16.gmra.mxu0 %v3388
        %v3814 = vpop.f32.mrf.mxu0
        %v3815 = vadd.f32 %v3654, %v3814
        %v3816 = vpop.f32.mrf.mxu0
        %v3817 = vpop.f32.mrf.mxu0
        %v3818 = vadd.f32 %v3657, %v3817
        %v3819 = vpop.f32.mrf.mxu0
        %3820 = vmatprep.mubr.bf16.mxu0 0
        %3821 = vmatmul.mubr.bf16.gmra.mxu0 %v3389
        %v3822 = vpop.f32.mrf.mxu0
        %v3823 = vadd.f32 %v3662, %v3822
        %v3824 = vpop.f32.mrf.mxu0
        %v3825 = vpop.f32.mrf.mxu0
        %v3826 = vadd.f32 %v3665, %v3825
        %v3827 = vpop.f32.mrf.mxu0
        %3828 = vmatprep.mubr.bf16.mxu0 0
        %3829 = vmatmul.mubr.bf16.gmra.mxu0 %v3390
        %v3830 = vpop.f32.mrf.mxu0
        %v3831 = vadd.f32 %v3670, %v3830
        %v3832 = vpop.f32.mrf.mxu0
        %v3833 = vpop.f32.mrf.mxu0
        %v3834 = vadd.f32 %v3673, %v3833
        %v3835 = vpop.f32.mrf.mxu0
        %3836 = vmatprep.mubr.bf16.mxu0 0
        %3837 = vmatmul.mubr.bf16.gmra.mxu0 %v3391
        %v3838 = vpop.f32.mrf.mxu0
        %v3839 = vadd.f32 %v3678, %v3838
        %v3840 = vpop.f32.mrf.mxu0
        %v3841 = vpop.f32.mrf.mxu0
        %v3842 = vadd.f32 %v3681, %v3841
        %v3843 = vpop.f32.mrf.mxu0
        %3844 = vmatprep.mubr.bf16.mxu0 0
        %3845 = vmatmul.mubr.bf16.gmra.mxu0 %v3392
        %v3846 = vpop.f32.mrf.mxu0
        %v3847 = vadd.f32 %v3686, %v3846
        %v3848 = vpop.f32.mrf.mxu0
        %v3849 = vpop.f32.mrf.mxu0
        %v3850 = vadd.f32 %v3689, %v3849
        %v3851 = vpop.f32.mrf.mxu0
        %3852 = vmatprep.mubr.bf16.mxu0 0
        %3853 = vmatmul.mubr.bf16.gmra.mxu0 %v3393
        %v3854 = vpop.f32.mrf.mxu0
        %v3855 = vadd.f32 %v3694, %v3854
        %v3856 = vpop.f32.mrf.mxu0
        %v3857 = vpop.f32.mrf.mxu0
        %v3858 = vadd.f32 %v3697, %v3857
        %v3859 = vpop.f32.mrf.mxu0
        %3860 = vdwg.mxu0
        %v3862 = vlaneseq
        %v3863 = vshrl.u32 %v3862, 7
        %v3864 = vsub.s32 0, %v3863
        %v3865 = vrot.slane %v562, %v3864
        %v3867 = vadd.f32 %v3865, %v3735
        %v3868 = vadd.f32 %v3865, %v3738
        %v3869 = vadd.f32 %v3865, %v3743
        %v3870 = vadd.f32 %v3865, %v3746
        %v3871 = vadd.f32 %v3865, %v3751
        %v3872 = vadd.f32 %v3865, %v3754
        %v3873 = vadd.f32 %v3865, %v3759
        %v3874 = vadd.f32 %v3865, %v3762
        %v3875 = vadd.f32 %v3865, %v3767
        %v3876 = vadd.f32 %v3865, %v3770
        %v3877 = vadd.f32 %v3865, %v3775
        %v3878 = vadd.f32 %v3865, %v3778
        %v3879 = vadd.f32 %v3865, %v3783
        %v3880 = vadd.f32 %v3865, %v3786
        %v3881 = vadd.f32 %v3865, %v3791
        %v3882 = vadd.f32 %v3865, %v3794
        %v3883 = vadd.f32 %v3865, %v3799
        %v3884 = vadd.f32 %v3865, %v3802
        %v3885 = vadd.f32 %v3865, %v3807
        %v3886 = vadd.f32 %v3865, %v3810
        %v3887 = vadd.f32 %v3865, %v3815
        %v3888 = vadd.f32 %v3865, %v3818
        %v3889 = vadd.f32 %v3865, %v3823
        %v3890 = vadd.f32 %v3865, %v3826
        %v3891 = vadd.f32 %v3865, %v3831
        %v3892 = vadd.f32 %v3865, %v3834
        %v3893 = vadd.f32 %v3865, %v3839
        %v3894 = vadd.f32 %v3865, %v3842
        %v3895 = vadd.f32 %v3865, %v3847
        %v3896 = vadd.f32 %v3865, %v3850
        %v3897 = vadd.f32 %v3865, %v3855
        %v3898 = vadd.f32 %v3865, %v3858
        %v3947 = vunpack.c.l.b16 %v465
        %v3948 = vunpack.c.l.b16 %v466
        %v3949 = vunpack.c.l.b16 %v467
        %v3950 = vunpack.c.l.b16 %v468
        %v3951 = vunpack.c.l.b16 %v469
        %v3952 = vunpack.c.l.b16 %v470
        %v3953 = vunpack.c.l.b16 %v471
        %v3954 = vunpack.c.l.b16 %v472
        %v3955 = vunpack.c.l.b16 %v473
        %v3956 = vunpack.c.l.b16 %v474
        %v3957 = vunpack.c.l.b16 %v475
        %v3958 = vunpack.c.l.b16 %v476
        %v3959 = vunpack.c.l.b16 %v477
        %v3960 = vunpack.c.l.b16 %v478
        %v3961 = vunpack.c.l.b16 %v479
        %v3962 = vunpack.c.l.b16 %v480
        %v3963 = vunpack.c.l.b16 %v481
        %v3964 = vunpack.c.l.b16 %v482
        %v3965 = vunpack.c.l.b16 %v483
        %v3966 = vunpack.c.l.b16 %v484
        %v3967 = vunpack.c.l.b16 %v485
        %v3968 = vunpack.c.l.b16 %v486
        %v3969 = vunpack.c.l.b16 %v487
        %v3970 = vunpack.c.l.b16 %v488
        %v3971 = vunpack.c.l.b16 %v489
        %v3972 = vunpack.c.l.b16 %v490
        %v3973 = vunpack.c.l.b16 %v491
        %v3974 = vunpack.c.l.b16 %v492
        %v3975 = vunpack.c.l.b16 %v493
        %v3976 = vunpack.c.l.b16 %v494
        %v3977 = vunpack.c.l.b16 %v495
        %v3978 = vunpack.c.l.b16 %v496
        %v3979 = vunpack.c.l.b16 %v497
        %v3980 = vunpack.c.l.b16 %v498
        %v3981 = vunpack.c.l.b16 %v499
        %v3982 = vunpack.c.l.b16 %v500
        %v3983 = vunpack.c.l.b16 %v501
        %v3984 = vunpack.c.l.b16 %v502
        %v3985 = vunpack.c.l.b16 %v503
        %v3986 = vunpack.c.l.b16 %v504
        %v3987 = vunpack.c.l.b16 %v505
        %v3988 = vunpack.c.l.b16 %v506
        %v3989 = vunpack.c.l.b16 %v507
        %v3990 = vunpack.c.l.b16 %v508
        %v3991 = vunpack.c.l.b16 %v509
        %v3992 = vunpack.c.l.b16 %v510
        %v3993 = vunpack.c.l.b16 %v511
        %v3994 = vunpack.c.l.b16 %v512
        %v3995 = vpack.c.b16 %v3948, %v3947
        %v3996 = vpack.c.b16 %v3950, %v3949
        %v3997 = vpack.c.b16 %v3952, %v3951
        %v3998 = vpack.c.b16 %v3954, %v3953
        %v3999 = vpack.c.b16 %v3956, %v3955
        %v4000 = vpack.c.b16 %v3958, %v3957
        %v4001 = vpack.c.b16 %v3960, %v3959
        %v4002 = vpack.c.b16 %v3962, %v3961
        %v4003 = vpack.c.b16 %v3964, %v3963
        %v4004 = vpack.c.b16 %v3966, %v3965
        %v4005 = vpack.c.b16 %v3968, %v3967
        %v4006 = vpack.c.b16 %v3970, %v3969
        %v4007 = vpack.c.b16 %v3972, %v3971
        %v4008 = vpack.c.b16 %v3974, %v3973
        %v4009 = vpack.c.b16 %v3976, %v3975
        %v4010 = vpack.c.b16 %v3978, %v3977
        %v4011 = vpack.c.b16 %v3980, %v3979
        %v4012 = vpack.c.b16 %v3982, %v3981
        %v4013 = vpack.c.b16 %v3984, %v3983
        %v4014 = vpack.c.b16 %v3986, %v3985
        %v4015 = vpack.c.b16 %v3988, %v3987
        %v4016 = vpack.c.b16 %v3990, %v3989
        %v4017 = vpack.c.b16 %v3992, %v3991
        %v4018 = vpack.c.b16 %v3994, %v3993
        %4043 = vmatprep.subr.bf16.mxu0 0
        %4044 = vmatpush1.bf16.msra.mxu0 %v4002
        %4045 = vmatprep.subr.bf16.mxu0 0
        %4046 = vmatpush1.bf16.msra.mxu0 %v4001
        %4047 = vmatprep.subr.bf16.mxu0 0
        %4048 = vmatpush1.bf16.msra.mxu0 %v4000
        %4049 = vmatprep.subr.bf16.mxu0 0
        %4050 = vmatpush1.bf16.msra.mxu0 %v3999
        %4051 = vmatprep.subr.bf16.mxu0 0
        %4052 = vmatpush1.bf16.msra.mxu0 %v3998
        %4053 = vmatprep.subr.bf16.mxu0 0
        %4054 = vmatpush1.bf16.msra.mxu0 %v3997
        %4055 = vmatprep.subr.bf16.mxu0 0
        %4056 = vmatpush1.bf16.msra.mxu0 %v3996
        %4057 = vmatprep.subr.bf16.mxu0 0
        %4058 = vmatpush1.bf16.msra.mxu0 %v3995
        %4059 = vmatprep.subr.bf16.mxu0 0
        %4060 = vmatpush2.bf16.msra.mxu0 %v4010
        %4061 = vmatprep.subr.bf16.mxu0 0
        %4062 = vmatpush2.bf16.msra.mxu0 %v4009
        %4063 = vmatprep.subr.bf16.mxu0 0
        %4064 = vmatpush2.bf16.msra.mxu0 %v4008
        %4065 = vmatprep.subr.bf16.mxu0 0
        %4066 = vmatpush2.bf16.msra.mxu0 %v4007
        %4067 = vmatprep.subr.bf16.mxu0 0
        %4068 = vmatpush2.bf16.msra.mxu0 %v4006
        %4069 = vmatprep.subr.bf16.mxu0 0
        %4070 = vmatpush2.bf16.msra.mxu0 %v4005
        %4071 = vmatprep.subr.bf16.mxu0 0
        %4072 = vmatpush2.bf16.msra.mxu0 %v4004
        %4073 = vmatprep.subr.bf16.mxu0 0
        %4074 = vmatpush2.bf16.msra.mxu0 %v4003
        %4075 = vmatprep.mubr.bf16.mxu0 %v3363
        %4076 = vmatmul.mubr.bf16.gmra.mxu0 %v3347
        %v4077 = vpop.f32.mrf.mxu0
        %v4078 = vadd.f32 0.0, %v4077
        %v4079 = vpop.f32.mrf.mxu0
        %v4080 = vpop.f32.mrf.mxu0
        %v4081 = vadd.f32 0.0, %v4080
        %v4082 = vpop.f32.mrf.mxu0
        %4083 = vmatprep.mubr.bf16.mxu0 %v3364
        %4084 = vmatmul.mubr.bf16.gmra.mxu0 %v3348
        %v4085 = vpop.f32.mrf.mxu0
        %v4086 = vadd.f32 0.0, %v4085
        %v4087 = vpop.f32.mrf.mxu0
        %v4088 = vpop.f32.mrf.mxu0
        %v4089 = vadd.f32 0.0, %v4088
        %v4090 = vpop.f32.mrf.mxu0
        %4091 = vmatprep.mubr.bf16.mxu0 %v3365
        %4092 = vmatmul.mubr.bf16.gmra.mxu0 %v3349
        %v4093 = vpop.f32.mrf.mxu0
        %v4094 = vadd.f32 0.0, %v4093
        %v4095 = vpop.f32.mrf.mxu0
        %v4096 = vpop.f32.mrf.mxu0
        %v4097 = vadd.f32 0.0, %v4096
        %v4098 = vpop.f32.mrf.mxu0
        %4099 = vmatprep.mubr.bf16.mxu0 %v3366
        %4100 = vmatmul.mubr.bf16.gmra.mxu0 %v3350
        %v4101 = vpop.f32.mrf.mxu0
        %v4102 = vadd.f32 0.0, %v4101
        %v4103 = vpop.f32.mrf.mxu0
        %v4104 = vpop.f32.mrf.mxu0
        %v4105 = vadd.f32 0.0, %v4104
        %v4106 = vpop.f32.mrf.mxu0
        %4107 = vmatprep.mubr.bf16.mxu0 %v3367
        %4108 = vmatmul.mubr.bf16.gmra.mxu0 %v3351
        %v4109 = vpop.f32.mrf.mxu0
        %v4110 = vadd.f32 0.0, %v4109
        %v4111 = vpop.f32.mrf.mxu0
        %v4112 = vpop.f32.mrf.mxu0
        %v4113 = vadd.f32 0.0, %v4112
        %v4114 = vpop.f32.mrf.mxu0
        %4115 = vmatprep.mubr.bf16.mxu0 %v3368
        %4116 = vmatmul.mubr.bf16.gmra.mxu0 %v3352
        %v4117 = vpop.f32.mrf.mxu0
        %v4118 = vadd.f32 0.0, %v4117
        %v4119 = vpop.f32.mrf.mxu0
        %v4120 = vpop.f32.mrf.mxu0
        %v4121 = vadd.f32 0.0, %v4120
        %v4122 = vpop.f32.mrf.mxu0
        %4123 = vmatprep.mubr.bf16.mxu0 %v3369
        %4124 = vmatmul.mubr.bf16.gmra.mxu0 %v3353
        %v4125 = vpop.f32.mrf.mxu0
        %v4126 = vadd.f32 0.0, %v4125
        %v4127 = vpop.f32.mrf.mxu0
        %v4128 = vpop.f32.mrf.mxu0
        %v4129 = vadd.f32 0.0, %v4128
        %v4130 = vpop.f32.mrf.mxu0
        %4131 = vmatprep.mubr.bf16.mxu0 %v3370
        %4132 = vmatmul.mubr.bf16.gmra.mxu0 %v3354
        %v4133 = vpop.f32.mrf.mxu0
        %v4134 = vadd.f32 0.0, %v4133
        %v4135 = vpop.f32.mrf.mxu0
        %v4136 = vpop.f32.mrf.mxu0
        %v4137 = vadd.f32 0.0, %v4136
        %v4138 = vpop.f32.mrf.mxu0
        %4139 = vmatprep.mubr.bf16.mxu0 %v3371
        %4140 = vmatmul.mubr.bf16.gmra.mxu0 %v3355
        %v4141 = vpop.f32.mrf.mxu0
        %v4142 = vadd.f32 0.0, %v4141
        %v4143 = vpop.f32.mrf.mxu0
        %v4144 = vpop.f32.mrf.mxu0
        %v4145 = vadd.f32 0.0, %v4144
        %v4146 = vpop.f32.mrf.mxu0
        %4147 = vmatprep.mubr.bf16.mxu0 %v3372
        %4148 = vmatmul.mubr.bf16.gmra.mxu0 %v3356
        %v4149 = vpop.f32.mrf.mxu0
        %v4150 = vadd.f32 0.0, %v4149
        %v4151 = vpop.f32.mrf.mxu0
        %v4152 = vpop.f32.mrf.mxu0
        %v4153 = vadd.f32 0.0, %v4152
        %v4154 = vpop.f32.mrf.mxu0
        %4155 = vmatprep.mubr.bf16.mxu0 %v3373
        %4156 = vmatmul.mubr.bf16.gmra.mxu0 %v3357
        %v4157 = vpop.f32.mrf.mxu0
        %v4158 = vadd.f32 0.0, %v4157
        %v4159 = vpop.f32.mrf.mxu0
        %v4160 = vpop.f32.mrf.mxu0
        %v4161 = vadd.f32 0.0, %v4160
        %v4162 = vpop.f32.mrf.mxu0
        %4163 = vmatprep.mubr.bf16.mxu0 %v3374
        %4164 = vmatmul.mubr.bf16.gmra.mxu0 %v3358
        %v4165 = vpop.f32.mrf.mxu0
        %v4166 = vadd.f32 0.0, %v4165
        %v4167 = vpop.f32.mrf.mxu0
        %v4168 = vpop.f32.mrf.mxu0
        %v4169 = vadd.f32 0.0, %v4168
        %v4170 = vpop.f32.mrf.mxu0
        %4171 = vmatprep.mubr.bf16.mxu0 %v3375
        %4172 = vmatmul.mubr.bf16.gmra.mxu0 %v3359
        %v4173 = vpop.f32.mrf.mxu0
        %v4174 = vadd.f32 0.0, %v4173
        %v4175 = vpop.f32.mrf.mxu0
        %v4176 = vpop.f32.mrf.mxu0
        %v4177 = vadd.f32 0.0, %v4176
        %v4178 = vpop.f32.mrf.mxu0
        %4179 = vmatprep.mubr.bf16.mxu0 %v3376
        %4180 = vmatmul.mubr.bf16.gmra.mxu0 %v3360
        %v4181 = vpop.f32.mrf.mxu0
        %v4182 = vadd.f32 0.0, %v4181
        %v4183 = vpop.f32.mrf.mxu0
        %v4184 = vpop.f32.mrf.mxu0
        %v4185 = vadd.f32 0.0, %v4184
        %v4186 = vpop.f32.mrf.mxu0
        %4187 = vmatprep.mubr.bf16.mxu0 %v3377
        %4188 = vmatmul.mubr.bf16.gmra.mxu0 %v3361
        %v4189 = vpop.f32.mrf.mxu0
        %v4190 = vadd.f32 0.0, %v4189
        %v4191 = vpop.f32.mrf.mxu0
        %v4192 = vpop.f32.mrf.mxu0
        %v4193 = vadd.f32 0.0, %v4192
        %v4194 = vpop.f32.mrf.mxu0
        %4195 = vmatprep.mubr.bf16.mxu0 %v3378
        %4196 = vmatmul.mubr.bf16.gmra.mxu0 %v3362
        %v4197 = vpop.f32.mrf.mxu0
        %v4198 = vadd.f32 0.0, %v4197
        %v4199 = vpop.f32.mrf.mxu0
        %v4200 = vpop.f32.mrf.mxu0
        %v4201 = vadd.f32 0.0, %v4200
        %v4202 = vpop.f32.mrf.mxu0
        %4203 = vdwg.mxu0
        %4204 = vmatprep.subr.bf16.mxu0 0
        %4205 = vmatpush1.bf16.msra.mxu0 %v4018
        %4206 = vmatprep.subr.bf16.mxu0 0
        %4207 = vmatpush1.bf16.msra.mxu0 %v4017
        %4208 = vmatprep.subr.bf16.mxu0 0
        %4209 = vmatpush1.bf16.msra.mxu0 %v4016
        %4210 = vmatprep.subr.bf16.mxu0 0
        %4211 = vmatpush1.bf16.msra.mxu0 %v4015
        %4212 = vmatprep.subr.bf16.mxu0 0
        %4213 = vmatpush1.bf16.msra.mxu0 %v4014
        %4214 = vmatprep.subr.bf16.mxu0 0
        %4215 = vmatpush1.bf16.msra.mxu0 %v4013
        %4216 = vmatprep.subr.bf16.mxu0 0
        %4217 = vmatpush1.bf16.msra.mxu0 %v4012
        %4218 = vmatprep.subr.bf16.mxu0 0
        %4219 = vmatpush1.bf16.msra.mxu0 %v4011
        %4220 = vmatprep.subr.bf16.mxu0 0
        %4221 = vmatpush2.bf16.msra.mxu0 0
        %4222 = vmatprep.subr.bf16.mxu0 0
        %4223 = vmatpush2.bf16.msra.mxu0 0
        %4224 = vmatprep.subr.bf16.mxu0 0
        %4225 = vmatpush2.bf16.msra.mxu0 0
        %4226 = vmatprep.subr.bf16.mxu0 0
        %4227 = vmatpush2.bf16.msra.mxu0 0
        %4228 = vmatprep.subr.bf16.mxu0 0
        %4229 = vmatpush2.bf16.msra.mxu0 0
        %4230 = vmatprep.subr.bf16.mxu0 0
        %4231 = vmatpush2.bf16.msra.mxu0 0
        %4232 = vmatprep.subr.bf16.mxu0 0
        %4233 = vmatpush2.bf16.msra.mxu0 0
        %4234 = vmatprep.subr.bf16.mxu0 0
        %4235 = vmatpush2.bf16.msra.mxu0 0
        %4236 = vmatprep.mubr.bf16.mxu0 0
        %4237 = vmatmul.mubr.bf16.gmra.mxu0 %v3379
        %v4238 = vpop.f32.mrf.mxu0
        %v4239 = vadd.f32 %v4078, %v4238
        %v4240 = vpop.f32.mrf.mxu0
        %v4241 = vpop.f32.mrf.mxu0
        %v4242 = vadd.f32 %v4081, %v4241
        %v4243 = vpop.f32.mrf.mxu0
        %4244 = vmatprep.mubr.bf16.mxu0 0
        %4245 = vmatmul.mubr.bf16.gmra.mxu0 %v3380
        %v4246 = vpop.f32.mrf.mxu0
        %v4247 = vadd.f32 %v4086, %v4246
        %v4248 = vpop.f32.mrf.mxu0
        %v4249 = vpop.f32.mrf.mxu0
        %v4250 = vadd.f32 %v4089, %v4249
        %v4251 = vpop.f32.mrf.mxu0
        %4252 = vmatprep.mubr.bf16.mxu0 0
        %4253 = vmatmul.mubr.bf16.gmra.mxu0 %v3381
        %v4254 = vpop.f32.mrf.mxu0
        %v4255 = vadd.f32 %v4094, %v4254
        %v4256 = vpop.f32.mrf.mxu0
        %v4257 = vpop.f32.mrf.mxu0
        %v4258 = vadd.f32 %v4097, %v4257
        %v4259 = vpop.f32.mrf.mxu0
        %4260 = vmatprep.mubr.bf16.mxu0 0
        %4261 = vmatmul.mubr.bf16.gmra.mxu0 %v3382
        %v4262 = vpop.f32.mrf.mxu0
        %v4263 = vadd.f32 %v4102, %v4262
        %v4264 = vpop.f32.mrf.mxu0
        %v4265 = vpop.f32.mrf.mxu0
        %v4266 = vadd.f32 %v4105, %v4265
        %v4267 = vpop.f32.mrf.mxu0
        %4268 = vmatprep.mubr.bf16.mxu0 0
        %4269 = vmatmul.mubr.bf16.gmra.mxu0 %v3383
        %v4270 = vpop.f32.mrf.mxu0
        %v4271 = vadd.f32 %v4110, %v4270
        %v4272 = vpop.f32.mrf.mxu0
        %v4273 = vpop.f32.mrf.mxu0
        %v4274 = vadd.f32 %v4113, %v4273
        %v4275 = vpop.f32.mrf.mxu0
        %4276 = vmatprep.mubr.bf16.mxu0 0
        %4277 = vmatmul.mubr.bf16.gmra.mxu0 %v3384
        %v4278 = vpop.f32.mrf.mxu0
        %v4279 = vadd.f32 %v4118, %v4278
        %v4280 = vpop.f32.mrf.mxu0
        %v4281 = vpop.f32.mrf.mxu0
        %v4282 = vadd.f32 %v4121, %v4281
        %v4283 = vpop.f32.mrf.mxu0
        %4284 = vmatprep.mubr.bf16.mxu0 0
        %4285 = vmatmul.mubr.bf16.gmra.mxu0 %v3385
        %v4286 = vpop.f32.mrf.mxu0
        %v4287 = vadd.f32 %v4126, %v4286
        %v4288 = vpop.f32.mrf.mxu0
        %v4289 = vpop.f32.mrf.mxu0
        %v4290 = vadd.f32 %v4129, %v4289
        %v4291 = vpop.f32.mrf.mxu0
        %4292 = vmatprep.mubr.bf16.mxu0 0
        %4293 = vmatmul.mubr.bf16.gmra.mxu0 %v3386
        %v4294 = vpop.f32.mrf.mxu0
        %v4295 = vadd.f32 %v4134, %v4294
        %v4296 = vpop.f32.mrf.mxu0
        %v4297 = vpop.f32.mrf.mxu0
        %v4298 = vadd.f32 %v4137, %v4297
        %v4299 = vpop.f32.mrf.mxu0
        %4300 = vmatprep.mubr.bf16.mxu0 0
        %4301 = vmatmul.mubr.bf16.gmra.mxu0 %v3387
        %v4302 = vpop.f32.mrf.mxu0
        %v4303 = vadd.f32 %v4142, %v4302
        %v4304 = vpop.f32.mrf.mxu0
        %v4305 = vpop.f32.mrf.mxu0
        %v4306 = vadd.f32 %v4145, %v4305
        %v4307 = vpop.f32.mrf.mxu0
        %4308 = vmatprep.mubr.bf16.mxu0 0
        %4309 = vmatmul.mubr.bf16.gmra.mxu0 %v3388
        %v4310 = vpop.f32.mrf.mxu0
        %v4311 = vadd.f32 %v4150, %v4310
        %v4312 = vpop.f32.mrf.mxu0
        %v4313 = vpop.f32.mrf.mxu0
        %v4314 = vadd.f32 %v4153, %v4313
        %v4315 = vpop.f32.mrf.mxu0
        %4316 = vmatprep.mubr.bf16.mxu0 0
        %4317 = vmatmul.mubr.bf16.gmra.mxu0 %v3389
        %v4318 = vpop.f32.mrf.mxu0
        %v4319 = vadd.f32 %v4158, %v4318
        %v4320 = vpop.f32.mrf.mxu0
        %v4321 = vpop.f32.mrf.mxu0
        %v4322 = vadd.f32 %v4161, %v4321
        %v4323 = vpop.f32.mrf.mxu0
        %4324 = vmatprep.mubr.bf16.mxu0 0
        %4325 = vmatmul.mubr.bf16.gmra.mxu0 %v3390
        %v4326 = vpop.f32.mrf.mxu0
        %v4327 = vadd.f32 %v4166, %v4326
        %v4328 = vpop.f32.mrf.mxu0
        %v4329 = vpop.f32.mrf.mxu0
        %v4330 = vadd.f32 %v4169, %v4329
        %v4331 = vpop.f32.mrf.mxu0
        %4332 = vmatprep.mubr.bf16.mxu0 0
        %4333 = vmatmul.mubr.bf16.gmra.mxu0 %v3391
        %v4334 = vpop.f32.mrf.mxu0
        %v4335 = vadd.f32 %v4174, %v4334
        %v4336 = vpop.f32.mrf.mxu0
        %v4337 = vpop.f32.mrf.mxu0
        %v4338 = vadd.f32 %v4177, %v4337
        %v4339 = vpop.f32.mrf.mxu0
        %4340 = vmatprep.mubr.bf16.mxu0 0
        %4341 = vmatmul.mubr.bf16.gmra.mxu0 %v3392
        %v4342 = vpop.f32.mrf.mxu0
        %v4343 = vadd.f32 %v4182, %v4342
        %v4344 = vpop.f32.mrf.mxu0
        %v4345 = vpop.f32.mrf.mxu0
        %v4346 = vadd.f32 %v4185, %v4345
        %v4347 = vpop.f32.mrf.mxu0
        %4348 = vmatprep.mubr.bf16.mxu0 0
        %4349 = vmatmul.mubr.bf16.gmra.mxu0 %v3393
        %v4350 = vpop.f32.mrf.mxu0
        %v4351 = vadd.f32 %v4190, %v4350
        %v4352 = vpop.f32.mrf.mxu0
        %v4353 = vpop.f32.mrf.mxu0
        %v4354 = vadd.f32 %v4193, %v4353
        %v4355 = vpop.f32.mrf.mxu0
        %4356 = vmatprep.mubr.bf16.mxu0 0
        %4357 = vmatmul.mubr.bf16.gmra.mxu0 %v3394
        %v4358 = vpop.f32.mrf.mxu0
        %v4359 = vadd.f32 %v4198, %v4358
        %v4360 = vpop.f32.mrf.mxu0
        %v4361 = vpop.f32.mrf.mxu0
        %v4362 = vadd.f32 %v4201, %v4361
        %v4363 = vpop.f32.mrf.mxu0
        %4364 = vdwg.mxu0
        %v4365 = vadd.f32 %v3867, %v4239
        %v4366 = vadd.f32 %v3868, %v4242
        %v4367 = vadd.f32 %v3869, %v4247
        %v4368 = vadd.f32 %v3870, %v4250
        %v4369 = vadd.f32 %v3871, %v4255
        %v4370 = vadd.f32 %v3872, %v4258
        %v4371 = vadd.f32 %v3873, %v4263
        %v4372 = vadd.f32 %v3874, %v4266
        %v4373 = vadd.f32 %v3875, %v4271
        %v4374 = vadd.f32 %v3876, %v4274
        %v4375 = vadd.f32 %v3877, %v4279
        %v4376 = vadd.f32 %v3878, %v4282
        %v4377 = vadd.f32 %v3879, %v4287
        %v4378 = vadd.f32 %v3880, %v4290
        %v4379 = vadd.f32 %v3881, %v4295
        %v4380 = vadd.f32 %v3882, %v4298
        %v4381 = vadd.f32 %v3883, %v4303
        %v4382 = vadd.f32 %v3884, %v4306
        %v4383 = vadd.f32 %v3885, %v4311
        %v4384 = vadd.f32 %v3886, %v4314
        %v4385 = vadd.f32 %v3887, %v4319
        %v4386 = vadd.f32 %v3888, %v4322
        %v4387 = vadd.f32 %v3889, %v4327
        %v4388 = vadd.f32 %v3890, %v4330
        %v4389 = vadd.f32 %v3891, %v4335
        %v4390 = vadd.f32 %v3892, %v4338
        %v4391 = vadd.f32 %v3893, %v4343
        %v4392 = vadd.f32 %v3894, %v4346
        %v4393 = vadd.f32 %v3895, %v4351
        %v4394 = vadd.f32 %v3896, %v4354
        %v4395 = vadd.f32 %v3897, %v4359
        %v4396 = vadd.f32 %v3898, %v4362
        %v4445 = vunpack.c.l.b16 %v513
        %v4446 = vunpack.c.l.b16 %v514
        %v4447 = vunpack.c.l.b16 %v515
        %v4448 = vunpack.c.l.b16 %v516
        %v4449 = vunpack.c.l.b16 %v517
        %v4450 = vunpack.c.l.b16 %v518
        %v4451 = vunpack.c.l.b16 %v519
        %v4452 = vunpack.c.l.b16 %v520
        %v4453 = vunpack.c.l.b16 %v521
        %v4454 = vunpack.c.l.b16 %v522
        %v4455 = vunpack.c.l.b16 %v523
        %v4456 = vunpack.c.l.b16 %v524
        %v4457 = vunpack.c.l.b16 %v525
        %v4458 = vunpack.c.l.b16 %v526
        %v4459 = vunpack.c.l.b16 %v527
        %v4460 = vunpack.c.l.b16 %v528
        %v4461 = vunpack.c.l.b16 %v529
        %v4462 = vunpack.c.l.b16 %v530
        %v4463 = vunpack.c.l.b16 %v531
        %v4464 = vunpack.c.l.b16 %v532
        %v4465 = vunpack.c.l.b16 %v533
        %v4466 = vunpack.c.l.b16 %v534
        %v4467 = vunpack.c.l.b16 %v535
        %v4468 = vunpack.c.l.b16 %v536
        %v4469 = vunpack.c.l.b16 %v537
        %v4470 = vunpack.c.l.b16 %v538
        %v4471 = vunpack.c.l.b16 %v539
        %v4472 = vunpack.c.l.b16 %v540
        %v4473 = vunpack.c.l.b16 %v541
        %v4474 = vunpack.c.l.b16 %v542
        %v4475 = vunpack.c.l.b16 %v543
        %v4476 = vunpack.c.l.b16 %v544
        %v4477 = vunpack.c.l.b16 %v545
        %v4478 = vunpack.c.l.b16 %v546
        %v4479 = vunpack.c.l.b16 %v547
        %v4480 = vunpack.c.l.b16 %v548
        %v4481 = vunpack.c.l.b16 %v549
        %v4482 = vunpack.c.l.b16 %v550
        %v4483 = vunpack.c.l.b16 %v551
        %v4484 = vunpack.c.l.b16 %v552
        %v4485 = vunpack.c.l.b16 %v553
        %v4486 = vunpack.c.l.b16 %v554
        %v4487 = vunpack.c.l.b16 %v555
        %v4488 = vunpack.c.l.b16 %v556
        %v4489 = vunpack.c.l.b16 %v557
        %v4490 = vunpack.c.l.b16 %v558
        %v4491 = vunpack.c.l.b16 %v559
        %v4492 = vunpack.c.l.b16 %v560
        %v4493 = vpack.c.b16 %v4446, %v4445
        %v4494 = vpack.c.b16 %v4448, %v4447
        %v4495 = vpack.c.b16 %v4450, %v4449
        %v4496 = vpack.c.b16 %v4452, %v4451
        %v4497 = vpack.c.b16 %v4454, %v4453
        %v4498 = vpack.c.b16 %v4456, %v4455
        %v4499 = vpack.c.b16 %v4458, %v4457
        %v4500 = vpack.c.b16 %v4460, %v4459
        %v4501 = vpack.c.b16 %v4462, %v4461
        %v4502 = vpack.c.b16 %v4464, %v4463
        %v4503 = vpack.c.b16 %v4466, %v4465
        %v4504 = vpack.c.b16 %v4468, %v4467
        %v4505 = vpack.c.b16 %v4470, %v4469
        %v4506 = vpack.c.b16 %v4472, %v4471
        %v4507 = vpack.c.b16 %v4474, %v4473
        %v4508 = vpack.c.b16 %v4476, %v4475
        %v4509 = vpack.c.b16 %v4478, %v4477
        %v4510 = vpack.c.b16 %v4480, %v4479
        %v4511 = vpack.c.b16 %v4482, %v4481
        %v4512 = vpack.c.b16 %v4484, %v4483
        %v4513 = vpack.c.b16 %v4486, %v4485
        %v4514 = vpack.c.b16 %v4488, %v4487
        %v4515 = vpack.c.b16 %v4490, %v4489
        %v4516 = vpack.c.b16 %v4492, %v4491
        %4541 = vmatprep.subr.bf16.mxu0 0
        %4542 = vmatpush1.bf16.msra.mxu0 %v4500
        %4543 = vmatprep.subr.bf16.mxu0 0
        %4544 = vmatpush1.bf16.msra.mxu0 %v4499
        %4545 = vmatprep.subr.bf16.mxu0 0
        %4546 = vmatpush1.bf16.msra.mxu0 %v4498
        %4547 = vmatprep.subr.bf16.mxu0 0
        %4548 = vmatpush1.bf16.msra.mxu0 %v4497
        %4549 = vmatprep.subr.bf16.mxu0 0
        %4550 = vmatpush1.bf16.msra.mxu0 %v4496
        %4551 = vmatprep.subr.bf16.mxu0 0
        %4552 = vmatpush1.bf16.msra.mxu0 %v4495
        %4553 = vmatprep.subr.bf16.mxu0 0
        %4554 = vmatpush1.bf16.msra.mxu0 %v4494
        %4555 = vmatprep.subr.bf16.mxu0 0
        %4556 = vmatpush1.bf16.msra.mxu0 %v4493
        %4557 = vmatprep.subr.bf16.mxu0 0
        %4558 = vmatpush2.bf16.msra.mxu0 %v4508
        %4559 = vmatprep.subr.bf16.mxu0 0
        %4560 = vmatpush2.bf16.msra.mxu0 %v4507
        %4561 = vmatprep.subr.bf16.mxu0 0
        %4562 = vmatpush2.bf16.msra.mxu0 %v4506
        %4563 = vmatprep.subr.bf16.mxu0 0
        %4564 = vmatpush2.bf16.msra.mxu0 %v4505
        %4565 = vmatprep.subr.bf16.mxu0 0
        %4566 = vmatpush2.bf16.msra.mxu0 %v4504
        %4567 = vmatprep.subr.bf16.mxu0 0
        %4568 = vmatpush2.bf16.msra.mxu0 %v4503
        %4569 = vmatprep.subr.bf16.mxu0 0
        %4570 = vmatpush2.bf16.msra.mxu0 %v4502
        %4571 = vmatprep.subr.bf16.mxu0 0
        %4572 = vmatpush2.bf16.msra.mxu0 %v4501
        %4573 = vmatprep.mubr.bf16.mxu0 %v3364
        %4574 = vmatmul.mubr.bf16.gmra.mxu0 %v3348
        %v4575 = vpop.f32.mrf.mxu0
        %v4576 = vadd.f32 0.0, %v4575
        %v4577 = vpop.f32.mrf.mxu0
        %v4578 = vpop.f32.mrf.mxu0
        %v4579 = vadd.f32 0.0, %v4578
        %v4580 = vpop.f32.mrf.mxu0
        %4581 = vmatprep.mubr.bf16.mxu0 %v3365
        %4582 = vmatmul.mubr.bf16.gmra.mxu0 %v3349
        %v4583 = vpop.f32.mrf.mxu0
        %v4584 = vadd.f32 0.0, %v4583
        %v4585 = vpop.f32.mrf.mxu0
        %v4586 = vpop.f32.mrf.mxu0
        %v4587 = vadd.f32 0.0, %v4586
        %v4588 = vpop.f32.mrf.mxu0
        %4589 = vmatprep.mubr.bf16.mxu0 %v3366
        %4590 = vmatmul.mubr.bf16.gmra.mxu0 %v3350
        %v4591 = vpop.f32.mrf.mxu0
        %v4592 = vadd.f32 0.0, %v4591
        %v4593 = vpop.f32.mrf.mxu0
        %v4594 = vpop.f32.mrf.mxu0
        %v4595 = vadd.f32 0.0, %v4594
        %v4596 = vpop.f32.mrf.mxu0
        %4597 = vmatprep.mubr.bf16.mxu0 %v3367
        %4598 = vmatmul.mubr.bf16.gmra.mxu0 %v3351
        %v4599 = vpop.f32.mrf.mxu0
        %v4600 = vadd.f32 0.0, %v4599
        %v4601 = vpop.f32.mrf.mxu0
        %v4602 = vpop.f32.mrf.mxu0
        %v4603 = vadd.f32 0.0, %v4602
        %v4604 = vpop.f32.mrf.mxu0
        %4605 = vmatprep.mubr.bf16.mxu0 %v3368
        %4606 = vmatmul.mubr.bf16.gmra.mxu0 %v3352
        %v4607 = vpop.f32.mrf.mxu0
        %v4608 = vadd.f32 0.0, %v4607
        %v4609 = vpop.f32.mrf.mxu0
        %v4610 = vpop.f32.mrf.mxu0
        %v4611 = vadd.f32 0.0, %v4610
        %v4612 = vpop.f32.mrf.mxu0
        %4613 = vmatprep.mubr.bf16.mxu0 %v3369
        %4614 = vmatmul.mubr.bf16.gmra.mxu0 %v3353
        %v4615 = vpop.f32.mrf.mxu0
        %v4616 = vadd.f32 0.0, %v4615
        %v4617 = vpop.f32.mrf.mxu0
        %v4618 = vpop.f32.mrf.mxu0
        %v4619 = vadd.f32 0.0, %v4618
        %v4620 = vpop.f32.mrf.mxu0
        %4621 = vmatprep.mubr.bf16.mxu0 %v3370
        %4622 = vmatmul.mubr.bf16.gmra.mxu0 %v3354
        %v4623 = vpop.f32.mrf.mxu0
        %v4624 = vadd.f32 0.0, %v4623
        %v4625 = vpop.f32.mrf.mxu0
        %v4626 = vpop.f32.mrf.mxu0
        %v4627 = vadd.f32 0.0, %v4626
        %v4628 = vpop.f32.mrf.mxu0
        %4629 = vmatprep.mubr.bf16.mxu0 %v3371
        %4630 = vmatmul.mubr.bf16.gmra.mxu0 %v3355
        %v4631 = vpop.f32.mrf.mxu0
        %v4632 = vadd.f32 0.0, %v4631
        %v4633 = vpop.f32.mrf.mxu0
        %v4634 = vpop.f32.mrf.mxu0
        %v4635 = vadd.f32 0.0, %v4634
        %v4636 = vpop.f32.mrf.mxu0
        %4637 = vmatprep.mubr.bf16.mxu0 %v3372
        %4638 = vmatmul.mubr.bf16.gmra.mxu0 %v3356
        %v4639 = vpop.f32.mrf.mxu0
        %v4640 = vadd.f32 0.0, %v4639
        %v4641 = vpop.f32.mrf.mxu0
        %v4642 = vpop.f32.mrf.mxu0
        %v4643 = vadd.f32 0.0, %v4642
        %v4644 = vpop.f32.mrf.mxu0
        %4645 = vmatprep.mubr.bf16.mxu0 %v3373
        %4646 = vmatmul.mubr.bf16.gmra.mxu0 %v3357
        %v4647 = vpop.f32.mrf.mxu0
        %v4648 = vadd.f32 0.0, %v4647
        %v4649 = vpop.f32.mrf.mxu0
        %v4650 = vpop.f32.mrf.mxu0
        %v4651 = vadd.f32 0.0, %v4650
        %v4652 = vpop.f32.mrf.mxu0
        %4653 = vmatprep.mubr.bf16.mxu0 %v3374
        %4654 = vmatmul.mubr.bf16.gmra.mxu0 %v3358
        %v4655 = vpop.f32.mrf.mxu0
        %v4656 = vadd.f32 0.0, %v4655
        %v4657 = vpop.f32.mrf.mxu0
        %v4658 = vpop.f32.mrf.mxu0
        %v4659 = vadd.f32 0.0, %v4658
        %v4660 = vpop.f32.mrf.mxu0
        %4661 = vmatprep.mubr.bf16.mxu0 %v3375
        %4662 = vmatmul.mubr.bf16.gmra.mxu0 %v3359
        %v4663 = vpop.f32.mrf.mxu0
        %v4664 = vadd.f32 0.0, %v4663
        %v4665 = vpop.f32.mrf.mxu0
        %v4666 = vpop.f32.mrf.mxu0
        %v4667 = vadd.f32 0.0, %v4666
        %v4668 = vpop.f32.mrf.mxu0
        %4669 = vmatprep.mubr.bf16.mxu0 %v3376
        %4670 = vmatmul.mubr.bf16.gmra.mxu0 %v3360
        %v4671 = vpop.f32.mrf.mxu0
        %v4672 = vadd.f32 0.0, %v4671
        %v4673 = vpop.f32.mrf.mxu0
        %v4674 = vpop.f32.mrf.mxu0
        %v4675 = vadd.f32 0.0, %v4674
        %v4676 = vpop.f32.mrf.mxu0
        %4677 = vmatprep.mubr.bf16.mxu0 %v3377
        %4678 = vmatmul.mubr.bf16.gmra.mxu0 %v3361
        %v4679 = vpop.f32.mrf.mxu0
        %v4680 = vadd.f32 0.0, %v4679
        %v4681 = vpop.f32.mrf.mxu0
        %v4682 = vpop.f32.mrf.mxu0
        %v4683 = vadd.f32 0.0, %v4682
        %v4684 = vpop.f32.mrf.mxu0
        %4685 = vmatprep.mubr.bf16.mxu0 %v3378
        %4686 = vmatmul.mubr.bf16.gmra.mxu0 %v3362
        %v4687 = vpop.f32.mrf.mxu0
        %v4688 = vadd.f32 0.0, %v4687
        %v4689 = vpop.f32.mrf.mxu0
        %v4690 = vpop.f32.mrf.mxu0
        %v4691 = vadd.f32 0.0, %v4690
        %v4692 = vpop.f32.mrf.mxu0
        %4693 = vmatprep.mubr.bf16.mxu0 %v3377
        %4694 = vmatmul.mubr.bf16.gmra.mxu0 %v3361
        %v4695 = vpop.f32.mrf.mxu0
        %v4696 = vadd.f32 0.0, %v4695
        %v4697 = vpop.f32.mrf.mxu0
        %v4698 = vpop.f32.mrf.mxu0
        %v4699 = vadd.f32 0.0, %v4698
        %v4700 = vpop.f32.mrf.mxu0
        %4701 = vdwg.mxu0
        %4702 = vmatprep.subr.bf16.mxu0 0
        %4703 = vmatpush1.bf16.msra.mxu0 %v4516
        %4704 = vmatprep.subr.bf16.mxu0 0
        %4705 = vmatpush1.bf16.msra.mxu0 %v4515
        %4706 = vmatprep.subr.bf16.mxu0 0
        %4707 = vmatpush1.bf16.msra.mxu0 %v4514
        %4708 = vmatprep.subr.bf16.mxu0 0
        %4709 = vmatpush1.bf16.msra.mxu0 %v4513
        %4710 = vmatprep.subr.bf16.mxu0 0
        %4711 = vmatpush1.bf16.msra.mxu0 %v4512
        %4712 = vmatprep.subr.bf16.mxu0 0
        %4713 = vmatpush1.bf16.msra.mxu0 %v4511
        %4714 = vmatprep.subr.bf16.mxu0 0
        %4715 = vmatpush1.bf16.msra.mxu0 %v4510
        %4716 = vmatprep.subr.bf16.mxu0 0
        %4717 = vmatpush1.bf16.msra.mxu0 %v4509
        %4718 = vmatprep.subr.bf16.mxu0 0
        %4719 = vmatpush2.bf16.msra.mxu0 0
        %4720 = vmatprep.subr.bf16.mxu0 0
        %4721 = vmatpush2.bf16.msra.mxu0 0
        %4722 = vmatprep.subr.bf16.mxu0 0
        %4723 = vmatpush2.bf16.msra.mxu0 0
        %4724 = vmatprep.subr.bf16.mxu0 0
        %4725 = vmatpush2.bf16.msra.mxu0 0
        %4726 = vmatprep.subr.bf16.mxu0 0
        %4727 = vmatpush2.bf16.msra.mxu0 0
        %4728 = vmatprep.subr.bf16.mxu0 0
        %4729 = vmatpush2.bf16.msra.mxu0 0
        %4730 = vmatprep.subr.bf16.mxu0 0
        %4731 = vmatpush2.bf16.msra.mxu0 0
        %4732 = vmatprep.subr.bf16.mxu0 0
        %4733 = vmatpush2.bf16.msra.mxu0 0
        %4734 = vmatprep.mubr.bf16.mxu0 0
        %4735 = vmatmul.mubr.bf16.gmra.mxu0 %v3380
        %v4736 = vpop.f32.mrf.mxu0
        %v4737 = vadd.f32 %v4576, %v4736
        %v4738 = vpop.f32.mrf.mxu0
        %v4739 = vpop.f32.mrf.mxu0
        %v4740 = vadd.f32 %v4579, %v4739
        %v4741 = vpop.f32.mrf.mxu0
        %4742 = vmatprep.mubr.bf16.mxu0 0
        %4743 = vmatmul.mubr.bf16.gmra.mxu0 %v3381
        %v4744 = vpop.f32.mrf.mxu0
        %v4745 = vadd.f32 %v4584, %v4744
        %v4746 = vpop.f32.mrf.mxu0
        %v4747 = vpop.f32.mrf.mxu0
        %v4748 = vadd.f32 %v4587, %v4747
        %v4749 = vpop.f32.mrf.mxu0
        %4750 = vmatprep.mubr.bf16.mxu0 0
        %4751 = vmatmul.mubr.bf16.gmra.mxu0 %v3382
        %v4752 = vpop.f32.mrf.mxu0
        %v4753 = vadd.f32 %v4592, %v4752
        %v4754 = vpop.f32.mrf.mxu0
        %v4755 = vpop.f32.mrf.mxu0
        %v4756 = vadd.f32 %v4595, %v4755
        %v4757 = vpop.f32.mrf.mxu0
        %4758 = vmatprep.mubr.bf16.mxu0 0
        %4759 = vmatmul.mubr.bf16.gmra.mxu0 %v3383
        %v4760 = vpop.f32.mrf.mxu0
        %v4761 = vadd.f32 %v4600, %v4760
        %v4762 = vpop.f32.mrf.mxu0
        %v4763 = vpop.f32.mrf.mxu0
        %v4764 = vadd.f32 %v4603, %v4763
        %v4765 = vpop.f32.mrf.mxu0
        %4766 = vmatprep.mubr.bf16.mxu0 0
        %4767 = vmatmul.mubr.bf16.gmra.mxu0 %v3384
        %v4768 = vpop.f32.mrf.mxu0
        %v4769 = vadd.f32 %v4608, %v4768
        %v4770 = vpop.f32.mrf.mxu0
        %v4771 = vpop.f32.mrf.mxu0
        %v4772 = vadd.f32 %v4611, %v4771
        %v4773 = vpop.f32.mrf.mxu0
        %4774 = vmatprep.mubr.bf16.mxu0 0
        %4775 = vmatmul.mubr.bf16.gmra.mxu0 %v3385
        %v4776 = vpop.f32.mrf.mxu0
        %v4777 = vadd.f32 %v4616, %v4776
        %v4778 = vpop.f32.mrf.mxu0
        %v4779 = vpop.f32.mrf.mxu0
        %v4780 = vadd.f32 %v4619, %v4779
        %v4781 = vpop.f32.mrf.mxu0
        %4782 = vmatprep.mubr.bf16.mxu0 0
        %4783 = vmatmul.mubr.bf16.gmra.mxu0 %v3386
        %v4784 = vpop.f32.mrf.mxu0
        %v4785 = vadd.f32 %v4624, %v4784
        %v4786 = vpop.f32.mrf.mxu0
        %v4787 = vpop.f32.mrf.mxu0
        %v4788 = vadd.f32 %v4627, %v4787
        %v4789 = vpop.f32.mrf.mxu0
        %4790 = vmatprep.mubr.bf16.mxu0 0
        %4791 = vmatmul.mubr.bf16.gmra.mxu0 %v3387
        %v4792 = vpop.f32.mrf.mxu0
        %v4793 = vadd.f32 %v4632, %v4792
        %v4794 = vpop.f32.mrf.mxu0
        %v4795 = vpop.f32.mrf.mxu0
        %v4796 = vadd.f32 %v4635, %v4795
        %v4797 = vpop.f32.mrf.mxu0
        %4798 = vmatprep.mubr.bf16.mxu0 0
        %4799 = vmatmul.mubr.bf16.gmra.mxu0 %v3388
        %v4800 = vpop.f32.mrf.mxu0
        %v4801 = vadd.f32 %v4640, %v4800
        %v4802 = vpop.f32.mrf.mxu0
        %v4803 = vpop.f32.mrf.mxu0
        %v4804 = vadd.f32 %v4643, %v4803
        %v4805 = vpop.f32.mrf.mxu0
        %4806 = vmatprep.mubr.bf16.mxu0 0
        %4807 = vmatmul.mubr.bf16.gmra.mxu0 %v3389
        %v4808 = vpop.f32.mrf.mxu0
        %v4809 = vadd.f32 %v4648, %v4808
        %v4810 = vpop.f32.mrf.mxu0
        %v4811 = vpop.f32.mrf.mxu0
        %v4812 = vadd.f32 %v4651, %v4811
        %v4813 = vpop.f32.mrf.mxu0
        %4814 = vmatprep.mubr.bf16.mxu0 0
        %4815 = vmatmul.mubr.bf16.gmra.mxu0 %v3390
        %v4816 = vpop.f32.mrf.mxu0
        %v4817 = vadd.f32 %v4656, %v4816
        %v4818 = vpop.f32.mrf.mxu0
        %v4819 = vpop.f32.mrf.mxu0
        %v4820 = vadd.f32 %v4659, %v4819
        %v4821 = vpop.f32.mrf.mxu0
        %4822 = vmatprep.mubr.bf16.mxu0 0
        %4823 = vmatmul.mubr.bf16.gmra.mxu0 %v3391
        %v4824 = vpop.f32.mrf.mxu0
        %v4825 = vadd.f32 %v4664, %v4824
        %v4826 = vpop.f32.mrf.mxu0
        %v4827 = vpop.f32.mrf.mxu0
        %v4828 = vadd.f32 %v4667, %v4827
        %v4829 = vpop.f32.mrf.mxu0
        %4830 = vmatprep.mubr.bf16.mxu0 0
        %4831 = vmatmul.mubr.bf16.gmra.mxu0 %v3392
        %v4832 = vpop.f32.mrf.mxu0
        %v4833 = vadd.f32 %v4672, %v4832
        %v4834 = vpop.f32.mrf.mxu0
        %v4835 = vpop.f32.mrf.mxu0
        %v4836 = vadd.f32 %v4675, %v4835
        %v4837 = vpop.f32.mrf.mxu0
        %4838 = vmatprep.mubr.bf16.mxu0 0
        %4839 = vmatmul.mubr.bf16.gmra.mxu0 %v3393
        %v4840 = vpop.f32.mrf.mxu0
        %v4841 = vadd.f32 %v4680, %v4840
        %v4842 = vpop.f32.mrf.mxu0
        %v4843 = vpop.f32.mrf.mxu0
        %v4844 = vadd.f32 %v4683, %v4843
        %v4845 = vpop.f32.mrf.mxu0
        %4846 = vmatprep.mubr.bf16.mxu0 0
        %4847 = vmatmul.mubr.bf16.gmra.mxu0 %v3394
        %v4848 = vpop.f32.mrf.mxu0
        %v4849 = vadd.f32 %v4688, %v4848
        %v4850 = vpop.f32.mrf.mxu0
        %v4851 = vpop.f32.mrf.mxu0
        %v4852 = vadd.f32 %v4691, %v4851
        %v4853 = vpop.f32.mrf.mxu0
        %4854 = vmatprep.mubr.bf16.mxu0 0
        %4855 = vmatmul.mubr.bf16.gmra.mxu0 %v3393
        %v4856 = vpop.f32.mrf.mxu0
        %v4857 = vadd.f32 %v4696, %v4856
        %v4858 = vpop.f32.mrf.mxu0
        %v4859 = vpop.f32.mrf.mxu0
        %v4860 = vadd.f32 %v4699, %v4859
        %v4861 = vpop.f32.mrf.mxu0
        %4862 = vdwg.mxu0
        %v4863 = vadd.f32 %v4365, %v4737
        %v4864 = vadd.f32 %v4366, %v4740
        %v4865 = vadd.f32 %v4367, %v4745
        %v4866 = vadd.f32 %v4368, %v4748
        %v4867 = vadd.f32 %v4369, %v4753
        %v4868 = vadd.f32 %v4370, %v4756
        %v4869 = vadd.f32 %v4371, %v4761
        %v4870 = vadd.f32 %v4372, %v4764
        %v4871 = vadd.f32 %v4373, %v4769
        %v4872 = vadd.f32 %v4374, %v4772
        %v4873 = vadd.f32 %v4375, %v4777
        %v4874 = vadd.f32 %v4376, %v4780
        %v4875 = vadd.f32 %v4377, %v4785
        %v4876 = vadd.f32 %v4378, %v4788
        %v4877 = vadd.f32 %v4379, %v4793
        %v4878 = vadd.f32 %v4380, %v4796
        %v4879 = vadd.f32 %v4381, %v4801
        %v4880 = vadd.f32 %v4382, %v4804
        %v4881 = vadd.f32 %v4383, %v4809
        %v4882 = vadd.f32 %v4384, %v4812
        %v4883 = vadd.f32 %v4385, %v4817
        %v4884 = vadd.f32 %v4386, %v4820
        %v4885 = vadd.f32 %v4387, %v4825
        %v4886 = vadd.f32 %v4388, %v4828
        %v4887 = vadd.f32 %v4389, %v4833
        %v4888 = vadd.f32 %v4390, %v4836
        %v4889 = vadd.f32 %v4391, %v4841
        %v4890 = vadd.f32 %v4392, %v4844
        %v4891 = vadd.f32 %v4393, %v4849
        %v4892 = vadd.f32 %v4394, %v4852
        %v4893 = vadd.f32 %v4395, %v4857
        %v4894 = vadd.f32 %v4396, %v4860
        %v4895 = vadd.f32 %v4863, %v4864
        %v4896 = vadd.f32 %v4895, %v4865
        %v4897 = vadd.f32 %v4896, %v4866
        %v4898 = vadd.f32 %v4897, %v4867
        %v4899 = vadd.f32 %v4898, %v4868
        %v4900 = vadd.f32 %v4899, %v4869
        %v4901 = vadd.f32 %v4900, %v4870
        %v4902 = vadd.f32 %v4901, %v4871
        %v4903 = vadd.f32 %v4902, %v4872
        %v4904 = vadd.f32 %v4903, %v4873
        %v4905 = vadd.f32 %v4904, %v4874
        %v4906 = vadd.f32 %v4905, %v4875
        %v4907 = vadd.f32 %v4906, %v4876
        %v4908 = vadd.f32 %v4907, %v4877
        %v4909 = vadd.f32 %v4908, %v4878
        %v4910 = vadd.f32 %v4909, %v4879
        %v4911 = vadd.f32 %v4910, %v4880
        %v4912 = vadd.f32 %v4911, %v4881
        %v4913 = vadd.f32 %v4912, %v4882
        %v4914 = vadd.f32 %v4913, %v4883
        %v4915 = vadd.f32 %v4914, %v4884
        %v4916 = vadd.f32 %v4915, %v4885
        %v4917 = vadd.f32 %v4916, %v4886
        %v4918 = vadd.f32 %v4917, %v4887
        %v4919 = vadd.f32 %v4918, %v4888
        %v4920 = vadd.f32 %v4919, %v4889
        %v4921 = vadd.f32 %v4920, %v4890
        %v4922 = vadd.f32 %v4921, %v4891
        %v4923 = vadd.f32 %v4922, %v4892
        %v4924 = vadd.f32 %v4923, %v4893
        %v4925 = vadd.f32 %v4924, %v4894
        %v4926 = vrot.slane %v4925, 4
        %v4927 = vadd.f32 %v4925, %v4926
        %v4928 = vrot.slane %v4927, 2
        %v4929 = vadd.f32 %v4927, %v4928
        %v4930 = vrot.slane %v4929, 1
        %v4931 = vadd.f32 %v4929, %v4930
        %v4932 = vmul.f32 %v4863, %v4863
        %v4933 = vmul.f32 %v4864, %v4864
        %v4934 = vmul.f32 %v4865, %v4865
        %v4935 = vmul.f32 %v4866, %v4866
        %v4936 = vmul.f32 %v4867, %v4867
        %v4937 = vmul.f32 %v4868, %v4868
        %v4938 = vmul.f32 %v4869, %v4869
        %v4939 = vmul.f32 %v4870, %v4870
        %v4940 = vmul.f32 %v4871, %v4871
        %v4941 = vmul.f32 %v4872, %v4872
        %v4942 = vmul.f32 %v4873, %v4873
        %v4943 = vmul.f32 %v4874, %v4874
        %v4944 = vmul.f32 %v4875, %v4875
        %v4945 = vmul.f32 %v4876, %v4876
        %v4946 = vmul.f32 %v4877, %v4877
        %v4947 = vmul.f32 %v4878, %v4878
        %v4948 = vmul.f32 %v4879, %v4879
        %v4949 = vmul.f32 %v4880, %v4880
        %v4950 = vmul.f32 %v4881, %v4881
        %v4951 = vmul.f32 %v4882, %v4882
        %v4952 = vmul.f32 %v4883, %v4883
        %v4953 = vmul.f32 %v4884, %v4884
        %v4954 = vmul.f32 %v4885, %v4885
        %v4955 = vmul.f32 %v4886, %v4886
        %v4956 = vmul.f32 %v4887, %v4887
        %v4957 = vmul.f32 %v4888, %v4888
        %v4958 = vmul.f32 %v4889, %v4889
        %v4959 = vmul.f32 %v4890, %v4890
        %v4960 = vmul.f32 %v4891, %v4891
        %v4961 = vmul.f32 %v4892, %v4892
        %v4962 = vmul.f32 %v4893, %v4893
        %v4963 = vmul.f32 %v4894, %v4894
        %v4964 = vadd.f32 %v4932, %v4933
        %v4965 = vadd.f32 %v4964, %v4934
        %v4966 = vadd.f32 %v4965, %v4935
        %v4967 = vadd.f32 %v4966, %v4936
        %v4968 = vadd.f32 %v4967, %v4937
        %v4969 = vadd.f32 %v4968, %v4938
        %v4970 = vadd.f32 %v4969, %v4939
        %v4971 = vadd.f32 %v4970, %v4940
        %v4972 = vadd.f32 %v4971, %v4941
        %v4973 = vadd.f32 %v4972, %v4942
        %v4974 = vadd.f32 %v4973, %v4943
        %v4975 = vadd.f32 %v4974, %v4944
        %v4976 = vadd.f32 %v4975, %v4945
        %v4977 = vadd.f32 %v4976, %v4946
        %v4978 = vadd.f32 %v4977, %v4947
        %v4979 = vadd.f32 %v4978, %v4948
        %v4980 = vadd.f32 %v4979, %v4949
        %v4981 = vadd.f32 %v4980, %v4950
        %v4982 = vadd.f32 %v4981, %v4951
        %v4983 = vadd.f32 %v4982, %v4952
        %v4984 = vadd.f32 %v4983, %v4953
        %v4985 = vadd.f32 %v4984, %v4954
        %v4986 = vadd.f32 %v4985, %v4955
        %v4987 = vadd.f32 %v4986, %v4956
        %v4988 = vadd.f32 %v4987, %v4957
        %v4989 = vadd.f32 %v4988, %v4958
        %v4990 = vadd.f32 %v4989, %v4959
        %v4991 = vadd.f32 %v4990, %v4960
        %v4992 = vadd.f32 %v4991, %v4961
        %v4993 = vadd.f32 %v4992, %v4962
        %v4994 = vadd.f32 %v4993, %v4963
        %v4995 = vrot.slane %v4994, 4
        %v4996 = vadd.f32 %v4994, %v4995
        %v4997 = vrot.slane %v4996, 2
        %v4998 = vadd.f32 %v4996, %v4997
        %v4999 = vrot.slane %v4998, 1
        %v5000 = vadd.f32 %v4998, %v4999
        %v5001 = vmul.f32 %v4931, 0.00390625
        %v5002 = vmul.f32 %v5000, 0.00390625
        %v5003 = vmul.f32 %v5001, %v5001
        %v5004 = vsub.f32 %v5002, %v5003
        %v5005 = vmax.f32 %v5004, 0.0
        %v5006 = vsub.f32 %v4863, %v5001
        %v5007 = vsub.f32 %v4864, %v5001
        %v5008 = vsub.f32 %v4865, %v5001
        %v5009 = vsub.f32 %v4866, %v5001
        %v5010 = vsub.f32 %v4867, %v5001
        %v5011 = vsub.f32 %v4868, %v5001
        %v5012 = vsub.f32 %v4869, %v5001
        %v5013 = vsub.f32 %v4870, %v5001
        %v5014 = vsub.f32 %v4871, %v5001
        %v5015 = vsub.f32 %v4872, %v5001
        %v5016 = vsub.f32 %v4873, %v5001
        %v5017 = vsub.f32 %v4874, %v5001
        %v5018 = vsub.f32 %v4875, %v5001
        %v5019 = vsub.f32 %v4876, %v5001
        %v5020 = vsub.f32 %v4877, %v5001
        %v5021 = vsub.f32 %v4878, %v5001
        %v5022 = vsub.f32 %v4879, %v5001
        %v5023 = vsub.f32 %v4880, %v5001
        %v5024 = vsub.f32 %v4881, %v5001
        %v5025 = vsub.f32 %v4882, %v5001
        %v5026 = vsub.f32 %v4883, %v5001
        %v5027 = vsub.f32 %v4884, %v5001
        %v5028 = vsub.f32 %v4885, %v5001
        %v5029 = vsub.f32 %v4886, %v5001
        %v5030 = vsub.f32 %v4887, %v5001
        %v5031 = vsub.f32 %v4888, %v5001
        %v5032 = vsub.f32 %v4889, %v5001
        %v5033 = vsub.f32 %v4890, %v5001
        %v5034 = vsub.f32 %v4891, %v5001
        %v5035 = vsub.f32 %v4892, %v5001
        %v5036 = vsub.f32 %v4893, %v5001
        %v5037 = vsub.f32 %v4894, %v5001
        %v5038 = vadd.f32 %v5005, 1e-05
        %v5039 = vrsqrt.pop %v5038
        %v5040 = vmul.f32 %v5006, %v5039
        %v5041 = vmul.f32 %v5007, %v5039
        %v5042 = vmul.f32 %v5008, %v5039
        %v5043 = vmul.f32 %v5009, %v5039
        %v5044 = vmul.f32 %v5010, %v5039
        %v5045 = vmul.f32 %v5011, %v5039
        %v5046 = vmul.f32 %v5012, %v5039
        %v5047 = vmul.f32 %v5013, %v5039
        %v5048 = vmul.f32 %v5014, %v5039
        %v5049 = vmul.f32 %v5015, %v5039
        %v5050 = vmul.f32 %v5016, %v5039
        %v5051 = vmul.f32 %v5017, %v5039
        %v5052 = vmul.f32 %v5018, %v5039
        %v5053 = vmul.f32 %v5019, %v5039
        %v5054 = vmul.f32 %v5020, %v5039
        %v5055 = vmul.f32 %v5021, %v5039
        %v5056 = vmul.f32 %v5022, %v5039
        %v5057 = vmul.f32 %v5023, %v5039
        %v5058 = vmul.f32 %v5024, %v5039
        %v5059 = vmul.f32 %v5025, %v5039
        %v5060 = vmul.f32 %v5026, %v5039
        %v5061 = vmul.f32 %v5027, %v5039
        %v5062 = vmul.f32 %v5028, %v5039
        %v5063 = vmul.f32 %v5029, %v5039
        %v5064 = vmul.f32 %v5030, %v5039
        %v5065 = vmul.f32 %v5031, %v5039
        %v5066 = vmul.f32 %v5032, %v5039
        %v5067 = vmul.f32 %v5033, %v5039
        %v5068 = vmul.f32 %v5034, %v5039
        %v5069 = vmul.f32 %v5035, %v5039
        %v5070 = vmul.f32 %v5036, %v5039
        %v5071 = vmul.f32 %v5037, %v5039
        %v5072 = vadd.f32 %v1044, %v5040
        %v5073 = vadd.f32 %v1045, %v5041
        %v5074 = vadd.f32 %v1046, %v5042
        %v5075 = vadd.f32 %v1047, %v5043
        %v5076 = vadd.f32 %v1048, %v5044
        %v5077 = vadd.f32 %v1049, %v5045
        %v5078 = vadd.f32 %v1050, %v5046
        %v5079 = vadd.f32 %v1051, %v5047
        %v5080 = vadd.f32 %v1052, %v5048
        %v5081 = vadd.f32 %v1053, %v5049
        %v5082 = vadd.f32 %v1054, %v5050
        %v5083 = vadd.f32 %v1055, %v5051
        %v5084 = vadd.f32 %v1056, %v5052
        %v5085 = vadd.f32 %v1057, %v5053
        %v5086 = vadd.f32 %v1058, %v5054
        %v5087 = vadd.f32 %v1059, %v5055
        %v5088 = vadd.f32 %v1060, %v5056
        %v5089 = vadd.f32 %v1061, %v5057
        %v5090 = vadd.f32 %v1062, %v5058
        %v5091 = vadd.f32 %v1063, %v5059
        %v5092 = vadd.f32 %v1064, %v5060
        %v5093 = vadd.f32 %v1065, %v5061
        %v5094 = vadd.f32 %v1066, %v5062
        %v5095 = vadd.f32 %v1067, %v5063
        %v5096 = vadd.f32 %v1068, %v5064
        %v5097 = vadd.f32 %v1069, %v5065
        %v5098 = vadd.f32 %v1070, %v5066
        %v5099 = vadd.f32 %v1071, %v5067
        %v5100 = vadd.f32 %v1072, %v5068
        %v5101 = vadd.f32 %v1073, %v5069
        %v5102 = vadd.f32 %v1074, %v5070
        %v5103 = vadd.f32 %v1075, %v5071
        %5104 = vst [vmem:[%s271] sm:$0xff] %v5072
        %5105 = vst [vmem:[%s271 + $0x8] sm:$0xff] %v5073
        %5106 = vst [vmem:[%s271 + $0x10] sm:$0xff] %v5074
        %5107 = vst [vmem:[%s271 + $0x18] sm:$0xff] %v5075
        %5108 = vst [vmem:[%s271 + $0x20] sm:$0xff] %v5076
        %5109 = vst [vmem:[%s271 + $0x28] sm:$0xff] %v5077
        %5110 = vst [vmem:[%s271 + $0x30] sm:$0xff] %v5078
        %5111 = vst [vmem:[%s271 + $0x38] sm:$0xff] %v5079
        %5112 = vst [vmem:[%s271 + $0x40] sm:$0xff] %v5080
        %5113 = vst [vmem:[%s271 + $0x48] sm:$0xff] %v5081
        %5114 = vst [vmem:[%s271 + $0x50] sm:$0xff] %v5082
        %5115 = vst [vmem:[%s271 + $0x58] sm:$0xff] %v5083
        %5116 = vst [vmem:[%s271 + $0x60] sm:$0xff] %v5084
        %5117 = vst [vmem:[%s271 + $0x68] sm:$0xff] %v5085
        %5118 = vst [vmem:[%s271 + $0x70] sm:$0xff] %v5086
        %5119 = vst [vmem:[%s271 + $0x78] sm:$0xff] %v5087
        %5120 = vst [vmem:[%s271 + $0x80] sm:$0xff] %v5088
        %5121 = vst [vmem:[%s271 + $0x88] sm:$0xff] %v5089
        %5122 = vst [vmem:[%s271 + $0x90] sm:$0xff] %v5090
        %5123 = vst [vmem:[%s271 + $0x98] sm:$0xff] %v5091
        %5124 = vst [vmem:[%s271 + $0xa0] sm:$0xff] %v5092
        %5125 = vst [vmem:[%s271 + $0xa8] sm:$0xff] %v5093
        %5126 = vst [vmem:[%s271 + $0xb0] sm:$0xff] %v5094
        %5127 = vst [vmem:[%s271 + $0xb8] sm:$0xff] %v5095
        %5128 = vst [vmem:[%s271 + $0xc0] sm:$0xff] %v5096
        %5129 = vst [vmem:[%s271 + $0xc8] sm:$0xff] %v5097
        %5130 = vst [vmem:[%s271 + $0xd0] sm:$0xff] %v5098
        %5131 = vst [vmem:[%s271 + $0xd8] sm:$0xff] %v5099
        %5132 = vst [vmem:[%s271 + $0xe0] sm:$0xff] %v5100
        %5133 = vst [vmem:[%s271 + $0xe8] sm:$0xff] %v5101
        %5134 = vst [vmem:[%s271 + $0xf0] sm:$0xff] %v5102
        %5135 = vst [vmem:[%s271 + $0xf8] sm:$0xff] %v5103
        %s5136 = sand.u32 %s141, 1
        %s5137 = scalar_lea.sflag [#allocation4], %s5136
        %s5138 = sand.u32 %s141, 1
        %s5139 = smul.addr %s5138, 256
        %s5140 = scalar_lea.vmem [#allocation8], %s5139
        // Predicated region
        $region53: #{tpu_custom_call.1} parent=39 // pred_check
          %p5141 = pneg %p151
        $region54: #{tpu_custom_call.1} parent=39 // pred_check_branch
          %5143 = sbr.rel (%p5141) target = $region56
        $region55: #{tpu_custom_call.1} parent=39 // pred_region
          %s5145 = ssub.s32 4096, 4096
          %5146 = vsyncadd %s5137, %s5145
          %s5147 = smul.addr %s23, 32
          %s5148 = smul.addr %s5147, 128
          %s5149 = scalar_lea.hbm %s5, %s5148
          %s5150 = sshll.u32 %s5140, 4
          %s5151 = int_to_ptr.vmem [resolvable:$true] %s5150
          %5156 = dma.vmem_to_hbm [thread:$0]  %s5151, 4096, %s5149, %s5137, 128, 128, 8
        $region56: #{tpu_custom_call.1} parent=39 // pred_fallthru
          _
      $region40: #{tpu_custom_call.1} parent=5 // pred_fallthru
        _
      %p5157 = scmp.le.s32.totalorder 2, %s18
      // Predicated region
      $region57: #{tpu_custom_call.1} parent=5 // pred_check
        %p5158 = pneg %p5157
      $region58: #{tpu_custom_call.1} parent=5 // pred_check_branch
        %5160 = sbr.rel (%p5158) target = $region60
      $region59: #{tpu_custom_call.1} parent=5 // pred_region
        %s5161 = ssub.s32 %s18, 2
        // Predicated region
        $region61: #{tpu_custom_call.1} parent=59 // pred_check
          %p5162 = pneg %p157
        $region62: #{tpu_custom_call.1} parent=59 // pred_check_branch
          %5164 = sbr.rel (%p5162) target = $region64
        $region63: #{tpu_custom_call.1} parent=59 // pred_region
          %s5165 = sand.u32 %s142, 1
          %s5166 = scalar_lea.sflag [#allocation4], %s5165
          %s5167 = sand.u32 %s142, 1
          %s5168 = smul.addr %s5167, 256
          %s5169 = scalar_lea.vmem [#allocation8], %s5168
          %5170 = dma.done %s5166, 4096
        $region64: #{tpu_custom_call.1} parent=59 // pred_fallthru
          _
      $region60: #{tpu_custom_call.1} parent=5 // pred_fallthru
        _
    $region6: #{tpu_custom_call.1} parent=1 // loop_footer
      %s22 = sadd.s32 1, %s18
    $region7: #{tpu_custom_call.1} parent=1 // loop_footer_branch
      %17 = sbr.rel target = $region3
    $region8: #{tpu_custom_call.1} parent=1 // loop_exit
      _
    %5171 = vsyncpa [#allocation3], 1
    %s5172 = scalar_lea.sflag [#allocation3], 1
    %5173 = vsyncpa %s5172, 1
    %5174 = vsyncpa [#allocation6], 1
    %5175 = vsyncpa [#allocation4], 1
    %s5176 = scalar_lea.sflag [#allocation4], 1
    %5177 = vsyncpa %s5176, 1

</llo_original>
